<compile_context>
chip_gen: v7x
topology: tpu7x:2x2x1
jax: 0.10.0
libtpu: 0.0.40
codegen_flags: <defaults>
</compile_context>

<pallas_src>
import jax
import jax.numpy as jnp
from jax import lax
from jax.experimental import pallas as pl
from jax.experimental.pallas import tpu as pltpu

LANE = 128
H_IN = 11                                           # implied input spatial size
CONV_CH = [(1, 4), (4, 8), (8, 16), (16, 8), (8, 4)]  # (cin, cout) per conv layer
N_LINEAR_IN = 4


def _cdiv(a, b):
    return -(-a // b)


def _conv3x3_relu(x_ref, y_ref, w_ref, b_ref, w_off, b_off, cin, cout, ho, wo):
    """Valid 3x3 conv + bias + ReLU with batch on the (sublane, lane) axes.

    x_ref: (cin, ho+2, wo+2, SUB, LANE) VMEM ref (input activations)
    y_ref: (cout, ho, wo, SUB, LANE)    VMEM ref (output activations)
    w_ref: flat f32 SMEM ref, OIHW weights for this layer start at w_off
    b_ref: flat f32 SMEM ref, biases for this layer start at b_off
    """
    sub = x_ref.shape[-2]

    def co_body(co, carry):
        bias = b_ref[b_off + co]

        def ci_body(ci, acc):
            base = w_off + (co * cin + ci) * 9
            # (dy, dx) taps unrolled in Python -> 9 full-vreg MAC statements per
            # iteration (good ILP); ci/cout stay as fori_loops to bound the
            # static program size.
            for dy in range(3):
                for dx in range(3):
                    w = w_ref[base + dy * 3 + dx]                 # SMEM scalar
                    patch = x_ref[ci, pl.ds(dy, ho), pl.ds(dx, wo), :, :]
                    acc = acc + patch * w
            return acc

        # Initialize the accumulator directly with the bias (saves the zero add
        # and the separate bias add).
        acc0 = jnp.full((ho, wo, sub, LANE), bias, dtype=jnp.float32)
        acc = lax.fori_loop(0, cin, ci_body, acc0)
        y_ref[co, :, :, :, :] = jnp.maximum(acc, 0.0)
        return carry

    lax.fori_loop(0, cout, co_body, 0)


def cnn_kernel(x_ref, w_ref, b_ref, o_ref, a1, a2, a3, a4, a5):
    sub = x_ref.shape[-2]
    acts = [x_ref, a1, a2, a3, a4, a5]
    h = H_IN
    w_off = 0
    b_off = 0
    for li, (cin, cout) in enumerate(CONV_CH):
        ho = h - 2
        _conv3x3_relu(acts[li], acts[li + 1], w_ref, b_ref, w_off, b_off,
                      cin, cout, ho, ho)
        w_off += cout * cin * 9
        b_off += cout
        h = ho
    # Flatten (spatial is 1x1, so flatten order == channel order, matching
    # torch.nn.Flatten) + Linear(4, 1) + sigmoid.  Output is lane-dense.
    z = jnp.full((sub, LANE), b_ref[b_off], dtype=jnp.float32)
    for co in range(N_LINEAR_IN):
        z = z + a5[co, 0, 0, :, :] * w_ref[w_off + co]
    o_ref[:, :] = jax.nn.sigmoid(z)


def _flatten_params(params):
    """Concatenate all weights (OIHW conv + linear) / biases into flat f32 arrays."""
    conv = params[:5]
    wl, bl = params[5]
    w_all = jnp.concatenate([w.reshape(-1) for w, _ in conv] + [wl.reshape(-1)])
    b_all = jnp.concatenate([b.reshape(-1) for _, b in conv] + [bl.reshape(-1)])
    return w_all.astype(jnp.float32), b_all.astype(jnp.float32)


def cnn_forward(x_nchw, params):
    """x_nchw: (N, 1, 11, 11) float32 (NCHW, like PyTorch). Returns (N, 1) f32."""
    assert x_nchw.shape[1:] == (1, H_IN, H_IN)
    N = x_nchw.shape[0]
    w_all, b_all = _flatten_params(params)

    sub = max(1, min(8, _cdiv(N, LANE)))      # full (8,128) vregs once N >= 1024
    btile = sub * LANE
    num_tiles = _cdiv(N, btile)
    n_pad = num_tiles * btile

    x = x_nchw.astype(jnp.float32)
    if n_pad != N:
        x = jnp.pad(x, ((0, n_pad - N), (0, 0), (0, 0), (0, 0)))
    # Batch -> (sublane, lane): (n_pad,1,11,11) -> (T, C=1, H, W, SUB, LANE).
    # Layout plumbing is done once here in the wrapper (XLA), not in-kernel.
    x = x.reshape(num_tiles, sub, LANE, 1, H_IN, H_IN).transpose(0, 3, 4, 5, 1, 2)

    spatial = [H_IN - 2 * (i + 1) for i in range(5)]          # 9, 7, 5, 3, 1
    scratch = [pltpu.VMEM((cout, s, s, sub, LANE), jnp.float32)
               for (cin, cout), s in zip(CONV_CH, spatial)]   # ~4.7 MiB at SUB=8

    smem_spec = pl.BlockSpec(memory_space=pltpu.MemorySpace.SMEM)

    out = pl.pallas_call(
        cnn_kernel,
        out_shape=jax.ShapeDtypeStruct((num_tiles, sub, LANE), jnp.float32),
        grid_spec=pltpu.PrefetchScalarGridSpec(
            num_scalar_prefetch=0,
            grid=(num_tiles,),
            in_specs=[
                pl.BlockSpec((None, 1, H_IN, H_IN, sub, LANE),
                             lambda t: (t, 0, 0, 0, 0, 0)),
                smem_spec,   # flat conv + linear weights (f32 scalars in SMEM)
                smem_spec,   # flat biases
            ],
            out_specs=pl.BlockSpec((None, sub, LANE), lambda t: (t, 0, 0)),
            scratch_shapes=scratch,
        ),
        compiler_params=pltpu.CompilerParams(
            dimension_semantics=("parallel",)),
    )(x, w_all, b_all)

    return out.reshape(n_pad)[:N].reshape(N, 1)


def init_params(key):
    """Deterministic PyTorch-style init; conv weights OIHW, linear weight (1, 4)."""
    conv_shapes = [(co, ci, 3, 3) for ci, co in CONV_CH]
    keys = jax.random.split(key, 2 * len(conv_shapes) + 2)
    params = []
    for i, shp in enumerate(conv_shapes):
        fan_in = shp[1] * shp[2] * shp[3]
        bound = 1.0 / jnp.sqrt(float(fan_in))
        w = jax.random.uniform(keys[2 * i], shp, jnp.float32, -bound, bound)
        b = jax.random.uniform(keys[2 * i + 1], (shp[0],), jnp.float32, -bound, bound)
        params.append((w, b))
    bound = 1.0 / jnp.sqrt(float(N_LINEAR_IN))
    wl = jax.random.uniform(keys[-2], (1, N_LINEAR_IN), jnp.float32, -bound, bound)
    bl = jax.random.uniform(keys[-1], (1,), jnp.float32, -bound, bound)
    params.append((wl, bl))
    return params


def reference_forward(x_nchw, params):
    """Plain-JAX NCHW/OIHW reference, matching the PyTorch module."""
    h = x_nchw.astype(jnp.float32)
    for w, b in params[:5]:
        h = lax.conv_general_dilated(
            h, w, window_strides=(1, 1), padding="VALID",
            dimension_numbers=("NCHW", "OIHW", "NCHW"))
        h = jax.nn.relu(h + b.reshape(1, -1, 1, 1))
    flat = h.reshape(h.shape[0], -1)                  # (N, 4)
    wl, bl = params[5]
    return jax.nn.sigmoid(flat @ wl.T + bl)


if __name__ == "__main__":
    key = jax.random.PRNGKey(0)
    k_x, k_p, k_x2 = jax.random.split(key, 3)
    params = init_params(k_p)

    # Small demo batch (NCHW, like PyTorch).
    x_small = jax.random.normal(k_x, (2, 1, H_IN, H_IN), jnp.float32)
    out_small = jax.block_until_ready(cnn_forward(x_small, params))
    ref_small = jax.block_until_ready(reference_forward(x_small, params))
    assert out_small.shape == (2, 1)
    assert jnp.allclose(out_small, ref_small, atol=1e-5, rtol=1e-5), (out_small, ref_small)

    # Larger batch: exercises full (8,128) batch tiles, 2 grid steps and padding.
    x_big = jax.random.normal(k_x2, (1100, 1, H_IN, H_IN), jnp.float32)
    out_big = jax.block_until_ready(cnn_forward(x_big, params))
    ref_big = jax.block_until_ready(reference_forward(x_big, params))
    assert out_big.shape == (1100, 1)
    assert jnp.allclose(out_big, ref_big, atol=1e-5, rtol=1e-5), float(
        jnp.max(jnp.abs(out_big - ref_big)))

    print("KERNEL_OK")
</pallas_src>

<mosaic_0001>
module attributes {stable_mosaic.version = 11 : i64} {
  func.func @cnn_kernel(%arg0: i32, %arg1: memref<1x1x11x11x1x128xf32, #tpu.memory_space<vmem>>, %arg2: memref<2920xf32, #tpu.memory_space<smem>>, %arg3: memref<41xf32, #tpu.memory_space<smem>>, %arg4: memref<1x1x128xf32, #tpu.memory_space<vmem>>, %arg5: memref<4x9x9x1x128xf32, #tpu.memory_space<vmem>>, %arg6: memref<8x7x7x1x128xf32, #tpu.memory_space<vmem>>, %arg7: memref<16x5x5x1x128xf32, #tpu.memory_space<vmem>>, %arg8: memref<8x3x3x1x128xf32, #tpu.memory_space<vmem>>, %arg9: memref<4x1x1x1x128xf32, #tpu.memory_space<vmem>>) attributes {dimension_semantics = [#tpu.dimension_semantics<parallel>], iteration_bounds = array<i64: 1>, scalar_prefetch = 0 : i64, scratch_operands = 5 : i64, tpu.core_type = #tpu.core_type<tc>, window_params = [{transform_indices = @transform_0, window_bounds = array<i64: 1, 1, 11, 11, 1, 128>}, {transform_indices = @transform_1, window_bounds = array<i64: 2920>}, {transform_indices = @transform_2, window_bounds = array<i64: 41>}, {transform_indices = @transform_3, window_bounds = array<i64: 1, 1, 128>}]} {
    %c0_i32 = arith.constant 0 : i32
    %c4_i32 = arith.constant 4 : i32
    %0 = arith.addi %c0_i32, %c4_i32 : i32
    %c1_i32 = arith.constant 1 : i32
    scf.for %arg10 = %c0_i32 to %0 step %c1_i32  : i32 {
      %c0_i32_34 = arith.constant 0 : i32
      %39 = arith.addi %c0_i32_34, %arg10 : i32
      %40 = arith.index_cast %39 : i32 to index
      %41 = memref.load %arg3[%40] : memref<41xf32, #tpu.memory_space<smem>>
      %42 = vector.broadcast %41 : f32 to vector<9x9x1x128xf32>
      %c0_i32_35 = arith.constant 0 : i32
      %c1_i32_36 = arith.constant 1 : i32
      %43 = arith.muli %arg10, %c1_i32_36 : i32
      %44 = arith.addi %43, %c0_i32_35 : i32
      %c9_i32 = arith.constant 9 : i32
      %45 = arith.muli %44, %c9_i32 : i32
      %c0_i32_37 = arith.constant 0 : i32
      %46 = arith.addi %c0_i32_37, %45 : i32
      %c0_i32_38 = arith.constant 0 : i32
      %47 = arith.addi %46, %c0_i32_38 : i32
      %c0_i32_39 = arith.constant 0 : i32
      %48 = arith.addi %47, %c0_i32_39 : i32
      %49 = arith.index_cast %48 : i32 to index
      %50 = memref.load %arg2[%49] : memref<2920xf32, #tpu.memory_space<smem>>
      %c0_40 = arith.constant 0 : index
      %51 = arith.index_cast %c0_i32_35 : i32 to index
      %c0_41 = arith.constant 0 : index
      %c0_42 = arith.constant 0 : index
      %c0_43 = arith.constant 0 : index
      %c0_44 = arith.constant 0 : index
      %52 = vector.load %arg1[%c0_40, %51, %c0_41, %c0_42, %c0_43, %c0_44] : memref<1x1x11x11x1x128xf32, #tpu.memory_space<vmem>>, vector<1x1x9x9x1x128xf32>
      %53 = vector.shape_cast %52 : vector<1x1x9x9x1x128xf32> to vector<9x9x1x128xf32>
      %54 = vector.broadcast %50 : f32 to vector<9x9x1x128xf32>
      %55 = arith.mulf %53, %54 : vector<9x9x1x128xf32>
      %56 = arith.addf %42, %55 : vector<9x9x1x128xf32>
      %c0_i32_45 = arith.constant 0 : i32
      %57 = arith.addi %46, %c0_i32_45 : i32
      %c1_i32_46 = arith.constant 1 : i32
      %58 = arith.addi %57, %c1_i32_46 : i32
      %59 = arith.index_cast %58 : i32 to index
      %60 = memref.load %arg2[%59] : memref<2920xf32, #tpu.memory_space<smem>>
      %c0_47 = arith.constant 0 : index
      %61 = arith.index_cast %c0_i32_35 : i32 to index
      %c0_48 = arith.constant 0 : index
      %c1_49 = arith.constant 1 : index
      %c0_50 = arith.constant 0 : index
      %c0_51 = arith.constant 0 : index
      %62 = vector.load %arg1[%c0_47, %61, %c0_48, %c1_49, %c0_50, %c0_51] : memref<1x1x11x11x1x128xf32, #tpu.memory_space<vmem>>, vector<1x1x9x9x1x128xf32>
      %63 = vector.shape_cast %62 : vector<1x1x9x9x1x128xf32> to vector<9x9x1x128xf32>
      %64 = vector.broadcast %60 : f32 to vector<9x9x1x128xf32>
      %65 = arith.mulf %63, %64 : vector<9x9x1x128xf32>
      %66 = arith.addf %56, %65 : vector<9x9x1x128xf32>
      %c0_i32_52 = arith.constant 0 : i32
      %67 = arith.addi %46, %c0_i32_52 : i32
      %c2_i32 = arith.constant 2 : i32
      %68 = arith.addi %67, %c2_i32 : i32
      %69 = arith.index_cast %68 : i32 to index
      %70 = memref.load %arg2[%69] : memref<2920xf32, #tpu.memory_space<smem>>
      %c0_53 = arith.constant 0 : index
      %71 = arith.index_cast %c0_i32_35 : i32 to index
      %c0_54 = arith.constant 0 : index
      %c2_55 = arith.constant 2 : index
      %c0_56 = arith.constant 0 : index
      %c0_57 = arith.constant 0 : index
      %72 = vector.load %arg1[%c0_53, %71, %c0_54, %c2_55, %c0_56, %c0_57] : memref<1x1x11x11x1x128xf32, #tpu.memory_space<vmem>>, vector<1x1x9x9x1x128xf32>
      %73 = vector.shape_cast %72 : vector<1x1x9x9x1x128xf32> to vector<9x9x1x128xf32>
      %74 = vector.broadcast %70 : f32 to vector<9x9x1x128xf32>
      %75 = arith.mulf %73, %74 : vector<9x9x1x128xf32>
      %76 = arith.addf %66, %75 : vector<9x9x1x128xf32>
      %c3_i32 = arith.constant 3 : i32
      %77 = arith.addi %46, %c3_i32 : i32
      %c0_i32_58 = arith.constant 0 : i32
      %78 = arith.addi %77, %c0_i32_58 : i32
      %79 = arith.index_cast %78 : i32 to index
      %80 = memref.load %arg2[%79] : memref<2920xf32, #tpu.memory_space<smem>>
      %c0_59 = arith.constant 0 : index
      %81 = arith.index_cast %c0_i32_35 : i32 to index
      %c1_60 = arith.constant 1 : index
      %c0_61 = arith.constant 0 : index
      %c0_62 = arith.constant 0 : index
      %c0_63 = arith.constant 0 : index
      %82 = vector.load %arg1[%c0_59, %81, %c1_60, %c0_61, %c0_62, %c0_63] : memref<1x1x11x11x1x128xf32, #tpu.memory_space<vmem>>, vector<1x1x9x9x1x128xf32>
      %83 = vector.shape_cast %82 : vector<1x1x9x9x1x128xf32> to vector<9x9x1x128xf32>
      %84 = vector.broadcast %80 : f32 to vector<9x9x1x128xf32>
      %85 = arith.mulf %83, %84 : vector<9x9x1x128xf32>
      %86 = arith.addf %76, %85 : vector<9x9x1x128xf32>
      %c3_i32_64 = arith.constant 3 : i32
      %87 = arith.addi %46, %c3_i32_64 : i32
      %c1_i32_65 = arith.constant 1 : i32
      %88 = arith.addi %87, %c1_i32_65 : i32
      %89 = arith.index_cast %88 : i32 to index
      %90 = memref.load %arg2[%89] : memref<2920xf32, #tpu.memory_space<smem>>
      %c0_66 = arith.constant 0 : index
      %91 = arith.index_cast %c0_i32_35 : i32 to index
      %c1_67 = arith.constant 1 : index
      %c1_68 = arith.constant 1 : index
      %c0_69 = arith.constant 0 : index
      %c0_70 = arith.constant 0 : index
      %92 = vector.load %arg1[%c0_66, %91, %c1_67, %c1_68, %c0_69, %c0_70] : memref<1x1x11x11x1x128xf32, #tpu.memory_space<vmem>>, vector<1x1x9x9x1x128xf32>
      %93 = vector.shape_cast %92 : vector<1x1x9x9x1x128xf32> to vector<9x9x1x128xf32>
      %94 = vector.broadcast %90 : f32 to vector<9x9x1x128xf32>
      %95 = arith.mulf %93, %94 : vector<9x9x1x128xf32>
      %96 = arith.addf %86, %95 : vector<9x9x1x128xf32>
      %c3_i32_71 = arith.constant 3 : i32
      %97 = arith.addi %46, %c3_i32_71 : i32
      %c2_i32_72 = arith.constant 2 : i32
      %98 = arith.addi %97, %c2_i32_72 : i32
      %99 = arith.index_cast %98 : i32 to index
      %100 = memref.load %arg2[%99] : memref<2920xf32, #tpu.memory_space<smem>>
      %c0_73 = arith.constant 0 : index
      %101 = arith.index_cast %c0_i32_35 : i32 to index
      %c1_74 = arith.constant 1 : index
      %c2_75 = arith.constant 2 : index
      %c0_76 = arith.constant 0 : index
      %c0_77 = arith.constant 0 : index
      %102 = vector.load %arg1[%c0_73, %101, %c1_74, %c2_75, %c0_76, %c0_77] : memref<1x1x11x11x1x128xf32, #tpu.memory_space<vmem>>, vector<1x1x9x9x1x128xf32>
      %103 = vector.shape_cast %102 : vector<1x1x9x9x1x128xf32> to vector<9x9x1x128xf32>
      %104 = vector.broadcast %100 : f32 to vector<9x9x1x128xf32>
      %105 = arith.mulf %103, %104 : vector<9x9x1x128xf32>
      %106 = arith.addf %96, %105 : vector<9x9x1x128xf32>
      %c6_i32 = arith.constant 6 : i32
      %107 = arith.addi %46, %c6_i32 : i32
      %c0_i32_78 = arith.constant 0 : i32
      %108 = arith.addi %107, %c0_i32_78 : i32
      %109 = arith.index_cast %108 : i32 to index
      %110 = memref.load %arg2[%109] : memref<2920xf32, #tpu.memory_space<smem>>
      %c0_79 = arith.constant 0 : index
      %111 = arith.index_cast %c0_i32_35 : i32 to index
      %c2_80 = arith.constant 2 : index
      %c0_81 = arith.constant 0 : index
      %c0_82 = arith.constant 0 : index
      %c0_83 = arith.constant 0 : index
      %112 = vector.load %arg1[%c0_79, %111, %c2_80, %c0_81, %c0_82, %c0_83] : memref<1x1x11x11x1x128xf32, #tpu.memory_space<vmem>>, vector<1x1x9x9x1x128xf32>
      %113 = vector.shape_cast %112 : vector<1x1x9x9x1x128xf32> to vector<9x9x1x128xf32>
      %114 = vector.broadcast %110 : f32 to vector<9x9x1x128xf32>
      %115 = arith.mulf %113, %114 : vector<9x9x1x128xf32>
      %116 = arith.addf %106, %115 : vector<9x9x1x128xf32>
      %c6_i32_84 = arith.constant 6 : i32
      %117 = arith.addi %46, %c6_i32_84 : i32
      %c1_i32_85 = arith.constant 1 : i32
      %118 = arith.addi %117, %c1_i32_85 : i32
      %119 = arith.index_cast %118 : i32 to index
      %120 = memref.load %arg2[%119] : memref<2920xf32, #tpu.memory_space<smem>>
      %c0_86 = arith.constant 0 : index
      %121 = arith.index_cast %c0_i32_35 : i32 to index
      %c2_87 = arith.constant 2 : index
      %c1_88 = arith.constant 1 : index
      %c0_89 = arith.constant 0 : index
      %c0_90 = arith.constant 0 : index
      %122 = vector.load %arg1[%c0_86, %121, %c2_87, %c1_88, %c0_89, %c0_90] : memref<1x1x11x11x1x128xf32, #tpu.memory_space<vmem>>, vector<1x1x9x9x1x128xf32>
      %123 = vector.shape_cast %122 : vector<1x1x9x9x1x128xf32> to vector<9x9x1x128xf32>
      %124 = vector.broadcast %120 : f32 to vector<9x9x1x128xf32>
      %125 = arith.mulf %123, %124 : vector<9x9x1x128xf32>
      %126 = arith.addf %116, %125 : vector<9x9x1x128xf32>
      %c6_i32_91 = arith.constant 6 : i32
      %127 = arith.addi %46, %c6_i32_91 : i32
      %c2_i32_92 = arith.constant 2 : i32
      %128 = arith.addi %127, %c2_i32_92 : i32
      %129 = arith.index_cast %128 : i32 to index
      %130 = memref.load %arg2[%129] : memref<2920xf32, #tpu.memory_space<smem>>
      %c0_93 = arith.constant 0 : index
      %131 = arith.index_cast %c0_i32_35 : i32 to index
      %c2_94 = arith.constant 2 : index
      %c2_95 = arith.constant 2 : index
      %c0_96 = arith.constant 0 : index
      %c0_97 = arith.constant 0 : index
      %132 = vector.load %arg1[%c0_93, %131, %c2_94, %c2_95, %c0_96, %c0_97] : memref<1x1x11x11x1x128xf32, #tpu.memory_space<vmem>>, vector<1x1x9x9x1x128xf32>
      %133 = vector.shape_cast %132 : vector<1x1x9x9x1x128xf32> to vector<9x9x1x128xf32>
      %134 = vector.broadcast %130 : f32 to vector<9x9x1x128xf32>
      %135 = arith.mulf %133, %134 : vector<9x9x1x128xf32>
      %136 = arith.addf %126, %135 : vector<9x9x1x128xf32>
      %c1_i32_98 = arith.constant 1 : i32
      %cst_99 = arith.constant 0.000000e+00 : f32
      %137 = vector.broadcast %cst_99 : f32 to vector<9x9x1x128xf32>
      %138 = arith.maximumf %136, %137 : vector<9x9x1x128xf32>
      %139 = arith.index_cast %arg10 : i32 to index
      %c0_100 = arith.constant 0 : index
      %c0_101 = arith.constant 0 : index
      %c0_102 = arith.constant 0 : index
      %c0_103 = arith.constant 0 : index
      %140 = vector.load %arg5[%139, %c0_100, %c0_101, %c0_102, %c0_103] : memref<4x9x9x1x128xf32, #tpu.memory_space<vmem>>, vector<1x9x9x1x128xf32>
      %141 = vector.shape_cast %140 : vector<1x9x9x1x128xf32> to vector<9x9x1x128xf32>
      %142 = vector.shape_cast %138 : vector<9x9x1x128xf32> to vector<1x9x9x1x128xf32>
      tpu.vector_store %arg5[%139, %c0_100, %c0_101, %c0_102, %c0_103], %142 {strides = array<i32>} : memref<4x9x9x1x128xf32, #tpu.memory_space<vmem>>, vector<1x9x9x1x128xf32>,
    }
    %c4_i32_0 = arith.constant 4 : i32
    %c0_i32_1 = arith.constant 0 : i32
    %c8_i32 = arith.constant 8 : i32
    %1 = arith.addi %c0_i32_1, %c8_i32 : i32
    %c1_i32_2 = arith.constant 1 : i32
    scf.for %arg10 = %c0_i32_1 to %1 step %c1_i32_2  : i32 {
      %c4_i32_34 = arith.constant 4 : i32
      %39 = arith.addi %c4_i32_34, %arg10 : i32
      %40 = arith.index_cast %39 : i32 to index
      %41 = memref.load %arg3[%40] : memref<41xf32, #tpu.memory_space<smem>>
      %42 = vector.broadcast %41 : f32 to vector<7x7x1x128xf32>
      %c0_i32_35 = arith.constant 0 : i32
      %c4_i32_36 = arith.constant 4 : i32
      %43 = arith.addi %c0_i32_35, %c4_i32_36 : i32
      %c1_i32_37 = arith.constant 1 : i32
      %44 = scf.for %arg11 = %c0_i32_35 to %43 step %c1_i32_37 iter_args(%arg12 = %42) -> (vector<7x7x1x128xf32>)  : i32 {
        %c4_i32_44 = arith.constant 4 : i32
        %51 = arith.muli %arg10, %c4_i32_44 : i32
        %52 = arith.addi %51, %arg11 : i32
        %c9_i32 = arith.constant 9 : i32
        %53 = arith.muli %52, %c9_i32 : i32
        %c36_i32 = arith.constant 36 : i32
        %54 = arith.addi %c36_i32, %53 : i32
        %c0_i32_45 = arith.constant 0 : i32
        %55 = arith.addi %54, %c0_i32_45 : i32
        %c0_i32_46 = arith.constant 0 : i32
        %56 = arith.addi %55, %c0_i32_46 : i32
        %57 = arith.index_cast %56 : i32 to index
        %58 = memref.load %arg2[%57] : memref<2920xf32, #tpu.memory_space<smem>>
        %59 = arith.index_cast %arg11 : i32 to index
        %c0_47 = arith.constant 0 : index
        %c0_48 = arith.constant 0 : index
        %c0_49 = arith.constant 0 : index
        %c0_50 = arith.constant 0 : index
        %60 = vector.load %arg5[%59, %c0_47, %c0_48, %c0_49, %c0_50] : memref<4x9x9x1x128xf32, #tpu.memory_space<vmem>>, vector<1x7x7x1x128xf32>
        %61 = vector.shape_cast %60 : vector<1x7x7x1x128xf32> to vector<7x7x1x128xf32>
        %62 = vector.broadcast %58 : f32 to vector<7x7x1x128xf32>
        %63 = arith.mulf %61, %62 : vector<7x7x1x128xf32>
        %64 = arith.addf %arg12, %63 : vector<7x7x1x128xf32>
        %c0_i32_51 = arith.constant 0 : i32
        %65 = arith.addi %54, %c0_i32_51 : i32
        %c1_i32_52 = arith.constant 1 : i32
        %66 = arith.addi %65, %c1_i32_52 : i32
        %67 = arith.index_cast %66 : i32 to index
        %68 = memref.load %arg2[%67] : memref<2920xf32, #tpu.memory_space<smem>>
        %69 = arith.index_cast %arg11 : i32 to index
        %c0_53 = arith.constant 0 : index
        %c1_54 = arith.constant 1 : index
        %c0_55 = arith.constant 0 : index
        %c0_56 = arith.constant 0 : index
        %70 = vector.load %arg5[%69, %c0_53, %c1_54, %c0_55, %c0_56] : memref<4x9x9x1x128xf32, #tpu.memory_space<vmem>>, vector<1x7x7x1x128xf32>
        %71 = vector.shape_cast %70 : vector<1x7x7x1x128xf32> to vector<7x7x1x128xf32>
        %72 = vector.broadcast %68 : f32 to vector<7x7x1x128xf32>
        %73 = arith.mulf %71, %72 : vector<7x7x1x128xf32>
        %74 = arith.addf %64, %73 : vector<7x7x1x128xf32>
        %c0_i32_57 = arith.constant 0 : i32
        %75 = arith.addi %54, %c0_i32_57 : i32
        %c2_i32 = arith.constant 2 : i32
        %76 = arith.addi %75, %c2_i32 : i32
        %77 = arith.index_cast %76 : i32 to index
        %78 = memref.load %arg2[%77] : memref<2920xf32, #tpu.memory_space<smem>>
        %79 = arith.index_cast %arg11 : i32 to index
        %c0_58 = arith.constant 0 : index
        %c2_59 = arith.constant 2 : index
        %c0_60 = arith.constant 0 : index
        %c0_61 = arith.constant 0 : index
        %80 = vector.load %arg5[%79, %c0_58, %c2_59, %c0_60, %c0_61] : memref<4x9x9x1x128xf32, #tpu.memory_space<vmem>>, vector<1x7x7x1x128xf32>
        %81 = vector.shape_cast %80 : vector<1x7x7x1x128xf32> to vector<7x7x1x128xf32>
        %82 = vector.broadcast %78 : f32 to vector<7x7x1x128xf32>
        %83 = arith.mulf %81, %82 : vector<7x7x1x128xf32>
        %84 = arith.addf %74, %83 : vector<7x7x1x128xf32>
        %c3_i32 = arith.constant 3 : i32
        %85 = arith.addi %54, %c3_i32 : i32
        %c0_i32_62 = arith.constant 0 : i32
        %86 = arith.addi %85, %c0_i32_62 : i32
        %87 = arith.index_cast %86 : i32 to index
        %88 = memref.load %arg2[%87] : memref<2920xf32, #tpu.memory_space<smem>>
        %89 = arith.index_cast %arg11 : i32 to index
        %c1_63 = arith.constant 1 : index
        %c0_64 = arith.constant 0 : index
        %c0_65 = arith.constant 0 : index
        %c0_66 = arith.constant 0 : index
        %90 = vector.load %arg5[%89, %c1_63, %c0_64, %c0_65, %c0_66] : memref<4x9x9x1x128xf32, #tpu.memory_space<vmem>>, vector<1x7x7x1x128xf32>
        %91 = vector.shape_cast %90 : vector<1x7x7x1x128xf32> to vector<7x7x1x128xf32>
        %92 = vector.broadcast %88 : f32 to vector<7x7x1x128xf32>
        %93 = arith.mulf %91, %92 : vector<7x7x1x128xf32>
        %94 = arith.addf %84, %93 : vector<7x7x1x128xf32>
        %c3_i32_67 = arith.constant 3 : i32
        %95 = arith.addi %54, %c3_i32_67 : i32
        %c1_i32_68 = arith.constant 1 : i32
        %96 = arith.addi %95, %c1_i32_68 : i32
        %97 = arith.index_cast %96 : i32 to index
        %98 = memref.load %arg2[%97] : memref<2920xf32, #tpu.memory_space<smem>>
        %99 = arith.index_cast %arg11 : i32 to index
        %c1_69 = arith.constant 1 : index
        %c1_70 = arith.constant 1 : index
        %c0_71 = arith.constant 0 : index
        %c0_72 = arith.constant 0 : index
        %100 = vector.load %arg5[%99, %c1_69, %c1_70, %c0_71, %c0_72] : memref<4x9x9x1x128xf32, #tpu.memory_space<vmem>>, vector<1x7x7x1x128xf32>
        %101 = vector.shape_cast %100 : vector<1x7x7x1x128xf32> to vector<7x7x1x128xf32>
        %102 = vector.broadcast %98 : f32 to vector<7x7x1x128xf32>
        %103 = arith.mulf %101, %102 : vector<7x7x1x128xf32>
        %104 = arith.addf %94, %103 : vector<7x7x1x128xf32>
        %c3_i32_73 = arith.constant 3 : i32
        %105 = arith.addi %54, %c3_i32_73 : i32
        %c2_i32_74 = arith.constant 2 : i32
        %106 = arith.addi %105, %c2_i32_74 : i32
        %107 = arith.index_cast %106 : i32 to index
        %108 = memref.load %arg2[%107] : memref<2920xf32, #tpu.memory_space<smem>>
        %109 = arith.index_cast %arg11 : i32 to index
        %c1_75 = arith.constant 1 : index
        %c2_76 = arith.constant 2 : index
        %c0_77 = arith.constant 0 : index
        %c0_78 = arith.constant 0 : index
        %110 = vector.load %arg5[%109, %c1_75, %c2_76, %c0_77, %c0_78] : memref<4x9x9x1x128xf32, #tpu.memory_space<vmem>>, vector<1x7x7x1x128xf32>
        %111 = vector.shape_cast %110 : vector<1x7x7x1x128xf32> to vector<7x7x1x128xf32>
        %112 = vector.broadcast %108 : f32 to vector<7x7x1x128xf32>
        %113 = arith.mulf %111, %112 : vector<7x7x1x128xf32>
        %114 = arith.addf %104, %113 : vector<7x7x1x128xf32>
        %c6_i32 = arith.constant 6 : i32
        %115 = arith.addi %54, %c6_i32 : i32
        %c0_i32_79 = arith.constant 0 : i32
        %116 = arith.addi %115, %c0_i32_79 : i32
        %117 = arith.index_cast %116 : i32 to index
        %118 = memref.load %arg2[%117] : memref<2920xf32, #tpu.memory_space<smem>>
        %119 = arith.index_cast %arg11 : i32 to index
        %c2_80 = arith.constant 2 : index
        %c0_81 = arith.constant 0 : index
        %c0_82 = arith.constant 0 : index
        %c0_83 = arith.constant 0 : index
        %120 = vector.load %arg5[%119, %c2_80, %c0_81, %c0_82, %c0_83] : memref<4x9x9x1x128xf32, #tpu.memory_space<vmem>>, vector<1x7x7x1x128xf32>
        %121 = vector.shape_cast %120 : vector<1x7x7x1x128xf32> to vector<7x7x1x128xf32>
        %122 = vector.broadcast %118 : f32 to vector<7x7x1x128xf32>
        %123 = arith.mulf %121, %122 : vector<7x7x1x128xf32>
        %124 = arith.addf %114, %123 : vector<7x7x1x128xf32>
        %c6_i32_84 = arith.constant 6 : i32
        %125 = arith.addi %54, %c6_i32_84 : i32
        %c1_i32_85 = arith.constant 1 : i32
        %126 = arith.addi %125, %c1_i32_85 : i32
        %127 = arith.index_cast %126 : i32 to index
        %128 = memref.load %arg2[%127] : memref<2920xf32, #tpu.memory_space<smem>>
        %129 = arith.index_cast %arg11 : i32 to index
        %c2_86 = arith.constant 2 : index
        %c1_87 = arith.constant 1 : index
        %c0_88 = arith.constant 0 : index
        %c0_89 = arith.constant 0 : index
        %130 = vector.load %arg5[%129, %c2_86, %c1_87, %c0_88, %c0_89] : memref<4x9x9x1x128xf32, #tpu.memory_space<vmem>>, vector<1x7x7x1x128xf32>
        %131 = vector.shape_cast %130 : vector<1x7x7x1x128xf32> to vector<7x7x1x128xf32>
        %132 = vector.broadcast %128 : f32 to vector<7x7x1x128xf32>
        %133 = arith.mulf %131, %132 : vector<7x7x1x128xf32>
        %134 = arith.addf %124, %133 : vector<7x7x1x128xf32>
        %c6_i32_90 = arith.constant 6 : i32
        %135 = arith.addi %54, %c6_i32_90 : i32
        %c2_i32_91 = arith.constant 2 : i32
        %136 = arith.addi %135, %c2_i32_91 : i32
        %137 = arith.index_cast %136 : i32 to index
        %138 = memref.load %arg2[%137] : memref<2920xf32, #tpu.memory_space<smem>>
        %139 = arith.index_cast %arg11 : i32 to index
        %c2_92 = arith.constant 2 : index
        %c2_93 = arith.constant 2 : index
        %c0_94 = arith.constant 0 : index
        %c0_95 = arith.constant 0 : index
        %140 = vector.load %arg5[%139, %c2_92, %c2_93, %c0_94, %c0_95] : memref<4x9x9x1x128xf32, #tpu.memory_space<vmem>>, vector<1x7x7x1x128xf32>
        %141 = vector.shape_cast %140 : vector<1x7x7x1x128xf32> to vector<7x7x1x128xf32>
        %142 = vector.broadcast %138 : f32 to vector<7x7x1x128xf32>
        %143 = arith.mulf %141, %142 : vector<7x7x1x128xf32>
        %144 = arith.addf %134, %143 : vector<7x7x1x128xf32>
        scf.yield %144 : vector<7x7x1x128xf32>
      }
      %c4_i32_38 = arith.constant 4 : i32
      %cst_39 = arith.constant 0.000000e+00 : f32
      %45 = vector.broadcast %cst_39 : f32 to vector<7x7x1x128xf32>
      %46 = arith.maximumf %44, %45 : vector<7x7x1x128xf32>
      %47 = arith.index_cast %arg10 : i32 to index
      %c0_40 = arith.constant 0 : index
      %c0_41 = arith.constant 0 : index
      %c0_42 = arith.constant 0 : index
      %c0_43 = arith.constant 0 : index
      %48 = vector.load %arg6[%47, %c0_40, %c0_41, %c0_42, %c0_43] : memref<8x7x7x1x128xf32, #tpu.memory_space<vmem>>, vector<1x7x7x1x128xf32>
      %49 = vector.shape_cast %48 : vector<1x7x7x1x128xf32> to vector<7x7x1x128xf32>
      %50 = vector.shape_cast %46 : vector<7x7x1x128xf32> to vector<1x7x7x1x128xf32>
      tpu.vector_store %arg6[%47, %c0_40, %c0_41, %c0_42, %c0_43], %50 {strides = array<i32>} : memref<8x7x7x1x128xf32, #tpu.memory_space<vmem>>, vector<1x7x7x1x128xf32>,
    }
    %c8_i32_3 = arith.constant 8 : i32
    %c0_i32_4 = arith.constant 0 : i32
    %c16_i32 = arith.constant 16 : i32
    %2 = arith.addi %c0_i32_4, %c16_i32 : i32
    %c1_i32_5 = arith.constant 1 : i32
    scf.for %arg10 = %c0_i32_4 to %2 step %c1_i32_5  : i32 {
      %c12_i32 = arith.constant 12 : i32
      %39 = arith.addi %c12_i32, %arg10 : i32
      %40 = arith.index_cast %39 : i32 to index
      %41 = memref.load %arg3[%40] : memref<41xf32, #tpu.memory_space<smem>>
      %42 = vector.broadcast %41 : f32 to vector<5x5x1x128xf32>
      %c0_i32_34 = arith.constant 0 : i32
      %c8_i32_35 = arith.constant 8 : i32
      %43 = arith.addi %c0_i32_34, %c8_i32_35 : i32
      %c1_i32_36 = arith.constant 1 : i32
      %44 = scf.for %arg11 = %c0_i32_34 to %43 step %c1_i32_36 iter_args(%arg12 = %42) -> (vector<5x5x1x128xf32>)  : i32 {
        %c8_i32_43 = arith.constant 8 : i32
        %51 = arith.muli %arg10, %c8_i32_43 : i32
        %52 = arith.addi %51, %arg11 : i32
        %c9_i32 = arith.constant 9 : i32
        %53 = arith.muli %52, %c9_i32 : i32
        %c324_i32 = arith.constant 324 : i32
        %54 = arith.addi %c324_i32, %53 : i32
        %c0_i32_44 = arith.constant 0 : i32
        %55 = arith.addi %54, %c0_i32_44 : i32
        %c0_i32_45 = arith.constant 0 : i32
        %56 = arith.addi %55, %c0_i32_45 : i32
        %57 = arith.index_cast %56 : i32 to index
        %58 = memref.load %arg2[%57] : memref<2920xf32, #tpu.memory_space<smem>>
        %59 = arith.index_cast %arg11 : i32 to index
        %c0_46 = arith.constant 0 : index
        %c0_47 = arith.constant 0 : index
        %c0_48 = arith.constant 0 : index
        %c0_49 = arith.constant 0 : index
        %60 = vector.load %arg6[%59, %c0_46, %c0_47, %c0_48, %c0_49] : memref<8x7x7x1x128xf32, #tpu.memory_space<vmem>>, vector<1x5x5x1x128xf32>
        %61 = vector.shape_cast %60 : vector<1x5x5x1x128xf32> to vector<5x5x1x128xf32>
        %62 = vector.broadcast %58 : f32 to vector<5x5x1x128xf32>
        %63 = arith.mulf %61, %62 : vector<5x5x1x128xf32>
        %64 = arith.addf %arg12, %63 : vector<5x5x1x128xf32>
        %c0_i32_50 = arith.constant 0 : i32
        %65 = arith.addi %54, %c0_i32_50 : i32
        %c1_i32_51 = arith.constant 1 : i32
        %66 = arith.addi %65, %c1_i32_51 : i32
        %67 = arith.index_cast %66 : i32 to index
        %68 = memref.load %arg2[%67] : memref<2920xf32, #tpu.memory_space<smem>>
        %69 = arith.index_cast %arg11 : i32 to index
        %c0_52 = arith.constant 0 : index
        %c1_53 = arith.constant 1 : index
        %c0_54 = arith.constant 0 : index
        %c0_55 = arith.constant 0 : index
        %70 = vector.load %arg6[%69, %c0_52, %c1_53, %c0_54, %c0_55] : memref<8x7x7x1x128xf32, #tpu.memory_space<vmem>>, vector<1x5x5x1x128xf32>
        %71 = vector.shape_cast %70 : vector<1x5x5x1x128xf32> to vector<5x5x1x128xf32>
        %72 = vector.broadcast %68 : f32 to vector<5x5x1x128xf32>
        %73 = arith.mulf %71, %72 : vector<5x5x1x128xf32>
        %74 = arith.addf %64, %73 : vector<5x5x1x128xf32>
        %c0_i32_56 = arith.constant 0 : i32
        %75 = arith.addi %54, %c0_i32_56 : i32
        %c2_i32 = arith.constant 2 : i32
        %76 = arith.addi %75, %c2_i32 : i32
        %77 = arith.index_cast %76 : i32 to index
        %78 = memref.load %arg2[%77] : memref<2920xf32, #tpu.memory_space<smem>>
        %79 = arith.index_cast %arg11 : i32 to index
        %c0_57 = arith.constant 0 : index
        %c2_58 = arith.constant 2 : index
        %c0_59 = arith.constant 0 : index
        %c0_60 = arith.constant 0 : index
        %80 = vector.load %arg6[%79, %c0_57, %c2_58, %c0_59, %c0_60] : memref<8x7x7x1x128xf32, #tpu.memory_space<vmem>>, vector<1x5x5x1x128xf32>
        %81 = vector.shape_cast %80 : vector<1x5x5x1x128xf32> to vector<5x5x1x128xf32>
        %82 = vector.broadcast %78 : f32 to vector<5x5x1x128xf32>
        %83 = arith.mulf %81, %82 : vector<5x5x1x128xf32>
        %84 = arith.addf %74, %83 : vector<5x5x1x128xf32>
        %c3_i32 = arith.constant 3 : i32
        %85 = arith.addi %54, %c3_i32 : i32
        %c0_i32_61 = arith.constant 0 : i32
        %86 = arith.addi %85, %c0_i32_61 : i32
        %87 = arith.index_cast %86 : i32 to index
        %88 = memref.load %arg2[%87] : memref<2920xf32, #tpu.memory_space<smem>>
        %89 = arith.index_cast %arg11 : i32 to index
        %c1_62 = arith.constant 1 : index
        %c0_63 = arith.constant 0 : index
        %c0_64 = arith.constant 0 : index
        %c0_65 = arith.constant 0 : index
        %90 = vector.load %arg6[%89, %c1_62, %c0_63, %c0_64, %c0_65] : memref<8x7x7x1x128xf32, #tpu.memory_space<vmem>>, vector<1x5x5x1x128xf32>
        %91 = vector.shape_cast %90 : vector<1x5x5x1x128xf32> to vector<5x5x1x128xf32>
        %92 = vector.broadcast %88 : f32 to vector<5x5x1x128xf32>
        %93 = arith.mulf %91, %92 : vector<5x5x1x128xf32>
        %94 = arith.addf %84, %93 : vector<5x5x1x128xf32>
        %c3_i32_66 = arith.constant 3 : i32
        %95 = arith.addi %54, %c3_i32_66 : i32
        %c1_i32_67 = arith.constant 1 : i32
        %96 = arith.addi %95, %c1_i32_67 : i32
        %97 = arith.index_cast %96 : i32 to index
        %98 = memref.load %arg2[%97] : memref<2920xf32, #tpu.memory_space<smem>>
        %99 = arith.index_cast %arg11 : i32 to index
        %c1_68 = arith.constant 1 : index
        %c1_69 = arith.constant 1 : index
        %c0_70 = arith.constant 0 : index
        %c0_71 = arith.constant 0 : index
        %100 = vector.load %arg6[%99, %c1_68, %c1_69, %c0_70, %c0_71] : memref<8x7x7x1x128xf32, #tpu.memory_space<vmem>>, vector<1x5x5x1x128xf32>
        %101 = vector.shape_cast %100 : vector<1x5x5x1x128xf32> to vector<5x5x1x128xf32>
        %102 = vector.broadcast %98 : f32 to vector<5x5x1x128xf32>
        %103 = arith.mulf %101, %102 : vector<5x5x1x128xf32>
        %104 = arith.addf %94, %103 : vector<5x5x1x128xf32>
        %c3_i32_72 = arith.constant 3 : i32
        %105 = arith.addi %54, %c3_i32_72 : i32
        %c2_i32_73 = arith.constant 2 : i32
        %106 = arith.addi %105, %c2_i32_73 : i32
        %107 = arith.index_cast %106 : i32 to index
        %108 = memref.load %arg2[%107] : memref<2920xf32, #tpu.memory_space<smem>>
        %109 = arith.index_cast %arg11 : i32 to index
        %c1_74 = arith.constant 1 : index
        %c2_75 = arith.constant 2 : index
        %c0_76 = arith.constant 0 : index
        %c0_77 = arith.constant 0 : index
        %110 = vector.load %arg6[%109, %c1_74, %c2_75, %c0_76, %c0_77] : memref<8x7x7x1x128xf32, #tpu.memory_space<vmem>>, vector<1x5x5x1x128xf32>
        %111 = vector.shape_cast %110 : vector<1x5x5x1x128xf32> to vector<5x5x1x128xf32>
        %112 = vector.broadcast %108 : f32 to vector<5x5x1x128xf32>
        %113 = arith.mulf %111, %112 : vector<5x5x1x128xf32>
        %114 = arith.addf %104, %113 : vector<5x5x1x128xf32>
        %c6_i32 = arith.constant 6 : i32
        %115 = arith.addi %54, %c6_i32 : i32
        %c0_i32_78 = arith.constant 0 : i32
        %116 = arith.addi %115, %c0_i32_78 : i32
        %117 = arith.index_cast %116 : i32 to index
        %118 = memref.load %arg2[%117] : memref<2920xf32, #tpu.memory_space<smem>>
        %119 = arith.index_cast %arg11 : i32 to index
        %c2_79 = arith.constant 2 : index
        %c0_80 = arith.constant 0 : index
        %c0_81 = arith.constant 0 : index
        %c0_82 = arith.constant 0 : index
        %120 = vector.load %arg6[%119, %c2_79, %c0_80, %c0_81, %c0_82] : memref<8x7x7x1x128xf32, #tpu.memory_space<vmem>>, vector<1x5x5x1x128xf32>
        %121 = vector.shape_cast %120 : vector<1x5x5x1x128xf32> to vector<5x5x1x128xf32>
        %122 = vector.broadcast %118 : f32 to vector<5x5x1x128xf32>
        %123 = arith.mulf %121, %122 : vector<5x5x1x128xf32>
        %124 = arith.addf %114, %123 : vector<5x5x1x128xf32>
        %c6_i32_83 = arith.constant 6 : i32
        %125 = arith.addi %54, %c6_i32_83 : i32
        %c1_i32_84 = arith.constant 1 : i32
        %126 = arith.addi %125, %c1_i32_84 : i32
        %127 = arith.index_cast %126 : i32 to index
        %128 = memref.load %arg2[%127] : memref<2920xf32, #tpu.memory_space<smem>>
        %129 = arith.index_cast %arg11 : i32 to index
        %c2_85 = arith.constant 2 : index
        %c1_86 = arith.constant 1 : index
        %c0_87 = arith.constant 0 : index
        %c0_88 = arith.constant 0 : index
        %130 = vector.load %arg6[%129, %c2_85, %c1_86, %c0_87, %c0_88] : memref<8x7x7x1x128xf32, #tpu.memory_space<vmem>>, vector<1x5x5x1x128xf32>
        %131 = vector.shape_cast %130 : vector<1x5x5x1x128xf32> to vector<5x5x1x128xf32>
        %132 = vector.broadcast %128 : f32 to vector<5x5x1x128xf32>
        %133 = arith.mulf %131, %132 : vector<5x5x1x128xf32>
        %134 = arith.addf %124, %133 : vector<5x5x1x128xf32>
        %c6_i32_89 = arith.constant 6 : i32
        %135 = arith.addi %54, %c6_i32_89 : i32
        %c2_i32_90 = arith.constant 2 : i32
        %136 = arith.addi %135, %c2_i32_90 : i32
        %137 = arith.index_cast %136 : i32 to index
        %138 = memref.load %arg2[%137] : memref<2920xf32, #tpu.memory_space<smem>>
        %139 = arith.index_cast %arg11 : i32 to index
        %c2_91 = arith.constant 2 : index
        %c2_92 = arith.constant 2 : index
        %c0_93 = arith.constant 0 : index
        %c0_94 = arith.constant 0 : index
        %140 = vector.load %arg6[%139, %c2_91, %c2_92, %c0_93, %c0_94] : memref<8x7x7x1x128xf32, #tpu.memory_space<vmem>>, vector<1x5x5x1x128xf32>
        %141 = vector.shape_cast %140 : vector<1x5x5x1x128xf32> to vector<5x5x1x128xf32>
        %142 = vector.broadcast %138 : f32 to vector<5x5x1x128xf32>
        %143 = arith.mulf %141, %142 : vector<5x5x1x128xf32>
        %144 = arith.addf %134, %143 : vector<5x5x1x128xf32>
        scf.yield %144 : vector<5x5x1x128xf32>
      }
      %c8_i32_37 = arith.constant 8 : i32
      %cst_38 = arith.constant 0.000000e+00 : f32
      %45 = vector.broadcast %cst_38 : f32 to vector<5x5x1x128xf32>
      %46 = arith.maximumf %44, %45 : vector<5x5x1x128xf32>
      %47 = arith.index_cast %arg10 : i32 to index
      %c0_39 = arith.constant 0 : index
      %c0_40 = arith.constant 0 : index
      %c0_41 = arith.constant 0 : index
      %c0_42 = arith.constant 0 : index
      %48 = vector.load %arg7[%47, %c0_39, %c0_40, %c0_41, %c0_42] : memref<16x5x5x1x128xf32, #tpu.memory_space<vmem>>, vector<1x5x5x1x128xf32>
      %49 = vector.shape_cast %48 : vector<1x5x5x1x128xf32> to vector<5x5x1x128xf32>
      %50 = vector.shape_cast %46 : vector<5x5x1x128xf32> to vector<1x5x5x1x128xf32>
      tpu.vector_store %arg7[%47, %c0_39, %c0_40, %c0_41, %c0_42], %50 {strides = array<i32>} : memref<16x5x5x1x128xf32, #tpu.memory_space<vmem>>, vector<1x5x5x1x128xf32>,
    }
    %c16_i32_6 = arith.constant 16 : i32
    %c0_i32_7 = arith.constant 0 : i32
    %c8_i32_8 = arith.constant 8 : i32
    %3 = arith.addi %c0_i32_7, %c8_i32_8 : i32
    %c1_i32_9 = arith.constant 1 : i32
    scf.for %arg10 = %c0_i32_7 to %3 step %c1_i32_9  : i32 {
      %c28_i32 = arith.constant 28 : i32
      %39 = arith.addi %c28_i32, %arg10 : i32
      %40 = arith.index_cast %39 : i32 to index
      %41 = memref.load %arg3[%40] : memref<41xf32, #tpu.memory_space<smem>>
      %42 = vector.broadcast %41 : f32 to vector<3x3x1x128xf32>
      %c0_i32_34 = arith.constant 0 : i32
      %c16_i32_35 = arith.constant 16 : i32
      %43 = arith.addi %c0_i32_34, %c16_i32_35 : i32
      %c1_i32_36 = arith.constant 1 : i32
      %44 = scf.for %arg11 = %c0_i32_34 to %43 step %c1_i32_36 iter_args(%arg12 = %42) -> (vector<3x3x1x128xf32>)  : i32 {
        %c16_i32_43 = arith.constant 16 : i32
        %51 = arith.muli %arg10, %c16_i32_43 : i32
        %52 = arith.addi %51, %arg11 : i32
        %c9_i32 = arith.constant 9 : i32
        %53 = arith.muli %52, %c9_i32 : i32
        %c1476_i32 = arith.constant 1476 : i32
        %54 = arith.addi %c1476_i32, %53 : i32
        %c0_i32_44 = arith.constant 0 : i32
        %55 = arith.addi %54, %c0_i32_44 : i32
        %c0_i32_45 = arith.constant 0 : i32
        %56 = arith.addi %55, %c0_i32_45 : i32
        %57 = arith.index_cast %56 : i32 to index
        %58 = memref.load %arg2[%57] : memref<2920xf32, #tpu.memory_space<smem>>
        %59 = arith.index_cast %arg11 : i32 to index
        %c0_46 = arith.constant 0 : index
        %c0_47 = arith.constant 0 : index
        %c0_48 = arith.constant 0 : index
        %c0_49 = arith.constant 0 : index
        %60 = vector.load %arg7[%59, %c0_46, %c0_47, %c0_48, %c0_49] : memref<16x5x5x1x128xf32, #tpu.memory_space<vmem>>, vector<1x3x3x1x128xf32>
        %61 = vector.shape_cast %60 : vector<1x3x3x1x128xf32> to vector<3x3x1x128xf32>
        %62 = vector.broadcast %58 : f32 to vector<3x3x1x128xf32>
        %63 = arith.mulf %61, %62 : vector<3x3x1x128xf32>
        %64 = arith.addf %arg12, %63 : vector<3x3x1x128xf32>
        %c0_i32_50 = arith.constant 0 : i32
        %65 = arith.addi %54, %c0_i32_50 : i32
        %c1_i32_51 = arith.constant 1 : i32
        %66 = arith.addi %65, %c1_i32_51 : i32
        %67 = arith.index_cast %66 : i32 to index
        %68 = memref.load %arg2[%67] : memref<2920xf32, #tpu.memory_space<smem>>
        %69 = arith.index_cast %arg11 : i32 to index
        %c0_52 = arith.constant 0 : index
        %c1_53 = arith.constant 1 : index
        %c0_54 = arith.constant 0 : index
        %c0_55 = arith.constant 0 : index
        %70 = vector.load %arg7[%69, %c0_52, %c1_53, %c0_54, %c0_55] : memref<16x5x5x1x128xf32, #tpu.memory_space<vmem>>, vector<1x3x3x1x128xf32>
        %71 = vector.shape_cast %70 : vector<1x3x3x1x128xf32> to vector<3x3x1x128xf32>
        %72 = vector.broadcast %68 : f32 to vector<3x3x1x128xf32>
        %73 = arith.mulf %71, %72 : vector<3x3x1x128xf32>
        %74 = arith.addf %64, %73 : vector<3x3x1x128xf32>
        %c0_i32_56 = arith.constant 0 : i32
        %75 = arith.addi %54, %c0_i32_56 : i32
        %c2_i32 = arith.constant 2 : i32
        %76 = arith.addi %75, %c2_i32 : i32
        %77 = arith.index_cast %76 : i32 to index
        %78 = memref.load %arg2[%77] : memref<2920xf32, #tpu.memory_space<smem>>
        %79 = arith.index_cast %arg11 : i32 to index
        %c0_57 = arith.constant 0 : index
        %c2_58 = arith.constant 2 : index
        %c0_59 = arith.constant 0 : index
        %c0_60 = arith.constant 0 : index
        %80 = vector.load %arg7[%79, %c0_57, %c2_58, %c0_59, %c0_60] : memref<16x5x5x1x128xf32, #tpu.memory_space<vmem>>, vector<1x3x3x1x128xf32>
        %81 = vector.shape_cast %80 : vector<1x3x3x1x128xf32> to vector<3x3x1x128xf32>
        %82 = vector.broadcast %78 : f32 to vector<3x3x1x128xf32>
        %83 = arith.mulf %81, %82 : vector<3x3x1x128xf32>
        %84 = arith.addf %74, %83 : vector<3x3x1x128xf32>
        %c3_i32 = arith.constant 3 : i32
        %85 = arith.addi %54, %c3_i32 : i32
        %c0_i32_61 = arith.constant 0 : i32
        %86 = arith.addi %85, %c0_i32_61 : i32
        %87 = arith.index_cast %86 : i32 to index
        %88 = memref.load %arg2[%87] : memref<2920xf32, #tpu.memory_space<smem>>
        %89 = arith.index_cast %arg11 : i32 to index
        %c1_62 = arith.constant 1 : index
        %c0_63 = arith.constant 0 : index
        %c0_64 = arith.constant 0 : index
        %c0_65 = arith.constant 0 : index
        %90 = vector.load %arg7[%89, %c1_62, %c0_63, %c0_64, %c0_65] : memref<16x5x5x1x128xf32, #tpu.memory_space<vmem>>, vector<1x3x3x1x128xf32>
        %91 = vector.shape_cast %90 : vector<1x3x3x1x128xf32> to vector<3x3x1x128xf32>
        %92 = vector.broadcast %88 : f32 to vector<3x3x1x128xf32>
        %93 = arith.mulf %91, %92 : vector<3x3x1x128xf32>
        %94 = arith.addf %84, %93 : vector<3x3x1x128xf32>
        %c3_i32_66 = arith.constant 3 : i32
        %95 = arith.addi %54, %c3_i32_66 : i32
        %c1_i32_67 = arith.constant 1 : i32
        %96 = arith.addi %95, %c1_i32_67 : i32
        %97 = arith.index_cast %96 : i32 to index
        %98 = memref.load %arg2[%97] : memref<2920xf32, #tpu.memory_space<smem>>
        %99 = arith.index_cast %arg11 : i32 to index
        %c1_68 = arith.constant 1 : index
        %c1_69 = arith.constant 1 : index
        %c0_70 = arith.constant 0 : index
        %c0_71 = arith.constant 0 : index
        %100 = vector.load %arg7[%99, %c1_68, %c1_69, %c0_70, %c0_71] : memref<16x5x5x1x128xf32, #tpu.memory_space<vmem>>, vector<1x3x3x1x128xf32>
        %101 = vector.shape_cast %100 : vector<1x3x3x1x128xf32> to vector<3x3x1x128xf32>
        %102 = vector.broadcast %98 : f32 to vector<3x3x1x128xf32>
        %103 = arith.mulf %101, %102 : vector<3x3x1x128xf32>
        %104 = arith.addf %94, %103 : vector<3x3x1x128xf32>
        %c3_i32_72 = arith.constant 3 : i32
        %105 = arith.addi %54, %c3_i32_72 : i32
        %c2_i32_73 = arith.constant 2 : i32
        %106 = arith.addi %105, %c2_i32_73 : i32
        %107 = arith.index_cast %106 : i32 to index
        %108 = memref.load %arg2[%107] : memref<2920xf32, #tpu.memory_space<smem>>
        %109 = arith.index_cast %arg11 : i32 to index
        %c1_74 = arith.constant 1 : index
        %c2_75 = arith.constant 2 : index
        %c0_76 = arith.constant 0 : index
        %c0_77 = arith.constant 0 : index
        %110 = vector.load %arg7[%109, %c1_74, %c2_75, %c0_76, %c0_77] : memref<16x5x5x1x128xf32, #tpu.memory_space<vmem>>, vector<1x3x3x1x128xf32>
        %111 = vector.shape_cast %110 : vector<1x3x3x1x128xf32> to vector<3x3x1x128xf32>
        %112 = vector.broadcast %108 : f32 to vector<3x3x1x128xf32>
        %113 = arith.mulf %111, %112 : vector<3x3x1x128xf32>
        %114 = arith.addf %104, %113 : vector<3x3x1x128xf32>
        %c6_i32 = arith.constant 6 : i32
        %115 = arith.addi %54, %c6_i32 : i32
        %c0_i32_78 = arith.constant 0 : i32
        %116 = arith.addi %115, %c0_i32_78 : i32
        %117 = arith.index_cast %116 : i32 to index
        %118 = memref.load %arg2[%117] : memref<2920xf32, #tpu.memory_space<smem>>
        %119 = arith.index_cast %arg11 : i32 to index
        %c2_79 = arith.constant 2 : index
        %c0_80 = arith.constant 0 : index
        %c0_81 = arith.constant 0 : index
        %c0_82 = arith.constant 0 : index
        %120 = vector.load %arg7[%119, %c2_79, %c0_80, %c0_81, %c0_82] : memref<16x5x5x1x128xf32, #tpu.memory_space<vmem>>, vector<1x3x3x1x128xf32>
        %121 = vector.shape_cast %120 : vector<1x3x3x1x128xf32> to vector<3x3x1x128xf32>
        %122 = vector.broadcast %118 : f32 to vector<3x3x1x128xf32>
        %123 = arith.mulf %121, %122 : vector<3x3x1x128xf32>
        %124 = arith.addf %114, %123 : vector<3x3x1x128xf32>
        %c6_i32_83 = arith.constant 6 : i32
        %125 = arith.addi %54, %c6_i32_83 : i32
        %c1_i32_84 = arith.constant 1 : i32
        %126 = arith.addi %125, %c1_i32_84 : i32
        %127 = arith.index_cast %126 : i32 to index
        %128 = memref.load %arg2[%127] : memref<2920xf32, #tpu.memory_space<smem>>
        %129 = arith.index_cast %arg11 : i32 to index
        %c2_85 = arith.constant 2 : index
        %c1_86 = arith.constant 1 : index
        %c0_87 = arith.constant 0 : index
        %c0_88 = arith.constant 0 : index
        %130 = vector.load %arg7[%129, %c2_85, %c1_86, %c0_87, %c0_88] : memref<16x5x5x1x128xf32, #tpu.memory_space<vmem>>, vector<1x3x3x1x128xf32>
        %131 = vector.shape_cast %130 : vector<1x3x3x1x128xf32> to vector<3x3x1x128xf32>
        %132 = vector.broadcast %128 : f32 to vector<3x3x1x128xf32>
        %133 = arith.mulf %131, %132 : vector<3x3x1x128xf32>
        %134 = arith.addf %124, %133 : vector<3x3x1x128xf32>
        %c6_i32_89 = arith.constant 6 : i32
        %135 = arith.addi %54, %c6_i32_89 : i32
        %c2_i32_90 = arith.constant 2 : i32
        %136 = arith.addi %135, %c2_i32_90 : i32
        %137 = arith.index_cast %136 : i32 to index
        %138 = memref.load %arg2[%137] : memref<2920xf32, #tpu.memory_space<smem>>
        %139 = arith.index_cast %arg11 : i32 to index
        %c2_91 = arith.constant 2 : index
        %c2_92 = arith.constant 2 : index
        %c0_93 = arith.constant 0 : index
        %c0_94 = arith.constant 0 : index
        %140 = vector.load %arg7[%139, %c2_91, %c2_92, %c0_93, %c0_94] : memref<16x5x5x1x128xf32, #tpu.memory_space<vmem>>, vector<1x3x3x1x128xf32>
        %141 = vector.shape_cast %140 : vector<1x3x3x1x128xf32> to vector<3x3x1x128xf32>
        %142 = vector.broadcast %138 : f32 to vector<3x3x1x128xf32>
        %143 = arith.mulf %141, %142 : vector<3x3x1x128xf32>
        %144 = arith.addf %134, %143 : vector<3x3x1x128xf32>
        scf.yield %144 : vector<3x3x1x128xf32>
      }
      %c16_i32_37 = arith.constant 16 : i32
      %cst_38 = arith.constant 0.000000e+00 : f32
      %45 = vector.broadcast %cst_38 : f32 to vector<3x3x1x128xf32>
      %46 = arith.maximumf %44, %45 : vector<3x3x1x128xf32>
      %47 = arith.index_cast %arg10 : i32 to index
      %c0_39 = arith.constant 0 : index
      %c0_40 = arith.constant 0 : index
      %c0_41 = arith.constant 0 : index
      %c0_42 = arith.constant 0 : index
      %48 = vector.load %arg8[%47, %c0_39, %c0_40, %c0_41, %c0_42] : memref<8x3x3x1x128xf32, #tpu.memory_space<vmem>>, vector<1x3x3x1x128xf32>
      %49 = vector.shape_cast %48 : vector<1x3x3x1x128xf32> to vector<3x3x1x128xf32>
      %50 = vector.shape_cast %46 : vector<3x3x1x128xf32> to vector<1x3x3x1x128xf32>
      tpu.vector_store %arg8[%47, %c0_39, %c0_40, %c0_41, %c0_42], %50 {strides = array<i32>} : memref<8x3x3x1x128xf32, #tpu.memory_space<vmem>>, vector<1x3x3x1x128xf32>,
    }
    %c8_i32_10 = arith.constant 8 : i32
    %c0_i32_11 = arith.constant 0 : i32
    %c4_i32_12 = arith.constant 4 : i32
    %4 = arith.addi %c0_i32_11, %c4_i32_12 : i32
    %c1_i32_13 = arith.constant 1 : i32
    scf.for %arg10 = %c0_i32_11 to %4 step %c1_i32_13  : i32 {
      %c36_i32 = arith.constant 36 : i32
      %39 = arith.addi %c36_i32, %arg10 : i32
      %40 = arith.index_cast %39 : i32 to index
      %41 = memref.load %arg3[%40] : memref<41xf32, #tpu.memory_space<smem>>
      %42 = vector.broadcast %41 : f32 to vector<1x1x1x128xf32>
      %c0_i32_34 = arith.constant 0 : i32
      %c8_i32_35 = arith.constant 8 : i32
      %43 = arith.addi %c0_i32_34, %c8_i32_35 : i32
      %c1_i32_36 = arith.constant 1 : i32
      %44 = scf.for %arg11 = %c0_i32_34 to %43 step %c1_i32_36 iter_args(%arg12 = %42) -> (vector<1x1x1x128xf32>)  : i32 {
        %c8_i32_43 = arith.constant 8 : i32
        %51 = arith.muli %arg10, %c8_i32_43 : i32
        %52 = arith.addi %51, %arg11 : i32
        %c9_i32 = arith.constant 9 : i32
        %53 = arith.muli %52, %c9_i32 : i32
        %c2628_i32 = arith.constant 2628 : i32
        %54 = arith.addi %c2628_i32, %53 : i32
        %c0_i32_44 = arith.constant 0 : i32
        %55 = arith.addi %54, %c0_i32_44 : i32
        %c0_i32_45 = arith.constant 0 : i32
        %56 = arith.addi %55, %c0_i32_45 : i32
        %57 = arith.index_cast %56 : i32 to index
        %58 = memref.load %arg2[%57] : memref<2920xf32, #tpu.memory_space<smem>>
        %59 = arith.index_cast %arg11 : i32 to index
        %c0_46 = arith.constant 0 : index
        %c0_47 = arith.constant 0 : index
        %c0_48 = arith.constant 0 : index
        %c0_49 = arith.constant 0 : index
        %60 = vector.load %arg8[%59, %c0_46, %c0_47, %c0_48, %c0_49] : memref<8x3x3x1x128xf32, #tpu.memory_space<vmem>>, vector<1x1x1x1x128xf32>
        %61 = vector.shape_cast %60 : vector<1x1x1x1x128xf32> to vector<1x1x1x128xf32>
        %62 = vector.broadcast %58 : f32 to vector<1x1x1x128xf32>
        %63 = arith.mulf %61, %62 : vector<1x1x1x128xf32>
        %64 = arith.addf %arg12, %63 : vector<1x1x1x128xf32>
        %c0_i32_50 = arith.constant 0 : i32
        %65 = arith.addi %54, %c0_i32_50 : i32
        %c1_i32_51 = arith.constant 1 : i32
        %66 = arith.addi %65, %c1_i32_51 : i32
        %67 = arith.index_cast %66 : i32 to index
        %68 = memref.load %arg2[%67] : memref<2920xf32, #tpu.memory_space<smem>>
        %69 = arith.index_cast %arg11 : i32 to index
        %c0_52 = arith.constant 0 : index
        %c1_53 = arith.constant 1 : index
        %c0_54 = arith.constant 0 : index
        %c0_55 = arith.constant 0 : index
        %70 = vector.load %arg8[%69, %c0_52, %c1_53, %c0_54, %c0_55] : memref<8x3x3x1x128xf32, #tpu.memory_space<vmem>>, vector<1x1x1x1x128xf32>
        %71 = vector.shape_cast %70 : vector<1x1x1x1x128xf32> to vector<1x1x1x128xf32>
        %72 = vector.broadcast %68 : f32 to vector<1x1x1x128xf32>
        %73 = arith.mulf %71, %72 : vector<1x1x1x128xf32>
        %74 = arith.addf %64, %73 : vector<1x1x1x128xf32>
        %c0_i32_56 = arith.constant 0 : i32
        %75 = arith.addi %54, %c0_i32_56 : i32
        %c2_i32 = arith.constant 2 : i32
        %76 = arith.addi %75, %c2_i32 : i32
        %77 = arith.index_cast %76 : i32 to index
        %78 = memref.load %arg2[%77] : memref<2920xf32, #tpu.memory_space<smem>>
        %79 = arith.index_cast %arg11 : i32 to index
        %c0_57 = arith.constant 0 : index
        %c2_58 = arith.constant 2 : index
        %c0_59 = arith.constant 0 : index
        %c0_60 = arith.constant 0 : index
        %80 = vector.load %arg8[%79, %c0_57, %c2_58, %c0_59, %c0_60] : memref<8x3x3x1x128xf32, #tpu.memory_space<vmem>>, vector<1x1x1x1x128xf32>
        %81 = vector.shape_cast %80 : vector<1x1x1x1x128xf32> to vector<1x1x1x128xf32>
        %82 = vector.broadcast %78 : f32 to vector<1x1x1x128xf32>
        %83 = arith.mulf %81, %82 : vector<1x1x1x128xf32>
        %84 = arith.addf %74, %83 : vector<1x1x1x128xf32>
        %c3_i32 = arith.constant 3 : i32
        %85 = arith.addi %54, %c3_i32 : i32
        %c0_i32_61 = arith.constant 0 : i32
        %86 = arith.addi %85, %c0_i32_61 : i32
        %87 = arith.index_cast %86 : i32 to index
        %88 = memref.load %arg2[%87] : memref<2920xf32, #tpu.memory_space<smem>>
        %89 = arith.index_cast %arg11 : i32 to index
        %c1_62 = arith.constant 1 : index
        %c0_63 = arith.constant 0 : index
        %c0_64 = arith.constant 0 : index
        %c0_65 = arith.constant 0 : index
        %90 = vector.load %arg8[%89, %c1_62, %c0_63, %c0_64, %c0_65] : memref<8x3x3x1x128xf32, #tpu.memory_space<vmem>>, vector<1x1x1x1x128xf32>
        %91 = vector.shape_cast %90 : vector<1x1x1x1x128xf32> to vector<1x1x1x128xf32>
        %92 = vector.broadcast %88 : f32 to vector<1x1x1x128xf32>
        %93 = arith.mulf %91, %92 : vector<1x1x1x128xf32>
        %94 = arith.addf %84, %93 : vector<1x1x1x128xf32>
        %c3_i32_66 = arith.constant 3 : i32
        %95 = arith.addi %54, %c3_i32_66 : i32
        %c1_i32_67 = arith.constant 1 : i32
        %96 = arith.addi %95, %c1_i32_67 : i32
        %97 = arith.index_cast %96 : i32 to index
        %98 = memref.load %arg2[%97] : memref<2920xf32, #tpu.memory_space<smem>>
        %99 = arith.index_cast %arg11 : i32 to index
        %c1_68 = arith.constant 1 : index
        %c1_69 = arith.constant 1 : index
        %c0_70 = arith.constant 0 : index
        %c0_71 = arith.constant 0 : index
        %100 = vector.load %arg8[%99, %c1_68, %c1_69, %c0_70, %c0_71] : memref<8x3x3x1x128xf32, #tpu.memory_space<vmem>>, vector<1x1x1x1x128xf32>
        %101 = vector.shape_cast %100 : vector<1x1x1x1x128xf32> to vector<1x1x1x128xf32>
        %102 = vector.broadcast %98 : f32 to vector<1x1x1x128xf32>
        %103 = arith.mulf %101, %102 : vector<1x1x1x128xf32>
        %104 = arith.addf %94, %103 : vector<1x1x1x128xf32>
        %c3_i32_72 = arith.constant 3 : i32
        %105 = arith.addi %54, %c3_i32_72 : i32
        %c2_i32_73 = arith.constant 2 : i32
        %106 = arith.addi %105, %c2_i32_73 : i32
        %107 = arith.index_cast %106 : i32 to index
        %108 = memref.load %arg2[%107] : memref<2920xf32, #tpu.memory_space<smem>>
        %109 = arith.index_cast %arg11 : i32 to index
        %c1_74 = arith.constant 1 : index
        %c2_75 = arith.constant 2 : index
        %c0_76 = arith.constant 0 : index
        %c0_77 = arith.constant 0 : index
        %110 = vector.load %arg8[%109, %c1_74, %c2_75, %c0_76, %c0_77] : memref<8x3x3x1x128xf32, #tpu.memory_space<vmem>>, vector<1x1x1x1x128xf32>
        %111 = vector.shape_cast %110 : vector<1x1x1x1x128xf32> to vector<1x1x1x128xf32>
        %112 = vector.broadcast %108 : f32 to vector<1x1x1x128xf32>
        %113 = arith.mulf %111, %112 : vector<1x1x1x128xf32>
        %114 = arith.addf %104, %113 : vector<1x1x1x128xf32>
        %c6_i32 = arith.constant 6 : i32
        %115 = arith.addi %54, %c6_i32 : i32
        %c0_i32_78 = arith.constant 0 : i32
        %116 = arith.addi %115, %c0_i32_78 : i32
        %117 = arith.index_cast %116 : i32 to index
        %118 = memref.load %arg2[%117] : memref<2920xf32, #tpu.memory_space<smem>>
        %119 = arith.index_cast %arg11 : i32 to index
        %c2_79 = arith.constant 2 : index
        %c0_80 = arith.constant 0 : index
        %c0_81 = arith.constant 0 : index
        %c0_82 = arith.constant 0 : index
        %120 = vector.load %arg8[%119, %c2_79, %c0_80, %c0_81, %c0_82] : memref<8x3x3x1x128xf32, #tpu.memory_space<vmem>>, vector<1x1x1x1x128xf32>
        %121 = vector.shape_cast %120 : vector<1x1x1x1x128xf32> to vector<1x1x1x128xf32>
        %122 = vector.broadcast %118 : f32 to vector<1x1x1x128xf32>
        %123 = arith.mulf %121, %122 : vector<1x1x1x128xf32>
        %124 = arith.addf %114, %123 : vector<1x1x1x128xf32>
        %c6_i32_83 = arith.constant 6 : i32
        %125 = arith.addi %54, %c6_i32_83 : i32
        %c1_i32_84 = arith.constant 1 : i32
        %126 = arith.addi %125, %c1_i32_84 : i32
        %127 = arith.index_cast %126 : i32 to index
        %128 = memref.load %arg2[%127] : memref<2920xf32, #tpu.memory_space<smem>>
        %129 = arith.index_cast %arg11 : i32 to index
        %c2_85 = arith.constant 2 : index
        %c1_86 = arith.constant 1 : index
        %c0_87 = arith.constant 0 : index
        %c0_88 = arith.constant 0 : index
        %130 = vector.load %arg8[%129, %c2_85, %c1_86, %c0_87, %c0_88] : memref<8x3x3x1x128xf32, #tpu.memory_space<vmem>>, vector<1x1x1x1x128xf32>
        %131 = vector.shape_cast %130 : vector<1x1x1x1x128xf32> to vector<1x1x1x128xf32>
        %132 = vector.broadcast %128 : f32 to vector<1x1x1x128xf32>
        %133 = arith.mulf %131, %132 : vector<1x1x1x128xf32>
        %134 = arith.addf %124, %133 : vector<1x1x1x128xf32>
        %c6_i32_89 = arith.constant 6 : i32
        %135 = arith.addi %54, %c6_i32_89 : i32
        %c2_i32_90 = arith.constant 2 : i32
        %136 = arith.addi %135, %c2_i32_90 : i32
        %137 = arith.index_cast %136 : i32 to index
        %138 = memref.load %arg2[%137] : memref<2920xf32, #tpu.memory_space<smem>>
        %139 = arith.index_cast %arg11 : i32 to index
        %c2_91 = arith.constant 2 : index
        %c2_92 = arith.constant 2 : index
        %c0_93 = arith.constant 0 : index
        %c0_94 = arith.constant 0 : index
        %140 = vector.load %arg8[%139, %c2_91, %c2_92, %c0_93, %c0_94] : memref<8x3x3x1x128xf32, #tpu.memory_space<vmem>>, vector<1x1x1x1x128xf32>
        %141 = vector.shape_cast %140 : vector<1x1x1x1x128xf32> to vector<1x1x1x128xf32>
        %142 = vector.broadcast %138 : f32 to vector<1x1x1x128xf32>
        %143 = arith.mulf %141, %142 : vector<1x1x1x128xf32>
        %144 = arith.addf %134, %143 : vector<1x1x1x128xf32>
        scf.yield %144 : vector<1x1x1x128xf32>
      }
      %c8_i32_37 = arith.constant 8 : i32
      %cst_38 = arith.constant 0.000000e+00 : f32
      %45 = vector.broadcast %cst_38 : f32 to vector<1x1x1x128xf32>
      %46 = arith.maximumf %44, %45 : vector<1x1x1x128xf32>
      %47 = arith.index_cast %arg10 : i32 to index
      %c0_39 = arith.constant 0 : index
      %c0_40 = arith.constant 0 : index
      %c0_41 = arith.constant 0 : index
      %c0_42 = arith.constant 0 : index
      %48 = vector.load %arg9[%47, %c0_39, %c0_40, %c0_41, %c0_42] : memref<4x1x1x1x128xf32, #tpu.memory_space<vmem>>, vector<1x1x1x1x128xf32>
      %49 = vector.shape_cast %48 : vector<1x1x1x1x128xf32> to vector<1x1x1x128xf32>
      %50 = vector.shape_cast %46 : vector<1x1x1x128xf32> to vector<1x1x1x1x128xf32>
      tpu.vector_store %arg9[%47, %c0_39, %c0_40, %c0_41, %c0_42], %50 {strides = array<i32>} : memref<4x1x1x1x128xf32, #tpu.memory_space<vmem>>, vector<1x1x1x1x128xf32>,
    }
    %c4_i32_14 = arith.constant 4 : i32
    %c40 = arith.constant 40 : index
    %5 = memref.load %arg3[%c40] : memref<41xf32, #tpu.memory_space<smem>>
    %6 = vector.broadcast %5 : f32 to vector<1x128xf32>
    %c0 = arith.constant 0 : index
    %c0_15 = arith.constant 0 : index
    %c0_16 = arith.constant 0 : index
    %c0_17 = arith.constant 0 : index
    %c0_18 = arith.constant 0 : index
    %7 = vector.load %arg9[%c0, %c0_15, %c0_16, %c0_17, %c0_18] : memref<4x1x1x1x128xf32, #tpu.memory_space<vmem>>, vector<1x1x1x1x128xf32>
    %8 = vector.shape_cast %7 : vector<1x1x1x1x128xf32> to vector<1x128xf32>
    %c2916 = arith.constant 2916 : index
    %9 = memref.load %arg2[%c2916] : memref<2920xf32, #tpu.memory_space<smem>>
    %10 = vector.broadcast %9 : f32 to vector<1x128xf32>
    %11 = arith.mulf %8, %10 : vector<1x128xf32>
    %12 = arith.addf %6, %11 : vector<1x128xf32>
    %c1 = arith.constant 1 : index
    %c0_19 = arith.constant 0 : index
    %c0_20 = arith.constant 0 : index
    %c0_21 = arith.constant 0 : index
    %c0_22 = arith.constant 0 : index
    %13 = vector.load %arg9[%c1, %c0_19, %c0_20, %c0_21, %c0_22] : memref<4x1x1x1x128xf32, #tpu.memory_space<vmem>>, vector<1x1x1x1x128xf32>
    %14 = vector.shape_cast %13 : vector<1x1x1x1x128xf32> to vector<1x128xf32>
    %c2917 = arith.constant 2917 : index
    %15 = memref.load %arg2[%c2917] : memref<2920xf32, #tpu.memory_space<smem>>
    %16 = vector.broadcast %15 : f32 to vector<1x128xf32>
    %17 = arith.mulf %14, %16 : vector<1x128xf32>
    %18 = arith.addf %12, %17 : vector<1x128xf32>
    %c2 = arith.constant 2 : index
    %c0_23 = arith.constant 0 : index
    %c0_24 = arith.constant 0 : index
    %c0_25 = arith.constant 0 : index
    %c0_26 = arith.constant 0 : index
    %19 = vector.load %arg9[%c2, %c0_23, %c0_24, %c0_25, %c0_26] : memref<4x1x1x1x128xf32, #tpu.memory_space<vmem>>, vector<1x1x1x1x128xf32>
    %20 = vector.shape_cast %19 : vector<1x1x1x1x128xf32> to vector<1x128xf32>
    %c2918 = arith.constant 2918 : index
    %21 = memref.load %arg2[%c2918] : memref<2920xf32, #tpu.memory_space<smem>>
    %22 = vector.broadcast %21 : f32 to vector<1x128xf32>
    %23 = arith.mulf %20, %22 : vector<1x128xf32>
    %24 = arith.addf %18, %23 : vector<1x128xf32>
    %c3 = arith.constant 3 : index
    %c0_27 = arith.constant 0 : index
    %c0_28 = arith.constant 0 : index
    %c0_29 = arith.constant 0 : index
    %c0_30 = arith.constant 0 : index
    %25 = vector.load %arg9[%c3, %c0_27, %c0_28, %c0_29, %c0_30] : memref<4x1x1x1x128xf32, #tpu.memory_space<vmem>>, vector<1x1x1x1x128xf32>
    %26 = vector.shape_cast %25 : vector<1x1x1x1x128xf32> to vector<1x128xf32>
    %c2919 = arith.constant 2919 : index
    %27 = memref.load %arg2[%c2919] : memref<2920xf32, #tpu.memory_space<smem>>
    %28 = vector.broadcast %27 : f32 to vector<1x128xf32>
    %29 = arith.mulf %26, %28 : vector<1x128xf32>
    %30 = arith.addf %24, %29 : vector<1x128xf32>
    %31 = arith.negf %30 : vector<1x128xf32>
    %32 = math.exp %31 : vector<1x128xf32>
    %cst = arith.constant 1.000000e+00 : f32
    %33 = vector.broadcast %cst : f32 to vector<1x128xf32>
    %34 = arith.addf %33, %32 : vector<1x128xf32>
    %35 = arith.divf %33, %34 : vector<1x128xf32>
    %c0_31 = arith.constant 0 : index
    %c0_32 = arith.constant 0 : index
    %c0_33 = arith.constant 0 : index
    %36 = vector.load %arg4[%c0_31, %c0_32, %c0_33] : memref<1x1x128xf32, #tpu.memory_space<vmem>>, vector<1x1x128xf32>
    %37 = vector.shape_cast %36 : vector<1x1x128xf32> to vector<1x128xf32>
    %38 = vector.shape_cast %35 : vector<1x128xf32> to vector<1x1x128xf32>
    tpu.vector_store %arg4[%c0_31, %c0_32, %c0_33], %38 {strides = array<i32>} : memref<1x1x128xf32, #tpu.memory_space<vmem>>, vector<1x1x128xf32>,
    return
  }
  func.func @transform_0(%arg0: i32) -> (i32, i32, i32, i32, i32, i32) {
    %c0_i32 = arith.constant 0 : i32
    %c0_i32_0 = arith.constant 0 : i32
    %c0_i32_1 = arith.constant 0 : i32
    %c0_i32_2 = arith.constant 0 : i32
    %c0_i32_3 = arith.constant 0 : i32
    %c0_i32_4 = arith.constant 0 : i32
    return %arg0, %c0_i32, %c0_i32_0, %c0_i32_1, %c0_i32_2, %c0_i32_3 : i32, i32, i32, i32, i32, i32
  }
  func.func @transform_1(%arg0: i32) -> i32 {
    %c0_i32 = arith.constant 0 : i32
    %c0_i32_0 = arith.constant 0 : i32
    return %c0_i32 : i32
  }
  func.func @transform_2(%arg0: i32) -> i32 {
    %c0_i32 = arith.constant 0 : i32
    %c0_i32_0 = arith.constant 0 : i32
    return %c0_i32 : i32
  }
  func.func @transform_3(%arg0: i32) -> (i32, i32, i32) {
    %c0_i32 = arith.constant 0 : i32
    %c0_i32_0 = arith.constant 0 : i32
    %c0_i32_1 = arith.constant 0 : i32
    return %arg0, %c0_i32, %c0_i32_0 : i32, i32, i32
  }
}

</mosaic_0001>

<llo_original>
// kernel: tpu_custom_call.1
$region0: #{tpu_custom_call.1}
  #allocation0 [shape = 'u32[]', space=smem, size = 0x4, offset = 0x4, fixed_abs, tag = 'smem constant byte address 0x4 - core index']
  #allocation1 [shape = 'u32[144,128]{1,0:T(1,128)}', space=vmem, size = 0x12000, scoped, tag = 'internal scratch']
  #allocation2 [shape = 'f32[4,9,9,1,128]{4,3,2,1,0:T(1,128)}', space=vmem, size = 0x28800, scoped, tag = 'scratch operand']
  #allocation3 [shape = 'f32[8,7,7,1,128]{4,3,2,1,0:T(1,128)}', space=vmem, size = 0x31000, scoped, tag = 'scratch operand']
  #allocation4 [shape = 'f32[16,5,5,1,128]{4,3,2,1,0:T(1,128)}', space=vmem, size = 0x32000, scoped, tag = 'scratch operand']
  #allocation5 [shape = 'f32[8,3,3,1,128]{4,3,2,1,0:T(1,128)}', space=vmem, size = 0x9000, scoped, tag = 'scratch operand']
  #allocation6 [shape = 'f32[4,1,1,1,128]{4,3,2,1,0:T(1,128)}', space=vmem, size = 0x800, scoped, tag = 'scratch operand']
  %s0 = inlined_call_operand.hbm [shape: f32[1,1,11,11,1,128], index: 0, kind: input, shape index: {}]
  %s1 = inlined_call_operand.hbm [shape: f32[2920], index: 1, kind: input, shape index: {}]
  %s2 = inlined_call_operand.vmem [shape: f32[41], index: 2, kind: input, shape index: {}]
  %s3 = inlined_call_operand.hbm [shape: f32[1,1,128], index: 3, kind: output, shape index: {}]
  %s4 = sld [smem:[#allocation0]]
  $region97: #{tpu_custom_call.1} parent=0
    _
  %s6 = ssub.s32 1, %s4
  %s7 = scalar_select 0, %s6, %s4
  $region1: #{tpu_custom_call.1} parent=0
    #allocation7 [shape = 'u8[61952]{0}', space=vmem, size = 0xf400, scoped, tag = 'input window, operand 0, single buffered']
    #allocation8 [shape = 's32[1]{0}', space=sflag, size = 0x4, scoped, tag = 'scoped memory for tpu_custom_call.1']
    #allocation9 [shape = 's32[1]{0}', space=sflag, size = 0x4, scoped, tag = 'scoped memory for tpu_custom_call.1']
    #allocation10 [shape = 's32[1]{0}', space=sflag, size = 0x4, scoped, tag = 'scoped memory for tpu_custom_call.1']
    #allocation11 [shape = 's32[1]{0}', space=sflag, size = 0x4, scoped, tag = 'scoped memory for tpu_custom_call.1']
    #allocation12 [shape = 'u8[11776]{0}', space=smem, size = 0x2e00, scoped, tag = 'input window, operand 1, single buffered']
    #allocation13 [shape = 'u8[512]{0}', space=smem, size = 0x200, scoped, tag = 'input window, operand 2, single buffered']
    #allocation14 [shape = 'u8[512]{0}', space=vmem, size = 0x400, scoped, tag = 'output window, operand 0, single buffered']
    %8 = vsyncpa [#allocation8], 0
    %9 = vsyncpa [#allocation10], 0
    %10 = vsyncpa [#allocation11], 0
    %11 = vsyncpa [#allocation9], 0
    // Predicated region
    $region2: #{tpu_custom_call.1} parent=1 // pred_check
      _
    $region3: #{tpu_custom_call.1} parent=1 // pred_check_branch
      %13 = sbr.rel (0) target = $region5
    $region4: #{tpu_custom_call.1} parent=1 // pred_region
      %s15 = ssub.s32 1936, 1936
      %16 = vsyncadd [#allocation8], %s15
      %s17 = sshll.u32 [#allocation7], 4
      %s18 = int_to_ptr.vmem [resolvable:$true] %s17
      %23 = dma.hbm_to_vmem [thread:$0]  %s0, 1936, %s18, [#allocation8], 16, 16, 1
    $region5: #{tpu_custom_call.1} parent=1 // pred_fallthru
      _
    // Predicated region
    $region6: #{tpu_custom_call.1} parent=1 // pred_check
      _
    $region7: #{tpu_custom_call.1} parent=1 // pred_check_branch
      %25 = sbr.rel (0) target = $region9
    $region8: #{tpu_custom_call.1} parent=1 // pred_region
      %s27 = ssub.s32 368, 368
      %28 = vsyncadd [#allocation10], %s27
      %31 = dma.hbm_to_smem %s1, 368, [#allocation12], [#allocation10]
    $region9: #{tpu_custom_call.1} parent=1 // pred_fallthru
      _
    // Predicated region
    $region10: #{tpu_custom_call.1} parent=1 // pred_check
      _
    $region11: #{tpu_custom_call.1} parent=1 // pred_check_branch
      %33 = sbr.rel (0) target = $region13
    $region12: #{tpu_custom_call.1} parent=1 // pred_region
      %s35 = ssub.s32 16, 16
      %36 = vsyncadd [#allocation11], %s35
      %s38 = sshll.u32 %s2, 4
      %s39 = int_to_ptr.vmem [resolvable:$true] %s38
      %41 = dma.vmem_to_smem %s39, 16, [#allocation13], [#allocation11]
    $region13: #{tpu_custom_call.1} parent=1 // pred_fallthru
      _
    // Predicated region
    $region14: #{tpu_custom_call.1} parent=1 // pred_check
      _
    $region15: #{tpu_custom_call.1} parent=1 // pred_check_branch
      %43 = sbr.rel (0) target = $region17
    $region16: #{tpu_custom_call.1} parent=1 // pred_region
      %44 = dma.done [#allocation8], 1936
    $region17: #{tpu_custom_call.1} parent=1 // pred_fallthru
      _
    // Predicated region
    $region18: #{tpu_custom_call.1} parent=1 // pred_check
      _
    $region19: #{tpu_custom_call.1} parent=1 // pred_check_branch
      %46 = sbr.rel (0) target = $region21
    $region20: #{tpu_custom_call.1} parent=1 // pred_region
      %47 = dma.done [#allocation10], 368
    $region21: #{tpu_custom_call.1} parent=1 // pred_fallthru
      _
    // Predicated region
    $region22: #{tpu_custom_call.1} parent=1 // pred_check
      _
    $region23: #{tpu_custom_call.1} parent=1 // pred_check_branch
      %49 = sbr.rel (0) target = $region25
    $region24: #{tpu_custom_call.1} parent=1 // pred_region
      %50 = dma.done [#allocation11], 16
    $region25: #{tpu_custom_call.1} parent=1 // pred_fallthru
      _
    %51 = sfence
    loop: start=0, step=1, limit=4
    $region26: #{tpu_custom_call.1} parent=1 // loop_pre_header
      _
    $region27: #{tpu_custom_call.1} parent=1 // loop_header
      %s53 = sphi 0, %s57
      %p54 = scmp.ge.s32.totalorder %s53, 4
    $region28: #{tpu_custom_call.1} parent=1 // loop_header_branch
      %56 = sbr.rel (%p54) target = $region32
    $region29: #{tpu_custom_call.1} parent=1 // loop_body
      %s58 = sld [smem:[#allocation13 + %s53]]
      %v59 = vstv %s58
      %s60 = smul.u32 %s53, 9
      %s61 = sld [smem:[#allocation12 + %s60]]
      %v62 = vld [vmem:[#allocation7] sm:$0x1]
      %v63 = vld [vmem:[#allocation7 + $0x1] sm:$0x1]
      %v64 = vld [vmem:[#allocation7 + $0x2] sm:$0x1]
      %v65 = vld [vmem:[#allocation7 + $0x3] sm:$0x1]
      %v66 = vld [vmem:[#allocation7 + $0x4] sm:$0x1]
      %v67 = vld [vmem:[#allocation7 + $0x5] sm:$0x1]
      %v68 = vld [vmem:[#allocation7 + $0x6] sm:$0x1]
      %v69 = vld [vmem:[#allocation7 + $0x7] sm:$0x1]
      %v70 = vld [vmem:[#allocation7 + $0x8] sm:$0x1]
      %v71 = vld [vmem:[#allocation7 + $0xb] sm:$0x1]
      %v72 = vld [vmem:[#allocation7 + $0xc] sm:$0x1]
      %v73 = vld [vmem:[#allocation7 + $0xd] sm:$0x1]
      %v74 = vld [vmem:[#allocation7 + $0xe] sm:$0x1]
      %v75 = vld [vmem:[#allocation7 + $0xf] sm:$0x1]
      %v76 = vld [vmem:[#allocation7 + $0x10] sm:$0x1]
      %v77 = vld [vmem:[#allocation7 + $0x11] sm:$0x1]
      %v78 = vld [vmem:[#allocation7 + $0x12] sm:$0x1]
      %v79 = vld [vmem:[#allocation7 + $0x13] sm:$0x1]
      %v80 = vld [vmem:[#allocation7 + $0x16] sm:$0x1]
      %v81 = vld [vmem:[#allocation7 + $0x17] sm:$0x1]
      %v82 = vld [vmem:[#allocation7 + $0x18] sm:$0x1]
      %v83 = vld [vmem:[#allocation7 + $0x19] sm:$0x1]
      %v84 = vld [vmem:[#allocation7 + $0x1a] sm:$0x1]
      %v85 = vld [vmem:[#allocation7 + $0x1b] sm:$0x1]
      %v86 = vld [vmem:[#allocation7 + $0x1c] sm:$0x1]
      %v87 = vld [vmem:[#allocation7 + $0x1d] sm:$0x1]
      %v88 = vld [vmem:[#allocation7 + $0x1e] sm:$0x1]
      %v89 = vld [vmem:[#allocation7 + $0x21] sm:$0x1]
      %v90 = vld [vmem:[#allocation7 + $0x22] sm:$0x1]
      %v91 = vld [vmem:[#allocation7 + $0x23] sm:$0x1]
      %v92 = vld [vmem:[#allocation7 + $0x24] sm:$0x1]
      %v93 = vld [vmem:[#allocation7 + $0x25] sm:$0x1]
      %v94 = vld [vmem:[#allocation7 + $0x26] sm:$0x1]
      %v95 = vld [vmem:[#allocation7 + $0x27] sm:$0x1]
      %v96 = vld [vmem:[#allocation7 + $0x28] sm:$0x1]
      %v97 = vld [vmem:[#allocation7 + $0x29] sm:$0x1]
      %v98 = vld [vmem:[#allocation7 + $0x2c] sm:$0x1]
      %v99 = vld [vmem:[#allocation7 + $0x2d] sm:$0x1]
      %v100 = vld [vmem:[#allocation7 + $0x2e] sm:$0x1]
      %v101 = vld [vmem:[#allocation7 + $0x2f] sm:$0x1]
      %v102 = vld [vmem:[#allocation7 + $0x30] sm:$0x1]
      %v103 = vld [vmem:[#allocation7 + $0x31] sm:$0x1]
      %v104 = vld [vmem:[#allocation7 + $0x32] sm:$0x1]
      %v105 = vld [vmem:[#allocation7 + $0x33] sm:$0x1]
      %v106 = vld [vmem:[#allocation7 + $0x34] sm:$0x1]
      %v107 = vld [vmem:[#allocation7 + $0x37] sm:$0x1]
      %v108 = vld [vmem:[#allocation7 + $0x38] sm:$0x1]
      %v109 = vld [vmem:[#allocation7 + $0x39] sm:$0x1]
      %v110 = vld [vmem:[#allocation7 + $0x3a] sm:$0x1]
      %v111 = vld [vmem:[#allocation7 + $0x3b] sm:$0x1]
      %v112 = vld [vmem:[#allocation7 + $0x3c] sm:$0x1]
      %v113 = vld [vmem:[#allocation7 + $0x3d] sm:$0x1]
      %v114 = vld [vmem:[#allocation7 + $0x3e] sm:$0x1]
      %v115 = vld [vmem:[#allocation7 + $0x3f] sm:$0x1]
      %v116 = vld [vmem:[#allocation7 + $0x42] sm:$0x1]
      %v117 = vld [vmem:[#allocation7 + $0x43] sm:$0x1]
      %v118 = vld [vmem:[#allocation7 + $0x44] sm:$0x1]
      %v119 = vld [vmem:[#allocation7 + $0x45] sm:$0x1]
      %v120 = vld [vmem:[#allocation7 + $0x46] sm:$0x1]
      %v121 = vld [vmem:[#allocation7 + $0x47] sm:$0x1]
      %v122 = vld [vmem:[#allocation7 + $0x48] sm:$0x1]
      %v123 = vld [vmem:[#allocation7 + $0x49] sm:$0x1]
      %v124 = vld [vmem:[#allocation7 + $0x4a] sm:$0x1]
      %v125 = vld [vmem:[#allocation7 + $0x4d] sm:$0x1]
      %v126 = vld [vmem:[#allocation7 + $0x4e] sm:$0x1]
      %v127 = vld [vmem:[#allocation7 + $0x4f] sm:$0x1]
      %v128 = vld [vmem:[#allocation7 + $0x50] sm:$0x1]
      %v129 = vld [vmem:[#allocation7 + $0x51] sm:$0x1]
      %v130 = vld [vmem:[#allocation7 + $0x52] sm:$0x1]
      %v131 = vld [vmem:[#allocation7 + $0x53] sm:$0x1]
      %v132 = vld [vmem:[#allocation7 + $0x54] sm:$0x1]
      %v133 = vld [vmem:[#allocation7 + $0x55] sm:$0x1]
      %v134 = vld [vmem:[#allocation7 + $0x58] sm:$0x1]
      %v135 = vld [vmem:[#allocation7 + $0x59] sm:$0x1]
      %v136 = vld [vmem:[#allocation7 + $0x5a] sm:$0x1]
      %v137 = vld [vmem:[#allocation7 + $0x5b] sm:$0x1]
      %v138 = vld [vmem:[#allocation7 + $0x5c] sm:$0x1]
      %v139 = vld [vmem:[#allocation7 + $0x5d] sm:$0x1]
      %v140 = vld [vmem:[#allocation7 + $0x5e] sm:$0x1]
      %v141 = vld [vmem:[#allocation7 + $0x5f] sm:$0x1]
      %v142 = vld [vmem:[#allocation7 + $0x60] sm:$0x1]
      %v143 = vstv %s61
      %v144 = vmul.f32 %v62, %v143
      %v145 = vmul.f32 %v63, %v143
      %v146 = vmul.f32 %v64, %v143
      %v147 = vmul.f32 %v65, %v143
      %v148 = vmul.f32 %v66, %v143
      %v149 = vmul.f32 %v67, %v143
      %v150 = vmul.f32 %v68, %v143
      %v151 = vmul.f32 %v69, %v143
      %v152 = vmul.f32 %v70, %v143
      %v153 = vmul.f32 %v71, %v143
      %v154 = vmul.f32 %v72, %v143
      %v155 = vmul.f32 %v73, %v143
      %v156 = vmul.f32 %v74, %v143
      %v157 = vmul.f32 %v75, %v143
      %v158 = vmul.f32 %v76, %v143
      %v159 = vmul.f32 %v77, %v143
      %v160 = vmul.f32 %v78, %v143
      %v161 = vmul.f32 %v79, %v143
      %v162 = vmul.f32 %v80, %v143
      %v163 = vmul.f32 %v81, %v143
      %v164 = vmul.f32 %v82, %v143
      %v165 = vmul.f32 %v83, %v143
      %v166 = vmul.f32 %v84, %v143
      %v167 = vmul.f32 %v85, %v143
      %v168 = vmul.f32 %v86, %v143
      %v169 = vmul.f32 %v87, %v143
      %v170 = vmul.f32 %v88, %v143
      %v171 = vmul.f32 %v89, %v143
      %v172 = vmul.f32 %v90, %v143
      %v173 = vmul.f32 %v91, %v143
      %v174 = vmul.f32 %v92, %v143
      %v175 = vmul.f32 %v93, %v143
      %v176 = vmul.f32 %v94, %v143
      %v177 = vmul.f32 %v95, %v143
      %v178 = vmul.f32 %v96, %v143
      %v179 = vmul.f32 %v97, %v143
      %v180 = vmul.f32 %v98, %v143
      %v181 = vmul.f32 %v99, %v143
      %v182 = vmul.f32 %v100, %v143
      %v183 = vmul.f32 %v101, %v143
      %v184 = vmul.f32 %v102, %v143
      %v185 = vmul.f32 %v103, %v143
      %v186 = vmul.f32 %v104, %v143
      %v187 = vmul.f32 %v105, %v143
      %v188 = vmul.f32 %v106, %v143
      %v189 = vmul.f32 %v107, %v143
      %v190 = vmul.f32 %v108, %v143
      %v191 = vmul.f32 %v109, %v143
      %v192 = vmul.f32 %v110, %v143
      %v193 = vmul.f32 %v111, %v143
      %v194 = vmul.f32 %v112, %v143
      %v195 = vmul.f32 %v113, %v143
      %v196 = vmul.f32 %v114, %v143
      %v197 = vmul.f32 %v115, %v143
      %v198 = vmul.f32 %v116, %v143
      %v199 = vmul.f32 %v117, %v143
      %v200 = vmul.f32 %v118, %v143
      %v201 = vmul.f32 %v119, %v143
      %v202 = vmul.f32 %v120, %v143
      %v203 = vmul.f32 %v121, %v143
      %v204 = vmul.f32 %v122, %v143
      %v205 = vmul.f32 %v123, %v143
      %v206 = vmul.f32 %v124, %v143
      %v207 = vmul.f32 %v125, %v143
      %v208 = vmul.f32 %v126, %v143
      %v209 = vmul.f32 %v127, %v143
      %v210 = vmul.f32 %v128, %v143
      %v211 = vmul.f32 %v129, %v143
      %v212 = vmul.f32 %v130, %v143
      %v213 = vmul.f32 %v131, %v143
      %v214 = vmul.f32 %v132, %v143
      %v215 = vmul.f32 %v133, %v143
      %v216 = vmul.f32 %v134, %v143
      %v217 = vmul.f32 %v135, %v143
      %v218 = vmul.f32 %v136, %v143
      %v219 = vmul.f32 %v137, %v143
      %v220 = vmul.f32 %v138, %v143
      %v221 = vmul.f32 %v139, %v143
      %v222 = vmul.f32 %v140, %v143
      %v223 = vmul.f32 %v141, %v143
      %v224 = vmul.f32 %v142, %v143
      %v225 = vadd.f32 %v59, %v144
      %v226 = vadd.f32 %v59, %v145
      %v227 = vadd.f32 %v59, %v146
      %v228 = vadd.f32 %v59, %v147
      %v229 = vadd.f32 %v59, %v148
      %v230 = vadd.f32 %v59, %v149
      %v231 = vadd.f32 %v59, %v150
      %v232 = vadd.f32 %v59, %v151
      %v233 = vadd.f32 %v59, %v152
      %v234 = vadd.f32 %v59, %v153
      %v235 = vadd.f32 %v59, %v154
      %v236 = vadd.f32 %v59, %v155
      %v237 = vadd.f32 %v59, %v156
      %v238 = vadd.f32 %v59, %v157
      %v239 = vadd.f32 %v59, %v158
      %v240 = vadd.f32 %v59, %v159
      %v241 = vadd.f32 %v59, %v160
      %v242 = vadd.f32 %v59, %v161
      %v243 = vadd.f32 %v59, %v162
      %v244 = vadd.f32 %v59, %v163
      %v245 = vadd.f32 %v59, %v164
      %v246 = vadd.f32 %v59, %v165
      %v247 = vadd.f32 %v59, %v166
      %v248 = vadd.f32 %v59, %v167
      %v249 = vadd.f32 %v59, %v168
      %v250 = vadd.f32 %v59, %v169
      %v251 = vadd.f32 %v59, %v170
      %v252 = vadd.f32 %v59, %v171
      %v253 = vadd.f32 %v59, %v172
      %v254 = vadd.f32 %v59, %v173
      %v255 = vadd.f32 %v59, %v174
      %v256 = vadd.f32 %v59, %v175
      %v257 = vadd.f32 %v59, %v176
      %v258 = vadd.f32 %v59, %v177
      %v259 = vadd.f32 %v59, %v178
      %v260 = vadd.f32 %v59, %v179
      %v261 = vadd.f32 %v59, %v180
      %v262 = vadd.f32 %v59, %v181
      %v263 = vadd.f32 %v59, %v182
      %v264 = vadd.f32 %v59, %v183
      %v265 = vadd.f32 %v59, %v184
      %v266 = vadd.f32 %v59, %v185
      %v267 = vadd.f32 %v59, %v186
      %v268 = vadd.f32 %v59, %v187
      %v269 = vadd.f32 %v59, %v188
      %v270 = vadd.f32 %v59, %v189
      %v271 = vadd.f32 %v59, %v190
      %v272 = vadd.f32 %v59, %v191
      %v273 = vadd.f32 %v59, %v192
      %v274 = vadd.f32 %v59, %v193
      %v275 = vadd.f32 %v59, %v194
      %v276 = vadd.f32 %v59, %v195
      %v277 = vadd.f32 %v59, %v196
      %v278 = vadd.f32 %v59, %v197
      %v279 = vadd.f32 %v59, %v198
      %v280 = vadd.f32 %v59, %v199
      %v281 = vadd.f32 %v59, %v200
      %v282 = vadd.f32 %v59, %v201
      %v283 = vadd.f32 %v59, %v202
      %v284 = vadd.f32 %v59, %v203
      %v285 = vadd.f32 %v59, %v204
      %v286 = vadd.f32 %v59, %v205
      %v287 = vadd.f32 %v59, %v206
      %v288 = vadd.f32 %v59, %v207
      %v289 = vadd.f32 %v59, %v208
      %v290 = vadd.f32 %v59, %v209
      %v291 = vadd.f32 %v59, %v210
      %v292 = vadd.f32 %v59, %v211
      %v293 = vadd.f32 %v59, %v212
      %v294 = vadd.f32 %v59, %v213
      %v295 = vadd.f32 %v59, %v214
      %v296 = vadd.f32 %v59, %v215
      %v297 = vadd.f32 %v59, %v216
      %v298 = vadd.f32 %v59, %v217
      %v299 = vadd.f32 %v59, %v218
      %v300 = vadd.f32 %v59, %v219
      %v301 = vadd.f32 %v59, %v220
      %v302 = vadd.f32 %v59, %v221
      %v303 = vadd.f32 %v59, %v222
      %v304 = vadd.f32 %v59, %v223
      %v305 = vadd.f32 %v59, %v224
      %s306 = sadd.s32 %s60, 1
      %s307 = sld [smem:[#allocation12 + %s306]]
      %s308 = scalar_lea.vmem [#allocation7], 1
      %v309 = vld [vmem:[%s308] sm:$0x1]
      %v310 = vld [vmem:[%s308 + $0x1] sm:$0x1]
      %v311 = vld [vmem:[%s308 + $0x2] sm:$0x1]
      %v312 = vld [vmem:[%s308 + $0x3] sm:$0x1]
      %v313 = vld [vmem:[%s308 + $0x4] sm:$0x1]
      %v314 = vld [vmem:[%s308 + $0x5] sm:$0x1]
      %v315 = vld [vmem:[%s308 + $0x6] sm:$0x1]
      %v316 = vld [vmem:[%s308 + $0x7] sm:$0x1]
      %v317 = vld [vmem:[%s308 + $0x8] sm:$0x1]
      %v318 = vld [vmem:[%s308 + $0xb] sm:$0x1]
      %v319 = vld [vmem:[%s308 + $0xc] sm:$0x1]
      %v320 = vld [vmem:[%s308 + $0xd] sm:$0x1]
      %v321 = vld [vmem:[%s308 + $0xe] sm:$0x1]
      %v322 = vld [vmem:[%s308 + $0xf] sm:$0x1]
      %v323 = vld [vmem:[%s308 + $0x10] sm:$0x1]
      %v324 = vld [vmem:[%s308 + $0x11] sm:$0x1]
      %v325 = vld [vmem:[%s308 + $0x12] sm:$0x1]
      %v326 = vld [vmem:[%s308 + $0x13] sm:$0x1]
      %v327 = vld [vmem:[%s308 + $0x16] sm:$0x1]
      %v328 = vld [vmem:[%s308 + $0x17] sm:$0x1]
      %v329 = vld [vmem:[%s308 + $0x18] sm:$0x1]
      %v330 = vld [vmem:[%s308 + $0x19] sm:$0x1]
      %v331 = vld [vmem:[%s308 + $0x1a] sm:$0x1]
      %v332 = vld [vmem:[%s308 + $0x1b] sm:$0x1]
      %v333 = vld [vmem:[%s308 + $0x1c] sm:$0x1]
      %v334 = vld [vmem:[%s308 + $0x1d] sm:$0x1]
      %v335 = vld [vmem:[%s308 + $0x1e] sm:$0x1]
      %v336 = vld [vmem:[%s308 + $0x21] sm:$0x1]
      %v337 = vld [vmem:[%s308 + $0x22] sm:$0x1]
      %v338 = vld [vmem:[%s308 + $0x23] sm:$0x1]
      %v339 = vld [vmem:[%s308 + $0x24] sm:$0x1]
      %v340 = vld [vmem:[%s308 + $0x25] sm:$0x1]
      %v341 = vld [vmem:[%s308 + $0x26] sm:$0x1]
      %v342 = vld [vmem:[%s308 + $0x27] sm:$0x1]
      %v343 = vld [vmem:[%s308 + $0x28] sm:$0x1]
      %v344 = vld [vmem:[%s308 + $0x29] sm:$0x1]
      %v345 = vld [vmem:[%s308 + $0x2c] sm:$0x1]
      %v346 = vld [vmem:[%s308 + $0x2d] sm:$0x1]
      %v347 = vld [vmem:[%s308 + $0x2e] sm:$0x1]
      %v348 = vld [vmem:[%s308 + $0x2f] sm:$0x1]
      %v349 = vld [vmem:[%s308 + $0x30] sm:$0x1]
      %v350 = vld [vmem:[%s308 + $0x31] sm:$0x1]
      %v351 = vld [vmem:[%s308 + $0x32] sm:$0x1]
      %v352 = vld [vmem:[%s308 + $0x33] sm:$0x1]
      %v353 = vld [vmem:[%s308 + $0x34] sm:$0x1]
      %v354 = vld [vmem:[%s308 + $0x37] sm:$0x1]
      %v355 = vld [vmem:[%s308 + $0x38] sm:$0x1]
      %v356 = vld [vmem:[%s308 + $0x39] sm:$0x1]
      %v357 = vld [vmem:[%s308 + $0x3a] sm:$0x1]
      %v358 = vld [vmem:[%s308 + $0x3b] sm:$0x1]
      %v359 = vld [vmem:[%s308 + $0x3c] sm:$0x1]
      %v360 = vld [vmem:[%s308 + $0x3d] sm:$0x1]
      %v361 = vld [vmem:[%s308 + $0x3e] sm:$0x1]
      %v362 = vld [vmem:[%s308 + $0x3f] sm:$0x1]
      %v363 = vld [vmem:[%s308 + $0x42] sm:$0x1]
      %v364 = vld [vmem:[%s308 + $0x43] sm:$0x1]
      %v365 = vld [vmem:[%s308 + $0x44] sm:$0x1]
      %v366 = vld [vmem:[%s308 + $0x45] sm:$0x1]
      %v367 = vld [vmem:[%s308 + $0x46] sm:$0x1]
      %v368 = vld [vmem:[%s308 + $0x47] sm:$0x1]
      %v369 = vld [vmem:[%s308 + $0x48] sm:$0x1]
      %v370 = vld [vmem:[%s308 + $0x49] sm:$0x1]
      %v371 = vld [vmem:[%s308 + $0x4a] sm:$0x1]
      %v372 = vld [vmem:[%s308 + $0x4d] sm:$0x1]
      %v373 = vld [vmem:[%s308 + $0x4e] sm:$0x1]
      %v374 = vld [vmem:[%s308 + $0x4f] sm:$0x1]
      %v375 = vld [vmem:[%s308 + $0x50] sm:$0x1]
      %v376 = vld [vmem:[%s308 + $0x51] sm:$0x1]
      %v377 = vld [vmem:[%s308 + $0x52] sm:$0x1]
      %v378 = vld [vmem:[%s308 + $0x53] sm:$0x1]
      %v379 = vld [vmem:[%s308 + $0x54] sm:$0x1]
      %v380 = vld [vmem:[%s308 + $0x55] sm:$0x1]
      %v381 = vld [vmem:[%s308 + $0x58] sm:$0x1]
      %v382 = vld [vmem:[%s308 + $0x59] sm:$0x1]
      %v383 = vld [vmem:[%s308 + $0x5a] sm:$0x1]
      %v384 = vld [vmem:[%s308 + $0x5b] sm:$0x1]
      %v385 = vld [vmem:[%s308 + $0x5c] sm:$0x1]
      %v386 = vld [vmem:[%s308 + $0x5d] sm:$0x1]
      %v387 = vld [vmem:[%s308 + $0x5e] sm:$0x1]
      %v388 = vld [vmem:[%s308 + $0x5f] sm:$0x1]
      %v389 = vld [vmem:[%s308 + $0x60] sm:$0x1]
      %v390 = vstv %s307
      %v391 = vmul.f32 %v309, %v390
      %v392 = vmul.f32 %v310, %v390
      %v393 = vmul.f32 %v311, %v390
      %v394 = vmul.f32 %v312, %v390
      %v395 = vmul.f32 %v313, %v390
      %v396 = vmul.f32 %v314, %v390
      %v397 = vmul.f32 %v315, %v390
      %v398 = vmul.f32 %v316, %v390
      %v399 = vmul.f32 %v317, %v390
      %v400 = vmul.f32 %v318, %v390
      %v401 = vmul.f32 %v319, %v390
      %v402 = vmul.f32 %v320, %v390
      %v403 = vmul.f32 %v321, %v390
      %v404 = vmul.f32 %v322, %v390
      %v405 = vmul.f32 %v323, %v390
      %v406 = vmul.f32 %v324, %v390
      %v407 = vmul.f32 %v325, %v390
      %v408 = vmul.f32 %v326, %v390
      %v409 = vmul.f32 %v327, %v390
      %v410 = vmul.f32 %v328, %v390
      %v411 = vmul.f32 %v329, %v390
      %v412 = vmul.f32 %v330, %v390
      %v413 = vmul.f32 %v331, %v390
      %v414 = vmul.f32 %v332, %v390
      %v415 = vmul.f32 %v333, %v390
      %v416 = vmul.f32 %v334, %v390
      %v417 = vmul.f32 %v335, %v390
      %v418 = vmul.f32 %v336, %v390
      %v419 = vmul.f32 %v337, %v390
      %v420 = vmul.f32 %v338, %v390
      %v421 = vmul.f32 %v339, %v390
      %v422 = vmul.f32 %v340, %v390
      %v423 = vmul.f32 %v341, %v390
      %v424 = vmul.f32 %v342, %v390
      %v425 = vmul.f32 %v343, %v390
      %v426 = vmul.f32 %v344, %v390
      %v427 = vmul.f32 %v345, %v390
      %v428 = vmul.f32 %v346, %v390
      %v429 = vmul.f32 %v347, %v390
      %v430 = vmul.f32 %v348, %v390
      %v431 = vmul.f32 %v349, %v390
      %v432 = vmul.f32 %v350, %v390
      %v433 = vmul.f32 %v351, %v390
      %v434 = vmul.f32 %v352, %v390
      %v435 = vmul.f32 %v353, %v390
      %v436 = vmul.f32 %v354, %v390
      %v437 = vmul.f32 %v355, %v390
      %v438 = vmul.f32 %v356, %v390
      %v439 = vmul.f32 %v357, %v390
      %v440 = vmul.f32 %v358, %v390
      %v441 = vmul.f32 %v359, %v390
      %v442 = vmul.f32 %v360, %v390
      %v443 = vmul.f32 %v361, %v390
      %v444 = vmul.f32 %v362, %v390
      %v445 = vmul.f32 %v363, %v390
      %v446 = vmul.f32 %v364, %v390
      %v447 = vmul.f32 %v365, %v390
      %v448 = vmul.f32 %v366, %v390
      %v449 = vmul.f32 %v367, %v390
      %v450 = vmul.f32 %v368, %v390
      %v451 = vmul.f32 %v369, %v390
      %v452 = vmul.f32 %v370, %v390
      %v453 = vmul.f32 %v371, %v390
      %v454 = vmul.f32 %v372, %v390
      %v455 = vmul.f32 %v373, %v390
      %v456 = vmul.f32 %v374, %v390
      %v457 = vmul.f32 %v375, %v390
      %v458 = vmul.f32 %v376, %v390
      %v459 = vmul.f32 %v377, %v390
      %v460 = vmul.f32 %v378, %v390
      %v461 = vmul.f32 %v379, %v390
      %v462 = vmul.f32 %v380, %v390
      %v463 = vmul.f32 %v381, %v390
      %v464 = vmul.f32 %v382, %v390
      %v465 = vmul.f32 %v383, %v390
      %v466 = vmul.f32 %v384, %v390
      %v467 = vmul.f32 %v385, %v390
      %v468 = vmul.f32 %v386, %v390
      %v469 = vmul.f32 %v387, %v390
      %v470 = vmul.f32 %v388, %v390
      %v471 = vmul.f32 %v389, %v390
      %v472 = vadd.f32 %v225, %v391
      %v473 = vadd.f32 %v226, %v392
      %v474 = vadd.f32 %v227, %v393
      %v475 = vadd.f32 %v228, %v394
      %v476 = vadd.f32 %v229, %v395
      %v477 = vadd.f32 %v230, %v396
      %v478 = vadd.f32 %v231, %v397
      %v479 = vadd.f32 %v232, %v398
      %v480 = vadd.f32 %v233, %v399
      %v481 = vadd.f32 %v234, %v400
      %v482 = vadd.f32 %v235, %v401
      %v483 = vadd.f32 %v236, %v402
      %v484 = vadd.f32 %v237, %v403
      %v485 = vadd.f32 %v238, %v404
      %v486 = vadd.f32 %v239, %v405
      %v487 = vadd.f32 %v240, %v406
      %v488 = vadd.f32 %v241, %v407
      %v489 = vadd.f32 %v242, %v408
      %v490 = vadd.f32 %v243, %v409
      %v491 = vadd.f32 %v244, %v410
      %v492 = vadd.f32 %v245, %v411
      %v493 = vadd.f32 %v246, %v412
      %v494 = vadd.f32 %v247, %v413
      %v495 = vadd.f32 %v248, %v414
      %v496 = vadd.f32 %v249, %v415
      %v497 = vadd.f32 %v250, %v416
      %v498 = vadd.f32 %v251, %v417
      %v499 = vadd.f32 %v252, %v418
      %v500 = vadd.f32 %v253, %v419
      %v501 = vadd.f32 %v254, %v420
      %v502 = vadd.f32 %v255, %v421
      %v503 = vadd.f32 %v256, %v422
      %v504 = vadd.f32 %v257, %v423
      %v505 = vadd.f32 %v258, %v424
      %v506 = vadd.f32 %v259, %v425
      %v507 = vadd.f32 %v260, %v426
      %v508 = vadd.f32 %v261, %v427
      %v509 = vadd.f32 %v262, %v428
      %v510 = vadd.f32 %v263, %v429
      %v511 = vadd.f32 %v264, %v430
      %v512 = vadd.f32 %v265, %v431
      %v513 = vadd.f32 %v266, %v432
      %v514 = vadd.f32 %v267, %v433
      %v515 = vadd.f32 %v268, %v434
      %v516 = vadd.f32 %v269, %v435
      %v517 = vadd.f32 %v270, %v436
      %v518 = vadd.f32 %v271, %v437
      %v519 = vadd.f32 %v272, %v438
      %v520 = vadd.f32 %v273, %v439
      %v521 = vadd.f32 %v274, %v440
      %v522 = vadd.f32 %v275, %v441
      %v523 = vadd.f32 %v276, %v442
      %v524 = vadd.f32 %v277, %v443
      %v525 = vadd.f32 %v278, %v444
      %v526 = vadd.f32 %v279, %v445
      %v527 = vadd.f32 %v280, %v446
      %v528 = vadd.f32 %v281, %v447
      %v529 = vadd.f32 %v282, %v448
      %v530 = vadd.f32 %v283, %v449
      %v531 = vadd.f32 %v284, %v450
      %v532 = vadd.f32 %v285, %v451
      %v533 = vadd.f32 %v286, %v452
      %v534 = vadd.f32 %v287, %v453
      %v535 = vadd.f32 %v288, %v454
      %v536 = vadd.f32 %v289, %v455
      %v537 = vadd.f32 %v290, %v456
      %v538 = vadd.f32 %v291, %v457
      %v539 = vadd.f32 %v292, %v458
      %v540 = vadd.f32 %v293, %v459
      %v541 = vadd.f32 %v294, %v460
      %v542 = vadd.f32 %v295, %v461
      %v543 = vadd.f32 %v296, %v462
      %v544 = vadd.f32 %v297, %v463
      %v545 = vadd.f32 %v298, %v464
      %v546 = vadd.f32 %v299, %v465
      %v547 = vadd.f32 %v300, %v466
      %v548 = vadd.f32 %v301, %v467
      %v549 = vadd.f32 %v302, %v468
      %v550 = vadd.f32 %v303, %v469
      %v551 = vadd.f32 %v304, %v470
      %v552 = vadd.f32 %v305, %v471
      %s553 = sadd.s32 %s60, 2
      %s554 = sld [smem:[#allocation12 + %s553]]
      %s555 = scalar_lea.vmem [#allocation7], 2
      %v556 = vld [vmem:[%s555] sm:$0x1]
      %v557 = vld [vmem:[%s555 + $0x1] sm:$0x1]
      %v558 = vld [vmem:[%s555 + $0x2] sm:$0x1]
      %v559 = vld [vmem:[%s555 + $0x3] sm:$0x1]
      %v560 = vld [vmem:[%s555 + $0x4] sm:$0x1]
      %v561 = vld [vmem:[%s555 + $0x5] sm:$0x1]
      %v562 = vld [vmem:[%s555 + $0x6] sm:$0x1]
      %v563 = vld [vmem:[%s555 + $0x7] sm:$0x1]
      %v564 = vld [vmem:[%s555 + $0x8] sm:$0x1]
      %v565 = vld [vmem:[%s555 + $0xb] sm:$0x1]
      %v566 = vld [vmem:[%s555 + $0xc] sm:$0x1]
      %v567 = vld [vmem:[%s555 + $0xd] sm:$0x1]
      %v568 = vld [vmem:[%s555 + $0xe] sm:$0x1]
      %v569 = vld [vmem:[%s555 + $0xf] sm:$0x1]
      %v570 = vld [vmem:[%s555 + $0x10] sm:$0x1]
      %v571 = vld [vmem:[%s555 + $0x11] sm:$0x1]
      %v572 = vld [vmem:[%s555 + $0x12] sm:$0x1]
      %v573 = vld [vmem:[%s555 + $0x13] sm:$0x1]
      %v574 = vld [vmem:[%s555 + $0x16] sm:$0x1]
      %v575 = vld [vmem:[%s555 + $0x17] sm:$0x1]
      %v576 = vld [vmem:[%s555 + $0x18] sm:$0x1]
      %v577 = vld [vmem:[%s555 + $0x19] sm:$0x1]
      %v578 = vld [vmem:[%s555 + $0x1a] sm:$0x1]
      %v579 = vld [vmem:[%s555 + $0x1b] sm:$0x1]
      %v580 = vld [vmem:[%s555 + $0x1c] sm:$0x1]
      %v581 = vld [vmem:[%s555 + $0x1d] sm:$0x1]
      %v582 = vld [vmem:[%s555 + $0x1e] sm:$0x1]
      %v583 = vld [vmem:[%s555 + $0x21] sm:$0x1]
      %v584 = vld [vmem:[%s555 + $0x22] sm:$0x1]
      %v585 = vld [vmem:[%s555 + $0x23] sm:$0x1]
      %v586 = vld [vmem:[%s555 + $0x24] sm:$0x1]
      %v587 = vld [vmem:[%s555 + $0x25] sm:$0x1]
      %v588 = vld [vmem:[%s555 + $0x26] sm:$0x1]
      %v589 = vld [vmem:[%s555 + $0x27] sm:$0x1]
      %v590 = vld [vmem:[%s555 + $0x28] sm:$0x1]
      %v591 = vld [vmem:[%s555 + $0x29] sm:$0x1]
      %v592 = vld [vmem:[%s555 + $0x2c] sm:$0x1]
      %v593 = vld [vmem:[%s555 + $0x2d] sm:$0x1]
      %v594 = vld [vmem:[%s555 + $0x2e] sm:$0x1]
      %v595 = vld [vmem:[%s555 + $0x2f] sm:$0x1]
      %v596 = vld [vmem:[%s555 + $0x30] sm:$0x1]
      %v597 = vld [vmem:[%s555 + $0x31] sm:$0x1]
      %v598 = vld [vmem:[%s555 + $0x32] sm:$0x1]
      %v599 = vld [vmem:[%s555 + $0x33] sm:$0x1]
      %v600 = vld [vmem:[%s555 + $0x34] sm:$0x1]
      %v601 = vld [vmem:[%s555 + $0x37] sm:$0x1]
      %v602 = vld [vmem:[%s555 + $0x38] sm:$0x1]
      %v603 = vld [vmem:[%s555 + $0x39] sm:$0x1]
      %v604 = vld [vmem:[%s555 + $0x3a] sm:$0x1]
      %v605 = vld [vmem:[%s555 + $0x3b] sm:$0x1]
      %v606 = vld [vmem:[%s555 + $0x3c] sm:$0x1]
      %v607 = vld [vmem:[%s555 + $0x3d] sm:$0x1]
      %v608 = vld [vmem:[%s555 + $0x3e] sm:$0x1]
      %v609 = vld [vmem:[%s555 + $0x3f] sm:$0x1]
      %v610 = vld [vmem:[%s555 + $0x42] sm:$0x1]
      %v611 = vld [vmem:[%s555 + $0x43] sm:$0x1]
      %v612 = vld [vmem:[%s555 + $0x44] sm:$0x1]
      %v613 = vld [vmem:[%s555 + $0x45] sm:$0x1]
      %v614 = vld [vmem:[%s555 + $0x46] sm:$0x1]
      %v615 = vld [vmem:[%s555 + $0x47] sm:$0x1]
      %v616 = vld [vmem:[%s555 + $0x48] sm:$0x1]
      %v617 = vld [vmem:[%s555 + $0x49] sm:$0x1]
      %v618 = vld [vmem:[%s555 + $0x4a] sm:$0x1]
      %v619 = vld [vmem:[%s555 + $0x4d] sm:$0x1]
      %v620 = vld [vmem:[%s555 + $0x4e] sm:$0x1]
      %v621 = vld [vmem:[%s555 + $0x4f] sm:$0x1]
      %v622 = vld [vmem:[%s555 + $0x50] sm:$0x1]
      %v623 = vld [vmem:[%s555 + $0x51] sm:$0x1]
      %v624 = vld [vmem:[%s555 + $0x52] sm:$0x1]
      %v625 = vld [vmem:[%s555 + $0x53] sm:$0x1]
      %v626 = vld [vmem:[%s555 + $0x54] sm:$0x1]
      %v627 = vld [vmem:[%s555 + $0x55] sm:$0x1]
      %v628 = vld [vmem:[%s555 + $0x58] sm:$0x1]
      %v629 = vld [vmem:[%s555 + $0x59] sm:$0x1]
      %v630 = vld [vmem:[%s555 + $0x5a] sm:$0x1]
      %v631 = vld [vmem:[%s555 + $0x5b] sm:$0x1]
      %v632 = vld [vmem:[%s555 + $0x5c] sm:$0x1]
      %v633 = vld [vmem:[%s555 + $0x5d] sm:$0x1]
      %v634 = vld [vmem:[%s555 + $0x5e] sm:$0x1]
      %v635 = vld [vmem:[%s555 + $0x5f] sm:$0x1]
      %v636 = vld [vmem:[%s555 + $0x60] sm:$0x1]
      %v637 = vstv %s554
      %v638 = vmul.f32 %v556, %v637
      %v639 = vmul.f32 %v557, %v637
      %v640 = vmul.f32 %v558, %v637
      %v641 = vmul.f32 %v559, %v637
      %v642 = vmul.f32 %v560, %v637
      %v643 = vmul.f32 %v561, %v637
      %v644 = vmul.f32 %v562, %v637
      %v645 = vmul.f32 %v563, %v637
      %v646 = vmul.f32 %v564, %v637
      %v647 = vmul.f32 %v565, %v637
      %v648 = vmul.f32 %v566, %v637
      %v649 = vmul.f32 %v567, %v637
      %v650 = vmul.f32 %v568, %v637
      %v651 = vmul.f32 %v569, %v637
      %v652 = vmul.f32 %v570, %v637
      %v653 = vmul.f32 %v571, %v637
      %v654 = vmul.f32 %v572, %v637
      %v655 = vmul.f32 %v573, %v637
      %v656 = vmul.f32 %v574, %v637
      %v657 = vmul.f32 %v575, %v637
      %v658 = vmul.f32 %v576, %v637
      %v659 = vmul.f32 %v577, %v637
      %v660 = vmul.f32 %v578, %v637
      %v661 = vmul.f32 %v579, %v637
      %v662 = vmul.f32 %v580, %v637
      %v663 = vmul.f32 %v581, %v637
      %v664 = vmul.f32 %v582, %v637
      %v665 = vmul.f32 %v583, %v637
      %v666 = vmul.f32 %v584, %v637
      %v667 = vmul.f32 %v585, %v637
      %v668 = vmul.f32 %v586, %v637
      %v669 = vmul.f32 %v587, %v637
      %v670 = vmul.f32 %v588, %v637
      %v671 = vmul.f32 %v589, %v637
      %v672 = vmul.f32 %v590, %v637
      %v673 = vmul.f32 %v591, %v637
      %v674 = vmul.f32 %v592, %v637
      %v675 = vmul.f32 %v593, %v637
      %v676 = vmul.f32 %v594, %v637
      %v677 = vmul.f32 %v595, %v637
      %v678 = vmul.f32 %v596, %v637
      %v679 = vmul.f32 %v597, %v637
      %v680 = vmul.f32 %v598, %v637
      %v681 = vmul.f32 %v599, %v637
      %v682 = vmul.f32 %v600, %v637
      %v683 = vmul.f32 %v601, %v637
      %v684 = vmul.f32 %v602, %v637
      %v685 = vmul.f32 %v603, %v637
      %v686 = vmul.f32 %v604, %v637
      %v687 = vmul.f32 %v605, %v637
      %v688 = vmul.f32 %v606, %v637
      %v689 = vmul.f32 %v607, %v637
      %v690 = vmul.f32 %v608, %v637
      %v691 = vmul.f32 %v609, %v637
      %v692 = vmul.f32 %v610, %v637
      %v693 = vmul.f32 %v611, %v637
      %v694 = vmul.f32 %v612, %v637
      %v695 = vmul.f32 %v613, %v637
      %v696 = vmul.f32 %v614, %v637
      %v697 = vmul.f32 %v615, %v637
      %v698 = vmul.f32 %v616, %v637
      %v699 = vmul.f32 %v617, %v637
      %v700 = vmul.f32 %v618, %v637
      %v701 = vmul.f32 %v619, %v637
      %v702 = vmul.f32 %v620, %v637
      %v703 = vmul.f32 %v621, %v637
      %v704 = vmul.f32 %v622, %v637
      %v705 = vmul.f32 %v623, %v637
      %v706 = vmul.f32 %v624, %v637
      %v707 = vmul.f32 %v625, %v637
      %v708 = vmul.f32 %v626, %v637
      %v709 = vmul.f32 %v627, %v637
      %v710 = vmul.f32 %v628, %v637
      %v711 = vmul.f32 %v629, %v637
      %v712 = vmul.f32 %v630, %v637
      %v713 = vmul.f32 %v631, %v637
      %v714 = vmul.f32 %v632, %v637
      %v715 = vmul.f32 %v633, %v637
      %v716 = vmul.f32 %v634, %v637
      %v717 = vmul.f32 %v635, %v637
      %v718 = vmul.f32 %v636, %v637
      %v719 = vadd.f32 %v472, %v638
      %v720 = vadd.f32 %v473, %v639
      %v721 = vadd.f32 %v474, %v640
      %v722 = vadd.f32 %v475, %v641
      %v723 = vadd.f32 %v476, %v642
      %v724 = vadd.f32 %v477, %v643
      %v725 = vadd.f32 %v478, %v644
      %v726 = vadd.f32 %v479, %v645
      %v727 = vadd.f32 %v480, %v646
      %v728 = vadd.f32 %v481, %v647
      %v729 = vadd.f32 %v482, %v648
      %v730 = vadd.f32 %v483, %v649
      %v731 = vadd.f32 %v484, %v650
      %v732 = vadd.f32 %v485, %v651
      %v733 = vadd.f32 %v486, %v652
      %v734 = vadd.f32 %v487, %v653
      %v735 = vadd.f32 %v488, %v654
      %v736 = vadd.f32 %v489, %v655
      %v737 = vadd.f32 %v490, %v656
      %v738 = vadd.f32 %v491, %v657
      %v739 = vadd.f32 %v492, %v658
      %v740 = vadd.f32 %v493, %v659
      %v741 = vadd.f32 %v494, %v660
      %v742 = vadd.f32 %v495, %v661
      %v743 = vadd.f32 %v496, %v662
      %v744 = vadd.f32 %v497, %v663
      %v745 = vadd.f32 %v498, %v664
      %v746 = vadd.f32 %v499, %v665
      %v747 = vadd.f32 %v500, %v666
      %v748 = vadd.f32 %v501, %v667
      %v749 = vadd.f32 %v502, %v668
      %v750 = vadd.f32 %v503, %v669
      %v751 = vadd.f32 %v504, %v670
      %v752 = vadd.f32 %v505, %v671
      %v753 = vadd.f32 %v506, %v672
      %v754 = vadd.f32 %v507, %v673
      %v755 = vadd.f32 %v508, %v674
      %v756 = vadd.f32 %v509, %v675
      %v757 = vadd.f32 %v510, %v676
      %v758 = vadd.f32 %v511, %v677
      %v759 = vadd.f32 %v512, %v678
      %v760 = vadd.f32 %v513, %v679
      %v761 = vadd.f32 %v514, %v680
      %v762 = vadd.f32 %v515, %v681
      %v763 = vadd.f32 %v516, %v682
      %v764 = vadd.f32 %v517, %v683
      %v765 = vadd.f32 %v518, %v684
      %v766 = vadd.f32 %v519, %v685
      %v767 = vadd.f32 %v520, %v686
      %v768 = vadd.f32 %v521, %v687
      %v769 = vadd.f32 %v522, %v688
      %v770 = vadd.f32 %v523, %v689
      %v771 = vadd.f32 %v524, %v690
      %v772 = vadd.f32 %v525, %v691
      %v773 = vadd.f32 %v526, %v692
      %v774 = vadd.f32 %v527, %v693
      %v775 = vadd.f32 %v528, %v694
      %v776 = vadd.f32 %v529, %v695
      %v777 = vadd.f32 %v530, %v696
      %v778 = vadd.f32 %v531, %v697
      %v779 = vadd.f32 %v532, %v698
      %v780 = vadd.f32 %v533, %v699
      %v781 = vadd.f32 %v534, %v700
      %v782 = vadd.f32 %v535, %v701
      %v783 = vadd.f32 %v536, %v702
      %v784 = vadd.f32 %v537, %v703
      %v785 = vadd.f32 %v538, %v704
      %v786 = vadd.f32 %v539, %v705
      %v787 = vadd.f32 %v540, %v706
      %v788 = vadd.f32 %v541, %v707
      %v789 = vadd.f32 %v542, %v708
      %v790 = vadd.f32 %v543, %v709
      %v791 = vadd.f32 %v544, %v710
      %v792 = vadd.f32 %v545, %v711
      %v793 = vadd.f32 %v546, %v712
      %v794 = vadd.f32 %v547, %v713
      %v795 = vadd.f32 %v548, %v714
      %v796 = vadd.f32 %v549, %v715
      %v797 = vadd.f32 %v550, %v716
      %v798 = vadd.f32 %v551, %v717
      %v799 = vadd.f32 %v552, %v718
      %s800 = sadd.s32 %s60, 3
      %s801 = sld [smem:[#allocation12 + %s800]]
      %s802 = scalar_lea.vmem [#allocation7], 11
      %v803 = vld [vmem:[%s802] sm:$0x1]
      %v804 = vld [vmem:[%s802 + $0x1] sm:$0x1]
      %v805 = vld [vmem:[%s802 + $0x2] sm:$0x1]
      %v806 = vld [vmem:[%s802 + $0x3] sm:$0x1]
      %v807 = vld [vmem:[%s802 + $0x4] sm:$0x1]
      %v808 = vld [vmem:[%s802 + $0x5] sm:$0x1]
      %v809 = vld [vmem:[%s802 + $0x6] sm:$0x1]
      %v810 = vld [vmem:[%s802 + $0x7] sm:$0x1]
      %v811 = vld [vmem:[%s802 + $0x8] sm:$0x1]
      %v812 = vld [vmem:[%s802 + $0xb] sm:$0x1]
      %v813 = vld [vmem:[%s802 + $0xc] sm:$0x1]
      %v814 = vld [vmem:[%s802 + $0xd] sm:$0x1]
      %v815 = vld [vmem:[%s802 + $0xe] sm:$0x1]
      %v816 = vld [vmem:[%s802 + $0xf] sm:$0x1]
      %v817 = vld [vmem:[%s802 + $0x10] sm:$0x1]
      %v818 = vld [vmem:[%s802 + $0x11] sm:$0x1]
      %v819 = vld [vmem:[%s802 + $0x12] sm:$0x1]
      %v820 = vld [vmem:[%s802 + $0x13] sm:$0x1]
      %v821 = vld [vmem:[%s802 + $0x16] sm:$0x1]
      %v822 = vld [vmem:[%s802 + $0x17] sm:$0x1]
      %v823 = vld [vmem:[%s802 + $0x18] sm:$0x1]
      %v824 = vld [vmem:[%s802 + $0x19] sm:$0x1]
      %v825 = vld [vmem:[%s802 + $0x1a] sm:$0x1]
      %v826 = vld [vmem:[%s802 + $0x1b] sm:$0x1]
      %v827 = vld [vmem:[%s802 + $0x1c] sm:$0x1]
      %v828 = vld [vmem:[%s802 + $0x1d] sm:$0x1]
      %v829 = vld [vmem:[%s802 + $0x1e] sm:$0x1]
      %v830 = vld [vmem:[%s802 + $0x21] sm:$0x1]
      %v831 = vld [vmem:[%s802 + $0x22] sm:$0x1]
      %v832 = vld [vmem:[%s802 + $0x23] sm:$0x1]
      %v833 = vld [vmem:[%s802 + $0x24] sm:$0x1]
      %v834 = vld [vmem:[%s802 + $0x25] sm:$0x1]
      %v835 = vld [vmem:[%s802 + $0x26] sm:$0x1]
      %v836 = vld [vmem:[%s802 + $0x27] sm:$0x1]
      %v837 = vld [vmem:[%s802 + $0x28] sm:$0x1]
      %v838 = vld [vmem:[%s802 + $0x29] sm:$0x1]
      %v839 = vld [vmem:[%s802 + $0x2c] sm:$0x1]
      %v840 = vld [vmem:[%s802 + $0x2d] sm:$0x1]
      %v841 = vld [vmem:[%s802 + $0x2e] sm:$0x1]
      %v842 = vld [vmem:[%s802 + $0x2f] sm:$0x1]
      %v843 = vld [vmem:[%s802 + $0x30] sm:$0x1]
      %v844 = vld [vmem:[%s802 + $0x31] sm:$0x1]
      %v845 = vld [vmem:[%s802 + $0x32] sm:$0x1]
      %v846 = vld [vmem:[%s802 + $0x33] sm:$0x1]
      %v847 = vld [vmem:[%s802 + $0x34] sm:$0x1]
      %v848 = vld [vmem:[%s802 + $0x37] sm:$0x1]
      %v849 = vld [vmem:[%s802 + $0x38] sm:$0x1]
      %v850 = vld [vmem:[%s802 + $0x39] sm:$0x1]
      %v851 = vld [vmem:[%s802 + $0x3a] sm:$0x1]
      %v852 = vld [vmem:[%s802 + $0x3b] sm:$0x1]
      %v853 = vld [vmem:[%s802 + $0x3c] sm:$0x1]
      %v854 = vld [vmem:[%s802 + $0x3d] sm:$0x1]
      %v855 = vld [vmem:[%s802 + $0x3e] sm:$0x1]
      %v856 = vld [vmem:[%s802 + $0x3f] sm:$0x1]
      %v857 = vld [vmem:[%s802 + $0x42] sm:$0x1]
      %v858 = vld [vmem:[%s802 + $0x43] sm:$0x1]
      %v859 = vld [vmem:[%s802 + $0x44] sm:$0x1]
      %v860 = vld [vmem:[%s802 + $0x45] sm:$0x1]
      %v861 = vld [vmem:[%s802 + $0x46] sm:$0x1]
      %v862 = vld [vmem:[%s802 + $0x47] sm:$0x1]
      %v863 = vld [vmem:[%s802 + $0x48] sm:$0x1]
      %v864 = vld [vmem:[%s802 + $0x49] sm:$0x1]
      %v865 = vld [vmem:[%s802 + $0x4a] sm:$0x1]
      %v866 = vld [vmem:[%s802 + $0x4d] sm:$0x1]
      %v867 = vld [vmem:[%s802 + $0x4e] sm:$0x1]
      %v868 = vld [vmem:[%s802 + $0x4f] sm:$0x1]
      %v869 = vld [vmem:[%s802 + $0x50] sm:$0x1]
      %v870 = vld [vmem:[%s802 + $0x51] sm:$0x1]
      %v871 = vld [vmem:[%s802 + $0x52] sm:$0x1]
      %v872 = vld [vmem:[%s802 + $0x53] sm:$0x1]
      %v873 = vld [vmem:[%s802 + $0x54] sm:$0x1]
      %v874 = vld [vmem:[%s802 + $0x55] sm:$0x1]
      %v875 = vld [vmem:[%s802 + $0x58] sm:$0x1]
      %v876 = vld [vmem:[%s802 + $0x59] sm:$0x1]
      %v877 = vld [vmem:[%s802 + $0x5a] sm:$0x1]
      %v878 = vld [vmem:[%s802 + $0x5b] sm:$0x1]
      %v879 = vld [vmem:[%s802 + $0x5c] sm:$0x1]
      %v880 = vld [vmem:[%s802 + $0x5d] sm:$0x1]
      %v881 = vld [vmem:[%s802 + $0x5e] sm:$0x1]
      %v882 = vld [vmem:[%s802 + $0x5f] sm:$0x1]
      %v883 = vld [vmem:[%s802 + $0x60] sm:$0x1]
      %v884 = vstv %s801
      %v885 = vmul.f32 %v803, %v884
      %v886 = vmul.f32 %v804, %v884
      %v887 = vmul.f32 %v805, %v884
      %v888 = vmul.f32 %v806, %v884
      %v889 = vmul.f32 %v807, %v884
      %v890 = vmul.f32 %v808, %v884
      %v891 = vmul.f32 %v809, %v884
      %v892 = vmul.f32 %v810, %v884
      %v893 = vmul.f32 %v811, %v884
      %v894 = vmul.f32 %v812, %v884
      %v895 = vmul.f32 %v813, %v884
      %v896 = vmul.f32 %v814, %v884
      %v897 = vmul.f32 %v815, %v884
      %v898 = vmul.f32 %v816, %v884
      %v899 = vmul.f32 %v817, %v884
      %v900 = vmul.f32 %v818, %v884
      %v901 = vmul.f32 %v819, %v884
      %v902 = vmul.f32 %v820, %v884
      %v903 = vmul.f32 %v821, %v884
      %v904 = vmul.f32 %v822, %v884
      %v905 = vmul.f32 %v823, %v884
      %v906 = vmul.f32 %v824, %v884
      %v907 = vmul.f32 %v825, %v884
      %v908 = vmul.f32 %v826, %v884
      %v909 = vmul.f32 %v827, %v884
      %v910 = vmul.f32 %v828, %v884
      %v911 = vmul.f32 %v829, %v884
      %v912 = vmul.f32 %v830, %v884
      %v913 = vmul.f32 %v831, %v884
      %v914 = vmul.f32 %v832, %v884
      %v915 = vmul.f32 %v833, %v884
      %v916 = vmul.f32 %v834, %v884
      %v917 = vmul.f32 %v835, %v884
      %v918 = vmul.f32 %v836, %v884
      %v919 = vmul.f32 %v837, %v884
      %v920 = vmul.f32 %v838, %v884
      %v921 = vmul.f32 %v839, %v884
      %v922 = vmul.f32 %v840, %v884
      %v923 = vmul.f32 %v841, %v884
      %v924 = vmul.f32 %v842, %v884
      %v925 = vmul.f32 %v843, %v884
      %v926 = vmul.f32 %v844, %v884
      %v927 = vmul.f32 %v845, %v884
      %v928 = vmul.f32 %v846, %v884
      %v929 = vmul.f32 %v847, %v884
      %v930 = vmul.f32 %v848, %v884
      %v931 = vmul.f32 %v849, %v884
      %v932 = vmul.f32 %v850, %v884
      %v933 = vmul.f32 %v851, %v884
      %v934 = vmul.f32 %v852, %v884
      %v935 = vmul.f32 %v853, %v884
      %v936 = vmul.f32 %v854, %v884
      %v937 = vmul.f32 %v855, %v884
      %v938 = vmul.f32 %v856, %v884
      %v939 = vmul.f32 %v857, %v884
      %v940 = vmul.f32 %v858, %v884
      %v941 = vmul.f32 %v859, %v884
      %v942 = vmul.f32 %v860, %v884
      %v943 = vmul.f32 %v861, %v884
      %v944 = vmul.f32 %v862, %v884
      %v945 = vmul.f32 %v863, %v884
      %v946 = vmul.f32 %v864, %v884
      %v947 = vmul.f32 %v865, %v884
      %v948 = vmul.f32 %v866, %v884
      %v949 = vmul.f32 %v867, %v884
      %v950 = vmul.f32 %v868, %v884
      %v951 = vmul.f32 %v869, %v884
      %v952 = vmul.f32 %v870, %v884
      %v953 = vmul.f32 %v871, %v884
      %v954 = vmul.f32 %v872, %v884
      %v955 = vmul.f32 %v873, %v884
      %v956 = vmul.f32 %v874, %v884
      %v957 = vmul.f32 %v875, %v884
      %v958 = vmul.f32 %v876, %v884
      %v959 = vmul.f32 %v877, %v884
      %v960 = vmul.f32 %v878, %v884
      %v961 = vmul.f32 %v879, %v884
      %v962 = vmul.f32 %v880, %v884
      %v963 = vmul.f32 %v881, %v884
      %v964 = vmul.f32 %v882, %v884
      %v965 = vmul.f32 %v883, %v884
      %v966 = vadd.f32 %v719, %v885
      %v967 = vadd.f32 %v720, %v886
      %v968 = vadd.f32 %v721, %v887
      %v969 = vadd.f32 %v722, %v888
      %v970 = vadd.f32 %v723, %v889
      %v971 = vadd.f32 %v724, %v890
      %v972 = vadd.f32 %v725, %v891
      %v973 = vadd.f32 %v726, %v892
      %v974 = vadd.f32 %v727, %v893
      %v975 = vadd.f32 %v728, %v894
      %v976 = vadd.f32 %v729, %v895
      %v977 = vadd.f32 %v730, %v896
      %v978 = vadd.f32 %v731, %v897
      %v979 = vadd.f32 %v732, %v898
      %v980 = vadd.f32 %v733, %v899
      %v981 = vadd.f32 %v734, %v900
      %v982 = vadd.f32 %v735, %v901
      %v983 = vadd.f32 %v736, %v902
      %v984 = vadd.f32 %v737, %v903
      %v985 = vadd.f32 %v738, %v904
      %v986 = vadd.f32 %v739, %v905
      %v987 = vadd.f32 %v740, %v906
      %v988 = vadd.f32 %v741, %v907
      %v989 = vadd.f32 %v742, %v908
      %v990 = vadd.f32 %v743, %v909
      %v991 = vadd.f32 %v744, %v910
      %v992 = vadd.f32 %v745, %v911
      %v993 = vadd.f32 %v746, %v912
      %v994 = vadd.f32 %v747, %v913
      %v995 = vadd.f32 %v748, %v914
      %v996 = vadd.f32 %v749, %v915
      %v997 = vadd.f32 %v750, %v916
      %v998 = vadd.f32 %v751, %v917
      %v999 = vadd.f32 %v752, %v918
      %v1000 = vadd.f32 %v753, %v919
      %v1001 = vadd.f32 %v754, %v920
      %v1002 = vadd.f32 %v755, %v921
      %v1003 = vadd.f32 %v756, %v922
      %v1004 = vadd.f32 %v757, %v923
      %v1005 = vadd.f32 %v758, %v924
      %v1006 = vadd.f32 %v759, %v925
      %v1007 = vadd.f32 %v760, %v926
      %v1008 = vadd.f32 %v761, %v927
      %v1009 = vadd.f32 %v762, %v928
      %v1010 = vadd.f32 %v763, %v929
      %v1011 = vadd.f32 %v764, %v930
      %v1012 = vadd.f32 %v765, %v931
      %v1013 = vadd.f32 %v766, %v932
      %v1014 = vadd.f32 %v767, %v933
      %v1015 = vadd.f32 %v768, %v934
      %v1016 = vadd.f32 %v769, %v935
      %v1017 = vadd.f32 %v770, %v936
      %v1018 = vadd.f32 %v771, %v937
      %v1019 = vadd.f32 %v772, %v938
      %v1020 = vadd.f32 %v773, %v939
      %v1021 = vadd.f32 %v774, %v940
      %v1022 = vadd.f32 %v775, %v941
      %v1023 = vadd.f32 %v776, %v942
      %v1024 = vadd.f32 %v777, %v943
      %v1025 = vadd.f32 %v778, %v944
      %v1026 = vadd.f32 %v779, %v945
      %v1027 = vadd.f32 %v780, %v946
      %v1028 = vadd.f32 %v781, %v947
      %v1029 = vadd.f32 %v782, %v948
      %v1030 = vadd.f32 %v783, %v949
      %v1031 = vadd.f32 %v784, %v950
      %v1032 = vadd.f32 %v785, %v951
      %v1033 = vadd.f32 %v786, %v952
      %v1034 = vadd.f32 %v787, %v953
      %v1035 = vadd.f32 %v788, %v954
      %v1036 = vadd.f32 %v789, %v955
      %v1037 = vadd.f32 %v790, %v956
      %v1038 = vadd.f32 %v791, %v957
      %v1039 = vadd.f32 %v792, %v958
      %v1040 = vadd.f32 %v793, %v959
      %v1041 = vadd.f32 %v794, %v960
      %v1042 = vadd.f32 %v795, %v961
      %v1043 = vadd.f32 %v796, %v962
      %v1044 = vadd.f32 %v797, %v963
      %v1045 = vadd.f32 %v798, %v964
      %v1046 = vadd.f32 %v799, %v965
      %s1047 = sadd.s32 %s60, 4
      %s1048 = sld [smem:[#allocation12 + %s1047]]
      %s1049 = scalar_lea.vmem [#allocation7], 12
      %v1050 = vld [vmem:[%s1049] sm:$0x1]
      %v1051 = vld [vmem:[%s1049 + $0x1] sm:$0x1]
      %v1052 = vld [vmem:[%s1049 + $0x2] sm:$0x1]
      %v1053 = vld [vmem:[%s1049 + $0x3] sm:$0x1]
      %v1054 = vld [vmem:[%s1049 + $0x4] sm:$0x1]
      %v1055 = vld [vmem:[%s1049 + $0x5] sm:$0x1]
      %v1056 = vld [vmem:[%s1049 + $0x6] sm:$0x1]
      %v1057 = vld [vmem:[%s1049 + $0x7] sm:$0x1]
      %v1058 = vld [vmem:[%s1049 + $0x8] sm:$0x1]
      %v1059 = vld [vmem:[%s1049 + $0xb] sm:$0x1]
      %v1060 = vld [vmem:[%s1049 + $0xc] sm:$0x1]
      %v1061 = vld [vmem:[%s1049 + $0xd] sm:$0x1]
      %v1062 = vld [vmem:[%s1049 + $0xe] sm:$0x1]
      %v1063 = vld [vmem:[%s1049 + $0xf] sm:$0x1]
      %v1064 = vld [vmem:[%s1049 + $0x10] sm:$0x1]
      %v1065 = vld [vmem:[%s1049 + $0x11] sm:$0x1]
      %v1066 = vld [vmem:[%s1049 + $0x12] sm:$0x1]
      %v1067 = vld [vmem:[%s1049 + $0x13] sm:$0x1]
      %v1068 = vld [vmem:[%s1049 + $0x16] sm:$0x1]
      %v1069 = vld [vmem:[%s1049 + $0x17] sm:$0x1]
      %v1070 = vld [vmem:[%s1049 + $0x18] sm:$0x1]
      %v1071 = vld [vmem:[%s1049 + $0x19] sm:$0x1]
      %v1072 = vld [vmem:[%s1049 + $0x1a] sm:$0x1]
      %v1073 = vld [vmem:[%s1049 + $0x1b] sm:$0x1]
      %v1074 = vld [vmem:[%s1049 + $0x1c] sm:$0x1]
      %v1075 = vld [vmem:[%s1049 + $0x1d] sm:$0x1]
      %v1076 = vld [vmem:[%s1049 + $0x1e] sm:$0x1]
      %v1077 = vld [vmem:[%s1049 + $0x21] sm:$0x1]
      %v1078 = vld [vmem:[%s1049 + $0x22] sm:$0x1]
      %v1079 = vld [vmem:[%s1049 + $0x23] sm:$0x1]
      %v1080 = vld [vmem:[%s1049 + $0x24] sm:$0x1]
      %v1081 = vld [vmem:[%s1049 + $0x25] sm:$0x1]
      %v1082 = vld [vmem:[%s1049 + $0x26] sm:$0x1]
      %v1083 = vld [vmem:[%s1049 + $0x27] sm:$0x1]
      %v1084 = vld [vmem:[%s1049 + $0x28] sm:$0x1]
      %v1085 = vld [vmem:[%s1049 + $0x29] sm:$0x1]
      %v1086 = vld [vmem:[%s1049 + $0x2c] sm:$0x1]
      %v1087 = vld [vmem:[%s1049 + $0x2d] sm:$0x1]
      %v1088 = vld [vmem:[%s1049 + $0x2e] sm:$0x1]
      %v1089 = vld [vmem:[%s1049 + $0x2f] sm:$0x1]
      %v1090 = vld [vmem:[%s1049 + $0x30] sm:$0x1]
      %v1091 = vld [vmem:[%s1049 + $0x31] sm:$0x1]
      %v1092 = vld [vmem:[%s1049 + $0x32] sm:$0x1]
      %v1093 = vld [vmem:[%s1049 + $0x33] sm:$0x1]
      %v1094 = vld [vmem:[%s1049 + $0x34] sm:$0x1]
      %v1095 = vld [vmem:[%s1049 + $0x37] sm:$0x1]
      %v1096 = vld [vmem:[%s1049 + $0x38] sm:$0x1]
      %v1097 = vld [vmem:[%s1049 + $0x39] sm:$0x1]
      %v1098 = vld [vmem:[%s1049 + $0x3a] sm:$0x1]
      %v1099 = vld [vmem:[%s1049 + $0x3b] sm:$0x1]
      %v1100 = vld [vmem:[%s1049 + $0x3c] sm:$0x1]
      %v1101 = vld [vmem:[%s1049 + $0x3d] sm:$0x1]
      %v1102 = vld [vmem:[%s1049 + $0x3e] sm:$0x1]
      %v1103 = vld [vmem:[%s1049 + $0x3f] sm:$0x1]
      %v1104 = vld [vmem:[%s1049 + $0x42] sm:$0x1]
      %v1105 = vld [vmem:[%s1049 + $0x43] sm:$0x1]
      %v1106 = vld [vmem:[%s1049 + $0x44] sm:$0x1]
      %v1107 = vld [vmem:[%s1049 + $0x45] sm:$0x1]
      %v1108 = vld [vmem:[%s1049 + $0x46] sm:$0x1]
      %v1109 = vld [vmem:[%s1049 + $0x47] sm:$0x1]
      %v1110 = vld [vmem:[%s1049 + $0x48] sm:$0x1]
      %v1111 = vld [vmem:[%s1049 + $0x49] sm:$0x1]
      %v1112 = vld [vmem:[%s1049 + $0x4a] sm:$0x1]
      %v1113 = vld [vmem:[%s1049 + $0x4d] sm:$0x1]
      %v1114 = vld [vmem:[%s1049 + $0x4e] sm:$0x1]
      %v1115 = vld [vmem:[%s1049 + $0x4f] sm:$0x1]
      %v1116 = vld [vmem:[%s1049 + $0x50] sm:$0x1]
      %v1117 = vld [vmem:[%s1049 + $0x51] sm:$0x1]
      %v1118 = vld [vmem:[%s1049 + $0x52] sm:$0x1]
      %v1119 = vld [vmem:[%s1049 + $0x53] sm:$0x1]
      %v1120 = vld [vmem:[%s1049 + $0x54] sm:$0x1]
      %v1121 = vld [vmem:[%s1049 + $0x55] sm:$0x1]
      %v1122 = vld [vmem:[%s1049 + $0x58] sm:$0x1]
      %v1123 = vld [vmem:[%s1049 + $0x59] sm:$0x1]
      %v1124 = vld [vmem:[%s1049 + $0x5a] sm:$0x1]
      %v1125 = vld [vmem:[%s1049 + $0x5b] sm:$0x1]
      %v1126 = vld [vmem:[%s1049 + $0x5c] sm:$0x1]
      %v1127 = vld [vmem:[%s1049 + $0x5d] sm:$0x1]
      %v1128 = vld [vmem:[%s1049 + $0x5e] sm:$0x1]
      %v1129 = vld [vmem:[%s1049 + $0x5f] sm:$0x1]
      %v1130 = vld [vmem:[%s1049 + $0x60] sm:$0x1]
      %v1131 = vstv %s1048
      %v1132 = vmul.f32 %v1050, %v1131
      %v1133 = vmul.f32 %v1051, %v1131
      %v1134 = vmul.f32 %v1052, %v1131
      %v1135 = vmul.f32 %v1053, %v1131
      %v1136 = vmul.f32 %v1054, %v1131
      %v1137 = vmul.f32 %v1055, %v1131
      %v1138 = vmul.f32 %v1056, %v1131
      %v1139 = vmul.f32 %v1057, %v1131
      %v1140 = vmul.f32 %v1058, %v1131
      %v1141 = vmul.f32 %v1059, %v1131
      %v1142 = vmul.f32 %v1060, %v1131
      %v1143 = vmul.f32 %v1061, %v1131
      %v1144 = vmul.f32 %v1062, %v1131
      %v1145 = vmul.f32 %v1063, %v1131
      %v1146 = vmul.f32 %v1064, %v1131
      %v1147 = vmul.f32 %v1065, %v1131
      %v1148 = vmul.f32 %v1066, %v1131
      %v1149 = vmul.f32 %v1067, %v1131
      %v1150 = vmul.f32 %v1068, %v1131
      %v1151 = vmul.f32 %v1069, %v1131
      %v1152 = vmul.f32 %v1070, %v1131
      %v1153 = vmul.f32 %v1071, %v1131
      %v1154 = vmul.f32 %v1072, %v1131
      %v1155 = vmul.f32 %v1073, %v1131
      %v1156 = vmul.f32 %v1074, %v1131
      %v1157 = vmul.f32 %v1075, %v1131
      %v1158 = vmul.f32 %v1076, %v1131
      %v1159 = vmul.f32 %v1077, %v1131
      %v1160 = vmul.f32 %v1078, %v1131
      %v1161 = vmul.f32 %v1079, %v1131
      %v1162 = vmul.f32 %v1080, %v1131
      %v1163 = vmul.f32 %v1081, %v1131
      %v1164 = vmul.f32 %v1082, %v1131
      %v1165 = vmul.f32 %v1083, %v1131
      %v1166 = vmul.f32 %v1084, %v1131
      %v1167 = vmul.f32 %v1085, %v1131
      %v1168 = vmul.f32 %v1086, %v1131
      %v1169 = vmul.f32 %v1087, %v1131
      %v1170 = vmul.f32 %v1088, %v1131
      %v1171 = vmul.f32 %v1089, %v1131
      %v1172 = vmul.f32 %v1090, %v1131
      %v1173 = vmul.f32 %v1091, %v1131
      %v1174 = vmul.f32 %v1092, %v1131
      %v1175 = vmul.f32 %v1093, %v1131
      %v1176 = vmul.f32 %v1094, %v1131
      %v1177 = vmul.f32 %v1095, %v1131
      %v1178 = vmul.f32 %v1096, %v1131
      %v1179 = vmul.f32 %v1097, %v1131
      %v1180 = vmul.f32 %v1098, %v1131
      %v1181 = vmul.f32 %v1099, %v1131
      %v1182 = vmul.f32 %v1100, %v1131
      %v1183 = vmul.f32 %v1101, %v1131
      %v1184 = vmul.f32 %v1102, %v1131
      %v1185 = vmul.f32 %v1103, %v1131
      %v1186 = vmul.f32 %v1104, %v1131
      %v1187 = vmul.f32 %v1105, %v1131
      %v1188 = vmul.f32 %v1106, %v1131
      %v1189 = vmul.f32 %v1107, %v1131
      %v1190 = vmul.f32 %v1108, %v1131
      %v1191 = vmul.f32 %v1109, %v1131
      %v1192 = vmul.f32 %v1110, %v1131
      %v1193 = vmul.f32 %v1111, %v1131
      %v1194 = vmul.f32 %v1112, %v1131
      %v1195 = vmul.f32 %v1113, %v1131
      %v1196 = vmul.f32 %v1114, %v1131
      %v1197 = vmul.f32 %v1115, %v1131
      %v1198 = vmul.f32 %v1116, %v1131
      %v1199 = vmul.f32 %v1117, %v1131
      %v1200 = vmul.f32 %v1118, %v1131
      %v1201 = vmul.f32 %v1119, %v1131
      %v1202 = vmul.f32 %v1120, %v1131
      %v1203 = vmul.f32 %v1121, %v1131
      %v1204 = vmul.f32 %v1122, %v1131
      %v1205 = vmul.f32 %v1123, %v1131
      %v1206 = vmul.f32 %v1124, %v1131
      %v1207 = vmul.f32 %v1125, %v1131
      %v1208 = vmul.f32 %v1126, %v1131
      %v1209 = vmul.f32 %v1127, %v1131
      %v1210 = vmul.f32 %v1128, %v1131
      %v1211 = vmul.f32 %v1129, %v1131
      %v1212 = vmul.f32 %v1130, %v1131
      %v1213 = vadd.f32 %v966, %v1132
      %v1214 = vadd.f32 %v967, %v1133
      %v1215 = vadd.f32 %v968, %v1134
      %v1216 = vadd.f32 %v969, %v1135
      %v1217 = vadd.f32 %v970, %v1136
      %v1218 = vadd.f32 %v971, %v1137
      %v1219 = vadd.f32 %v972, %v1138
      %v1220 = vadd.f32 %v973, %v1139
      %v1221 = vadd.f32 %v974, %v1140
      %v1222 = vadd.f32 %v975, %v1141
      %v1223 = vadd.f32 %v976, %v1142
      %v1224 = vadd.f32 %v977, %v1143
      %v1225 = vadd.f32 %v978, %v1144
      %v1226 = vadd.f32 %v979, %v1145
      %v1227 = vadd.f32 %v980, %v1146
      %v1228 = vadd.f32 %v981, %v1147
      %v1229 = vadd.f32 %v982, %v1148
      %v1230 = vadd.f32 %v983, %v1149
      %v1231 = vadd.f32 %v984, %v1150
      %v1232 = vadd.f32 %v985, %v1151
      %v1233 = vadd.f32 %v986, %v1152
      %v1234 = vadd.f32 %v987, %v1153
      %v1235 = vadd.f32 %v988, %v1154
      %v1236 = vadd.f32 %v989, %v1155
      %v1237 = vadd.f32 %v990, %v1156
      %v1238 = vadd.f32 %v991, %v1157
      %v1239 = vadd.f32 %v992, %v1158
      %v1240 = vadd.f32 %v993, %v1159
      %v1241 = vadd.f32 %v994, %v1160
      %v1242 = vadd.f32 %v995, %v1161
      %v1243 = vadd.f32 %v996, %v1162
      %v1244 = vadd.f32 %v997, %v1163
      %v1245 = vadd.f32 %v998, %v1164
      %v1246 = vadd.f32 %v999, %v1165
      %v1247 = vadd.f32 %v1000, %v1166
      %v1248 = vadd.f32 %v1001, %v1167
      %v1249 = vadd.f32 %v1002, %v1168
      %v1250 = vadd.f32 %v1003, %v1169
      %v1251 = vadd.f32 %v1004, %v1170
      %v1252 = vadd.f32 %v1005, %v1171
      %v1253 = vadd.f32 %v1006, %v1172
      %v1254 = vadd.f32 %v1007, %v1173
      %v1255 = vadd.f32 %v1008, %v1174
      %v1256 = vadd.f32 %v1009, %v1175
      %v1257 = vadd.f32 %v1010, %v1176
      %v1258 = vadd.f32 %v1011, %v1177
      %v1259 = vadd.f32 %v1012, %v1178
      %v1260 = vadd.f32 %v1013, %v1179
      %v1261 = vadd.f32 %v1014, %v1180
      %v1262 = vadd.f32 %v1015, %v1181
      %v1263 = vadd.f32 %v1016, %v1182
      %v1264 = vadd.f32 %v1017, %v1183
      %v1265 = vadd.f32 %v1018, %v1184
      %v1266 = vadd.f32 %v1019, %v1185
      %v1267 = vadd.f32 %v1020, %v1186
      %v1268 = vadd.f32 %v1021, %v1187
      %v1269 = vadd.f32 %v1022, %v1188
      %v1270 = vadd.f32 %v1023, %v1189
      %v1271 = vadd.f32 %v1024, %v1190
      %v1272 = vadd.f32 %v1025, %v1191
      %v1273 = vadd.f32 %v1026, %v1192
      %v1274 = vadd.f32 %v1027, %v1193
      %v1275 = vadd.f32 %v1028, %v1194
      %v1276 = vadd.f32 %v1029, %v1195
      %v1277 = vadd.f32 %v1030, %v1196
      %v1278 = vadd.f32 %v1031, %v1197
      %v1279 = vadd.f32 %v1032, %v1198
      %v1280 = vadd.f32 %v1033, %v1199
      %v1281 = vadd.f32 %v1034, %v1200
      %v1282 = vadd.f32 %v1035, %v1201
      %v1283 = vadd.f32 %v1036, %v1202
      %v1284 = vadd.f32 %v1037, %v1203
      %v1285 = vadd.f32 %v1038, %v1204
      %v1286 = vadd.f32 %v1039, %v1205
      %v1287 = vadd.f32 %v1040, %v1206
      %v1288 = vadd.f32 %v1041, %v1207
      %v1289 = vadd.f32 %v1042, %v1208
      %v1290 = vadd.f32 %v1043, %v1209
      %v1291 = vadd.f32 %v1044, %v1210
      %v1292 = vadd.f32 %v1045, %v1211
      %v1293 = vadd.f32 %v1046, %v1212
      %s1294 = sadd.s32 %s60, 5
      %s1295 = sld [smem:[#allocation12 + %s1294]]
      %s1296 = scalar_lea.vmem [#allocation7], 13
      %v1297 = vld [vmem:[%s1296] sm:$0x1]
      %v1298 = vld [vmem:[%s1296 + $0x1] sm:$0x1]
      %v1299 = vld [vmem:[%s1296 + $0x2] sm:$0x1]
      %v1300 = vld [vmem:[%s1296 + $0x3] sm:$0x1]
      %v1301 = vld [vmem:[%s1296 + $0x4] sm:$0x1]
      %v1302 = vld [vmem:[%s1296 + $0x5] sm:$0x1]
      %v1303 = vld [vmem:[%s1296 + $0x6] sm:$0x1]
      %v1304 = vld [vmem:[%s1296 + $0x7] sm:$0x1]
      %v1305 = vld [vmem:[%s1296 + $0x8] sm:$0x1]
      %v1306 = vld [vmem:[%s1296 + $0xb] sm:$0x1]
      %v1307 = vld [vmem:[%s1296 + $0xc] sm:$0x1]
      %v1308 = vld [vmem:[%s1296 + $0xd] sm:$0x1]
      %v1309 = vld [vmem:[%s1296 + $0xe] sm:$0x1]
      %v1310 = vld [vmem:[%s1296 + $0xf] sm:$0x1]
      %v1311 = vld [vmem:[%s1296 + $0x10] sm:$0x1]
      %v1312 = vld [vmem:[%s1296 + $0x11] sm:$0x1]
      %v1313 = vld [vmem:[%s1296 + $0x12] sm:$0x1]
      %v1314 = vld [vmem:[%s1296 + $0x13] sm:$0x1]
      %v1315 = vld [vmem:[%s1296 + $0x16] sm:$0x1]
      %v1316 = vld [vmem:[%s1296 + $0x17] sm:$0x1]
      %v1317 = vld [vmem:[%s1296 + $0x18] sm:$0x1]
      %v1318 = vld [vmem:[%s1296 + $0x19] sm:$0x1]
      %v1319 = vld [vmem:[%s1296 + $0x1a] sm:$0x1]
      %v1320 = vld [vmem:[%s1296 + $0x1b] sm:$0x1]
      %v1321 = vld [vmem:[%s1296 + $0x1c] sm:$0x1]
      %v1322 = vld [vmem:[%s1296 + $0x1d] sm:$0x1]
      %v1323 = vld [vmem:[%s1296 + $0x1e] sm:$0x1]
      %v1324 = vld [vmem:[%s1296 + $0x21] sm:$0x1]
      %v1325 = vld [vmem:[%s1296 + $0x22] sm:$0x1]
      %v1326 = vld [vmem:[%s1296 + $0x23] sm:$0x1]
      %v1327 = vld [vmem:[%s1296 + $0x24] sm:$0x1]
      %v1328 = vld [vmem:[%s1296 + $0x25] sm:$0x1]
      %v1329 = vld [vmem:[%s1296 + $0x26] sm:$0x1]
      %v1330 = vld [vmem:[%s1296 + $0x27] sm:$0x1]
      %v1331 = vld [vmem:[%s1296 + $0x28] sm:$0x1]
      %v1332 = vld [vmem:[%s1296 + $0x29] sm:$0x1]
      %v1333 = vld [vmem:[%s1296 + $0x2c] sm:$0x1]
      %v1334 = vld [vmem:[%s1296 + $0x2d] sm:$0x1]
      %v1335 = vld [vmem:[%s1296 + $0x2e] sm:$0x1]
      %v1336 = vld [vmem:[%s1296 + $0x2f] sm:$0x1]
      %v1337 = vld [vmem:[%s1296 + $0x30] sm:$0x1]
      %v1338 = vld [vmem:[%s1296 + $0x31] sm:$0x1]
      %v1339 = vld [vmem:[%s1296 + $0x32] sm:$0x1]
      %v1340 = vld [vmem:[%s1296 + $0x33] sm:$0x1]
      %v1341 = vld [vmem:[%s1296 + $0x34] sm:$0x1]
      %v1342 = vld [vmem:[%s1296 + $0x37] sm:$0x1]
      %v1343 = vld [vmem:[%s1296 + $0x38] sm:$0x1]
      %v1344 = vld [vmem:[%s1296 + $0x39] sm:$0x1]
      %v1345 = vld [vmem:[%s1296 + $0x3a] sm:$0x1]
      %v1346 = vld [vmem:[%s1296 + $0x3b] sm:$0x1]
      %v1347 = vld [vmem:[%s1296 + $0x3c] sm:$0x1]
      %v1348 = vld [vmem:[%s1296 + $0x3d] sm:$0x1]
      %v1349 = vld [vmem:[%s1296 + $0x3e] sm:$0x1]
      %v1350 = vld [vmem:[%s1296 + $0x3f] sm:$0x1]
      %v1351 = vld [vmem:[%s1296 + $0x42] sm:$0x1]
      %v1352 = vld [vmem:[%s1296 + $0x43] sm:$0x1]
      %v1353 = vld [vmem:[%s1296 + $0x44] sm:$0x1]
      %v1354 = vld [vmem:[%s1296 + $0x45] sm:$0x1]
      %v1355 = vld [vmem:[%s1296 + $0x46] sm:$0x1]
      %v1356 = vld [vmem:[%s1296 + $0x47] sm:$0x1]
      %v1357 = vld [vmem:[%s1296 + $0x48] sm:$0x1]
      %v1358 = vld [vmem:[%s1296 + $0x49] sm:$0x1]
      %v1359 = vld [vmem:[%s1296 + $0x4a] sm:$0x1]
      %v1360 = vld [vmem:[%s1296 + $0x4d] sm:$0x1]
      %v1361 = vld [vmem:[%s1296 + $0x4e] sm:$0x1]
      %v1362 = vld [vmem:[%s1296 + $0x4f] sm:$0x1]
      %v1363 = vld [vmem:[%s1296 + $0x50] sm:$0x1]
      %v1364 = vld [vmem:[%s1296 + $0x51] sm:$0x1]
      %v1365 = vld [vmem:[%s1296 + $0x52] sm:$0x1]
      %v1366 = vld [vmem:[%s1296 + $0x53] sm:$0x1]
      %v1367 = vld [vmem:[%s1296 + $0x54] sm:$0x1]
      %v1368 = vld [vmem:[%s1296 + $0x55] sm:$0x1]
      %v1369 = vld [vmem:[%s1296 + $0x58] sm:$0x1]
      %v1370 = vld [vmem:[%s1296 + $0x59] sm:$0x1]
      %v1371 = vld [vmem:[%s1296 + $0x5a] sm:$0x1]
      %v1372 = vld [vmem:[%s1296 + $0x5b] sm:$0x1]
      %v1373 = vld [vmem:[%s1296 + $0x5c] sm:$0x1]
      %v1374 = vld [vmem:[%s1296 + $0x5d] sm:$0x1]
      %v1375 = vld [vmem:[%s1296 + $0x5e] sm:$0x1]
      %v1376 = vld [vmem:[%s1296 + $0x5f] sm:$0x1]
      %v1377 = vld [vmem:[%s1296 + $0x60] sm:$0x1]
      %v1378 = vstv %s1295
      %v1379 = vmul.f32 %v1297, %v1378
      %v1380 = vmul.f32 %v1298, %v1378
      %v1381 = vmul.f32 %v1299, %v1378
      %v1382 = vmul.f32 %v1300, %v1378
      %v1383 = vmul.f32 %v1301, %v1378
      %v1384 = vmul.f32 %v1302, %v1378
      %v1385 = vmul.f32 %v1303, %v1378
      %v1386 = vmul.f32 %v1304, %v1378
      %v1387 = vmul.f32 %v1305, %v1378
      %v1388 = vmul.f32 %v1306, %v1378
      %v1389 = vmul.f32 %v1307, %v1378
      %v1390 = vmul.f32 %v1308, %v1378
      %v1391 = vmul.f32 %v1309, %v1378
      %v1392 = vmul.f32 %v1310, %v1378
      %v1393 = vmul.f32 %v1311, %v1378
      %v1394 = vmul.f32 %v1312, %v1378
      %v1395 = vmul.f32 %v1313, %v1378
      %v1396 = vmul.f32 %v1314, %v1378
      %v1397 = vmul.f32 %v1315, %v1378
      %v1398 = vmul.f32 %v1316, %v1378
      %v1399 = vmul.f32 %v1317, %v1378
      %v1400 = vmul.f32 %v1318, %v1378
      %v1401 = vmul.f32 %v1319, %v1378
      %v1402 = vmul.f32 %v1320, %v1378
      %v1403 = vmul.f32 %v1321, %v1378
      %v1404 = vmul.f32 %v1322, %v1378
      %v1405 = vmul.f32 %v1323, %v1378
      %v1406 = vmul.f32 %v1324, %v1378
      %v1407 = vmul.f32 %v1325, %v1378
      %v1408 = vmul.f32 %v1326, %v1378
      %v1409 = vmul.f32 %v1327, %v1378
      %v1410 = vmul.f32 %v1328, %v1378
      %v1411 = vmul.f32 %v1329, %v1378
      %v1412 = vmul.f32 %v1330, %v1378
      %v1413 = vmul.f32 %v1331, %v1378
      %v1414 = vmul.f32 %v1332, %v1378
      %v1415 = vmul.f32 %v1333, %v1378
      %v1416 = vmul.f32 %v1334, %v1378
      %v1417 = vmul.f32 %v1335, %v1378
      %v1418 = vmul.f32 %v1336, %v1378
      %v1419 = vmul.f32 %v1337, %v1378
      %v1420 = vmul.f32 %v1338, %v1378
      %v1421 = vmul.f32 %v1339, %v1378
      %v1422 = vmul.f32 %v1340, %v1378
      %v1423 = vmul.f32 %v1341, %v1378
      %v1424 = vmul.f32 %v1342, %v1378
      %v1425 = vmul.f32 %v1343, %v1378
      %v1426 = vmul.f32 %v1344, %v1378
      %v1427 = vmul.f32 %v1345, %v1378
      %v1428 = vmul.f32 %v1346, %v1378
      %v1429 = vmul.f32 %v1347, %v1378
      %v1430 = vmul.f32 %v1348, %v1378
      %v1431 = vmul.f32 %v1349, %v1378
      %v1432 = vmul.f32 %v1350, %v1378
      %v1433 = vmul.f32 %v1351, %v1378
      %v1434 = vmul.f32 %v1352, %v1378
      %v1435 = vmul.f32 %v1353, %v1378
      %v1436 = vmul.f32 %v1354, %v1378
      %v1437 = vmul.f32 %v1355, %v1378
      %v1438 = vmul.f32 %v1356, %v1378
      %v1439 = vmul.f32 %v1357, %v1378
      %v1440 = vmul.f32 %v1358, %v1378
      %v1441 = vmul.f32 %v1359, %v1378
      %v1442 = vmul.f32 %v1360, %v1378
      %v1443 = vmul.f32 %v1361, %v1378
      %v1444 = vmul.f32 %v1362, %v1378
      %v1445 = vmul.f32 %v1363, %v1378
      %v1446 = vmul.f32 %v1364, %v1378
      %v1447 = vmul.f32 %v1365, %v1378
      %v1448 = vmul.f32 %v1366, %v1378
      %v1449 = vmul.f32 %v1367, %v1378
      %v1450 = vmul.f32 %v1368, %v1378
      %v1451 = vmul.f32 %v1369, %v1378
      %v1452 = vmul.f32 %v1370, %v1378
      %v1453 = vmul.f32 %v1371, %v1378
      %v1454 = vmul.f32 %v1372, %v1378
      %v1455 = vmul.f32 %v1373, %v1378
      %v1456 = vmul.f32 %v1374, %v1378
      %v1457 = vmul.f32 %v1375, %v1378
      %v1458 = vmul.f32 %v1376, %v1378
      %v1459 = vmul.f32 %v1377, %v1378
      %v1460 = vadd.f32 %v1213, %v1379
      %v1461 = vadd.f32 %v1214, %v1380
      %v1462 = vadd.f32 %v1215, %v1381
      %v1463 = vadd.f32 %v1216, %v1382
      %v1464 = vadd.f32 %v1217, %v1383
      %v1465 = vadd.f32 %v1218, %v1384
      %v1466 = vadd.f32 %v1219, %v1385
      %v1467 = vadd.f32 %v1220, %v1386
      %v1468 = vadd.f32 %v1221, %v1387
      %v1469 = vadd.f32 %v1222, %v1388
      %v1470 = vadd.f32 %v1223, %v1389
      %v1471 = vadd.f32 %v1224, %v1390
      %v1472 = vadd.f32 %v1225, %v1391
      %v1473 = vadd.f32 %v1226, %v1392
      %v1474 = vadd.f32 %v1227, %v1393
      %v1475 = vadd.f32 %v1228, %v1394
      %v1476 = vadd.f32 %v1229, %v1395
      %v1477 = vadd.f32 %v1230, %v1396
      %v1478 = vadd.f32 %v1231, %v1397
      %v1479 = vadd.f32 %v1232, %v1398
      %v1480 = vadd.f32 %v1233, %v1399
      %v1481 = vadd.f32 %v1234, %v1400
      %v1482 = vadd.f32 %v1235, %v1401
      %v1483 = vadd.f32 %v1236, %v1402
      %v1484 = vadd.f32 %v1237, %v1403
      %v1485 = vadd.f32 %v1238, %v1404
      %v1486 = vadd.f32 %v1239, %v1405
      %v1487 = vadd.f32 %v1240, %v1406
      %v1488 = vadd.f32 %v1241, %v1407
      %v1489 = vadd.f32 %v1242, %v1408
      %v1490 = vadd.f32 %v1243, %v1409
      %v1491 = vadd.f32 %v1244, %v1410
      %v1492 = vadd.f32 %v1245, %v1411
      %v1493 = vadd.f32 %v1246, %v1412
      %v1494 = vadd.f32 %v1247, %v1413
      %v1495 = vadd.f32 %v1248, %v1414
      %v1496 = vadd.f32 %v1249, %v1415
      %v1497 = vadd.f32 %v1250, %v1416
      %v1498 = vadd.f32 %v1251, %v1417
      %v1499 = vadd.f32 %v1252, %v1418
      %v1500 = vadd.f32 %v1253, %v1419
      %v1501 = vadd.f32 %v1254, %v1420
      %v1502 = vadd.f32 %v1255, %v1421
      %v1503 = vadd.f32 %v1256, %v1422
      %v1504 = vadd.f32 %v1257, %v1423
      %v1505 = vadd.f32 %v1258, %v1424
      %v1506 = vadd.f32 %v1259, %v1425
      %v1507 = vadd.f32 %v1260, %v1426
      %v1508 = vadd.f32 %v1261, %v1427
      %v1509 = vadd.f32 %v1262, %v1428
      %v1510 = vadd.f32 %v1263, %v1429
      %v1511 = vadd.f32 %v1264, %v1430
      %v1512 = vadd.f32 %v1265, %v1431
      %v1513 = vadd.f32 %v1266, %v1432
      %v1514 = vadd.f32 %v1267, %v1433
      %v1515 = vadd.f32 %v1268, %v1434
      %v1516 = vadd.f32 %v1269, %v1435
      %v1517 = vadd.f32 %v1270, %v1436
      %v1518 = vadd.f32 %v1271, %v1437
      %v1519 = vadd.f32 %v1272, %v1438
      %v1520 = vadd.f32 %v1273, %v1439
      %v1521 = vadd.f32 %v1274, %v1440
      %v1522 = vadd.f32 %v1275, %v1441
      %v1523 = vadd.f32 %v1276, %v1442
      %v1524 = vadd.f32 %v1277, %v1443
      %v1525 = vadd.f32 %v1278, %v1444
      %v1526 = vadd.f32 %v1279, %v1445
      %v1527 = vadd.f32 %v1280, %v1446
      %v1528 = vadd.f32 %v1281, %v1447
      %v1529 = vadd.f32 %v1282, %v1448
      %v1530 = vadd.f32 %v1283, %v1449
      %v1531 = vadd.f32 %v1284, %v1450
      %v1532 = vadd.f32 %v1285, %v1451
      %v1533 = vadd.f32 %v1286, %v1452
      %v1534 = vadd.f32 %v1287, %v1453
      %v1535 = vadd.f32 %v1288, %v1454
      %v1536 = vadd.f32 %v1289, %v1455
      %v1537 = vadd.f32 %v1290, %v1456
      %v1538 = vadd.f32 %v1291, %v1457
      %v1539 = vadd.f32 %v1292, %v1458
      %v1540 = vadd.f32 %v1293, %v1459
      %s1541 = sadd.s32 %s60, 6
      %s1542 = sld [smem:[#allocation12 + %s1541]]
      %s1543 = scalar_lea.vmem [#allocation7], 22
      %v1544 = vld [vmem:[%s1543] sm:$0x1]
      %v1545 = vld [vmem:[%s1543 + $0x1] sm:$0x1]
      %v1546 = vld [vmem:[%s1543 + $0x2] sm:$0x1]
      %v1547 = vld [vmem:[%s1543 + $0x3] sm:$0x1]
      %v1548 = vld [vmem:[%s1543 + $0x4] sm:$0x1]
      %v1549 = vld [vmem:[%s1543 + $0x5] sm:$0x1]
      %v1550 = vld [vmem:[%s1543 + $0x6] sm:$0x1]
      %v1551 = vld [vmem:[%s1543 + $0x7] sm:$0x1]
      %v1552 = vld [vmem:[%s1543 + $0x8] sm:$0x1]
      %v1553 = vld [vmem:[%s1543 + $0xb] sm:$0x1]
      %v1554 = vld [vmem:[%s1543 + $0xc] sm:$0x1]
      %v1555 = vld [vmem:[%s1543 + $0xd] sm:$0x1]
      %v1556 = vld [vmem:[%s1543 + $0xe] sm:$0x1]
      %v1557 = vld [vmem:[%s1543 + $0xf] sm:$0x1]
      %v1558 = vld [vmem:[%s1543 + $0x10] sm:$0x1]
      %v1559 = vld [vmem:[%s1543 + $0x11] sm:$0x1]
      %v1560 = vld [vmem:[%s1543 + $0x12] sm:$0x1]
      %v1561 = vld [vmem:[%s1543 + $0x13] sm:$0x1]
      %v1562 = vld [vmem:[%s1543 + $0x16] sm:$0x1]
      %v1563 = vld [vmem:[%s1543 + $0x17] sm:$0x1]
      %v1564 = vld [vmem:[%s1543 + $0x18] sm:$0x1]
      %v1565 = vld [vmem:[%s1543 + $0x19] sm:$0x1]
      %v1566 = vld [vmem:[%s1543 + $0x1a] sm:$0x1]
      %v1567 = vld [vmem:[%s1543 + $0x1b] sm:$0x1]
      %v1568 = vld [vmem:[%s1543 + $0x1c] sm:$0x1]
      %v1569 = vld [vmem:[%s1543 + $0x1d] sm:$0x1]
      %v1570 = vld [vmem:[%s1543 + $0x1e] sm:$0x1]
      %v1571 = vld [vmem:[%s1543 + $0x21] sm:$0x1]
      %v1572 = vld [vmem:[%s1543 + $0x22] sm:$0x1]
      %v1573 = vld [vmem:[%s1543 + $0x23] sm:$0x1]
      %v1574 = vld [vmem:[%s1543 + $0x24] sm:$0x1]
      %v1575 = vld [vmem:[%s1543 + $0x25] sm:$0x1]
      %v1576 = vld [vmem:[%s1543 + $0x26] sm:$0x1]
      %v1577 = vld [vmem:[%s1543 + $0x27] sm:$0x1]
      %v1578 = vld [vmem:[%s1543 + $0x28] sm:$0x1]
      %v1579 = vld [vmem:[%s1543 + $0x29] sm:$0x1]
      %v1580 = vld [vmem:[%s1543 + $0x2c] sm:$0x1]
      %v1581 = vld [vmem:[%s1543 + $0x2d] sm:$0x1]
      %v1582 = vld [vmem:[%s1543 + $0x2e] sm:$0x1]
      %v1583 = vld [vmem:[%s1543 + $0x2f] sm:$0x1]
      %v1584 = vld [vmem:[%s1543 + $0x30] sm:$0x1]
      %v1585 = vld [vmem:[%s1543 + $0x31] sm:$0x1]
      %v1586 = vld [vmem:[%s1543 + $0x32] sm:$0x1]
      %v1587 = vld [vmem:[%s1543 + $0x33] sm:$0x1]
      %v1588 = vld [vmem:[%s1543 + $0x34] sm:$0x1]
      %v1589 = vld [vmem:[%s1543 + $0x37] sm:$0x1]
      %v1590 = vld [vmem:[%s1543 + $0x38] sm:$0x1]
      %v1591 = vld [vmem:[%s1543 + $0x39] sm:$0x1]
      %v1592 = vld [vmem:[%s1543 + $0x3a] sm:$0x1]
      %v1593 = vld [vmem:[%s1543 + $0x3b] sm:$0x1]
      %v1594 = vld [vmem:[%s1543 + $0x3c] sm:$0x1]
      %v1595 = vld [vmem:[%s1543 + $0x3d] sm:$0x1]
      %v1596 = vld [vmem:[%s1543 + $0x3e] sm:$0x1]
      %v1597 = vld [vmem:[%s1543 + $0x3f] sm:$0x1]
      %v1598 = vld [vmem:[%s1543 + $0x42] sm:$0x1]
      %v1599 = vld [vmem:[%s1543 + $0x43] sm:$0x1]
      %v1600 = vld [vmem:[%s1543 + $0x44] sm:$0x1]
      %v1601 = vld [vmem:[%s1543 + $0x45] sm:$0x1]
      %v1602 = vld [vmem:[%s1543 + $0x46] sm:$0x1]
      %v1603 = vld [vmem:[%s1543 + $0x47] sm:$0x1]
      %v1604 = vld [vmem:[%s1543 + $0x48] sm:$0x1]
      %v1605 = vld [vmem:[%s1543 + $0x49] sm:$0x1]
      %v1606 = vld [vmem:[%s1543 + $0x4a] sm:$0x1]
      %v1607 = vld [vmem:[%s1543 + $0x4d] sm:$0x1]
      %v1608 = vld [vmem:[%s1543 + $0x4e] sm:$0x1]
      %v1609 = vld [vmem:[%s1543 + $0x4f] sm:$0x1]
      %v1610 = vld [vmem:[%s1543 + $0x50] sm:$0x1]
      %v1611 = vld [vmem:[%s1543 + $0x51] sm:$0x1]
      %v1612 = vld [vmem:[%s1543 + $0x52] sm:$0x1]
      %v1613 = vld [vmem:[%s1543 + $0x53] sm:$0x1]
      %v1614 = vld [vmem:[%s1543 + $0x54] sm:$0x1]
      %v1615 = vld [vmem:[%s1543 + $0x55] sm:$0x1]
      %v1616 = vld [vmem:[%s1543 + $0x58] sm:$0x1]
      %v1617 = vld [vmem:[%s1543 + $0x59] sm:$0x1]
      %v1618 = vld [vmem:[%s1543 + $0x5a] sm:$0x1]
      %v1619 = vld [vmem:[%s1543 + $0x5b] sm:$0x1]
      %v1620 = vld [vmem:[%s1543 + $0x5c] sm:$0x1]
      %v1621 = vld [vmem:[%s1543 + $0x5d] sm:$0x1]
      %v1622 = vld [vmem:[%s1543 + $0x5e] sm:$0x1]
      %v1623 = vld [vmem:[%s1543 + $0x5f] sm:$0x1]
      %v1624 = vld [vmem:[%s1543 + $0x60] sm:$0x1]
      %v1625 = vstv %s1542
      %v1626 = vmul.f32 %v1544, %v1625
      %v1627 = vmul.f32 %v1545, %v1625
      %v1628 = vmul.f32 %v1546, %v1625
      %v1629 = vmul.f32 %v1547, %v1625
      %v1630 = vmul.f32 %v1548, %v1625
      %v1631 = vmul.f32 %v1549, %v1625
      %v1632 = vmul.f32 %v1550, %v1625
      %v1633 = vmul.f32 %v1551, %v1625
      %v1634 = vmul.f32 %v1552, %v1625
      %v1635 = vmul.f32 %v1553, %v1625
      %v1636 = vmul.f32 %v1554, %v1625
      %v1637 = vmul.f32 %v1555, %v1625
      %v1638 = vmul.f32 %v1556, %v1625
      %v1639 = vmul.f32 %v1557, %v1625
      %v1640 = vmul.f32 %v1558, %v1625
      %v1641 = vmul.f32 %v1559, %v1625
      %v1642 = vmul.f32 %v1560, %v1625
      %v1643 = vmul.f32 %v1561, %v1625
      %v1644 = vmul.f32 %v1562, %v1625
      %v1645 = vmul.f32 %v1563, %v1625
      %v1646 = vmul.f32 %v1564, %v1625
      %v1647 = vmul.f32 %v1565, %v1625
      %v1648 = vmul.f32 %v1566, %v1625
      %v1649 = vmul.f32 %v1567, %v1625
      %v1650 = vmul.f32 %v1568, %v1625
      %v1651 = vmul.f32 %v1569, %v1625
      %v1652 = vmul.f32 %v1570, %v1625
      %v1653 = vmul.f32 %v1571, %v1625
      %v1654 = vmul.f32 %v1572, %v1625
      %v1655 = vmul.f32 %v1573, %v1625
      %v1656 = vmul.f32 %v1574, %v1625
      %v1657 = vmul.f32 %v1575, %v1625
      %v1658 = vmul.f32 %v1576, %v1625
      %v1659 = vmul.f32 %v1577, %v1625
      %v1660 = vmul.f32 %v1578, %v1625
      %v1661 = vmul.f32 %v1579, %v1625
      %v1662 = vmul.f32 %v1580, %v1625
      %v1663 = vmul.f32 %v1581, %v1625
      %v1664 = vmul.f32 %v1582, %v1625
      %v1665 = vmul.f32 %v1583, %v1625
      %v1666 = vmul.f32 %v1584, %v1625
      %v1667 = vmul.f32 %v1585, %v1625
      %v1668 = vmul.f32 %v1586, %v1625
      %v1669 = vmul.f32 %v1587, %v1625
      %v1670 = vmul.f32 %v1588, %v1625
      %v1671 = vmul.f32 %v1589, %v1625
      %v1672 = vmul.f32 %v1590, %v1625
      %v1673 = vmul.f32 %v1591, %v1625
      %v1674 = vmul.f32 %v1592, %v1625
      %v1675 = vmul.f32 %v1593, %v1625
      %v1676 = vmul.f32 %v1594, %v1625
      %v1677 = vmul.f32 %v1595, %v1625
      %v1678 = vmul.f32 %v1596, %v1625
      %v1679 = vmul.f32 %v1597, %v1625
      %v1680 = vmul.f32 %v1598, %v1625
      %v1681 = vmul.f32 %v1599, %v1625
      %v1682 = vmul.f32 %v1600, %v1625
      %v1683 = vmul.f32 %v1601, %v1625
      %v1684 = vmul.f32 %v1602, %v1625
      %v1685 = vmul.f32 %v1603, %v1625
      %v1686 = vmul.f32 %v1604, %v1625
      %v1687 = vmul.f32 %v1605, %v1625
      %v1688 = vmul.f32 %v1606, %v1625
      %v1689 = vmul.f32 %v1607, %v1625
      %v1690 = vmul.f32 %v1608, %v1625
      %v1691 = vmul.f32 %v1609, %v1625
      %v1692 = vmul.f32 %v1610, %v1625
      %v1693 = vmul.f32 %v1611, %v1625
      %v1694 = vmul.f32 %v1612, %v1625
      %v1695 = vmul.f32 %v1613, %v1625
      %v1696 = vmul.f32 %v1614, %v1625
      %v1697 = vmul.f32 %v1615, %v1625
      %v1698 = vmul.f32 %v1616, %v1625
      %v1699 = vmul.f32 %v1617, %v1625
      %v1700 = vmul.f32 %v1618, %v1625
      %v1701 = vmul.f32 %v1619, %v1625
      %v1702 = vmul.f32 %v1620, %v1625
      %v1703 = vmul.f32 %v1621, %v1625
      %v1704 = vmul.f32 %v1622, %v1625
      %v1705 = vmul.f32 %v1623, %v1625
      %v1706 = vmul.f32 %v1624, %v1625
      %v1707 = vadd.f32 %v1460, %v1626
      %v1708 = vadd.f32 %v1461, %v1627
      %v1709 = vadd.f32 %v1462, %v1628
      %v1710 = vadd.f32 %v1463, %v1629
      %v1711 = vadd.f32 %v1464, %v1630
      %v1712 = vadd.f32 %v1465, %v1631
      %v1713 = vadd.f32 %v1466, %v1632
      %v1714 = vadd.f32 %v1467, %v1633
      %v1715 = vadd.f32 %v1468, %v1634
      %v1716 = vadd.f32 %v1469, %v1635
      %v1717 = vadd.f32 %v1470, %v1636
      %v1718 = vadd.f32 %v1471, %v1637
      %v1719 = vadd.f32 %v1472, %v1638
      %v1720 = vadd.f32 %v1473, %v1639
      %v1721 = vadd.f32 %v1474, %v1640
      %v1722 = vadd.f32 %v1475, %v1641
      %v1723 = vadd.f32 %v1476, %v1642
      %v1724 = vadd.f32 %v1477, %v1643
      %v1725 = vadd.f32 %v1478, %v1644
      %v1726 = vadd.f32 %v1479, %v1645
      %v1727 = vadd.f32 %v1480, %v1646
      %v1728 = vadd.f32 %v1481, %v1647
      %v1729 = vadd.f32 %v1482, %v1648
      %v1730 = vadd.f32 %v1483, %v1649
      %v1731 = vadd.f32 %v1484, %v1650
      %v1732 = vadd.f32 %v1485, %v1651
      %v1733 = vadd.f32 %v1486, %v1652
      %v1734 = vadd.f32 %v1487, %v1653
      %v1735 = vadd.f32 %v1488, %v1654
      %v1736 = vadd.f32 %v1489, %v1655
      %v1737 = vadd.f32 %v1490, %v1656
      %v1738 = vadd.f32 %v1491, %v1657
      %v1739 = vadd.f32 %v1492, %v1658
      %v1740 = vadd.f32 %v1493, %v1659
      %v1741 = vadd.f32 %v1494, %v1660
      %v1742 = vadd.f32 %v1495, %v1661
      %v1743 = vadd.f32 %v1496, %v1662
      %v1744 = vadd.f32 %v1497, %v1663
      %v1745 = vadd.f32 %v1498, %v1664
      %v1746 = vadd.f32 %v1499, %v1665
      %v1747 = vadd.f32 %v1500, %v1666
      %v1748 = vadd.f32 %v1501, %v1667
      %v1749 = vadd.f32 %v1502, %v1668
      %v1750 = vadd.f32 %v1503, %v1669
      %v1751 = vadd.f32 %v1504, %v1670
      %v1752 = vadd.f32 %v1505, %v1671
      %v1753 = vadd.f32 %v1506, %v1672
      %v1754 = vadd.f32 %v1507, %v1673
      %v1755 = vadd.f32 %v1508, %v1674
      %v1756 = vadd.f32 %v1509, %v1675
      %v1757 = vadd.f32 %v1510, %v1676
      %v1758 = vadd.f32 %v1511, %v1677
      %v1759 = vadd.f32 %v1512, %v1678
      %v1760 = vadd.f32 %v1513, %v1679
      %v1761 = vadd.f32 %v1514, %v1680
      %v1762 = vadd.f32 %v1515, %v1681
      %v1763 = vadd.f32 %v1516, %v1682
      %v1764 = vadd.f32 %v1517, %v1683
      %v1765 = vadd.f32 %v1518, %v1684
      %v1766 = vadd.f32 %v1519, %v1685
      %v1767 = vadd.f32 %v1520, %v1686
      %v1768 = vadd.f32 %v1521, %v1687
      %v1769 = vadd.f32 %v1522, %v1688
      %v1770 = vadd.f32 %v1523, %v1689
      %v1771 = vadd.f32 %v1524, %v1690
      %v1772 = vadd.f32 %v1525, %v1691
      %v1773 = vadd.f32 %v1526, %v1692
      %v1774 = vadd.f32 %v1527, %v1693
      %v1775 = vadd.f32 %v1528, %v1694
      %v1776 = vadd.f32 %v1529, %v1695
      %v1777 = vadd.f32 %v1530, %v1696
      %v1778 = vadd.f32 %v1531, %v1697
      %v1779 = vadd.f32 %v1532, %v1698
      %v1780 = vadd.f32 %v1533, %v1699
      %v1781 = vadd.f32 %v1534, %v1700
      %v1782 = vadd.f32 %v1535, %v1701
      %v1783 = vadd.f32 %v1536, %v1702
      %v1784 = vadd.f32 %v1537, %v1703
      %v1785 = vadd.f32 %v1538, %v1704
      %v1786 = vadd.f32 %v1539, %v1705
      %v1787 = vadd.f32 %v1540, %v1706
      %s1788 = sadd.s32 %s60, 7
      %s1789 = sld [smem:[#allocation12 + %s1788]]
      %s1790 = scalar_lea.vmem [#allocation7], 23
      %v1791 = vld [vmem:[%s1790] sm:$0x1]
      %v1792 = vld [vmem:[%s1790 + $0x1] sm:$0x1]
      %v1793 = vld [vmem:[%s1790 + $0x2] sm:$0x1]
      %v1794 = vld [vmem:[%s1790 + $0x3] sm:$0x1]
      %v1795 = vld [vmem:[%s1790 + $0x4] sm:$0x1]
      %v1796 = vld [vmem:[%s1790 + $0x5] sm:$0x1]
      %v1797 = vld [vmem:[%s1790 + $0x6] sm:$0x1]
      %v1798 = vld [vmem:[%s1790 + $0x7] sm:$0x1]
      %v1799 = vld [vmem:[%s1790 + $0x8] sm:$0x1]
      %v1800 = vld [vmem:[%s1790 + $0xb] sm:$0x1]
      %v1801 = vld [vmem:[%s1790 + $0xc] sm:$0x1]
      %v1802 = vld [vmem:[%s1790 + $0xd] sm:$0x1]
      %v1803 = vld [vmem:[%s1790 + $0xe] sm:$0x1]
      %v1804 = vld [vmem:[%s1790 + $0xf] sm:$0x1]
      %v1805 = vld [vmem:[%s1790 + $0x10] sm:$0x1]
      %v1806 = vld [vmem:[%s1790 + $0x11] sm:$0x1]
      %v1807 = vld [vmem:[%s1790 + $0x12] sm:$0x1]
      %v1808 = vld [vmem:[%s1790 + $0x13] sm:$0x1]
      %v1809 = vld [vmem:[%s1790 + $0x16] sm:$0x1]
      %v1810 = vld [vmem:[%s1790 + $0x17] sm:$0x1]
      %v1811 = vld [vmem:[%s1790 + $0x18] sm:$0x1]
      %v1812 = vld [vmem:[%s1790 + $0x19] sm:$0x1]
      %v1813 = vld [vmem:[%s1790 + $0x1a] sm:$0x1]
      %v1814 = vld [vmem:[%s1790 + $0x1b] sm:$0x1]
      %v1815 = vld [vmem:[%s1790 + $0x1c] sm:$0x1]
      %v1816 = vld [vmem:[%s1790 + $0x1d] sm:$0x1]
      %v1817 = vld [vmem:[%s1790 + $0x1e] sm:$0x1]
      %v1818 = vld [vmem:[%s1790 + $0x21] sm:$0x1]
      %v1819 = vld [vmem:[%s1790 + $0x22] sm:$0x1]
      %v1820 = vld [vmem:[%s1790 + $0x23] sm:$0x1]
      %v1821 = vld [vmem:[%s1790 + $0x24] sm:$0x1]
      %v1822 = vld [vmem:[%s1790 + $0x25] sm:$0x1]
      %v1823 = vld [vmem:[%s1790 + $0x26] sm:$0x1]
      %v1824 = vld [vmem:[%s1790 + $0x27] sm:$0x1]
      %v1825 = vld [vmem:[%s1790 + $0x28] sm:$0x1]
      %v1826 = vld [vmem:[%s1790 + $0x29] sm:$0x1]
      %v1827 = vld [vmem:[%s1790 + $0x2c] sm:$0x1]
      %v1828 = vld [vmem:[%s1790 + $0x2d] sm:$0x1]
      %v1829 = vld [vmem:[%s1790 + $0x2e] sm:$0x1]
      %v1830 = vld [vmem:[%s1790 + $0x2f] sm:$0x1]
      %v1831 = vld [vmem:[%s1790 + $0x30] sm:$0x1]
      %v1832 = vld [vmem:[%s1790 + $0x31] sm:$0x1]
      %v1833 = vld [vmem:[%s1790 + $0x32] sm:$0x1]
      %v1834 = vld [vmem:[%s1790 + $0x33] sm:$0x1]
      %v1835 = vld [vmem:[%s1790 + $0x34] sm:$0x1]
      %v1836 = vld [vmem:[%s1790 + $0x37] sm:$0x1]
      %v1837 = vld [vmem:[%s1790 + $0x38] sm:$0x1]
      %v1838 = vld [vmem:[%s1790 + $0x39] sm:$0x1]
      %v1839 = vld [vmem:[%s1790 + $0x3a] sm:$0x1]
      %v1840 = vld [vmem:[%s1790 + $0x3b] sm:$0x1]
      %v1841 = vld [vmem:[%s1790 + $0x3c] sm:$0x1]
      %v1842 = vld [vmem:[%s1790 + $0x3d] sm:$0x1]
      %v1843 = vld [vmem:[%s1790 + $0x3e] sm:$0x1]
      %v1844 = vld [vmem:[%s1790 + $0x3f] sm:$0x1]
      %v1845 = vld [vmem:[%s1790 + $0x42] sm:$0x1]
      %v1846 = vld [vmem:[%s1790 + $0x43] sm:$0x1]
      %v1847 = vld [vmem:[%s1790 + $0x44] sm:$0x1]
      %v1848 = vld [vmem:[%s1790 + $0x45] sm:$0x1]
      %v1849 = vld [vmem:[%s1790 + $0x46] sm:$0x1]
      %v1850 = vld [vmem:[%s1790 + $0x47] sm:$0x1]
      %v1851 = vld [vmem:[%s1790 + $0x48] sm:$0x1]
      %v1852 = vld [vmem:[%s1790 + $0x49] sm:$0x1]
      %v1853 = vld [vmem:[%s1790 + $0x4a] sm:$0x1]
      %v1854 = vld [vmem:[%s1790 + $0x4d] sm:$0x1]
      %v1855 = vld [vmem:[%s1790 + $0x4e] sm:$0x1]
      %v1856 = vld [vmem:[%s1790 + $0x4f] sm:$0x1]
      %v1857 = vld [vmem:[%s1790 + $0x50] sm:$0x1]
      %v1858 = vld [vmem:[%s1790 + $0x51] sm:$0x1]
      %v1859 = vld [vmem:[%s1790 + $0x52] sm:$0x1]
      %v1860 = vld [vmem:[%s1790 + $0x53] sm:$0x1]
      %v1861 = vld [vmem:[%s1790 + $0x54] sm:$0x1]
      %v1862 = vld [vmem:[%s1790 + $0x55] sm:$0x1]
      %v1863 = vld [vmem:[%s1790 + $0x58] sm:$0x1]
      %v1864 = vld [vmem:[%s1790 + $0x59] sm:$0x1]
      %v1865 = vld [vmem:[%s1790 + $0x5a] sm:$0x1]
      %v1866 = vld [vmem:[%s1790 + $0x5b] sm:$0x1]
      %v1867 = vld [vmem:[%s1790 + $0x5c] sm:$0x1]
      %v1868 = vld [vmem:[%s1790 + $0x5d] sm:$0x1]
      %v1869 = vld [vmem:[%s1790 + $0x5e] sm:$0x1]
      %v1870 = vld [vmem:[%s1790 + $0x5f] sm:$0x1]
      %v1871 = vld [vmem:[%s1790 + $0x60] sm:$0x1]
      %v1872 = vstv %s1789
      %v1873 = vmul.f32 %v1791, %v1872
      %v1874 = vmul.f32 %v1792, %v1872
      %v1875 = vmul.f32 %v1793, %v1872
      %v1876 = vmul.f32 %v1794, %v1872
      %v1877 = vmul.f32 %v1795, %v1872
      %v1878 = vmul.f32 %v1796, %v1872
      %v1879 = vmul.f32 %v1797, %v1872
      %v1880 = vmul.f32 %v1798, %v1872
      %v1881 = vmul.f32 %v1799, %v1872
      %v1882 = vmul.f32 %v1800, %v1872
      %v1883 = vmul.f32 %v1801, %v1872
      %v1884 = vmul.f32 %v1802, %v1872
      %v1885 = vmul.f32 %v1803, %v1872
      %v1886 = vmul.f32 %v1804, %v1872
      %v1887 = vmul.f32 %v1805, %v1872
      %v1888 = vmul.f32 %v1806, %v1872
      %v1889 = vmul.f32 %v1807, %v1872
      %v1890 = vmul.f32 %v1808, %v1872
      %v1891 = vmul.f32 %v1809, %v1872
      %v1892 = vmul.f32 %v1810, %v1872
      %v1893 = vmul.f32 %v1811, %v1872
      %v1894 = vmul.f32 %v1812, %v1872
      %v1895 = vmul.f32 %v1813, %v1872
      %v1896 = vmul.f32 %v1814, %v1872
      %v1897 = vmul.f32 %v1815, %v1872
      %v1898 = vmul.f32 %v1816, %v1872
      %v1899 = vmul.f32 %v1817, %v1872
      %v1900 = vmul.f32 %v1818, %v1872
      %v1901 = vmul.f32 %v1819, %v1872
      %v1902 = vmul.f32 %v1820, %v1872
      %v1903 = vmul.f32 %v1821, %v1872
      %v1904 = vmul.f32 %v1822, %v1872
      %v1905 = vmul.f32 %v1823, %v1872
      %v1906 = vmul.f32 %v1824, %v1872
      %v1907 = vmul.f32 %v1825, %v1872
      %v1908 = vmul.f32 %v1826, %v1872
      %v1909 = vmul.f32 %v1827, %v1872
      %v1910 = vmul.f32 %v1828, %v1872
      %v1911 = vmul.f32 %v1829, %v1872
      %v1912 = vmul.f32 %v1830, %v1872
      %v1913 = vmul.f32 %v1831, %v1872
      %v1914 = vmul.f32 %v1832, %v1872
      %v1915 = vmul.f32 %v1833, %v1872
      %v1916 = vmul.f32 %v1834, %v1872
      %v1917 = vmul.f32 %v1835, %v1872
      %v1918 = vmul.f32 %v1836, %v1872
      %v1919 = vmul.f32 %v1837, %v1872
      %v1920 = vmul.f32 %v1838, %v1872
      %v1921 = vmul.f32 %v1839, %v1872
      %v1922 = vmul.f32 %v1840, %v1872
      %v1923 = vmul.f32 %v1841, %v1872
      %v1924 = vmul.f32 %v1842, %v1872
      %v1925 = vmul.f32 %v1843, %v1872
      %v1926 = vmul.f32 %v1844, %v1872
      %v1927 = vmul.f32 %v1845, %v1872
      %v1928 = vmul.f32 %v1846, %v1872
      %v1929 = vmul.f32 %v1847, %v1872
      %v1930 = vmul.f32 %v1848, %v1872
      %v1931 = vmul.f32 %v1849, %v1872
      %v1932 = vmul.f32 %v1850, %v1872
      %v1933 = vmul.f32 %v1851, %v1872
      %v1934 = vmul.f32 %v1852, %v1872
      %v1935 = vmul.f32 %v1853, %v1872
      %v1936 = vmul.f32 %v1854, %v1872
      %v1937 = vmul.f32 %v1855, %v1872
      %v1938 = vmul.f32 %v1856, %v1872
      %v1939 = vmul.f32 %v1857, %v1872
      %v1940 = vmul.f32 %v1858, %v1872
      %v1941 = vmul.f32 %v1859, %v1872
      %v1942 = vmul.f32 %v1860, %v1872
      %v1943 = vmul.f32 %v1861, %v1872
      %v1944 = vmul.f32 %v1862, %v1872
      %v1945 = vmul.f32 %v1863, %v1872
      %v1946 = vmul.f32 %v1864, %v1872
      %v1947 = vmul.f32 %v1865, %v1872
      %v1948 = vmul.f32 %v1866, %v1872
      %v1949 = vmul.f32 %v1867, %v1872
      %v1950 = vmul.f32 %v1868, %v1872
      %v1951 = vmul.f32 %v1869, %v1872
      %v1952 = vmul.f32 %v1870, %v1872
      %v1953 = vmul.f32 %v1871, %v1872
      %v1954 = vadd.f32 %v1707, %v1873
      %v1955 = vadd.f32 %v1708, %v1874
      %v1956 = vadd.f32 %v1709, %v1875
      %v1957 = vadd.f32 %v1710, %v1876
      %v1958 = vadd.f32 %v1711, %v1877
      %v1959 = vadd.f32 %v1712, %v1878
      %v1960 = vadd.f32 %v1713, %v1879
      %v1961 = vadd.f32 %v1714, %v1880
      %v1962 = vadd.f32 %v1715, %v1881
      %v1963 = vadd.f32 %v1716, %v1882
      %v1964 = vadd.f32 %v1717, %v1883
      %v1965 = vadd.f32 %v1718, %v1884
      %v1966 = vadd.f32 %v1719, %v1885
      %v1967 = vadd.f32 %v1720, %v1886
      %v1968 = vadd.f32 %v1721, %v1887
      %v1969 = vadd.f32 %v1722, %v1888
      %v1970 = vadd.f32 %v1723, %v1889
      %v1971 = vadd.f32 %v1724, %v1890
      %v1972 = vadd.f32 %v1725, %v1891
      %v1973 = vadd.f32 %v1726, %v1892
      %v1974 = vadd.f32 %v1727, %v1893
      %v1975 = vadd.f32 %v1728, %v1894
      %v1976 = vadd.f32 %v1729, %v1895
      %v1977 = vadd.f32 %v1730, %v1896
      %v1978 = vadd.f32 %v1731, %v1897
      %v1979 = vadd.f32 %v1732, %v1898
      %v1980 = vadd.f32 %v1733, %v1899
      %v1981 = vadd.f32 %v1734, %v1900
      %v1982 = vadd.f32 %v1735, %v1901
      %v1983 = vadd.f32 %v1736, %v1902
      %v1984 = vadd.f32 %v1737, %v1903
      %v1985 = vadd.f32 %v1738, %v1904
      %v1986 = vadd.f32 %v1739, %v1905
      %v1987 = vadd.f32 %v1740, %v1906
      %v1988 = vadd.f32 %v1741, %v1907
      %v1989 = vadd.f32 %v1742, %v1908
      %v1990 = vadd.f32 %v1743, %v1909
      %v1991 = vadd.f32 %v1744, %v1910
      %v1992 = vadd.f32 %v1745, %v1911
      %v1993 = vadd.f32 %v1746, %v1912
      %v1994 = vadd.f32 %v1747, %v1913
      %v1995 = vadd.f32 %v1748, %v1914
      %v1996 = vadd.f32 %v1749, %v1915
      %v1997 = vadd.f32 %v1750, %v1916
      %v1998 = vadd.f32 %v1751, %v1917
      %v1999 = vadd.f32 %v1752, %v1918
      %v2000 = vadd.f32 %v1753, %v1919
      %v2001 = vadd.f32 %v1754, %v1920
      %v2002 = vadd.f32 %v1755, %v1921
      %v2003 = vadd.f32 %v1756, %v1922
      %v2004 = vadd.f32 %v1757, %v1923
      %v2005 = vadd.f32 %v1758, %v1924
      %v2006 = vadd.f32 %v1759, %v1925
      %v2007 = vadd.f32 %v1760, %v1926
      %v2008 = vadd.f32 %v1761, %v1927
      %v2009 = vadd.f32 %v1762, %v1928
      %v2010 = vadd.f32 %v1763, %v1929
      %v2011 = vadd.f32 %v1764, %v1930
      %v2012 = vadd.f32 %v1765, %v1931
      %v2013 = vadd.f32 %v1766, %v1932
      %v2014 = vadd.f32 %v1767, %v1933
      %v2015 = vadd.f32 %v1768, %v1934
      %v2016 = vadd.f32 %v1769, %v1935
      %v2017 = vadd.f32 %v1770, %v1936
      %v2018 = vadd.f32 %v1771, %v1937
      %v2019 = vadd.f32 %v1772, %v1938
      %v2020 = vadd.f32 %v1773, %v1939
      %v2021 = vadd.f32 %v1774, %v1940
      %v2022 = vadd.f32 %v1775, %v1941
      %v2023 = vadd.f32 %v1776, %v1942
      %v2024 = vadd.f32 %v1777, %v1943
      %v2025 = vadd.f32 %v1778, %v1944
      %v2026 = vadd.f32 %v1779, %v1945
      %v2027 = vadd.f32 %v1780, %v1946
      %v2028 = vadd.f32 %v1781, %v1947
      %v2029 = vadd.f32 %v1782, %v1948
      %v2030 = vadd.f32 %v1783, %v1949
      %v2031 = vadd.f32 %v1784, %v1950
      %v2032 = vadd.f32 %v1785, %v1951
      %v2033 = vadd.f32 %v1786, %v1952
      %v2034 = vadd.f32 %v1787, %v1953
      %s2035 = sadd.s32 %s60, 8
      %s2036 = sld [smem:[#allocation12 + %s2035]]
      %s2037 = scalar_lea.vmem [#allocation7], 24
      %v2038 = vld [vmem:[%s2037] sm:$0x1]
      %v2039 = vld [vmem:[%s2037 + $0x1] sm:$0x1]
      %v2040 = vld [vmem:[%s2037 + $0x2] sm:$0x1]
      %v2041 = vld [vmem:[%s2037 + $0x3] sm:$0x1]
      %v2042 = vld [vmem:[%s2037 + $0x4] sm:$0x1]
      %v2043 = vld [vmem:[%s2037 + $0x5] sm:$0x1]
      %v2044 = vld [vmem:[%s2037 + $0x6] sm:$0x1]
      %v2045 = vld [vmem:[%s2037 + $0x7] sm:$0x1]
      %v2046 = vld [vmem:[%s2037 + $0x8] sm:$0x1]
      %v2047 = vld [vmem:[%s2037 + $0xb] sm:$0x1]
      %v2048 = vld [vmem:[%s2037 + $0xc] sm:$0x1]
      %v2049 = vld [vmem:[%s2037 + $0xd] sm:$0x1]
      %v2050 = vld [vmem:[%s2037 + $0xe] sm:$0x1]
      %v2051 = vld [vmem:[%s2037 + $0xf] sm:$0x1]
      %v2052 = vld [vmem:[%s2037 + $0x10] sm:$0x1]
      %v2053 = vld [vmem:[%s2037 + $0x11] sm:$0x1]
      %v2054 = vld [vmem:[%s2037 + $0x12] sm:$0x1]
      %v2055 = vld [vmem:[%s2037 + $0x13] sm:$0x1]
      %v2056 = vld [vmem:[%s2037 + $0x16] sm:$0x1]
      %v2057 = vld [vmem:[%s2037 + $0x17] sm:$0x1]
      %v2058 = vld [vmem:[%s2037 + $0x18] sm:$0x1]
      %v2059 = vld [vmem:[%s2037 + $0x19] sm:$0x1]
      %v2060 = vld [vmem:[%s2037 + $0x1a] sm:$0x1]
      %v2061 = vld [vmem:[%s2037 + $0x1b] sm:$0x1]
      %v2062 = vld [vmem:[%s2037 + $0x1c] sm:$0x1]
      %v2063 = vld [vmem:[%s2037 + $0x1d] sm:$0x1]
      %v2064 = vld [vmem:[%s2037 + $0x1e] sm:$0x1]
      %v2065 = vld [vmem:[%s2037 + $0x21] sm:$0x1]
      %v2066 = vld [vmem:[%s2037 + $0x22] sm:$0x1]
      %v2067 = vld [vmem:[%s2037 + $0x23] sm:$0x1]
      %v2068 = vld [vmem:[%s2037 + $0x24] sm:$0x1]
      %v2069 = vld [vmem:[%s2037 + $0x25] sm:$0x1]
      %v2070 = vld [vmem:[%s2037 + $0x26] sm:$0x1]
      %v2071 = vld [vmem:[%s2037 + $0x27] sm:$0x1]
      %v2072 = vld [vmem:[%s2037 + $0x28] sm:$0x1]
      %v2073 = vld [vmem:[%s2037 + $0x29] sm:$0x1]
      %v2074 = vld [vmem:[%s2037 + $0x2c] sm:$0x1]
      %v2075 = vld [vmem:[%s2037 + $0x2d] sm:$0x1]
      %v2076 = vld [vmem:[%s2037 + $0x2e] sm:$0x1]
      %v2077 = vld [vmem:[%s2037 + $0x2f] sm:$0x1]
      %v2078 = vld [vmem:[%s2037 + $0x30] sm:$0x1]
      %v2079 = vld [vmem:[%s2037 + $0x31] sm:$0x1]
      %v2080 = vld [vmem:[%s2037 + $0x32] sm:$0x1]
      %v2081 = vld [vmem:[%s2037 + $0x33] sm:$0x1]
      %v2082 = vld [vmem:[%s2037 + $0x34] sm:$0x1]
      %v2083 = vld [vmem:[%s2037 + $0x37] sm:$0x1]
      %v2084 = vld [vmem:[%s2037 + $0x38] sm:$0x1]
      %v2085 = vld [vmem:[%s2037 + $0x39] sm:$0x1]
      %v2086 = vld [vmem:[%s2037 + $0x3a] sm:$0x1]
      %v2087 = vld [vmem:[%s2037 + $0x3b] sm:$0x1]
      %v2088 = vld [vmem:[%s2037 + $0x3c] sm:$0x1]
      %v2089 = vld [vmem:[%s2037 + $0x3d] sm:$0x1]
      %v2090 = vld [vmem:[%s2037 + $0x3e] sm:$0x1]
      %v2091 = vld [vmem:[%s2037 + $0x3f] sm:$0x1]
      %v2092 = vld [vmem:[%s2037 + $0x42] sm:$0x1]
      %v2093 = vld [vmem:[%s2037 + $0x43] sm:$0x1]
      %v2094 = vld [vmem:[%s2037 + $0x44] sm:$0x1]
      %v2095 = vld [vmem:[%s2037 + $0x45] sm:$0x1]
      %v2096 = vld [vmem:[%s2037 + $0x46] sm:$0x1]
      %v2097 = vld [vmem:[%s2037 + $0x47] sm:$0x1]
      %v2098 = vld [vmem:[%s2037 + $0x48] sm:$0x1]
      %v2099 = vld [vmem:[%s2037 + $0x49] sm:$0x1]
      %v2100 = vld [vmem:[%s2037 + $0x4a] sm:$0x1]
      %v2101 = vld [vmem:[%s2037 + $0x4d] sm:$0x1]
      %v2102 = vld [vmem:[%s2037 + $0x4e] sm:$0x1]
      %v2103 = vld [vmem:[%s2037 + $0x4f] sm:$0x1]
      %v2104 = vld [vmem:[%s2037 + $0x50] sm:$0x1]
      %v2105 = vld [vmem:[%s2037 + $0x51] sm:$0x1]
      %v2106 = vld [vmem:[%s2037 + $0x52] sm:$0x1]
      %v2107 = vld [vmem:[%s2037 + $0x53] sm:$0x1]
      %v2108 = vld [vmem:[%s2037 + $0x54] sm:$0x1]
      %v2109 = vld [vmem:[%s2037 + $0x55] sm:$0x1]
      %v2110 = vld [vmem:[%s2037 + $0x58] sm:$0x1]
      %v2111 = vld [vmem:[%s2037 + $0x59] sm:$0x1]
      %v2112 = vld [vmem:[%s2037 + $0x5a] sm:$0x1]
      %v2113 = vld [vmem:[%s2037 + $0x5b] sm:$0x1]
      %v2114 = vld [vmem:[%s2037 + $0x5c] sm:$0x1]
      %v2115 = vld [vmem:[%s2037 + $0x5d] sm:$0x1]
      %v2116 = vld [vmem:[%s2037 + $0x5e] sm:$0x1]
      %v2117 = vld [vmem:[%s2037 + $0x5f] sm:$0x1]
      %v2118 = vld [vmem:[%s2037 + $0x60] sm:$0x1]
      %v2119 = vstv %s2036
      %v2120 = vmul.f32 %v2038, %v2119
      %v2121 = vmul.f32 %v2039, %v2119
      %v2122 = vmul.f32 %v2040, %v2119
      %v2123 = vmul.f32 %v2041, %v2119
      %v2124 = vmul.f32 %v2042, %v2119
      %v2125 = vmul.f32 %v2043, %v2119
      %v2126 = vmul.f32 %v2044, %v2119
      %v2127 = vmul.f32 %v2045, %v2119
      %v2128 = vmul.f32 %v2046, %v2119
      %v2129 = vmul.f32 %v2047, %v2119
      %v2130 = vmul.f32 %v2048, %v2119
      %v2131 = vmul.f32 %v2049, %v2119
      %v2132 = vmul.f32 %v2050, %v2119
      %v2133 = vmul.f32 %v2051, %v2119
      %v2134 = vmul.f32 %v2052, %v2119
      %v2135 = vmul.f32 %v2053, %v2119
      %v2136 = vmul.f32 %v2054, %v2119
      %v2137 = vmul.f32 %v2055, %v2119
      %v2138 = vmul.f32 %v2056, %v2119
      %v2139 = vmul.f32 %v2057, %v2119
      %v2140 = vmul.f32 %v2058, %v2119
      %v2141 = vmul.f32 %v2059, %v2119
      %v2142 = vmul.f32 %v2060, %v2119
      %v2143 = vmul.f32 %v2061, %v2119
      %v2144 = vmul.f32 %v2062, %v2119
      %v2145 = vmul.f32 %v2063, %v2119
      %v2146 = vmul.f32 %v2064, %v2119
      %v2147 = vmul.f32 %v2065, %v2119
      %v2148 = vmul.f32 %v2066, %v2119
      %v2149 = vmul.f32 %v2067, %v2119
      %v2150 = vmul.f32 %v2068, %v2119
      %v2151 = vmul.f32 %v2069, %v2119
      %v2152 = vmul.f32 %v2070, %v2119
      %v2153 = vmul.f32 %v2071, %v2119
      %v2154 = vmul.f32 %v2072, %v2119
      %v2155 = vmul.f32 %v2073, %v2119
      %v2156 = vmul.f32 %v2074, %v2119
      %v2157 = vmul.f32 %v2075, %v2119
      %v2158 = vmul.f32 %v2076, %v2119
      %v2159 = vmul.f32 %v2077, %v2119
      %v2160 = vmul.f32 %v2078, %v2119
      %v2161 = vmul.f32 %v2079, %v2119
      %v2162 = vmul.f32 %v2080, %v2119
      %v2163 = vmul.f32 %v2081, %v2119
      %v2164 = vmul.f32 %v2082, %v2119
      %v2165 = vmul.f32 %v2083, %v2119
      %v2166 = vmul.f32 %v2084, %v2119
      %v2167 = vmul.f32 %v2085, %v2119
      %v2168 = vmul.f32 %v2086, %v2119
      %v2169 = vmul.f32 %v2087, %v2119
      %v2170 = vmul.f32 %v2088, %v2119
      %v2171 = vmul.f32 %v2089, %v2119
      %v2172 = vmul.f32 %v2090, %v2119
      %v2173 = vmul.f32 %v2091, %v2119
      %v2174 = vmul.f32 %v2092, %v2119
      %v2175 = vmul.f32 %v2093, %v2119
      %v2176 = vmul.f32 %v2094, %v2119
      %v2177 = vmul.f32 %v2095, %v2119
      %v2178 = vmul.f32 %v2096, %v2119
      %v2179 = vmul.f32 %v2097, %v2119
      %v2180 = vmul.f32 %v2098, %v2119
      %v2181 = vmul.f32 %v2099, %v2119
      %v2182 = vmul.f32 %v2100, %v2119
      %v2183 = vmul.f32 %v2101, %v2119
      %v2184 = vmul.f32 %v2102, %v2119
      %v2185 = vmul.f32 %v2103, %v2119
      %v2186 = vmul.f32 %v2104, %v2119
      %v2187 = vmul.f32 %v2105, %v2119
      %v2188 = vmul.f32 %v2106, %v2119
      %v2189 = vmul.f32 %v2107, %v2119
      %v2190 = vmul.f32 %v2108, %v2119
      %v2191 = vmul.f32 %v2109, %v2119
      %v2192 = vmul.f32 %v2110, %v2119
      %v2193 = vmul.f32 %v2111, %v2119
      %v2194 = vmul.f32 %v2112, %v2119
      %v2195 = vmul.f32 %v2113, %v2119
      %v2196 = vmul.f32 %v2114, %v2119
      %v2197 = vmul.f32 %v2115, %v2119
      %v2198 = vmul.f32 %v2116, %v2119
      %v2199 = vmul.f32 %v2117, %v2119
      %v2200 = vmul.f32 %v2118, %v2119
      %v2201 = vadd.f32 %v1954, %v2120
      %v2202 = vadd.f32 %v1955, %v2121
      %v2203 = vadd.f32 %v1956, %v2122
      %v2204 = vadd.f32 %v1957, %v2123
      %v2205 = vadd.f32 %v1958, %v2124
      %v2206 = vadd.f32 %v1959, %v2125
      %v2207 = vadd.f32 %v1960, %v2126
      %v2208 = vadd.f32 %v1961, %v2127
      %v2209 = vadd.f32 %v1962, %v2128
      %v2210 = vadd.f32 %v1963, %v2129
      %v2211 = vadd.f32 %v1964, %v2130
      %v2212 = vadd.f32 %v1965, %v2131
      %v2213 = vadd.f32 %v1966, %v2132
      %v2214 = vadd.f32 %v1967, %v2133
      %v2215 = vadd.f32 %v1968, %v2134
      %v2216 = vadd.f32 %v1969, %v2135
      %v2217 = vadd.f32 %v1970, %v2136
      %v2218 = vadd.f32 %v1971, %v2137
      %v2219 = vadd.f32 %v1972, %v2138
      %v2220 = vadd.f32 %v1973, %v2139
      %v2221 = vadd.f32 %v1974, %v2140
      %v2222 = vadd.f32 %v1975, %v2141
      %v2223 = vadd.f32 %v1976, %v2142
      %v2224 = vadd.f32 %v1977, %v2143
      %v2225 = vadd.f32 %v1978, %v2144
      %v2226 = vadd.f32 %v1979, %v2145
      %v2227 = vadd.f32 %v1980, %v2146
      %v2228 = vadd.f32 %v1981, %v2147
      %v2229 = vadd.f32 %v1982, %v2148
      %v2230 = vadd.f32 %v1983, %v2149
      %v2231 = vadd.f32 %v1984, %v2150
      %v2232 = vadd.f32 %v1985, %v2151
      %v2233 = vadd.f32 %v1986, %v2152
      %v2234 = vadd.f32 %v1987, %v2153
      %v2235 = vadd.f32 %v1988, %v2154
      %v2236 = vadd.f32 %v1989, %v2155
      %v2237 = vadd.f32 %v1990, %v2156
      %v2238 = vadd.f32 %v1991, %v2157
      %v2239 = vadd.f32 %v1992, %v2158
      %v2240 = vadd.f32 %v1993, %v2159
      %v2241 = vadd.f32 %v1994, %v2160
      %v2242 = vadd.f32 %v1995, %v2161
      %v2243 = vadd.f32 %v1996, %v2162
      %v2244 = vadd.f32 %v1997, %v2163
      %v2245 = vadd.f32 %v1998, %v2164
      %v2246 = vadd.f32 %v1999, %v2165
      %v2247 = vadd.f32 %v2000, %v2166
      %v2248 = vadd.f32 %v2001, %v2167
      %v2249 = vadd.f32 %v2002, %v2168
      %v2250 = vadd.f32 %v2003, %v2169
      %v2251 = vadd.f32 %v2004, %v2170
      %v2252 = vadd.f32 %v2005, %v2171
      %v2253 = vadd.f32 %v2006, %v2172
      %v2254 = vadd.f32 %v2007, %v2173
      %v2255 = vadd.f32 %v2008, %v2174
      %v2256 = vadd.f32 %v2009, %v2175
      %v2257 = vadd.f32 %v2010, %v2176
      %v2258 = vadd.f32 %v2011, %v2177
      %v2259 = vadd.f32 %v2012, %v2178
      %v2260 = vadd.f32 %v2013, %v2179
      %v2261 = vadd.f32 %v2014, %v2180
      %v2262 = vadd.f32 %v2015, %v2181
      %v2263 = vadd.f32 %v2016, %v2182
      %v2264 = vadd.f32 %v2017, %v2183
      %v2265 = vadd.f32 %v2018, %v2184
      %v2266 = vadd.f32 %v2019, %v2185
      %v2267 = vadd.f32 %v2020, %v2186
      %v2268 = vadd.f32 %v2021, %v2187
      %v2269 = vadd.f32 %v2022, %v2188
      %v2270 = vadd.f32 %v2023, %v2189
      %v2271 = vadd.f32 %v2024, %v2190
      %v2272 = vadd.f32 %v2025, %v2191
      %v2273 = vadd.f32 %v2026, %v2192
      %v2274 = vadd.f32 %v2027, %v2193
      %v2275 = vadd.f32 %v2028, %v2194
      %v2276 = vadd.f32 %v2029, %v2195
      %v2277 = vadd.f32 %v2030, %v2196
      %v2278 = vadd.f32 %v2031, %v2197
      %v2279 = vadd.f32 %v2032, %v2198
      %v2280 = vadd.f32 %v2033, %v2199
      %v2281 = vadd.f32 %v2034, %v2200
      %v2282 = vmax.f32 %v2201, 0.0
      %v2283 = vmax.f32 %v2202, 0.0
      %v2284 = vmax.f32 %v2203, 0.0
      %v2285 = vmax.f32 %v2204, 0.0
      %v2286 = vmax.f32 %v2205, 0.0
      %v2287 = vmax.f32 %v2206, 0.0
      %v2288 = vmax.f32 %v2207, 0.0
      %v2289 = vmax.f32 %v2208, 0.0
      %v2290 = vmax.f32 %v2209, 0.0
      %v2291 = vmax.f32 %v2210, 0.0
      %v2292 = vmax.f32 %v2211, 0.0
      %v2293 = vmax.f32 %v2212, 0.0
      %v2294 = vmax.f32 %v2213, 0.0
      %v2295 = vmax.f32 %v2214, 0.0
      %v2296 = vmax.f32 %v2215, 0.0
      %v2297 = vmax.f32 %v2216, 0.0
      %v2298 = vmax.f32 %v2217, 0.0
      %v2299 = vmax.f32 %v2218, 0.0
      %v2300 = vmax.f32 %v2219, 0.0
      %v2301 = vmax.f32 %v2220, 0.0
      %v2302 = vmax.f32 %v2221, 0.0
      %v2303 = vmax.f32 %v2222, 0.0
      %v2304 = vmax.f32 %v2223, 0.0
      %v2305 = vmax.f32 %v2224, 0.0
      %v2306 = vmax.f32 %v2225, 0.0
      %v2307 = vmax.f32 %v2226, 0.0
      %v2308 = vmax.f32 %v2227, 0.0
      %v2309 = vmax.f32 %v2228, 0.0
      %v2310 = vmax.f32 %v2229, 0.0
      %v2311 = vmax.f32 %v2230, 0.0
      %v2312 = vmax.f32 %v2231, 0.0
      %v2313 = vmax.f32 %v2232, 0.0
      %v2314 = vmax.f32 %v2233, 0.0
      %v2315 = vmax.f32 %v2234, 0.0
      %v2316 = vmax.f32 %v2235, 0.0
      %v2317 = vmax.f32 %v2236, 0.0
      %v2318 = vmax.f32 %v2237, 0.0
      %v2319 = vmax.f32 %v2238, 0.0
      %v2320 = vmax.f32 %v2239, 0.0
      %v2321 = vmax.f32 %v2240, 0.0
      %v2322 = vmax.f32 %v2241, 0.0
      %v2323 = vmax.f32 %v2242, 0.0
      %v2324 = vmax.f32 %v2243, 0.0
      %v2325 = vmax.f32 %v2244, 0.0
      %v2326 = vmax.f32 %v2245, 0.0
      %v2327 = vmax.f32 %v2246, 0.0
      %v2328 = vmax.f32 %v2247, 0.0
      %v2329 = vmax.f32 %v2248, 0.0
      %v2330 = vmax.f32 %v2249, 0.0
      %v2331 = vmax.f32 %v2250, 0.0
      %v2332 = vmax.f32 %v2251, 0.0
      %v2333 = vmax.f32 %v2252, 0.0
      %v2334 = vmax.f32 %v2253, 0.0
      %v2335 = vmax.f32 %v2254, 0.0
      %v2336 = vmax.f32 %v2255, 0.0
      %v2337 = vmax.f32 %v2256, 0.0
      %v2338 = vmax.f32 %v2257, 0.0
      %v2339 = vmax.f32 %v2258, 0.0
      %v2340 = vmax.f32 %v2259, 0.0
      %v2341 = vmax.f32 %v2260, 0.0
      %v2342 = vmax.f32 %v2261, 0.0
      %v2343 = vmax.f32 %v2262, 0.0
      %v2344 = vmax.f32 %v2263, 0.0
      %v2345 = vmax.f32 %v2264, 0.0
      %v2346 = vmax.f32 %v2265, 0.0
      %v2347 = vmax.f32 %v2266, 0.0
      %v2348 = vmax.f32 %v2267, 0.0
      %v2349 = vmax.f32 %v2268, 0.0
      %v2350 = vmax.f32 %v2269, 0.0
      %v2351 = vmax.f32 %v2270, 0.0
      %v2352 = vmax.f32 %v2271, 0.0
      %v2353 = vmax.f32 %v2272, 0.0
      %v2354 = vmax.f32 %v2273, 0.0
      %v2355 = vmax.f32 %v2274, 0.0
      %v2356 = vmax.f32 %v2275, 0.0
      %v2357 = vmax.f32 %v2276, 0.0
      %v2358 = vmax.f32 %v2277, 0.0
      %v2359 = vmax.f32 %v2278, 0.0
      %v2360 = vmax.f32 %v2279, 0.0
      %v2361 = vmax.f32 %v2280, 0.0
      %v2362 = vmax.f32 %v2281, 0.0
      %s2363 = smul.u32 %s53, 81
      %s2364 = scalar_lea.vmem [#allocation2], %s2363
      %2365 = vst [vmem:[%s2364] sm:$0x1] %v2282
      %2366 = vst [vmem:[%s2364 + $0x1] sm:$0x1] %v2283
      %2367 = vst [vmem:[%s2364 + $0x2] sm:$0x1] %v2284
      %2368 = vst [vmem:[%s2364 + $0x3] sm:$0x1] %v2285
      %2369 = vst [vmem:[%s2364 + $0x4] sm:$0x1] %v2286
      %2370 = vst [vmem:[%s2364 + $0x5] sm:$0x1] %v2287
      %2371 = vst [vmem:[%s2364 + $0x6] sm:$0x1] %v2288
      %2372 = vst [vmem:[%s2364 + $0x7] sm:$0x1] %v2289
      %2373 = vst [vmem:[%s2364 + $0x8] sm:$0x1] %v2290
      %2374 = vst [vmem:[%s2364 + $0x9] sm:$0x1] %v2291
      %2375 = vst [vmem:[%s2364 + $0xa] sm:$0x1] %v2292
      %2376 = vst [vmem:[%s2364 + $0xb] sm:$0x1] %v2293
      %2377 = vst [vmem:[%s2364 + $0xc] sm:$0x1] %v2294
      %2378 = vst [vmem:[%s2364 + $0xd] sm:$0x1] %v2295
      %2379 = vst [vmem:[%s2364 + $0xe] sm:$0x1] %v2296
      %2380 = vst [vmem:[%s2364 + $0xf] sm:$0x1] %v2297
      %2381 = vst [vmem:[%s2364 + $0x10] sm:$0x1] %v2298
      %2382 = vst [vmem:[%s2364 + $0x11] sm:$0x1] %v2299
      %2383 = vst [vmem:[%s2364 + $0x12] sm:$0x1] %v2300
      %2384 = vst [vmem:[%s2364 + $0x13] sm:$0x1] %v2301
      %2385 = vst [vmem:[%s2364 + $0x14] sm:$0x1] %v2302
      %2386 = vst [vmem:[%s2364 + $0x15] sm:$0x1] %v2303
      %2387 = vst [vmem:[%s2364 + $0x16] sm:$0x1] %v2304
      %2388 = vst [vmem:[%s2364 + $0x17] sm:$0x1] %v2305
      %2389 = vst [vmem:[%s2364 + $0x18] sm:$0x1] %v2306
      %2390 = vst [vmem:[%s2364 + $0x19] sm:$0x1] %v2307
      %2391 = vst [vmem:[%s2364 + $0x1a] sm:$0x1] %v2308
      %2392 = vst [vmem:[%s2364 + $0x1b] sm:$0x1] %v2309
      %2393 = vst [vmem:[%s2364 + $0x1c] sm:$0x1] %v2310
      %2394 = vst [vmem:[%s2364 + $0x1d] sm:$0x1] %v2311
      %2395 = vst [vmem:[%s2364 + $0x1e] sm:$0x1] %v2312
      %2396 = vst [vmem:[%s2364 + $0x1f] sm:$0x1] %v2313
      %2397 = vst [vmem:[%s2364 + $0x20] sm:$0x1] %v2314
      %2398 = vst [vmem:[%s2364 + $0x21] sm:$0x1] %v2315
      %2399 = vst [vmem:[%s2364 + $0x22] sm:$0x1] %v2316
      %2400 = vst [vmem:[%s2364 + $0x23] sm:$0x1] %v2317
      %2401 = vst [vmem:[%s2364 + $0x24] sm:$0x1] %v2318
      %2402 = vst [vmem:[%s2364 + $0x25] sm:$0x1] %v2319
      %2403 = vst [vmem:[%s2364 + $0x26] sm:$0x1] %v2320
      %2404 = vst [vmem:[%s2364 + $0x27] sm:$0x1] %v2321
      %2405 = vst [vmem:[%s2364 + $0x28] sm:$0x1] %v2322
      %2406 = vst [vmem:[%s2364 + $0x29] sm:$0x1] %v2323
      %2407 = vst [vmem:[%s2364 + $0x2a] sm:$0x1] %v2324
      %2408 = vst [vmem:[%s2364 + $0x2b] sm:$0x1] %v2325
      %2409 = vst [vmem:[%s2364 + $0x2c] sm:$0x1] %v2326
      %2410 = vst [vmem:[%s2364 + $0x2d] sm:$0x1] %v2327
      %2411 = vst [vmem:[%s2364 + $0x2e] sm:$0x1] %v2328
      %2412 = vst [vmem:[%s2364 + $0x2f] sm:$0x1] %v2329
      %2413 = vst [vmem:[%s2364 + $0x30] sm:$0x1] %v2330
      %2414 = vst [vmem:[%s2364 + $0x31] sm:$0x1] %v2331
      %2415 = vst [vmem:[%s2364 + $0x32] sm:$0x1] %v2332
      %2416 = vst [vmem:[%s2364 + $0x33] sm:$0x1] %v2333
      %2417 = vst [vmem:[%s2364 + $0x34] sm:$0x1] %v2334
      %2418 = vst [vmem:[%s2364 + $0x35] sm:$0x1] %v2335
      %2419 = vst [vmem:[%s2364 + $0x36] sm:$0x1] %v2336
      %2420 = vst [vmem:[%s2364 + $0x37] sm:$0x1] %v2337
      %2421 = vst [vmem:[%s2364 + $0x38] sm:$0x1] %v2338
      %2422 = vst [vmem:[%s2364 + $0x39] sm:$0x1] %v2339
      %2423 = vst [vmem:[%s2364 + $0x3a] sm:$0x1] %v2340
      %2424 = vst [vmem:[%s2364 + $0x3b] sm:$0x1] %v2341
      %2425 = vst [vmem:[%s2364 + $0x3c] sm:$0x1] %v2342
      %2426 = vst [vmem:[%s2364 + $0x3d] sm:$0x1] %v2343
      %2427 = vst [vmem:[%s2364 + $0x3e] sm:$0x1] %v2344
      %2428 = vst [vmem:[%s2364 + $0x3f] sm:$0x1] %v2345
      %2429 = vst [vmem:[%s2364 + $0x40] sm:$0x1] %v2346
      %2430 = vst [vmem:[%s2364 + $0x41] sm:$0x1] %v2347
      %2431 = vst [vmem:[%s2364 + $0x42] sm:$0x1] %v2348
      %2432 = vst [vmem:[%s2364 + $0x43] sm:$0x1] %v2349
      %2433 = vst [vmem:[%s2364 + $0x44] sm:$0x1] %v2350
      %2434 = vst [vmem:[%s2364 + $0x45] sm:$0x1] %v2351
      %2435 = vst [vmem:[%s2364 + $0x46] sm:$0x1] %v2352
      %2436 = vst [vmem:[%s2364 + $0x47] sm:$0x1] %v2353
      %2437 = vst [vmem:[%s2364 + $0x48] sm:$0x1] %v2354
      %2438 = vst [vmem:[%s2364 + $0x49] sm:$0x1] %v2355
      %2439 = vst [vmem:[%s2364 + $0x4a] sm:$0x1] %v2356
      %2440 = vst [vmem:[%s2364 + $0x4b] sm:$0x1] %v2357
      %2441 = vst [vmem:[%s2364 + $0x4c] sm:$0x1] %v2358
      %2442 = vst [vmem:[%s2364 + $0x4d] sm:$0x1] %v2359
      %2443 = vst [vmem:[%s2364 + $0x4e] sm:$0x1] %v2360
      %2444 = vst [vmem:[%s2364 + $0x4f] sm:$0x1] %v2361
      %2445 = vst [vmem:[%s2364 + $0x50] sm:$0x1] %v2362
    $region30: #{tpu_custom_call.1} parent=1 // loop_footer
      %s57 = sadd.s32 1, %s53
    $region31: #{tpu_custom_call.1} parent=1 // loop_footer_branch
      %52 = sbr.rel target = $region27
    $region32: #{tpu_custom_call.1} parent=1 // loop_exit
      _
    loop: start=0, step=1, limit=8
    $region33: #{tpu_custom_call.1} parent=1 // loop_pre_header
      _
    $region34: #{tpu_custom_call.1} parent=1 // loop_header
      %s2447 = sphi 0, %s2451
      %p2448 = scmp.ge.s32.totalorder %s2447, 8
    $region35: #{tpu_custom_call.1} parent=1 // loop_header_branch
      %2450 = sbr.rel (%p2448) target = $region39
    $region36: #{tpu_custom_call.1} parent=1 // loop_body
      %s2452 = sadd.s32 %s2447, 4
      %s2453 = sld [smem:[#allocation13 + %s2452]]
      %v2454 = vstv %s2453
      loop: start=0, step=1, limit=4
      $region40: #{tpu_custom_call.1} parent=36 // loop_pre_header
        _
      $region41: #{tpu_custom_call.1} parent=36 // loop_header
        %s2456 = sphi 0, %s2460
        %p2457 = scmp.ge.s32.totalorder %s2456, 4
        %v2461 = vphi %v2454, %v3832
        %v2462 = vphi %v2454, %v3833
        %v2463 = vphi %v2454, %v3834
        %v2464 = vphi %v2454, %v3835
        %v2465 = vphi %v2454, %v3836
        %v2466 = vphi %v2454, %v3837
        %v2467 = vphi %v2454, %v3838
        %v2468 = vphi %v2454, %v3839
        %v2469 = vphi %v2454, %v3840
        %v2470 = vphi %v2454, %v3841
        %v2471 = vphi %v2454, %v3842
        %v2472 = vphi %v2454, %v3843
        %v2473 = vphi %v2454, %v3844
        %v2474 = vphi %v2454, %v3845
        %v2475 = vphi %v2454, %v3846
        %v2476 = vphi %v2454, %v3847
        %v2477 = vphi %v2454, %v3848
        %v2478 = vphi %v2454, %v3849
        %v2479 = vphi %v2454, %v3850
        %v2480 = vphi %v2454, %v3851
        %v2481 = vphi %v2454, %v3852
        %v2482 = vphi %v2454, %v3853
        %v2483 = vphi %v2454, %v3854
        %v2484 = vphi %v2454, %v3855
        %v2485 = vphi %v2454, %v3856
        %v2486 = vphi %v2454, %v3857
        %v2487 = vphi %v2454, %v3858
        %v2488 = vphi %v2454, %v3859
        %v2489 = vphi %v2454, %v3860
        %v2490 = vphi %v2454, %v3861
        %v2491 = vphi %v2454, %v3862
        %v2492 = vphi %v2454, %v3863
        %v2493 = vphi %v2454, %v3864
        %v2494 = vphi %v2454, %v3865
        %v2495 = vphi %v2454, %v3866
        %v2496 = vphi %v2454, %v3867
        %v2497 = vphi %v2454, %v3868
        %v2498 = vphi %v2454, %v3869
        %v2499 = vphi %v2454, %v3870
        %v2500 = vphi %v2454, %v3871
        %v2501 = vphi %v2454, %v3872
        %v2502 = vphi %v2454, %v3873
        %v2503 = vphi %v2454, %v3874
        %v2504 = vphi %v2454, %v3875
        %v2505 = vphi %v2454, %v3876
        %v2506 = vphi %v2454, %v3877
        %v2507 = vphi %v2454, %v3878
        %v2508 = vphi %v2454, %v3879
        %v2509 = vphi %v2454, %v3880
      $region42: #{tpu_custom_call.1} parent=36 // loop_header_branch
        %2459 = sbr.rel (%p2457) target = $region46
      $region43: #{tpu_custom_call.1} parent=36 // loop_body
        %s2510 = smul.u32 %s2447, 4
        %s2511 = sadd.s32 %s2510, %s2456
        %s2512 = smul.u32 %s2511, 9
        %s2513 = sadd.s32 %s2512, 36
        %s2514 = sld [smem:[#allocation12 + %s2513]]
        %s2515 = smul.u32 %s2456, 81
        %s2516 = scalar_lea.vmem [#allocation2], %s2515
        %v2517 = vld [vmem:[%s2516] sm:$0x1]
        %v2518 = vld [vmem:[%s2516 + $0x1] sm:$0x1]
        %v2519 = vld [vmem:[%s2516 + $0x2] sm:$0x1]
        %v2520 = vld [vmem:[%s2516 + $0x3] sm:$0x1]
        %v2521 = vld [vmem:[%s2516 + $0x4] sm:$0x1]
        %v2522 = vld [vmem:[%s2516 + $0x5] sm:$0x1]
        %v2523 = vld [vmem:[%s2516 + $0x6] sm:$0x1]
        %v2524 = vld [vmem:[%s2516 + $0x9] sm:$0x1]
        %v2525 = vld [vmem:[%s2516 + $0xa] sm:$0x1]
        %v2526 = vld [vmem:[%s2516 + $0xb] sm:$0x1]
        %v2527 = vld [vmem:[%s2516 + $0xc] sm:$0x1]
        %v2528 = vld [vmem:[%s2516 + $0xd] sm:$0x1]
        %v2529 = vld [vmem:[%s2516 + $0xe] sm:$0x1]
        %v2530 = vld [vmem:[%s2516 + $0xf] sm:$0x1]
        %v2531 = vld [vmem:[%s2516 + $0x12] sm:$0x1]
        %v2532 = vld [vmem:[%s2516 + $0x13] sm:$0x1]
        %v2533 = vld [vmem:[%s2516 + $0x14] sm:$0x1]
        %v2534 = vld [vmem:[%s2516 + $0x15] sm:$0x1]
        %v2535 = vld [vmem:[%s2516 + $0x16] sm:$0x1]
        %v2536 = vld [vmem:[%s2516 + $0x17] sm:$0x1]
        %v2537 = vld [vmem:[%s2516 + $0x18] sm:$0x1]
        %v2538 = vld [vmem:[%s2516 + $0x1b] sm:$0x1]
        %v2539 = vld [vmem:[%s2516 + $0x1c] sm:$0x1]
        %v2540 = vld [vmem:[%s2516 + $0x1d] sm:$0x1]
        %v2541 = vld [vmem:[%s2516 + $0x1e] sm:$0x1]
        %v2542 = vld [vmem:[%s2516 + $0x1f] sm:$0x1]
        %v2543 = vld [vmem:[%s2516 + $0x20] sm:$0x1]
        %v2544 = vld [vmem:[%s2516 + $0x21] sm:$0x1]
        %v2545 = vld [vmem:[%s2516 + $0x24] sm:$0x1]
        %v2546 = vld [vmem:[%s2516 + $0x25] sm:$0x1]
        %v2547 = vld [vmem:[%s2516 + $0x26] sm:$0x1]
        %v2548 = vld [vmem:[%s2516 + $0x27] sm:$0x1]
        %v2549 = vld [vmem:[%s2516 + $0x28] sm:$0x1]
        %v2550 = vld [vmem:[%s2516 + $0x29] sm:$0x1]
        %v2551 = vld [vmem:[%s2516 + $0x2a] sm:$0x1]
        %v2552 = vld [vmem:[%s2516 + $0x2d] sm:$0x1]
        %v2553 = vld [vmem:[%s2516 + $0x2e] sm:$0x1]
        %v2554 = vld [vmem:[%s2516 + $0x2f] sm:$0x1]
        %v2555 = vld [vmem:[%s2516 + $0x30] sm:$0x1]
        %v2556 = vld [vmem:[%s2516 + $0x31] sm:$0x1]
        %v2557 = vld [vmem:[%s2516 + $0x32] sm:$0x1]
        %v2558 = vld [vmem:[%s2516 + $0x33] sm:$0x1]
        %v2559 = vld [vmem:[%s2516 + $0x36] sm:$0x1]
        %v2560 = vld [vmem:[%s2516 + $0x37] sm:$0x1]
        %v2561 = vld [vmem:[%s2516 + $0x38] sm:$0x1]
        %v2562 = vld [vmem:[%s2516 + $0x39] sm:$0x1]
        %v2563 = vld [vmem:[%s2516 + $0x3a] sm:$0x1]
        %v2564 = vld [vmem:[%s2516 + $0x3b] sm:$0x1]
        %v2565 = vld [vmem:[%s2516 + $0x3c] sm:$0x1]
        %v2566 = vstv %s2514
        %v2567 = vmul.f32 %v2517, %v2566
        %v2568 = vmul.f32 %v2518, %v2566
        %v2569 = vmul.f32 %v2519, %v2566
        %v2570 = vmul.f32 %v2520, %v2566
        %v2571 = vmul.f32 %v2521, %v2566
        %v2572 = vmul.f32 %v2522, %v2566
        %v2573 = vmul.f32 %v2523, %v2566
        %v2574 = vmul.f32 %v2524, %v2566
        %v2575 = vmul.f32 %v2525, %v2566
        %v2576 = vmul.f32 %v2526, %v2566
        %v2577 = vmul.f32 %v2527, %v2566
        %v2578 = vmul.f32 %v2528, %v2566
        %v2579 = vmul.f32 %v2529, %v2566
        %v2580 = vmul.f32 %v2530, %v2566
        %v2581 = vmul.f32 %v2531, %v2566
        %v2582 = vmul.f32 %v2532, %v2566
        %v2583 = vmul.f32 %v2533, %v2566
        %v2584 = vmul.f32 %v2534, %v2566
        %v2585 = vmul.f32 %v2535, %v2566
        %v2586 = vmul.f32 %v2536, %v2566
        %v2587 = vmul.f32 %v2537, %v2566
        %v2588 = vmul.f32 %v2538, %v2566
        %v2589 = vmul.f32 %v2539, %v2566
        %v2590 = vmul.f32 %v2540, %v2566
        %v2591 = vmul.f32 %v2541, %v2566
        %v2592 = vmul.f32 %v2542, %v2566
        %v2593 = vmul.f32 %v2543, %v2566
        %v2594 = vmul.f32 %v2544, %v2566
        %v2595 = vmul.f32 %v2545, %v2566
        %v2596 = vmul.f32 %v2546, %v2566
        %v2597 = vmul.f32 %v2547, %v2566
        %v2598 = vmul.f32 %v2548, %v2566
        %v2599 = vmul.f32 %v2549, %v2566
        %v2600 = vmul.f32 %v2550, %v2566
        %v2601 = vmul.f32 %v2551, %v2566
        %v2602 = vmul.f32 %v2552, %v2566
        %v2603 = vmul.f32 %v2553, %v2566
        %v2604 = vmul.f32 %v2554, %v2566
        %v2605 = vmul.f32 %v2555, %v2566
        %v2606 = vmul.f32 %v2556, %v2566
        %v2607 = vmul.f32 %v2557, %v2566
        %v2608 = vmul.f32 %v2558, %v2566
        %v2609 = vmul.f32 %v2559, %v2566
        %v2610 = vmul.f32 %v2560, %v2566
        %v2611 = vmul.f32 %v2561, %v2566
        %v2612 = vmul.f32 %v2562, %v2566
        %v2613 = vmul.f32 %v2563, %v2566
        %v2614 = vmul.f32 %v2564, %v2566
        %v2615 = vmul.f32 %v2565, %v2566
        %v2616 = vadd.f32 %v2461, %v2567
        %v2617 = vadd.f32 %v2462, %v2568
        %v2618 = vadd.f32 %v2463, %v2569
        %v2619 = vadd.f32 %v2464, %v2570
        %v2620 = vadd.f32 %v2465, %v2571
        %v2621 = vadd.f32 %v2466, %v2572
        %v2622 = vadd.f32 %v2467, %v2573
        %v2623 = vadd.f32 %v2468, %v2574
        %v2624 = vadd.f32 %v2469, %v2575
        %v2625 = vadd.f32 %v2470, %v2576
        %v2626 = vadd.f32 %v2471, %v2577
        %v2627 = vadd.f32 %v2472, %v2578
        %v2628 = vadd.f32 %v2473, %v2579
        %v2629 = vadd.f32 %v2474, %v2580
        %v2630 = vadd.f32 %v2475, %v2581
        %v2631 = vadd.f32 %v2476, %v2582
        %v2632 = vadd.f32 %v2477, %v2583
        %v2633 = vadd.f32 %v2478, %v2584
        %v2634 = vadd.f32 %v2479, %v2585
        %v2635 = vadd.f32 %v2480, %v2586
        %v2636 = vadd.f32 %v2481, %v2587
        %v2637 = vadd.f32 %v2482, %v2588
        %v2638 = vadd.f32 %v2483, %v2589
        %v2639 = vadd.f32 %v2484, %v2590
        %v2640 = vadd.f32 %v2485, %v2591
        %v2641 = vadd.f32 %v2486, %v2592
        %v2642 = vadd.f32 %v2487, %v2593
        %v2643 = vadd.f32 %v2488, %v2594
        %v2644 = vadd.f32 %v2489, %v2595
        %v2645 = vadd.f32 %v2490, %v2596
        %v2646 = vadd.f32 %v2491, %v2597
        %v2647 = vadd.f32 %v2492, %v2598
        %v2648 = vadd.f32 %v2493, %v2599
        %v2649 = vadd.f32 %v2494, %v2600
        %v2650 = vadd.f32 %v2495, %v2601
        %v2651 = vadd.f32 %v2496, %v2602
        %v2652 = vadd.f32 %v2497, %v2603
        %v2653 = vadd.f32 %v2498, %v2604
        %v2654 = vadd.f32 %v2499, %v2605
        %v2655 = vadd.f32 %v2500, %v2606
        %v2656 = vadd.f32 %v2501, %v2607
        %v2657 = vadd.f32 %v2502, %v2608
        %v2658 = vadd.f32 %v2503, %v2609
        %v2659 = vadd.f32 %v2504, %v2610
        %v2660 = vadd.f32 %v2505, %v2611
        %v2661 = vadd.f32 %v2506, %v2612
        %v2662 = vadd.f32 %v2507, %v2613
        %v2663 = vadd.f32 %v2508, %v2614
        %v2664 = vadd.f32 %v2509, %v2615
        %s2665 = sadd.s32 %s2512, 37
        %s2666 = sld [smem:[#allocation12 + %s2665]]
        %s2667 = sadd.s32 1, %s2515
        %s2668 = scalar_lea.vmem [#allocation2], %s2667
        %v2669 = vld [vmem:[%s2668] sm:$0x1]
        %v2670 = vld [vmem:[%s2668 + $0x1] sm:$0x1]
        %v2671 = vld [vmem:[%s2668 + $0x2] sm:$0x1]
        %v2672 = vld [vmem:[%s2668 + $0x3] sm:$0x1]
        %v2673 = vld [vmem:[%s2668 + $0x4] sm:$0x1]
        %v2674 = vld [vmem:[%s2668 + $0x5] sm:$0x1]
        %v2675 = vld [vmem:[%s2668 + $0x6] sm:$0x1]
        %v2676 = vld [vmem:[%s2668 + $0x9] sm:$0x1]
        %v2677 = vld [vmem:[%s2668 + $0xa] sm:$0x1]
        %v2678 = vld [vmem:[%s2668 + $0xb] sm:$0x1]
        %v2679 = vld [vmem:[%s2668 + $0xc] sm:$0x1]
        %v2680 = vld [vmem:[%s2668 + $0xd] sm:$0x1]
        %v2681 = vld [vmem:[%s2668 + $0xe] sm:$0x1]
        %v2682 = vld [vmem:[%s2668 + $0xf] sm:$0x1]
        %v2683 = vld [vmem:[%s2668 + $0x12] sm:$0x1]
        %v2684 = vld [vmem:[%s2668 + $0x13] sm:$0x1]
        %v2685 = vld [vmem:[%s2668 + $0x14] sm:$0x1]
        %v2686 = vld [vmem:[%s2668 + $0x15] sm:$0x1]
        %v2687 = vld [vmem:[%s2668 + $0x16] sm:$0x1]
        %v2688 = vld [vmem:[%s2668 + $0x17] sm:$0x1]
        %v2689 = vld [vmem:[%s2668 + $0x18] sm:$0x1]
        %v2690 = vld [vmem:[%s2668 + $0x1b] sm:$0x1]
        %v2691 = vld [vmem:[%s2668 + $0x1c] sm:$0x1]
        %v2692 = vld [vmem:[%s2668 + $0x1d] sm:$0x1]
        %v2693 = vld [vmem:[%s2668 + $0x1e] sm:$0x1]
        %v2694 = vld [vmem:[%s2668 + $0x1f] sm:$0x1]
        %v2695 = vld [vmem:[%s2668 + $0x20] sm:$0x1]
        %v2696 = vld [vmem:[%s2668 + $0x21] sm:$0x1]
        %v2697 = vld [vmem:[%s2668 + $0x24] sm:$0x1]
        %v2698 = vld [vmem:[%s2668 + $0x25] sm:$0x1]
        %v2699 = vld [vmem:[%s2668 + $0x26] sm:$0x1]
        %v2700 = vld [vmem:[%s2668 + $0x27] sm:$0x1]
        %v2701 = vld [vmem:[%s2668 + $0x28] sm:$0x1]
        %v2702 = vld [vmem:[%s2668 + $0x29] sm:$0x1]
        %v2703 = vld [vmem:[%s2668 + $0x2a] sm:$0x1]
        %v2704 = vld [vmem:[%s2668 + $0x2d] sm:$0x1]
        %v2705 = vld [vmem:[%s2668 + $0x2e] sm:$0x1]
        %v2706 = vld [vmem:[%s2668 + $0x2f] sm:$0x1]
        %v2707 = vld [vmem:[%s2668 + $0x30] sm:$0x1]
        %v2708 = vld [vmem:[%s2668 + $0x31] sm:$0x1]
        %v2709 = vld [vmem:[%s2668 + $0x32] sm:$0x1]
        %v2710 = vld [vmem:[%s2668 + $0x33] sm:$0x1]
        %v2711 = vld [vmem:[%s2668 + $0x36] sm:$0x1]
        %v2712 = vld [vmem:[%s2668 + $0x37] sm:$0x1]
        %v2713 = vld [vmem:[%s2668 + $0x38] sm:$0x1]
        %v2714 = vld [vmem:[%s2668 + $0x39] sm:$0x1]
        %v2715 = vld [vmem:[%s2668 + $0x3a] sm:$0x1]
        %v2716 = vld [vmem:[%s2668 + $0x3b] sm:$0x1]
        %v2717 = vld [vmem:[%s2668 + $0x3c] sm:$0x1]
        %v2718 = vstv %s2666
        %v2719 = vmul.f32 %v2669, %v2718
        %v2720 = vmul.f32 %v2670, %v2718
        %v2721 = vmul.f32 %v2671, %v2718
        %v2722 = vmul.f32 %v2672, %v2718
        %v2723 = vmul.f32 %v2673, %v2718
        %v2724 = vmul.f32 %v2674, %v2718
        %v2725 = vmul.f32 %v2675, %v2718
        %v2726 = vmul.f32 %v2676, %v2718
        %v2727 = vmul.f32 %v2677, %v2718
        %v2728 = vmul.f32 %v2678, %v2718
        %v2729 = vmul.f32 %v2679, %v2718
        %v2730 = vmul.f32 %v2680, %v2718
        %v2731 = vmul.f32 %v2681, %v2718
        %v2732 = vmul.f32 %v2682, %v2718
        %v2733 = vmul.f32 %v2683, %v2718
        %v2734 = vmul.f32 %v2684, %v2718
        %v2735 = vmul.f32 %v2685, %v2718
        %v2736 = vmul.f32 %v2686, %v2718
        %v2737 = vmul.f32 %v2687, %v2718
        %v2738 = vmul.f32 %v2688, %v2718
        %v2739 = vmul.f32 %v2689, %v2718
        %v2740 = vmul.f32 %v2690, %v2718
        %v2741 = vmul.f32 %v2691, %v2718
        %v2742 = vmul.f32 %v2692, %v2718
        %v2743 = vmul.f32 %v2693, %v2718
        %v2744 = vmul.f32 %v2694, %v2718
        %v2745 = vmul.f32 %v2695, %v2718
        %v2746 = vmul.f32 %v2696, %v2718
        %v2747 = vmul.f32 %v2697, %v2718
        %v2748 = vmul.f32 %v2698, %v2718
        %v2749 = vmul.f32 %v2699, %v2718
        %v2750 = vmul.f32 %v2700, %v2718
        %v2751 = vmul.f32 %v2701, %v2718
        %v2752 = vmul.f32 %v2702, %v2718
        %v2753 = vmul.f32 %v2703, %v2718
        %v2754 = vmul.f32 %v2704, %v2718
        %v2755 = vmul.f32 %v2705, %v2718
        %v2756 = vmul.f32 %v2706, %v2718
        %v2757 = vmul.f32 %v2707, %v2718
        %v2758 = vmul.f32 %v2708, %v2718
        %v2759 = vmul.f32 %v2709, %v2718
        %v2760 = vmul.f32 %v2710, %v2718
        %v2761 = vmul.f32 %v2711, %v2718
        %v2762 = vmul.f32 %v2712, %v2718
        %v2763 = vmul.f32 %v2713, %v2718
        %v2764 = vmul.f32 %v2714, %v2718
        %v2765 = vmul.f32 %v2715, %v2718
        %v2766 = vmul.f32 %v2716, %v2718
        %v2767 = vmul.f32 %v2717, %v2718
        %v2768 = vadd.f32 %v2616, %v2719
        %v2769 = vadd.f32 %v2617, %v2720
        %v2770 = vadd.f32 %v2618, %v2721
        %v2771 = vadd.f32 %v2619, %v2722
        %v2772 = vadd.f32 %v2620, %v2723
        %v2773 = vadd.f32 %v2621, %v2724
        %v2774 = vadd.f32 %v2622, %v2725
        %v2775 = vadd.f32 %v2623, %v2726
        %v2776 = vadd.f32 %v2624, %v2727
        %v2777 = vadd.f32 %v2625, %v2728
        %v2778 = vadd.f32 %v2626, %v2729
        %v2779 = vadd.f32 %v2627, %v2730
        %v2780 = vadd.f32 %v2628, %v2731
        %v2781 = vadd.f32 %v2629, %v2732
        %v2782 = vadd.f32 %v2630, %v2733
        %v2783 = vadd.f32 %v2631, %v2734
        %v2784 = vadd.f32 %v2632, %v2735
        %v2785 = vadd.f32 %v2633, %v2736
        %v2786 = vadd.f32 %v2634, %v2737
        %v2787 = vadd.f32 %v2635, %v2738
        %v2788 = vadd.f32 %v2636, %v2739
        %v2789 = vadd.f32 %v2637, %v2740
        %v2790 = vadd.f32 %v2638, %v2741
        %v2791 = vadd.f32 %v2639, %v2742
        %v2792 = vadd.f32 %v2640, %v2743
        %v2793 = vadd.f32 %v2641, %v2744
        %v2794 = vadd.f32 %v2642, %v2745
        %v2795 = vadd.f32 %v2643, %v2746
        %v2796 = vadd.f32 %v2644, %v2747
        %v2797 = vadd.f32 %v2645, %v2748
        %v2798 = vadd.f32 %v2646, %v2749
        %v2799 = vadd.f32 %v2647, %v2750
        %v2800 = vadd.f32 %v2648, %v2751
        %v2801 = vadd.f32 %v2649, %v2752
        %v2802 = vadd.f32 %v2650, %v2753
        %v2803 = vadd.f32 %v2651, %v2754
        %v2804 = vadd.f32 %v2652, %v2755
        %v2805 = vadd.f32 %v2653, %v2756
        %v2806 = vadd.f32 %v2654, %v2757
        %v2807 = vadd.f32 %v2655, %v2758
        %v2808 = vadd.f32 %v2656, %v2759
        %v2809 = vadd.f32 %v2657, %v2760
        %v2810 = vadd.f32 %v2658, %v2761
        %v2811 = vadd.f32 %v2659, %v2762
        %v2812 = vadd.f32 %v2660, %v2763
        %v2813 = vadd.f32 %v2661, %v2764
        %v2814 = vadd.f32 %v2662, %v2765
        %v2815 = vadd.f32 %v2663, %v2766
        %v2816 = vadd.f32 %v2664, %v2767
        %s2817 = sadd.s32 %s2512, 38
        %s2818 = sld [smem:[#allocation12 + %s2817]]
        %s2819 = sadd.s32 2, %s2515
        %s2820 = scalar_lea.vmem [#allocation2], %s2819
        %v2821 = vld [vmem:[%s2820] sm:$0x1]
        %v2822 = vld [vmem:[%s2820 + $0x1] sm:$0x1]
        %v2823 = vld [vmem:[%s2820 + $0x2] sm:$0x1]
        %v2824 = vld [vmem:[%s2820 + $0x3] sm:$0x1]
        %v2825 = vld [vmem:[%s2820 + $0x4] sm:$0x1]
        %v2826 = vld [vmem:[%s2820 + $0x5] sm:$0x1]
        %v2827 = vld [vmem:[%s2820 + $0x6] sm:$0x1]
        %v2828 = vld [vmem:[%s2820 + $0x9] sm:$0x1]
        %v2829 = vld [vmem:[%s2820 + $0xa] sm:$0x1]
        %v2830 = vld [vmem:[%s2820 + $0xb] sm:$0x1]
        %v2831 = vld [vmem:[%s2820 + $0xc] sm:$0x1]
        %v2832 = vld [vmem:[%s2820 + $0xd] sm:$0x1]
        %v2833 = vld [vmem:[%s2820 + $0xe] sm:$0x1]
        %v2834 = vld [vmem:[%s2820 + $0xf] sm:$0x1]
        %v2835 = vld [vmem:[%s2820 + $0x12] sm:$0x1]
        %v2836 = vld [vmem:[%s2820 + $0x13] sm:$0x1]
        %v2837 = vld [vmem:[%s2820 + $0x14] sm:$0x1]
        %v2838 = vld [vmem:[%s2820 + $0x15] sm:$0x1]
        %v2839 = vld [vmem:[%s2820 + $0x16] sm:$0x1]
        %v2840 = vld [vmem:[%s2820 + $0x17] sm:$0x1]
        %v2841 = vld [vmem:[%s2820 + $0x18] sm:$0x1]
        %v2842 = vld [vmem:[%s2820 + $0x1b] sm:$0x1]
        %v2843 = vld [vmem:[%s2820 + $0x1c] sm:$0x1]
        %v2844 = vld [vmem:[%s2820 + $0x1d] sm:$0x1]
        %v2845 = vld [vmem:[%s2820 + $0x1e] sm:$0x1]
        %v2846 = vld [vmem:[%s2820 + $0x1f] sm:$0x1]
        %v2847 = vld [vmem:[%s2820 + $0x20] sm:$0x1]
        %v2848 = vld [vmem:[%s2820 + $0x21] sm:$0x1]
        %v2849 = vld [vmem:[%s2820 + $0x24] sm:$0x1]
        %v2850 = vld [vmem:[%s2820 + $0x25] sm:$0x1]
        %v2851 = vld [vmem:[%s2820 + $0x26] sm:$0x1]
        %v2852 = vld [vmem:[%s2820 + $0x27] sm:$0x1]
        %v2853 = vld [vmem:[%s2820 + $0x28] sm:$0x1]
        %v2854 = vld [vmem:[%s2820 + $0x29] sm:$0x1]
        %v2855 = vld [vmem:[%s2820 + $0x2a] sm:$0x1]
        %v2856 = vld [vmem:[%s2820 + $0x2d] sm:$0x1]
        %v2857 = vld [vmem:[%s2820 + $0x2e] sm:$0x1]
        %v2858 = vld [vmem:[%s2820 + $0x2f] sm:$0x1]
        %v2859 = vld [vmem:[%s2820 + $0x30] sm:$0x1]
        %v2860 = vld [vmem:[%s2820 + $0x31] sm:$0x1]
        %v2861 = vld [vmem:[%s2820 + $0x32] sm:$0x1]
        %v2862 = vld [vmem:[%s2820 + $0x33] sm:$0x1]
        %v2863 = vld [vmem:[%s2820 + $0x36] sm:$0x1]
        %v2864 = vld [vmem:[%s2820 + $0x37] sm:$0x1]
        %v2865 = vld [vmem:[%s2820 + $0x38] sm:$0x1]
        %v2866 = vld [vmem:[%s2820 + $0x39] sm:$0x1]
        %v2867 = vld [vmem:[%s2820 + $0x3a] sm:$0x1]
        %v2868 = vld [vmem:[%s2820 + $0x3b] sm:$0x1]
        %v2869 = vld [vmem:[%s2820 + $0x3c] sm:$0x1]
        %v2870 = vstv %s2818
        %v2871 = vmul.f32 %v2821, %v2870
        %v2872 = vmul.f32 %v2822, %v2870
        %v2873 = vmul.f32 %v2823, %v2870
        %v2874 = vmul.f32 %v2824, %v2870
        %v2875 = vmul.f32 %v2825, %v2870
        %v2876 = vmul.f32 %v2826, %v2870
        %v2877 = vmul.f32 %v2827, %v2870
        %v2878 = vmul.f32 %v2828, %v2870
        %v2879 = vmul.f32 %v2829, %v2870
        %v2880 = vmul.f32 %v2830, %v2870
        %v2881 = vmul.f32 %v2831, %v2870
        %v2882 = vmul.f32 %v2832, %v2870
        %v2883 = vmul.f32 %v2833, %v2870
        %v2884 = vmul.f32 %v2834, %v2870
        %v2885 = vmul.f32 %v2835, %v2870
        %v2886 = vmul.f32 %v2836, %v2870
        %v2887 = vmul.f32 %v2837, %v2870
        %v2888 = vmul.f32 %v2838, %v2870
        %v2889 = vmul.f32 %v2839, %v2870
        %v2890 = vmul.f32 %v2840, %v2870
        %v2891 = vmul.f32 %v2841, %v2870
        %v2892 = vmul.f32 %v2842, %v2870
        %v2893 = vmul.f32 %v2843, %v2870
        %v2894 = vmul.f32 %v2844, %v2870
        %v2895 = vmul.f32 %v2845, %v2870
        %v2896 = vmul.f32 %v2846, %v2870
        %v2897 = vmul.f32 %v2847, %v2870
        %v2898 = vmul.f32 %v2848, %v2870
        %v2899 = vmul.f32 %v2849, %v2870
        %v2900 = vmul.f32 %v2850, %v2870
        %v2901 = vmul.f32 %v2851, %v2870
        %v2902 = vmul.f32 %v2852, %v2870
        %v2903 = vmul.f32 %v2853, %v2870
        %v2904 = vmul.f32 %v2854, %v2870
        %v2905 = vmul.f32 %v2855, %v2870
        %v2906 = vmul.f32 %v2856, %v2870
        %v2907 = vmul.f32 %v2857, %v2870
        %v2908 = vmul.f32 %v2858, %v2870
        %v2909 = vmul.f32 %v2859, %v2870
        %v2910 = vmul.f32 %v2860, %v2870
        %v2911 = vmul.f32 %v2861, %v2870
        %v2912 = vmul.f32 %v2862, %v2870
        %v2913 = vmul.f32 %v2863, %v2870
        %v2914 = vmul.f32 %v2864, %v2870
        %v2915 = vmul.f32 %v2865, %v2870
        %v2916 = vmul.f32 %v2866, %v2870
        %v2917 = vmul.f32 %v2867, %v2870
        %v2918 = vmul.f32 %v2868, %v2870
        %v2919 = vmul.f32 %v2869, %v2870
        %v2920 = vadd.f32 %v2768, %v2871
        %v2921 = vadd.f32 %v2769, %v2872
        %v2922 = vadd.f32 %v2770, %v2873
        %v2923 = vadd.f32 %v2771, %v2874
        %v2924 = vadd.f32 %v2772, %v2875
        %v2925 = vadd.f32 %v2773, %v2876
        %v2926 = vadd.f32 %v2774, %v2877
        %v2927 = vadd.f32 %v2775, %v2878
        %v2928 = vadd.f32 %v2776, %v2879
        %v2929 = vadd.f32 %v2777, %v2880
        %v2930 = vadd.f32 %v2778, %v2881
        %v2931 = vadd.f32 %v2779, %v2882
        %v2932 = vadd.f32 %v2780, %v2883
        %v2933 = vadd.f32 %v2781, %v2884
        %v2934 = vadd.f32 %v2782, %v2885
        %v2935 = vadd.f32 %v2783, %v2886
        %v2936 = vadd.f32 %v2784, %v2887
        %v2937 = vadd.f32 %v2785, %v2888
        %v2938 = vadd.f32 %v2786, %v2889
        %v2939 = vadd.f32 %v2787, %v2890
        %v2940 = vadd.f32 %v2788, %v2891
        %v2941 = vadd.f32 %v2789, %v2892
        %v2942 = vadd.f32 %v2790, %v2893
        %v2943 = vadd.f32 %v2791, %v2894
        %v2944 = vadd.f32 %v2792, %v2895
        %v2945 = vadd.f32 %v2793, %v2896
        %v2946 = vadd.f32 %v2794, %v2897
        %v2947 = vadd.f32 %v2795, %v2898
        %v2948 = vadd.f32 %v2796, %v2899
        %v2949 = vadd.f32 %v2797, %v2900
        %v2950 = vadd.f32 %v2798, %v2901
        %v2951 = vadd.f32 %v2799, %v2902
        %v2952 = vadd.f32 %v2800, %v2903
        %v2953 = vadd.f32 %v2801, %v2904
        %v2954 = vadd.f32 %v2802, %v2905
        %v2955 = vadd.f32 %v2803, %v2906
        %v2956 = vadd.f32 %v2804, %v2907
        %v2957 = vadd.f32 %v2805, %v2908
        %v2958 = vadd.f32 %v2806, %v2909
        %v2959 = vadd.f32 %v2807, %v2910
        %v2960 = vadd.f32 %v2808, %v2911
        %v2961 = vadd.f32 %v2809, %v2912
        %v2962 = vadd.f32 %v2810, %v2913
        %v2963 = vadd.f32 %v2811, %v2914
        %v2964 = vadd.f32 %v2812, %v2915
        %v2965 = vadd.f32 %v2813, %v2916
        %v2966 = vadd.f32 %v2814, %v2917
        %v2967 = vadd.f32 %v2815, %v2918
        %v2968 = vadd.f32 %v2816, %v2919
        %s2969 = sadd.s32 %s2512, 39
        %s2970 = sld [smem:[#allocation12 + %s2969]]
        %s2971 = sadd.s32 9, %s2515
        %s2972 = scalar_lea.vmem [#allocation2], %s2971
        %v2973 = vld [vmem:[%s2972] sm:$0x1]
        %v2974 = vld [vmem:[%s2972 + $0x1] sm:$0x1]
        %v2975 = vld [vmem:[%s2972 + $0x2] sm:$0x1]
        %v2976 = vld [vmem:[%s2972 + $0x3] sm:$0x1]
        %v2977 = vld [vmem:[%s2972 + $0x4] sm:$0x1]
        %v2978 = vld [vmem:[%s2972 + $0x5] sm:$0x1]
        %v2979 = vld [vmem:[%s2972 + $0x6] sm:$0x1]
        %v2980 = vld [vmem:[%s2972 + $0x9] sm:$0x1]
        %v2981 = vld [vmem:[%s2972 + $0xa] sm:$0x1]
        %v2982 = vld [vmem:[%s2972 + $0xb] sm:$0x1]
        %v2983 = vld [vmem:[%s2972 + $0xc] sm:$0x1]
        %v2984 = vld [vmem:[%s2972 + $0xd] sm:$0x1]
        %v2985 = vld [vmem:[%s2972 + $0xe] sm:$0x1]
        %v2986 = vld [vmem:[%s2972 + $0xf] sm:$0x1]
        %v2987 = vld [vmem:[%s2972 + $0x12] sm:$0x1]
        %v2988 = vld [vmem:[%s2972 + $0x13] sm:$0x1]
        %v2989 = vld [vmem:[%s2972 + $0x14] sm:$0x1]
        %v2990 = vld [vmem:[%s2972 + $0x15] sm:$0x1]
        %v2991 = vld [vmem:[%s2972 + $0x16] sm:$0x1]
        %v2992 = vld [vmem:[%s2972 + $0x17] sm:$0x1]
        %v2993 = vld [vmem:[%s2972 + $0x18] sm:$0x1]
        %v2994 = vld [vmem:[%s2972 + $0x1b] sm:$0x1]
        %v2995 = vld [vmem:[%s2972 + $0x1c] sm:$0x1]
        %v2996 = vld [vmem:[%s2972 + $0x1d] sm:$0x1]
        %v2997 = vld [vmem:[%s2972 + $0x1e] sm:$0x1]
        %v2998 = vld [vmem:[%s2972 + $0x1f] sm:$0x1]
        %v2999 = vld [vmem:[%s2972 + $0x20] sm:$0x1]
        %v3000 = vld [vmem:[%s2972 + $0x21] sm:$0x1]
        %v3001 = vld [vmem:[%s2972 + $0x24] sm:$0x1]
        %v3002 = vld [vmem:[%s2972 + $0x25] sm:$0x1]
        %v3003 = vld [vmem:[%s2972 + $0x26] sm:$0x1]
        %v3004 = vld [vmem:[%s2972 + $0x27] sm:$0x1]
        %v3005 = vld [vmem:[%s2972 + $0x28] sm:$0x1]
        %v3006 = vld [vmem:[%s2972 + $0x29] sm:$0x1]
        %v3007 = vld [vmem:[%s2972 + $0x2a] sm:$0x1]
        %v3008 = vld [vmem:[%s2972 + $0x2d] sm:$0x1]
        %v3009 = vld [vmem:[%s2972 + $0x2e] sm:$0x1]
        %v3010 = vld [vmem:[%s2972 + $0x2f] sm:$0x1]
        %v3011 = vld [vmem:[%s2972 + $0x30] sm:$0x1]
        %v3012 = vld [vmem:[%s2972 + $0x31] sm:$0x1]
        %v3013 = vld [vmem:[%s2972 + $0x32] sm:$0x1]
        %v3014 = vld [vmem:[%s2972 + $0x33] sm:$0x1]
        %v3015 = vld [vmem:[%s2972 + $0x36] sm:$0x1]
        %v3016 = vld [vmem:[%s2972 + $0x37] sm:$0x1]
        %v3017 = vld [vmem:[%s2972 + $0x38] sm:$0x1]
        %v3018 = vld [vmem:[%s2972 + $0x39] sm:$0x1]
        %v3019 = vld [vmem:[%s2972 + $0x3a] sm:$0x1]
        %v3020 = vld [vmem:[%s2972 + $0x3b] sm:$0x1]
        %v3021 = vld [vmem:[%s2972 + $0x3c] sm:$0x1]
        %v3022 = vstv %s2970
        %v3023 = vmul.f32 %v2973, %v3022
        %v3024 = vmul.f32 %v2974, %v3022
        %v3025 = vmul.f32 %v2975, %v3022
        %v3026 = vmul.f32 %v2976, %v3022
        %v3027 = vmul.f32 %v2977, %v3022
        %v3028 = vmul.f32 %v2978, %v3022
        %v3029 = vmul.f32 %v2979, %v3022
        %v3030 = vmul.f32 %v2980, %v3022
        %v3031 = vmul.f32 %v2981, %v3022
        %v3032 = vmul.f32 %v2982, %v3022
        %v3033 = vmul.f32 %v2983, %v3022
        %v3034 = vmul.f32 %v2984, %v3022
        %v3035 = vmul.f32 %v2985, %v3022
        %v3036 = vmul.f32 %v2986, %v3022
        %v3037 = vmul.f32 %v2987, %v3022
        %v3038 = vmul.f32 %v2988, %v3022
        %v3039 = vmul.f32 %v2989, %v3022
        %v3040 = vmul.f32 %v2990, %v3022
        %v3041 = vmul.f32 %v2991, %v3022
        %v3042 = vmul.f32 %v2992, %v3022
        %v3043 = vmul.f32 %v2993, %v3022
        %v3044 = vmul.f32 %v2994, %v3022
        %v3045 = vmul.f32 %v2995, %v3022
        %v3046 = vmul.f32 %v2996, %v3022
        %v3047 = vmul.f32 %v2997, %v3022
        %v3048 = vmul.f32 %v2998, %v3022
        %v3049 = vmul.f32 %v2999, %v3022
        %v3050 = vmul.f32 %v3000, %v3022
        %v3051 = vmul.f32 %v3001, %v3022
        %v3052 = vmul.f32 %v3002, %v3022
        %v3053 = vmul.f32 %v3003, %v3022
        %v3054 = vmul.f32 %v3004, %v3022
        %v3055 = vmul.f32 %v3005, %v3022
        %v3056 = vmul.f32 %v3006, %v3022
        %v3057 = vmul.f32 %v3007, %v3022
        %v3058 = vmul.f32 %v3008, %v3022
        %v3059 = vmul.f32 %v3009, %v3022
        %v3060 = vmul.f32 %v3010, %v3022
        %v3061 = vmul.f32 %v3011, %v3022
        %v3062 = vmul.f32 %v3012, %v3022
        %v3063 = vmul.f32 %v3013, %v3022
        %v3064 = vmul.f32 %v3014, %v3022
        %v3065 = vmul.f32 %v3015, %v3022
        %v3066 = vmul.f32 %v3016, %v3022
        %v3067 = vmul.f32 %v3017, %v3022
        %v3068 = vmul.f32 %v3018, %v3022
        %v3069 = vmul.f32 %v3019, %v3022
        %v3070 = vmul.f32 %v3020, %v3022
        %v3071 = vmul.f32 %v3021, %v3022
        %v3072 = vadd.f32 %v2920, %v3023
        %v3073 = vadd.f32 %v2921, %v3024
        %v3074 = vadd.f32 %v2922, %v3025
        %v3075 = vadd.f32 %v2923, %v3026
        %v3076 = vadd.f32 %v2924, %v3027
        %v3077 = vadd.f32 %v2925, %v3028
        %v3078 = vadd.f32 %v2926, %v3029
        %v3079 = vadd.f32 %v2927, %v3030
        %v3080 = vadd.f32 %v2928, %v3031
        %v3081 = vadd.f32 %v2929, %v3032
        %v3082 = vadd.f32 %v2930, %v3033
        %v3083 = vadd.f32 %v2931, %v3034
        %v3084 = vadd.f32 %v2932, %v3035
        %v3085 = vadd.f32 %v2933, %v3036
        %v3086 = vadd.f32 %v2934, %v3037
        %v3087 = vadd.f32 %v2935, %v3038
        %v3088 = vadd.f32 %v2936, %v3039
        %v3089 = vadd.f32 %v2937, %v3040
        %v3090 = vadd.f32 %v2938, %v3041
        %v3091 = vadd.f32 %v2939, %v3042
        %v3092 = vadd.f32 %v2940, %v3043
        %v3093 = vadd.f32 %v2941, %v3044
        %v3094 = vadd.f32 %v2942, %v3045
        %v3095 = vadd.f32 %v2943, %v3046
        %v3096 = vadd.f32 %v2944, %v3047
        %v3097 = vadd.f32 %v2945, %v3048
        %v3098 = vadd.f32 %v2946, %v3049
        %v3099 = vadd.f32 %v2947, %v3050
        %v3100 = vadd.f32 %v2948, %v3051
        %v3101 = vadd.f32 %v2949, %v3052
        %v3102 = vadd.f32 %v2950, %v3053
        %v3103 = vadd.f32 %v2951, %v3054
        %v3104 = vadd.f32 %v2952, %v3055
        %v3105 = vadd.f32 %v2953, %v3056
        %v3106 = vadd.f32 %v2954, %v3057
        %v3107 = vadd.f32 %v2955, %v3058
        %v3108 = vadd.f32 %v2956, %v3059
        %v3109 = vadd.f32 %v2957, %v3060
        %v3110 = vadd.f32 %v2958, %v3061
        %v3111 = vadd.f32 %v2959, %v3062
        %v3112 = vadd.f32 %v2960, %v3063
        %v3113 = vadd.f32 %v2961, %v3064
        %v3114 = vadd.f32 %v2962, %v3065
        %v3115 = vadd.f32 %v2963, %v3066
        %v3116 = vadd.f32 %v2964, %v3067
        %v3117 = vadd.f32 %v2965, %v3068
        %v3118 = vadd.f32 %v2966, %v3069
        %v3119 = vadd.f32 %v2967, %v3070
        %v3120 = vadd.f32 %v2968, %v3071
        %s3121 = sadd.s32 %s2512, 40
        %s3122 = sld [smem:[#allocation12 + %s3121]]
        %s3123 = sadd.s32 10, %s2515
        %s3124 = scalar_lea.vmem [#allocation2], %s3123
        %v3125 = vld [vmem:[%s3124] sm:$0x1]
        %v3126 = vld [vmem:[%s3124 + $0x1] sm:$0x1]
        %v3127 = vld [vmem:[%s3124 + $0x2] sm:$0x1]
        %v3128 = vld [vmem:[%s3124 + $0x3] sm:$0x1]
        %v3129 = vld [vmem:[%s3124 + $0x4] sm:$0x1]
        %v3130 = vld [vmem:[%s3124 + $0x5] sm:$0x1]
        %v3131 = vld [vmem:[%s3124 + $0x6] sm:$0x1]
        %v3132 = vld [vmem:[%s3124 + $0x9] sm:$0x1]
        %v3133 = vld [vmem:[%s3124 + $0xa] sm:$0x1]
        %v3134 = vld [vmem:[%s3124 + $0xb] sm:$0x1]
        %v3135 = vld [vmem:[%s3124 + $0xc] sm:$0x1]
        %v3136 = vld [vmem:[%s3124 + $0xd] sm:$0x1]
        %v3137 = vld [vmem:[%s3124 + $0xe] sm:$0x1]
        %v3138 = vld [vmem:[%s3124 + $0xf] sm:$0x1]
        %v3139 = vld [vmem:[%s3124 + $0x12] sm:$0x1]
        %v3140 = vld [vmem:[%s3124 + $0x13] sm:$0x1]
        %v3141 = vld [vmem:[%s3124 + $0x14] sm:$0x1]
        %v3142 = vld [vmem:[%s3124 + $0x15] sm:$0x1]
        %v3143 = vld [vmem:[%s3124 + $0x16] sm:$0x1]
        %v3144 = vld [vmem:[%s3124 + $0x17] sm:$0x1]
        %v3145 = vld [vmem:[%s3124 + $0x18] sm:$0x1]
        %v3146 = vld [vmem:[%s3124 + $0x1b] sm:$0x1]
        %v3147 = vld [vmem:[%s3124 + $0x1c] sm:$0x1]
        %v3148 = vld [vmem:[%s3124 + $0x1d] sm:$0x1]
        %v3149 = vld [vmem:[%s3124 + $0x1e] sm:$0x1]
        %v3150 = vld [vmem:[%s3124 + $0x1f] sm:$0x1]
        %v3151 = vld [vmem:[%s3124 + $0x20] sm:$0x1]
        %v3152 = vld [vmem:[%s3124 + $0x21] sm:$0x1]
        %v3153 = vld [vmem:[%s3124 + $0x24] sm:$0x1]
        %v3154 = vld [vmem:[%s3124 + $0x25] sm:$0x1]
        %v3155 = vld [vmem:[%s3124 + $0x26] sm:$0x1]
        %v3156 = vld [vmem:[%s3124 + $0x27] sm:$0x1]
        %v3157 = vld [vmem:[%s3124 + $0x28] sm:$0x1]
        %v3158 = vld [vmem:[%s3124 + $0x29] sm:$0x1]
        %v3159 = vld [vmem:[%s3124 + $0x2a] sm:$0x1]
        %v3160 = vld [vmem:[%s3124 + $0x2d] sm:$0x1]
        %v3161 = vld [vmem:[%s3124 + $0x2e] sm:$0x1]
        %v3162 = vld [vmem:[%s3124 + $0x2f] sm:$0x1]
        %v3163 = vld [vmem:[%s3124 + $0x30] sm:$0x1]
        %v3164 = vld [vmem:[%s3124 + $0x31] sm:$0x1]
        %v3165 = vld [vmem:[%s3124 + $0x32] sm:$0x1]
        %v3166 = vld [vmem:[%s3124 + $0x33] sm:$0x1]
        %v3167 = vld [vmem:[%s3124 + $0x36] sm:$0x1]
        %v3168 = vld [vmem:[%s3124 + $0x37] sm:$0x1]
        %v3169 = vld [vmem:[%s3124 + $0x38] sm:$0x1]
        %v3170 = vld [vmem:[%s3124 + $0x39] sm:$0x1]
        %v3171 = vld [vmem:[%s3124 + $0x3a] sm:$0x1]
        %v3172 = vld [vmem:[%s3124 + $0x3b] sm:$0x1]
        %v3173 = vld [vmem:[%s3124 + $0x3c] sm:$0x1]
        %v3174 = vstv %s3122
        %v3175 = vmul.f32 %v3125, %v3174
        %v3176 = vmul.f32 %v3126, %v3174
        %v3177 = vmul.f32 %v3127, %v3174
        %v3178 = vmul.f32 %v3128, %v3174
        %v3179 = vmul.f32 %v3129, %v3174
        %v3180 = vmul.f32 %v3130, %v3174
        %v3181 = vmul.f32 %v3131, %v3174
        %v3182 = vmul.f32 %v3132, %v3174
        %v3183 = vmul.f32 %v3133, %v3174
        %v3184 = vmul.f32 %v3134, %v3174
        %v3185 = vmul.f32 %v3135, %v3174
        %v3186 = vmul.f32 %v3136, %v3174
        %v3187 = vmul.f32 %v3137, %v3174
        %v3188 = vmul.f32 %v3138, %v3174
        %v3189 = vmul.f32 %v3139, %v3174
        %v3190 = vmul.f32 %v3140, %v3174
        %v3191 = vmul.f32 %v3141, %v3174
        %v3192 = vmul.f32 %v3142, %v3174
        %v3193 = vmul.f32 %v3143, %v3174
        %v3194 = vmul.f32 %v3144, %v3174
        %v3195 = vmul.f32 %v3145, %v3174
        %v3196 = vmul.f32 %v3146, %v3174
        %v3197 = vmul.f32 %v3147, %v3174
        %v3198 = vmul.f32 %v3148, %v3174
        %v3199 = vmul.f32 %v3149, %v3174
        %v3200 = vmul.f32 %v3150, %v3174
        %v3201 = vmul.f32 %v3151, %v3174
        %v3202 = vmul.f32 %v3152, %v3174
        %v3203 = vmul.f32 %v3153, %v3174
        %v3204 = vmul.f32 %v3154, %v3174
        %v3205 = vmul.f32 %v3155, %v3174
        %v3206 = vmul.f32 %v3156, %v3174
        %v3207 = vmul.f32 %v3157, %v3174
        %v3208 = vmul.f32 %v3158, %v3174
        %v3209 = vmul.f32 %v3159, %v3174
        %v3210 = vmul.f32 %v3160, %v3174
        %v3211 = vmul.f32 %v3161, %v3174
        %v3212 = vmul.f32 %v3162, %v3174
        %v3213 = vmul.f32 %v3163, %v3174
        %v3214 = vmul.f32 %v3164, %v3174
        %v3215 = vmul.f32 %v3165, %v3174
        %v3216 = vmul.f32 %v3166, %v3174
        %v3217 = vmul.f32 %v3167, %v3174
        %v3218 = vmul.f32 %v3168, %v3174
        %v3219 = vmul.f32 %v3169, %v3174
        %v3220 = vmul.f32 %v3170, %v3174
        %v3221 = vmul.f32 %v3171, %v3174
        %v3222 = vmul.f32 %v3172, %v3174
        %v3223 = vmul.f32 %v3173, %v3174
        %v3224 = vadd.f32 %v3072, %v3175
        %v3225 = vadd.f32 %v3073, %v3176
        %v3226 = vadd.f32 %v3074, %v3177
        %v3227 = vadd.f32 %v3075, %v3178
        %v3228 = vadd.f32 %v3076, %v3179
        %v3229 = vadd.f32 %v3077, %v3180
        %v3230 = vadd.f32 %v3078, %v3181
        %v3231 = vadd.f32 %v3079, %v3182
        %v3232 = vadd.f32 %v3080, %v3183
        %v3233 = vadd.f32 %v3081, %v3184
        %v3234 = vadd.f32 %v3082, %v3185
        %v3235 = vadd.f32 %v3083, %v3186
        %v3236 = vadd.f32 %v3084, %v3187
        %v3237 = vadd.f32 %v3085, %v3188
        %v3238 = vadd.f32 %v3086, %v3189
        %v3239 = vadd.f32 %v3087, %v3190
        %v3240 = vadd.f32 %v3088, %v3191
        %v3241 = vadd.f32 %v3089, %v3192
        %v3242 = vadd.f32 %v3090, %v3193
        %v3243 = vadd.f32 %v3091, %v3194
        %v3244 = vadd.f32 %v3092, %v3195
        %v3245 = vadd.f32 %v3093, %v3196
        %v3246 = vadd.f32 %v3094, %v3197
        %v3247 = vadd.f32 %v3095, %v3198
        %v3248 = vadd.f32 %v3096, %v3199
        %v3249 = vadd.f32 %v3097, %v3200
        %v3250 = vadd.f32 %v3098, %v3201
        %v3251 = vadd.f32 %v3099, %v3202
        %v3252 = vadd.f32 %v3100, %v3203
        %v3253 = vadd.f32 %v3101, %v3204
        %v3254 = vadd.f32 %v3102, %v3205
        %v3255 = vadd.f32 %v3103, %v3206
        %v3256 = vadd.f32 %v3104, %v3207
        %v3257 = vadd.f32 %v3105, %v3208
        %v3258 = vadd.f32 %v3106, %v3209
        %v3259 = vadd.f32 %v3107, %v3210
        %v3260 = vadd.f32 %v3108, %v3211
        %v3261 = vadd.f32 %v3109, %v3212
        %v3262 = vadd.f32 %v3110, %v3213
        %v3263 = vadd.f32 %v3111, %v3214
        %v3264 = vadd.f32 %v3112, %v3215
        %v3265 = vadd.f32 %v3113, %v3216
        %v3266 = vadd.f32 %v3114, %v3217
        %v3267 = vadd.f32 %v3115, %v3218
        %v3268 = vadd.f32 %v3116, %v3219
        %v3269 = vadd.f32 %v3117, %v3220
        %v3270 = vadd.f32 %v3118, %v3221
        %v3271 = vadd.f32 %v3119, %v3222
        %v3272 = vadd.f32 %v3120, %v3223
        %s3273 = sadd.s32 %s2512, 41
        %s3274 = sld [smem:[#allocation12 + %s3273]]
        %s3275 = sadd.s32 11, %s2515
        %s3276 = scalar_lea.vmem [#allocation2], %s3275
        %v3277 = vld [vmem:[%s3276] sm:$0x1]
        %v3278 = vld [vmem:[%s3276 + $0x1] sm:$0x1]
        %v3279 = vld [vmem:[%s3276 + $0x2] sm:$0x1]
        %v3280 = vld [vmem:[%s3276 + $0x3] sm:$0x1]
        %v3281 = vld [vmem:[%s3276 + $0x4] sm:$0x1]
        %v3282 = vld [vmem:[%s3276 + $0x5] sm:$0x1]
        %v3283 = vld [vmem:[%s3276 + $0x6] sm:$0x1]
        %v3284 = vld [vmem:[%s3276 + $0x9] sm:$0x1]
        %v3285 = vld [vmem:[%s3276 + $0xa] sm:$0x1]
        %v3286 = vld [vmem:[%s3276 + $0xb] sm:$0x1]
        %v3287 = vld [vmem:[%s3276 + $0xc] sm:$0x1]
        %v3288 = vld [vmem:[%s3276 + $0xd] sm:$0x1]
        %v3289 = vld [vmem:[%s3276 + $0xe] sm:$0x1]
        %v3290 = vld [vmem:[%s3276 + $0xf] sm:$0x1]
        %v3291 = vld [vmem:[%s3276 + $0x12] sm:$0x1]
        %v3292 = vld [vmem:[%s3276 + $0x13] sm:$0x1]
        %v3293 = vld [vmem:[%s3276 + $0x14] sm:$0x1]
        %v3294 = vld [vmem:[%s3276 + $0x15] sm:$0x1]
        %v3295 = vld [vmem:[%s3276 + $0x16] sm:$0x1]
        %v3296 = vld [vmem:[%s3276 + $0x17] sm:$0x1]
        %v3297 = vld [vmem:[%s3276 + $0x18] sm:$0x1]
        %v3298 = vld [vmem:[%s3276 + $0x1b] sm:$0x1]
        %v3299 = vld [vmem:[%s3276 + $0x1c] sm:$0x1]
        %v3300 = vld [vmem:[%s3276 + $0x1d] sm:$0x1]
        %v3301 = vld [vmem:[%s3276 + $0x1e] sm:$0x1]
        %v3302 = vld [vmem:[%s3276 + $0x1f] sm:$0x1]
        %v3303 = vld [vmem:[%s3276 + $0x20] sm:$0x1]
        %v3304 = vld [vmem:[%s3276 + $0x21] sm:$0x1]
        %v3305 = vld [vmem:[%s3276 + $0x24] sm:$0x1]
        %v3306 = vld [vmem:[%s3276 + $0x25] sm:$0x1]
        %v3307 = vld [vmem:[%s3276 + $0x26] sm:$0x1]
        %v3308 = vld [vmem:[%s3276 + $0x27] sm:$0x1]
        %v3309 = vld [vmem:[%s3276 + $0x28] sm:$0x1]
        %v3310 = vld [vmem:[%s3276 + $0x29] sm:$0x1]
        %v3311 = vld [vmem:[%s3276 + $0x2a] sm:$0x1]
        %v3312 = vld [vmem:[%s3276 + $0x2d] sm:$0x1]
        %v3313 = vld [vmem:[%s3276 + $0x2e] sm:$0x1]
        %v3314 = vld [vmem:[%s3276 + $0x2f] sm:$0x1]
        %v3315 = vld [vmem:[%s3276 + $0x30] sm:$0x1]
        %v3316 = vld [vmem:[%s3276 + $0x31] sm:$0x1]
        %v3317 = vld [vmem:[%s3276 + $0x32] sm:$0x1]
        %v3318 = vld [vmem:[%s3276 + $0x33] sm:$0x1]
        %v3319 = vld [vmem:[%s3276 + $0x36] sm:$0x1]
        %v3320 = vld [vmem:[%s3276 + $0x37] sm:$0x1]
        %v3321 = vld [vmem:[%s3276 + $0x38] sm:$0x1]
        %v3322 = vld [vmem:[%s3276 + $0x39] sm:$0x1]
        %v3323 = vld [vmem:[%s3276 + $0x3a] sm:$0x1]
        %v3324 = vld [vmem:[%s3276 + $0x3b] sm:$0x1]
        %v3325 = vld [vmem:[%s3276 + $0x3c] sm:$0x1]
        %v3326 = vstv %s3274
        %v3327 = vmul.f32 %v3277, %v3326
        %v3328 = vmul.f32 %v3278, %v3326
        %v3329 = vmul.f32 %v3279, %v3326
        %v3330 = vmul.f32 %v3280, %v3326
        %v3331 = vmul.f32 %v3281, %v3326
        %v3332 = vmul.f32 %v3282, %v3326
        %v3333 = vmul.f32 %v3283, %v3326
        %v3334 = vmul.f32 %v3284, %v3326
        %v3335 = vmul.f32 %v3285, %v3326
        %v3336 = vmul.f32 %v3286, %v3326
        %v3337 = vmul.f32 %v3287, %v3326
        %v3338 = vmul.f32 %v3288, %v3326
        %v3339 = vmul.f32 %v3289, %v3326
        %v3340 = vmul.f32 %v3290, %v3326
        %v3341 = vmul.f32 %v3291, %v3326
        %v3342 = vmul.f32 %v3292, %v3326
        %v3343 = vmul.f32 %v3293, %v3326
        %v3344 = vmul.f32 %v3294, %v3326
        %v3345 = vmul.f32 %v3295, %v3326
        %v3346 = vmul.f32 %v3296, %v3326
        %v3347 = vmul.f32 %v3297, %v3326
        %v3348 = vmul.f32 %v3298, %v3326
        %v3349 = vmul.f32 %v3299, %v3326
        %v3350 = vmul.f32 %v3300, %v3326
        %v3351 = vmul.f32 %v3301, %v3326
        %v3352 = vmul.f32 %v3302, %v3326
        %v3353 = vmul.f32 %v3303, %v3326
        %v3354 = vmul.f32 %v3304, %v3326
        %v3355 = vmul.f32 %v3305, %v3326
        %v3356 = vmul.f32 %v3306, %v3326
        %v3357 = vmul.f32 %v3307, %v3326
        %v3358 = vmul.f32 %v3308, %v3326
        %v3359 = vmul.f32 %v3309, %v3326
        %v3360 = vmul.f32 %v3310, %v3326
        %v3361 = vmul.f32 %v3311, %v3326
        %v3362 = vmul.f32 %v3312, %v3326
        %v3363 = vmul.f32 %v3313, %v3326
        %v3364 = vmul.f32 %v3314, %v3326
        %v3365 = vmul.f32 %v3315, %v3326
        %v3366 = vmul.f32 %v3316, %v3326
        %v3367 = vmul.f32 %v3317, %v3326
        %v3368 = vmul.f32 %v3318, %v3326
        %v3369 = vmul.f32 %v3319, %v3326
        %v3370 = vmul.f32 %v3320, %v3326
        %v3371 = vmul.f32 %v3321, %v3326
        %v3372 = vmul.f32 %v3322, %v3326
        %v3373 = vmul.f32 %v3323, %v3326
        %v3374 = vmul.f32 %v3324, %v3326
        %v3375 = vmul.f32 %v3325, %v3326
        %v3376 = vadd.f32 %v3224, %v3327
        %v3377 = vadd.f32 %v3225, %v3328
        %v3378 = vadd.f32 %v3226, %v3329
        %v3379 = vadd.f32 %v3227, %v3330
        %v3380 = vadd.f32 %v3228, %v3331
        %v3381 = vadd.f32 %v3229, %v3332
        %v3382 = vadd.f32 %v3230, %v3333
        %v3383 = vadd.f32 %v3231, %v3334
        %v3384 = vadd.f32 %v3232, %v3335
        %v3385 = vadd.f32 %v3233, %v3336
        %v3386 = vadd.f32 %v3234, %v3337
        %v3387 = vadd.f32 %v3235, %v3338
        %v3388 = vadd.f32 %v3236, %v3339
        %v3389 = vadd.f32 %v3237, %v3340
        %v3390 = vadd.f32 %v3238, %v3341
        %v3391 = vadd.f32 %v3239, %v3342
        %v3392 = vadd.f32 %v3240, %v3343
        %v3393 = vadd.f32 %v3241, %v3344
        %v3394 = vadd.f32 %v3242, %v3345
        %v3395 = vadd.f32 %v3243, %v3346
        %v3396 = vadd.f32 %v3244, %v3347
        %v3397 = vadd.f32 %v3245, %v3348
        %v3398 = vadd.f32 %v3246, %v3349
        %v3399 = vadd.f32 %v3247, %v3350
        %v3400 = vadd.f32 %v3248, %v3351
        %v3401 = vadd.f32 %v3249, %v3352
        %v3402 = vadd.f32 %v3250, %v3353
        %v3403 = vadd.f32 %v3251, %v3354
        %v3404 = vadd.f32 %v3252, %v3355
        %v3405 = vadd.f32 %v3253, %v3356
        %v3406 = vadd.f32 %v3254, %v3357
        %v3407 = vadd.f32 %v3255, %v3358
        %v3408 = vadd.f32 %v3256, %v3359
        %v3409 = vadd.f32 %v3257, %v3360
        %v3410 = vadd.f32 %v3258, %v3361
        %v3411 = vadd.f32 %v3259, %v3362
        %v3412 = vadd.f32 %v3260, %v3363
        %v3413 = vadd.f32 %v3261, %v3364
        %v3414 = vadd.f32 %v3262, %v3365
        %v3415 = vadd.f32 %v3263, %v3366
        %v3416 = vadd.f32 %v3264, %v3367
        %v3417 = vadd.f32 %v3265, %v3368
        %v3418 = vadd.f32 %v3266, %v3369
        %v3419 = vadd.f32 %v3267, %v3370
        %v3420 = vadd.f32 %v3268, %v3371
        %v3421 = vadd.f32 %v3269, %v3372
        %v3422 = vadd.f32 %v3270, %v3373
        %v3423 = vadd.f32 %v3271, %v3374
        %v3424 = vadd.f32 %v3272, %v3375
        %s3425 = sadd.s32 %s2512, 42
        %s3426 = sld [smem:[#allocation12 + %s3425]]
        %s3427 = sadd.s32 18, %s2515
        %s3428 = scalar_lea.vmem [#allocation2], %s3427
        %v3429 = vld [vmem:[%s3428] sm:$0x1]
        %v3430 = vld [vmem:[%s3428 + $0x1] sm:$0x1]
        %v3431 = vld [vmem:[%s3428 + $0x2] sm:$0x1]
        %v3432 = vld [vmem:[%s3428 + $0x3] sm:$0x1]
        %v3433 = vld [vmem:[%s3428 + $0x4] sm:$0x1]
        %v3434 = vld [vmem:[%s3428 + $0x5] sm:$0x1]
        %v3435 = vld [vmem:[%s3428 + $0x6] sm:$0x1]
        %v3436 = vld [vmem:[%s3428 + $0x9] sm:$0x1]
        %v3437 = vld [vmem:[%s3428 + $0xa] sm:$0x1]
        %v3438 = vld [vmem:[%s3428 + $0xb] sm:$0x1]
        %v3439 = vld [vmem:[%s3428 + $0xc] sm:$0x1]
        %v3440 = vld [vmem:[%s3428 + $0xd] sm:$0x1]
        %v3441 = vld [vmem:[%s3428 + $0xe] sm:$0x1]
        %v3442 = vld [vmem:[%s3428 + $0xf] sm:$0x1]
        %v3443 = vld [vmem:[%s3428 + $0x12] sm:$0x1]
        %v3444 = vld [vmem:[%s3428 + $0x13] sm:$0x1]
        %v3445 = vld [vmem:[%s3428 + $0x14] sm:$0x1]
        %v3446 = vld [vmem:[%s3428 + $0x15] sm:$0x1]
        %v3447 = vld [vmem:[%s3428 + $0x16] sm:$0x1]
        %v3448 = vld [vmem:[%s3428 + $0x17] sm:$0x1]
        %v3449 = vld [vmem:[%s3428 + $0x18] sm:$0x1]
        %v3450 = vld [vmem:[%s3428 + $0x1b] sm:$0x1]
        %v3451 = vld [vmem:[%s3428 + $0x1c] sm:$0x1]
        %v3452 = vld [vmem:[%s3428 + $0x1d] sm:$0x1]
        %v3453 = vld [vmem:[%s3428 + $0x1e] sm:$0x1]
        %v3454 = vld [vmem:[%s3428 + $0x1f] sm:$0x1]
        %v3455 = vld [vmem:[%s3428 + $0x20] sm:$0x1]
        %v3456 = vld [vmem:[%s3428 + $0x21] sm:$0x1]
        %v3457 = vld [vmem:[%s3428 + $0x24] sm:$0x1]
        %v3458 = vld [vmem:[%s3428 + $0x25] sm:$0x1]
        %v3459 = vld [vmem:[%s3428 + $0x26] sm:$0x1]
        %v3460 = vld [vmem:[%s3428 + $0x27] sm:$0x1]
        %v3461 = vld [vmem:[%s3428 + $0x28] sm:$0x1]
        %v3462 = vld [vmem:[%s3428 + $0x29] sm:$0x1]
        %v3463 = vld [vmem:[%s3428 + $0x2a] sm:$0x1]
        %v3464 = vld [vmem:[%s3428 + $0x2d] sm:$0x1]
        %v3465 = vld [vmem:[%s3428 + $0x2e] sm:$0x1]
        %v3466 = vld [vmem:[%s3428 + $0x2f] sm:$0x1]
        %v3467 = vld [vmem:[%s3428 + $0x30] sm:$0x1]
        %v3468 = vld [vmem:[%s3428 + $0x31] sm:$0x1]
        %v3469 = vld [vmem:[%s3428 + $0x32] sm:$0x1]
        %v3470 = vld [vmem:[%s3428 + $0x33] sm:$0x1]
        %v3471 = vld [vmem:[%s3428 + $0x36] sm:$0x1]
        %v3472 = vld [vmem:[%s3428 + $0x37] sm:$0x1]
        %v3473 = vld [vmem:[%s3428 + $0x38] sm:$0x1]
        %v3474 = vld [vmem:[%s3428 + $0x39] sm:$0x1]
        %v3475 = vld [vmem:[%s3428 + $0x3a] sm:$0x1]
        %v3476 = vld [vmem:[%s3428 + $0x3b] sm:$0x1]
        %v3477 = vld [vmem:[%s3428 + $0x3c] sm:$0x1]
        %v3478 = vstv %s3426
        %v3479 = vmul.f32 %v3429, %v3478
        %v3480 = vmul.f32 %v3430, %v3478
        %v3481 = vmul.f32 %v3431, %v3478
        %v3482 = vmul.f32 %v3432, %v3478
        %v3483 = vmul.f32 %v3433, %v3478
        %v3484 = vmul.f32 %v3434, %v3478
        %v3485 = vmul.f32 %v3435, %v3478
        %v3486 = vmul.f32 %v3436, %v3478
        %v3487 = vmul.f32 %v3437, %v3478
        %v3488 = vmul.f32 %v3438, %v3478
        %v3489 = vmul.f32 %v3439, %v3478
        %v3490 = vmul.f32 %v3440, %v3478
        %v3491 = vmul.f32 %v3441, %v3478
        %v3492 = vmul.f32 %v3442, %v3478
        %v3493 = vmul.f32 %v3443, %v3478
        %v3494 = vmul.f32 %v3444, %v3478
        %v3495 = vmul.f32 %v3445, %v3478
        %v3496 = vmul.f32 %v3446, %v3478
        %v3497 = vmul.f32 %v3447, %v3478
        %v3498 = vmul.f32 %v3448, %v3478
        %v3499 = vmul.f32 %v3449, %v3478
        %v3500 = vmul.f32 %v3450, %v3478
        %v3501 = vmul.f32 %v3451, %v3478
        %v3502 = vmul.f32 %v3452, %v3478
        %v3503 = vmul.f32 %v3453, %v3478
        %v3504 = vmul.f32 %v3454, %v3478
        %v3505 = vmul.f32 %v3455, %v3478
        %v3506 = vmul.f32 %v3456, %v3478
        %v3507 = vmul.f32 %v3457, %v3478
        %v3508 = vmul.f32 %v3458, %v3478
        %v3509 = vmul.f32 %v3459, %v3478
        %v3510 = vmul.f32 %v3460, %v3478
        %v3511 = vmul.f32 %v3461, %v3478
        %v3512 = vmul.f32 %v3462, %v3478
        %v3513 = vmul.f32 %v3463, %v3478
        %v3514 = vmul.f32 %v3464, %v3478
        %v3515 = vmul.f32 %v3465, %v3478
        %v3516 = vmul.f32 %v3466, %v3478
        %v3517 = vmul.f32 %v3467, %v3478
        %v3518 = vmul.f32 %v3468, %v3478
        %v3519 = vmul.f32 %v3469, %v3478
        %v3520 = vmul.f32 %v3470, %v3478
        %v3521 = vmul.f32 %v3471, %v3478
        %v3522 = vmul.f32 %v3472, %v3478
        %v3523 = vmul.f32 %v3473, %v3478
        %v3524 = vmul.f32 %v3474, %v3478
        %v3525 = vmul.f32 %v3475, %v3478
        %v3526 = vmul.f32 %v3476, %v3478
        %v3527 = vmul.f32 %v3477, %v3478
        %v3528 = vadd.f32 %v3376, %v3479
        %v3529 = vadd.f32 %v3377, %v3480
        %v3530 = vadd.f32 %v3378, %v3481
        %v3531 = vadd.f32 %v3379, %v3482
        %v3532 = vadd.f32 %v3380, %v3483
        %v3533 = vadd.f32 %v3381, %v3484
        %v3534 = vadd.f32 %v3382, %v3485
        %v3535 = vadd.f32 %v3383, %v3486
        %v3536 = vadd.f32 %v3384, %v3487
        %v3537 = vadd.f32 %v3385, %v3488
        %v3538 = vadd.f32 %v3386, %v3489
        %v3539 = vadd.f32 %v3387, %v3490
        %v3540 = vadd.f32 %v3388, %v3491
        %v3541 = vadd.f32 %v3389, %v3492
        %v3542 = vadd.f32 %v3390, %v3493
        %v3543 = vadd.f32 %v3391, %v3494
        %v3544 = vadd.f32 %v3392, %v3495
        %v3545 = vadd.f32 %v3393, %v3496
        %v3546 = vadd.f32 %v3394, %v3497
        %v3547 = vadd.f32 %v3395, %v3498
        %v3548 = vadd.f32 %v3396, %v3499
        %v3549 = vadd.f32 %v3397, %v3500
        %v3550 = vadd.f32 %v3398, %v3501
        %v3551 = vadd.f32 %v3399, %v3502
        %v3552 = vadd.f32 %v3400, %v3503
        %v3553 = vadd.f32 %v3401, %v3504
        %v3554 = vadd.f32 %v3402, %v3505
        %v3555 = vadd.f32 %v3403, %v3506
        %v3556 = vadd.f32 %v3404, %v3507
        %v3557 = vadd.f32 %v3405, %v3508
        %v3558 = vadd.f32 %v3406, %v3509
        %v3559 = vadd.f32 %v3407, %v3510
        %v3560 = vadd.f32 %v3408, %v3511
        %v3561 = vadd.f32 %v3409, %v3512
        %v3562 = vadd.f32 %v3410, %v3513
        %v3563 = vadd.f32 %v3411, %v3514
        %v3564 = vadd.f32 %v3412, %v3515
        %v3565 = vadd.f32 %v3413, %v3516
        %v3566 = vadd.f32 %v3414, %v3517
        %v3567 = vadd.f32 %v3415, %v3518
        %v3568 = vadd.f32 %v3416, %v3519
        %v3569 = vadd.f32 %v3417, %v3520
        %v3570 = vadd.f32 %v3418, %v3521
        %v3571 = vadd.f32 %v3419, %v3522
        %v3572 = vadd.f32 %v3420, %v3523
        %v3573 = vadd.f32 %v3421, %v3524
        %v3574 = vadd.f32 %v3422, %v3525
        %v3575 = vadd.f32 %v3423, %v3526
        %v3576 = vadd.f32 %v3424, %v3527
        %s3577 = sadd.s32 %s2512, 43
        %s3578 = sld [smem:[#allocation12 + %s3577]]
        %s3579 = sadd.s32 19, %s2515
        %s3580 = scalar_lea.vmem [#allocation2], %s3579
        %v3581 = vld [vmem:[%s3580] sm:$0x1]
        %v3582 = vld [vmem:[%s3580 + $0x1] sm:$0x1]
        %v3583 = vld [vmem:[%s3580 + $0x2] sm:$0x1]
        %v3584 = vld [vmem:[%s3580 + $0x3] sm:$0x1]
        %v3585 = vld [vmem:[%s3580 + $0x4] sm:$0x1]
        %v3586 = vld [vmem:[%s3580 + $0x5] sm:$0x1]
        %v3587 = vld [vmem:[%s3580 + $0x6] sm:$0x1]
        %v3588 = vld [vmem:[%s3580 + $0x9] sm:$0x1]
        %v3589 = vld [vmem:[%s3580 + $0xa] sm:$0x1]
        %v3590 = vld [vmem:[%s3580 + $0xb] sm:$0x1]
        %v3591 = vld [vmem:[%s3580 + $0xc] sm:$0x1]
        %v3592 = vld [vmem:[%s3580 + $0xd] sm:$0x1]
        %v3593 = vld [vmem:[%s3580 + $0xe] sm:$0x1]
        %v3594 = vld [vmem:[%s3580 + $0xf] sm:$0x1]
        %v3595 = vld [vmem:[%s3580 + $0x12] sm:$0x1]
        %v3596 = vld [vmem:[%s3580 + $0x13] sm:$0x1]
        %v3597 = vld [vmem:[%s3580 + $0x14] sm:$0x1]
        %v3598 = vld [vmem:[%s3580 + $0x15] sm:$0x1]
        %v3599 = vld [vmem:[%s3580 + $0x16] sm:$0x1]
        %v3600 = vld [vmem:[%s3580 + $0x17] sm:$0x1]
        %v3601 = vld [vmem:[%s3580 + $0x18] sm:$0x1]
        %v3602 = vld [vmem:[%s3580 + $0x1b] sm:$0x1]
        %v3603 = vld [vmem:[%s3580 + $0x1c] sm:$0x1]
        %v3604 = vld [vmem:[%s3580 + $0x1d] sm:$0x1]
        %v3605 = vld [vmem:[%s3580 + $0x1e] sm:$0x1]
        %v3606 = vld [vmem:[%s3580 + $0x1f] sm:$0x1]
        %v3607 = vld [vmem:[%s3580 + $0x20] sm:$0x1]
        %v3608 = vld [vmem:[%s3580 + $0x21] sm:$0x1]
        %v3609 = vld [vmem:[%s3580 + $0x24] sm:$0x1]
        %v3610 = vld [vmem:[%s3580 + $0x25] sm:$0x1]
        %v3611 = vld [vmem:[%s3580 + $0x26] sm:$0x1]
        %v3612 = vld [vmem:[%s3580 + $0x27] sm:$0x1]
        %v3613 = vld [vmem:[%s3580 + $0x28] sm:$0x1]
        %v3614 = vld [vmem:[%s3580 + $0x29] sm:$0x1]
        %v3615 = vld [vmem:[%s3580 + $0x2a] sm:$0x1]
        %v3616 = vld [vmem:[%s3580 + $0x2d] sm:$0x1]
        %v3617 = vld [vmem:[%s3580 + $0x2e] sm:$0x1]
        %v3618 = vld [vmem:[%s3580 + $0x2f] sm:$0x1]
        %v3619 = vld [vmem:[%s3580 + $0x30] sm:$0x1]
        %v3620 = vld [vmem:[%s3580 + $0x31] sm:$0x1]
        %v3621 = vld [vmem:[%s3580 + $0x32] sm:$0x1]
        %v3622 = vld [vmem:[%s3580 + $0x33] sm:$0x1]
        %v3623 = vld [vmem:[%s3580 + $0x36] sm:$0x1]
        %v3624 = vld [vmem:[%s3580 + $0x37] sm:$0x1]
        %v3625 = vld [vmem:[%s3580 + $0x38] sm:$0x1]
        %v3626 = vld [vmem:[%s3580 + $0x39] sm:$0x1]
        %v3627 = vld [vmem:[%s3580 + $0x3a] sm:$0x1]
        %v3628 = vld [vmem:[%s3580 + $0x3b] sm:$0x1]
        %v3629 = vld [vmem:[%s3580 + $0x3c] sm:$0x1]
        %v3630 = vstv %s3578
        %v3631 = vmul.f32 %v3581, %v3630
        %v3632 = vmul.f32 %v3582, %v3630
        %v3633 = vmul.f32 %v3583, %v3630
        %v3634 = vmul.f32 %v3584, %v3630
        %v3635 = vmul.f32 %v3585, %v3630
        %v3636 = vmul.f32 %v3586, %v3630
        %v3637 = vmul.f32 %v3587, %v3630
        %v3638 = vmul.f32 %v3588, %v3630
        %v3639 = vmul.f32 %v3589, %v3630
        %v3640 = vmul.f32 %v3590, %v3630
        %v3641 = vmul.f32 %v3591, %v3630
        %v3642 = vmul.f32 %v3592, %v3630
        %v3643 = vmul.f32 %v3593, %v3630
        %v3644 = vmul.f32 %v3594, %v3630
        %v3645 = vmul.f32 %v3595, %v3630
        %v3646 = vmul.f32 %v3596, %v3630
        %v3647 = vmul.f32 %v3597, %v3630
        %v3648 = vmul.f32 %v3598, %v3630
        %v3649 = vmul.f32 %v3599, %v3630
        %v3650 = vmul.f32 %v3600, %v3630
        %v3651 = vmul.f32 %v3601, %v3630
        %v3652 = vmul.f32 %v3602, %v3630
        %v3653 = vmul.f32 %v3603, %v3630
        %v3654 = vmul.f32 %v3604, %v3630
        %v3655 = vmul.f32 %v3605, %v3630
        %v3656 = vmul.f32 %v3606, %v3630
        %v3657 = vmul.f32 %v3607, %v3630
        %v3658 = vmul.f32 %v3608, %v3630
        %v3659 = vmul.f32 %v3609, %v3630
        %v3660 = vmul.f32 %v3610, %v3630
        %v3661 = vmul.f32 %v3611, %v3630
        %v3662 = vmul.f32 %v3612, %v3630
        %v3663 = vmul.f32 %v3613, %v3630
        %v3664 = vmul.f32 %v3614, %v3630
        %v3665 = vmul.f32 %v3615, %v3630
        %v3666 = vmul.f32 %v3616, %v3630
        %v3667 = vmul.f32 %v3617, %v3630
        %v3668 = vmul.f32 %v3618, %v3630
        %v3669 = vmul.f32 %v3619, %v3630
        %v3670 = vmul.f32 %v3620, %v3630
        %v3671 = vmul.f32 %v3621, %v3630
        %v3672 = vmul.f32 %v3622, %v3630
        %v3673 = vmul.f32 %v3623, %v3630
        %v3674 = vmul.f32 %v3624, %v3630
        %v3675 = vmul.f32 %v3625, %v3630
        %v3676 = vmul.f32 %v3626, %v3630
        %v3677 = vmul.f32 %v3627, %v3630
        %v3678 = vmul.f32 %v3628, %v3630
        %v3679 = vmul.f32 %v3629, %v3630
        %v3680 = vadd.f32 %v3528, %v3631
        %v3681 = vadd.f32 %v3529, %v3632
        %v3682 = vadd.f32 %v3530, %v3633
        %v3683 = vadd.f32 %v3531, %v3634
        %v3684 = vadd.f32 %v3532, %v3635
        %v3685 = vadd.f32 %v3533, %v3636
        %v3686 = vadd.f32 %v3534, %v3637
        %v3687 = vadd.f32 %v3535, %v3638
        %v3688 = vadd.f32 %v3536, %v3639
        %v3689 = vadd.f32 %v3537, %v3640
        %v3690 = vadd.f32 %v3538, %v3641
        %v3691 = vadd.f32 %v3539, %v3642
        %v3692 = vadd.f32 %v3540, %v3643
        %v3693 = vadd.f32 %v3541, %v3644
        %v3694 = vadd.f32 %v3542, %v3645
        %v3695 = vadd.f32 %v3543, %v3646
        %v3696 = vadd.f32 %v3544, %v3647
        %v3697 = vadd.f32 %v3545, %v3648
        %v3698 = vadd.f32 %v3546, %v3649
        %v3699 = vadd.f32 %v3547, %v3650
        %v3700 = vadd.f32 %v3548, %v3651
        %v3701 = vadd.f32 %v3549, %v3652
        %v3702 = vadd.f32 %v3550, %v3653
        %v3703 = vadd.f32 %v3551, %v3654
        %v3704 = vadd.f32 %v3552, %v3655
        %v3705 = vadd.f32 %v3553, %v3656
        %v3706 = vadd.f32 %v3554, %v3657
        %v3707 = vadd.f32 %v3555, %v3658
        %v3708 = vadd.f32 %v3556, %v3659
        %v3709 = vadd.f32 %v3557, %v3660
        %v3710 = vadd.f32 %v3558, %v3661
        %v3711 = vadd.f32 %v3559, %v3662
        %v3712 = vadd.f32 %v3560, %v3663
        %v3713 = vadd.f32 %v3561, %v3664
        %v3714 = vadd.f32 %v3562, %v3665
        %v3715 = vadd.f32 %v3563, %v3666
        %v3716 = vadd.f32 %v3564, %v3667
        %v3717 = vadd.f32 %v3565, %v3668
        %v3718 = vadd.f32 %v3566, %v3669
        %v3719 = vadd.f32 %v3567, %v3670
        %v3720 = vadd.f32 %v3568, %v3671
        %v3721 = vadd.f32 %v3569, %v3672
        %v3722 = vadd.f32 %v3570, %v3673
        %v3723 = vadd.f32 %v3571, %v3674
        %v3724 = vadd.f32 %v3572, %v3675
        %v3725 = vadd.f32 %v3573, %v3676
        %v3726 = vadd.f32 %v3574, %v3677
        %v3727 = vadd.f32 %v3575, %v3678
        %v3728 = vadd.f32 %v3576, %v3679
        %s3729 = sadd.s32 %s2512, 44
        %s3730 = sld [smem:[#allocation12 + %s3729]]
        %s3731 = sadd.s32 20, %s2515
        %s3732 = scalar_lea.vmem [#allocation2], %s3731
        %v3733 = vld [vmem:[%s3732] sm:$0x1]
        %v3734 = vld [vmem:[%s3732 + $0x1] sm:$0x1]
        %v3735 = vld [vmem:[%s3732 + $0x2] sm:$0x1]
        %v3736 = vld [vmem:[%s3732 + $0x3] sm:$0x1]
        %v3737 = vld [vmem:[%s3732 + $0x4] sm:$0x1]
        %v3738 = vld [vmem:[%s3732 + $0x5] sm:$0x1]
        %v3739 = vld [vmem:[%s3732 + $0x6] sm:$0x1]
        %v3740 = vld [vmem:[%s3732 + $0x9] sm:$0x1]
        %v3741 = vld [vmem:[%s3732 + $0xa] sm:$0x1]
        %v3742 = vld [vmem:[%s3732 + $0xb] sm:$0x1]
        %v3743 = vld [vmem:[%s3732 + $0xc] sm:$0x1]
        %v3744 = vld [vmem:[%s3732 + $0xd] sm:$0x1]
        %v3745 = vld [vmem:[%s3732 + $0xe] sm:$0x1]
        %v3746 = vld [vmem:[%s3732 + $0xf] sm:$0x1]
        %v3747 = vld [vmem:[%s3732 + $0x12] sm:$0x1]
        %v3748 = vld [vmem:[%s3732 + $0x13] sm:$0x1]
        %v3749 = vld [vmem:[%s3732 + $0x14] sm:$0x1]
        %v3750 = vld [vmem:[%s3732 + $0x15] sm:$0x1]
        %v3751 = vld [vmem:[%s3732 + $0x16] sm:$0x1]
        %v3752 = vld [vmem:[%s3732 + $0x17] sm:$0x1]
        %v3753 = vld [vmem:[%s3732 + $0x18] sm:$0x1]
        %v3754 = vld [vmem:[%s3732 + $0x1b] sm:$0x1]
        %v3755 = vld [vmem:[%s3732 + $0x1c] sm:$0x1]
        %v3756 = vld [vmem:[%s3732 + $0x1d] sm:$0x1]
        %v3757 = vld [vmem:[%s3732 + $0x1e] sm:$0x1]
        %v3758 = vld [vmem:[%s3732 + $0x1f] sm:$0x1]
        %v3759 = vld [vmem:[%s3732 + $0x20] sm:$0x1]
        %v3760 = vld [vmem:[%s3732 + $0x21] sm:$0x1]
        %v3761 = vld [vmem:[%s3732 + $0x24] sm:$0x1]
        %v3762 = vld [vmem:[%s3732 + $0x25] sm:$0x1]
        %v3763 = vld [vmem:[%s3732 + $0x26] sm:$0x1]
        %v3764 = vld [vmem:[%s3732 + $0x27] sm:$0x1]
        %v3765 = vld [vmem:[%s3732 + $0x28] sm:$0x1]
        %v3766 = vld [vmem:[%s3732 + $0x29] sm:$0x1]
        %v3767 = vld [vmem:[%s3732 + $0x2a] sm:$0x1]
        %v3768 = vld [vmem:[%s3732 + $0x2d] sm:$0x1]
        %v3769 = vld [vmem:[%s3732 + $0x2e] sm:$0x1]
        %v3770 = vld [vmem:[%s3732 + $0x2f] sm:$0x1]
        %v3771 = vld [vmem:[%s3732 + $0x30] sm:$0x1]
        %v3772 = vld [vmem:[%s3732 + $0x31] sm:$0x1]
        %v3773 = vld [vmem:[%s3732 + $0x32] sm:$0x1]
        %v3774 = vld [vmem:[%s3732 + $0x33] sm:$0x1]
        %v3775 = vld [vmem:[%s3732 + $0x36] sm:$0x1]
        %v3776 = vld [vmem:[%s3732 + $0x37] sm:$0x1]
        %v3777 = vld [vmem:[%s3732 + $0x38] sm:$0x1]
        %v3778 = vld [vmem:[%s3732 + $0x39] sm:$0x1]
        %v3779 = vld [vmem:[%s3732 + $0x3a] sm:$0x1]
        %v3780 = vld [vmem:[%s3732 + $0x3b] sm:$0x1]
        %v3781 = vld [vmem:[%s3732 + $0x3c] sm:$0x1]
        %v3782 = vstv %s3730
        %v3783 = vmul.f32 %v3733, %v3782
        %v3784 = vmul.f32 %v3734, %v3782
        %v3785 = vmul.f32 %v3735, %v3782
        %v3786 = vmul.f32 %v3736, %v3782
        %v3787 = vmul.f32 %v3737, %v3782
        %v3788 = vmul.f32 %v3738, %v3782
        %v3789 = vmul.f32 %v3739, %v3782
        %v3790 = vmul.f32 %v3740, %v3782
        %v3791 = vmul.f32 %v3741, %v3782
        %v3792 = vmul.f32 %v3742, %v3782
        %v3793 = vmul.f32 %v3743, %v3782
        %v3794 = vmul.f32 %v3744, %v3782
        %v3795 = vmul.f32 %v3745, %v3782
        %v3796 = vmul.f32 %v3746, %v3782
        %v3797 = vmul.f32 %v3747, %v3782
        %v3798 = vmul.f32 %v3748, %v3782
        %v3799 = vmul.f32 %v3749, %v3782
        %v3800 = vmul.f32 %v3750, %v3782
        %v3801 = vmul.f32 %v3751, %v3782
        %v3802 = vmul.f32 %v3752, %v3782
        %v3803 = vmul.f32 %v3753, %v3782
        %v3804 = vmul.f32 %v3754, %v3782
        %v3805 = vmul.f32 %v3755, %v3782
        %v3806 = vmul.f32 %v3756, %v3782
        %v3807 = vmul.f32 %v3757, %v3782
        %v3808 = vmul.f32 %v3758, %v3782
        %v3809 = vmul.f32 %v3759, %v3782
        %v3810 = vmul.f32 %v3760, %v3782
        %v3811 = vmul.f32 %v3761, %v3782
        %v3812 = vmul.f32 %v3762, %v3782
        %v3813 = vmul.f32 %v3763, %v3782
        %v3814 = vmul.f32 %v3764, %v3782
        %v3815 = vmul.f32 %v3765, %v3782
        %v3816 = vmul.f32 %v3766, %v3782
        %v3817 = vmul.f32 %v3767, %v3782
        %v3818 = vmul.f32 %v3768, %v3782
        %v3819 = vmul.f32 %v3769, %v3782
        %v3820 = vmul.f32 %v3770, %v3782
        %v3821 = vmul.f32 %v3771, %v3782
        %v3822 = vmul.f32 %v3772, %v3782
        %v3823 = vmul.f32 %v3773, %v3782
        %v3824 = vmul.f32 %v3774, %v3782
        %v3825 = vmul.f32 %v3775, %v3782
        %v3826 = vmul.f32 %v3776, %v3782
        %v3827 = vmul.f32 %v3777, %v3782
        %v3828 = vmul.f32 %v3778, %v3782
        %v3829 = vmul.f32 %v3779, %v3782
        %v3830 = vmul.f32 %v3780, %v3782
        %v3831 = vmul.f32 %v3781, %v3782
        %v3832 = vadd.f32 %v3680, %v3783
        %v3833 = vadd.f32 %v3681, %v3784
        %v3834 = vadd.f32 %v3682, %v3785
        %v3835 = vadd.f32 %v3683, %v3786
        %v3836 = vadd.f32 %v3684, %v3787
        %v3837 = vadd.f32 %v3685, %v3788
        %v3838 = vadd.f32 %v3686, %v3789
        %v3839 = vadd.f32 %v3687, %v3790
        %v3840 = vadd.f32 %v3688, %v3791
        %v3841 = vadd.f32 %v3689, %v3792
        %v3842 = vadd.f32 %v3690, %v3793
        %v3843 = vadd.f32 %v3691, %v3794
        %v3844 = vadd.f32 %v3692, %v3795
        %v3845 = vadd.f32 %v3693, %v3796
        %v3846 = vadd.f32 %v3694, %v3797
        %v3847 = vadd.f32 %v3695, %v3798
        %v3848 = vadd.f32 %v3696, %v3799
        %v3849 = vadd.f32 %v3697, %v3800
        %v3850 = vadd.f32 %v3698, %v3801
        %v3851 = vadd.f32 %v3699, %v3802
        %v3852 = vadd.f32 %v3700, %v3803
        %v3853 = vadd.f32 %v3701, %v3804
        %v3854 = vadd.f32 %v3702, %v3805
        %v3855 = vadd.f32 %v3703, %v3806
        %v3856 = vadd.f32 %v3704, %v3807
        %v3857 = vadd.f32 %v3705, %v3808
        %v3858 = vadd.f32 %v3706, %v3809
        %v3859 = vadd.f32 %v3707, %v3810
        %v3860 = vadd.f32 %v3708, %v3811
        %v3861 = vadd.f32 %v3709, %v3812
        %v3862 = vadd.f32 %v3710, %v3813
        %v3863 = vadd.f32 %v3711, %v3814
        %v3864 = vadd.f32 %v3712, %v3815
        %v3865 = vadd.f32 %v3713, %v3816
        %v3866 = vadd.f32 %v3714, %v3817
        %v3867 = vadd.f32 %v3715, %v3818
        %v3868 = vadd.f32 %v3716, %v3819
        %v3869 = vadd.f32 %v3717, %v3820
        %v3870 = vadd.f32 %v3718, %v3821
        %v3871 = vadd.f32 %v3719, %v3822
        %v3872 = vadd.f32 %v3720, %v3823
        %v3873 = vadd.f32 %v3721, %v3824
        %v3874 = vadd.f32 %v3722, %v3825
        %v3875 = vadd.f32 %v3723, %v3826
        %v3876 = vadd.f32 %v3724, %v3827
        %v3877 = vadd.f32 %v3725, %v3828
        %v3878 = vadd.f32 %v3726, %v3829
        %v3879 = vadd.f32 %v3727, %v3830
        %v3880 = vadd.f32 %v3728, %v3831
      $region44: #{tpu_custom_call.1} parent=36 // loop_footer
        %s2460 = sadd.s32 1, %s2456
      $region45: #{tpu_custom_call.1} parent=36 // loop_footer_branch
        %2455 = sbr.rel target = $region41
      $region46: #{tpu_custom_call.1} parent=36 // loop_exit
        _
      %v3881 = vmax.f32 %v2461, 0.0
      %v3882 = vmax.f32 %v2462, 0.0
      %v3883 = vmax.f32 %v2463, 0.0
      %v3884 = vmax.f32 %v2464, 0.0
      %v3885 = vmax.f32 %v2465, 0.0
      %v3886 = vmax.f32 %v2466, 0.0
      %v3887 = vmax.f32 %v2467, 0.0
      %v3888 = vmax.f32 %v2468, 0.0
      %v3889 = vmax.f32 %v2469, 0.0
      %v3890 = vmax.f32 %v2470, 0.0
      %v3891 = vmax.f32 %v2471, 0.0
      %v3892 = vmax.f32 %v2472, 0.0
      %v3893 = vmax.f32 %v2473, 0.0
      %v3894 = vmax.f32 %v2474, 0.0
      %v3895 = vmax.f32 %v2475, 0.0
      %v3896 = vmax.f32 %v2476, 0.0
      %v3897 = vmax.f32 %v2477, 0.0
      %v3898 = vmax.f32 %v2478, 0.0
      %v3899 = vmax.f32 %v2479, 0.0
      %v3900 = vmax.f32 %v2480, 0.0
      %v3901 = vmax.f32 %v2481, 0.0
      %v3902 = vmax.f32 %v2482, 0.0
      %v3903 = vmax.f32 %v2483, 0.0
      %v3904 = vmax.f32 %v2484, 0.0
      %v3905 = vmax.f32 %v2485, 0.0
      %v3906 = vmax.f32 %v2486, 0.0
      %v3907 = vmax.f32 %v2487, 0.0
      %v3908 = vmax.f32 %v2488, 0.0
      %v3909 = vmax.f32 %v2489, 0.0
      %v3910 = vmax.f32 %v2490, 0.0
      %v3911 = vmax.f32 %v2491, 0.0
      %v3912 = vmax.f32 %v2492, 0.0
      %v3913 = vmax.f32 %v2493, 0.0
      %v3914 = vmax.f32 %v2494, 0.0
      %v3915 = vmax.f32 %v2495, 0.0
      %v3916 = vmax.f32 %v2496, 0.0
      %v3917 = vmax.f32 %v2497, 0.0
      %v3918 = vmax.f32 %v2498, 0.0
      %v3919 = vmax.f32 %v2499, 0.0
      %v3920 = vmax.f32 %v2500, 0.0
      %v3921 = vmax.f32 %v2501, 0.0
      %v3922 = vmax.f32 %v2502, 0.0
      %v3923 = vmax.f32 %v2503, 0.0
      %v3924 = vmax.f32 %v2504, 0.0
      %v3925 = vmax.f32 %v2505, 0.0
      %v3926 = vmax.f32 %v2506, 0.0
      %v3927 = vmax.f32 %v2507, 0.0
      %v3928 = vmax.f32 %v2508, 0.0
      %v3929 = vmax.f32 %v2509, 0.0
      %s3930 = smul.u32 %s2447, 49
      %s3931 = scalar_lea.vmem [#allocation3], %s3930
      %3932 = vst [vmem:[%s3931] sm:$0x1] %v3881
      %3933 = vst [vmem:[%s3931 + $0x1] sm:$0x1] %v3882
      %3934 = vst [vmem:[%s3931 + $0x2] sm:$0x1] %v3883
      %3935 = vst [vmem:[%s3931 + $0x3] sm:$0x1] %v3884
      %3936 = vst [vmem:[%s3931 + $0x4] sm:$0x1] %v3885
      %3937 = vst [vmem:[%s3931 + $0x5] sm:$0x1] %v3886
      %3938 = vst [vmem:[%s3931 + $0x6] sm:$0x1] %v3887
      %3939 = vst [vmem:[%s3931 + $0x7] sm:$0x1] %v3888
      %3940 = vst [vmem:[%s3931 + $0x8] sm:$0x1] %v3889
      %3941 = vst [vmem:[%s3931 + $0x9] sm:$0x1] %v3890
      %3942 = vst [vmem:[%s3931 + $0xa] sm:$0x1] %v3891
      %3943 = vst [vmem:[%s3931 + $0xb] sm:$0x1] %v3892
      %3944 = vst [vmem:[%s3931 + $0xc] sm:$0x1] %v3893
      %3945 = vst [vmem:[%s3931 + $0xd] sm:$0x1] %v3894
      %3946 = vst [vmem:[%s3931 + $0xe] sm:$0x1] %v3895
      %3947 = vst [vmem:[%s3931 + $0xf] sm:$0x1] %v3896
      %3948 = vst [vmem:[%s3931 + $0x10] sm:$0x1] %v3897
      %3949 = vst [vmem:[%s3931 + $0x11] sm:$0x1] %v3898
      %3950 = vst [vmem:[%s3931 + $0x12] sm:$0x1] %v3899
      %3951 = vst [vmem:[%s3931 + $0x13] sm:$0x1] %v3900
      %3952 = vst [vmem:[%s3931 + $0x14] sm:$0x1] %v3901
      %3953 = vst [vmem:[%s3931 + $0x15] sm:$0x1] %v3902
      %3954 = vst [vmem:[%s3931 + $0x16] sm:$0x1] %v3903
      %3955 = vst [vmem:[%s3931 + $0x17] sm:$0x1] %v3904
      %3956 = vst [vmem:[%s3931 + $0x18] sm:$0x1] %v3905
      %3957 = vst [vmem:[%s3931 + $0x19] sm:$0x1] %v3906
      %3958 = vst [vmem:[%s3931 + $0x1a] sm:$0x1] %v3907
      %3959 = vst [vmem:[%s3931 + $0x1b] sm:$0x1] %v3908
      %3960 = vst [vmem:[%s3931 + $0x1c] sm:$0x1] %v3909
      %3961 = vst [vmem:[%s3931 + $0x1d] sm:$0x1] %v3910
      %3962 = vst [vmem:[%s3931 + $0x1e] sm:$0x1] %v3911
      %3963 = vst [vmem:[%s3931 + $0x1f] sm:$0x1] %v3912
      %3964 = vst [vmem:[%s3931 + $0x20] sm:$0x1] %v3913
      %3965 = vst [vmem:[%s3931 + $0x21] sm:$0x1] %v3914
      %3966 = vst [vmem:[%s3931 + $0x22] sm:$0x1] %v3915
      %3967 = vst [vmem:[%s3931 + $0x23] sm:$0x1] %v3916
      %3968 = vst [vmem:[%s3931 + $0x24] sm:$0x1] %v3917
      %3969 = vst [vmem:[%s3931 + $0x25] sm:$0x1] %v3918
      %3970 = vst [vmem:[%s3931 + $0x26] sm:$0x1] %v3919
      %3971 = vst [vmem:[%s3931 + $0x27] sm:$0x1] %v3920
      %3972 = vst [vmem:[%s3931 + $0x28] sm:$0x1] %v3921
      %3973 = vst [vmem:[%s3931 + $0x29] sm:$0x1] %v3922
      %3974 = vst [vmem:[%s3931 + $0x2a] sm:$0x1] %v3923
      %3975 = vst [vmem:[%s3931 + $0x2b] sm:$0x1] %v3924
      %3976 = vst [vmem:[%s3931 + $0x2c] sm:$0x1] %v3925
      %3977 = vst [vmem:[%s3931 + $0x2d] sm:$0x1] %v3926
      %3978 = vst [vmem:[%s3931 + $0x2e] sm:$0x1] %v3927
      %3979 = vst [vmem:[%s3931 + $0x2f] sm:$0x1] %v3928
      %3980 = vst [vmem:[%s3931 + $0x30] sm:$0x1] %v3929
    $region37: #{tpu_custom_call.1} parent=1 // loop_footer
      %s2451 = sadd.s32 1, %s2447
    $region38: #{tpu_custom_call.1} parent=1 // loop_footer_branch
      %2446 = sbr.rel target = $region34
    $region39: #{tpu_custom_call.1} parent=1 // loop_exit
      _
    loop: start=0, step=1, limit=16
    $region47: #{tpu_custom_call.1} parent=1 // loop_pre_header
      _
    $region48: #{tpu_custom_call.1} parent=1 // loop_header
      %s3982 = sphi 0, %s3986
      %p3983 = scmp.ge.s32.totalorder %s3982, 16
    $region49: #{tpu_custom_call.1} parent=1 // loop_header_branch
      %3985 = sbr.rel (%p3983) target = $region53
    $region50: #{tpu_custom_call.1} parent=1 // loop_body
      %s3987 = sadd.s32 %s3982, 12
      %s3988 = sld [smem:[#allocation13 + %s3987]]
      %v3989 = vstv %s3988
      loop: start=0, step=1, limit=8
      $region54: #{tpu_custom_call.1} parent=50 // loop_pre_header
        _
      $region55: #{tpu_custom_call.1} parent=50 // loop_header
        %s3991 = sphi 0, %s3995
        %p3992 = scmp.ge.s32.totalorder %s3991, 8
        %v3996 = vphi %v3989, %v4719
        %v3997 = vphi %v3989, %v4720
        %v3998 = vphi %v3989, %v4721
        %v3999 = vphi %v3989, %v4722
        %v4000 = vphi %v3989, %v4723
        %v4001 = vphi %v3989, %v4724
        %v4002 = vphi %v3989, %v4725
        %v4003 = vphi %v3989, %v4726
        %v4004 = vphi %v3989, %v4727
        %v4005 = vphi %v3989, %v4728
        %v4006 = vphi %v3989, %v4729
        %v4007 = vphi %v3989, %v4730
        %v4008 = vphi %v3989, %v4731
        %v4009 = vphi %v3989, %v4732
        %v4010 = vphi %v3989, %v4733
        %v4011 = vphi %v3989, %v4734
        %v4012 = vphi %v3989, %v4735
        %v4013 = vphi %v3989, %v4736
        %v4014 = vphi %v3989, %v4737
        %v4015 = vphi %v3989, %v4738
        %v4016 = vphi %v3989, %v4739
        %v4017 = vphi %v3989, %v4740
        %v4018 = vphi %v3989, %v4741
        %v4019 = vphi %v3989, %v4742
        %v4020 = vphi %v3989, %v4743
      $region56: #{tpu_custom_call.1} parent=50 // loop_header_branch
        %3994 = sbr.rel (%p3992) target = $region60
      $region57: #{tpu_custom_call.1} parent=50 // loop_body
        %s4021 = smul.u32 %s3982, 8
        %s4022 = sadd.s32 %s4021, %s3991
        %s4023 = smul.u32 %s4022, 9
        %s4024 = sadd.s32 %s4023, 324
        %s4025 = sld [smem:[#allocation12 + %s4024]]
        %s4026 = smul.u32 %s3991, 49
        %s4027 = scalar_lea.vmem [#allocation3], %s4026
        %v4028 = vld [vmem:[%s4027] sm:$0x1]
        %v4029 = vld [vmem:[%s4027 + $0x1] sm:$0x1]
        %v4030 = vld [vmem:[%s4027 + $0x2] sm:$0x1]
        %v4031 = vld [vmem:[%s4027 + $0x3] sm:$0x1]
        %v4032 = vld [vmem:[%s4027 + $0x4] sm:$0x1]
        %v4033 = vld [vmem:[%s4027 + $0x7] sm:$0x1]
        %v4034 = vld [vmem:[%s4027 + $0x8] sm:$0x1]
        %v4035 = vld [vmem:[%s4027 + $0x9] sm:$0x1]
        %v4036 = vld [vmem:[%s4027 + $0xa] sm:$0x1]
        %v4037 = vld [vmem:[%s4027 + $0xb] sm:$0x1]
        %v4038 = vld [vmem:[%s4027 + $0xe] sm:$0x1]
        %v4039 = vld [vmem:[%s4027 + $0xf] sm:$0x1]
        %v4040 = vld [vmem:[%s4027 + $0x10] sm:$0x1]
        %v4041 = vld [vmem:[%s4027 + $0x11] sm:$0x1]
        %v4042 = vld [vmem:[%s4027 + $0x12] sm:$0x1]
        %v4043 = vld [vmem:[%s4027 + $0x15] sm:$0x1]
        %v4044 = vld [vmem:[%s4027 + $0x16] sm:$0x1]
        %v4045 = vld [vmem:[%s4027 + $0x17] sm:$0x1]
        %v4046 = vld [vmem:[%s4027 + $0x18] sm:$0x1]
        %v4047 = vld [vmem:[%s4027 + $0x19] sm:$0x1]
        %v4048 = vld [vmem:[%s4027 + $0x1c] sm:$0x1]
        %v4049 = vld [vmem:[%s4027 + $0x1d] sm:$0x1]
        %v4050 = vld [vmem:[%s4027 + $0x1e] sm:$0x1]
        %v4051 = vld [vmem:[%s4027 + $0x1f] sm:$0x1]
        %v4052 = vld [vmem:[%s4027 + $0x20] sm:$0x1]
        %v4053 = vstv %s4025
        %v4054 = vmul.f32 %v4028, %v4053
        %v4055 = vmul.f32 %v4029, %v4053
        %v4056 = vmul.f32 %v4030, %v4053
        %v4057 = vmul.f32 %v4031, %v4053
        %v4058 = vmul.f32 %v4032, %v4053
        %v4059 = vmul.f32 %v4033, %v4053
        %v4060 = vmul.f32 %v4034, %v4053
        %v4061 = vmul.f32 %v4035, %v4053
        %v4062 = vmul.f32 %v4036, %v4053
        %v4063 = vmul.f32 %v4037, %v4053
        %v4064 = vmul.f32 %v4038, %v4053
        %v4065 = vmul.f32 %v4039, %v4053
        %v4066 = vmul.f32 %v4040, %v4053
        %v4067 = vmul.f32 %v4041, %v4053
        %v4068 = vmul.f32 %v4042, %v4053
        %v4069 = vmul.f32 %v4043, %v4053
        %v4070 = vmul.f32 %v4044, %v4053
        %v4071 = vmul.f32 %v4045, %v4053
        %v4072 = vmul.f32 %v4046, %v4053
        %v4073 = vmul.f32 %v4047, %v4053
        %v4074 = vmul.f32 %v4048, %v4053
        %v4075 = vmul.f32 %v4049, %v4053
        %v4076 = vmul.f32 %v4050, %v4053
        %v4077 = vmul.f32 %v4051, %v4053
        %v4078 = vmul.f32 %v4052, %v4053
        %v4079 = vadd.f32 %v3996, %v4054
        %v4080 = vadd.f32 %v3997, %v4055
        %v4081 = vadd.f32 %v3998, %v4056
        %v4082 = vadd.f32 %v3999, %v4057
        %v4083 = vadd.f32 %v4000, %v4058
        %v4084 = vadd.f32 %v4001, %v4059
        %v4085 = vadd.f32 %v4002, %v4060
        %v4086 = vadd.f32 %v4003, %v4061
        %v4087 = vadd.f32 %v4004, %v4062
        %v4088 = vadd.f32 %v4005, %v4063
        %v4089 = vadd.f32 %v4006, %v4064
        %v4090 = vadd.f32 %v4007, %v4065
        %v4091 = vadd.f32 %v4008, %v4066
        %v4092 = vadd.f32 %v4009, %v4067
        %v4093 = vadd.f32 %v4010, %v4068
        %v4094 = vadd.f32 %v4011, %v4069
        %v4095 = vadd.f32 %v4012, %v4070
        %v4096 = vadd.f32 %v4013, %v4071
        %v4097 = vadd.f32 %v4014, %v4072
        %v4098 = vadd.f32 %v4015, %v4073
        %v4099 = vadd.f32 %v4016, %v4074
        %v4100 = vadd.f32 %v4017, %v4075
        %v4101 = vadd.f32 %v4018, %v4076
        %v4102 = vadd.f32 %v4019, %v4077
        %v4103 = vadd.f32 %v4020, %v4078
        %s4104 = sadd.s32 %s4023, 325
        %s4105 = sld [smem:[#allocation12 + %s4104]]
        %s4106 = sadd.s32 1, %s4026
        %s4107 = scalar_lea.vmem [#allocation3], %s4106
        %v4108 = vld [vmem:[%s4107] sm:$0x1]
        %v4109 = vld [vmem:[%s4107 + $0x1] sm:$0x1]
        %v4110 = vld [vmem:[%s4107 + $0x2] sm:$0x1]
        %v4111 = vld [vmem:[%s4107 + $0x3] sm:$0x1]
        %v4112 = vld [vmem:[%s4107 + $0x4] sm:$0x1]
        %v4113 = vld [vmem:[%s4107 + $0x7] sm:$0x1]
        %v4114 = vld [vmem:[%s4107 + $0x8] sm:$0x1]
        %v4115 = vld [vmem:[%s4107 + $0x9] sm:$0x1]
        %v4116 = vld [vmem:[%s4107 + $0xa] sm:$0x1]
        %v4117 = vld [vmem:[%s4107 + $0xb] sm:$0x1]
        %v4118 = vld [vmem:[%s4107 + $0xe] sm:$0x1]
        %v4119 = vld [vmem:[%s4107 + $0xf] sm:$0x1]
        %v4120 = vld [vmem:[%s4107 + $0x10] sm:$0x1]
        %v4121 = vld [vmem:[%s4107 + $0x11] sm:$0x1]
        %v4122 = vld [vmem:[%s4107 + $0x12] sm:$0x1]
        %v4123 = vld [vmem:[%s4107 + $0x15] sm:$0x1]
        %v4124 = vld [vmem:[%s4107 + $0x16] sm:$0x1]
        %v4125 = vld [vmem:[%s4107 + $0x17] sm:$0x1]
        %v4126 = vld [vmem:[%s4107 + $0x18] sm:$0x1]
        %v4127 = vld [vmem:[%s4107 + $0x19] sm:$0x1]
        %v4128 = vld [vmem:[%s4107 + $0x1c] sm:$0x1]
        %v4129 = vld [vmem:[%s4107 + $0x1d] sm:$0x1]
        %v4130 = vld [vmem:[%s4107 + $0x1e] sm:$0x1]
        %v4131 = vld [vmem:[%s4107 + $0x1f] sm:$0x1]
        %v4132 = vld [vmem:[%s4107 + $0x20] sm:$0x1]
        %v4133 = vstv %s4105
        %v4134 = vmul.f32 %v4108, %v4133
        %v4135 = vmul.f32 %v4109, %v4133
        %v4136 = vmul.f32 %v4110, %v4133
        %v4137 = vmul.f32 %v4111, %v4133
        %v4138 = vmul.f32 %v4112, %v4133
        %v4139 = vmul.f32 %v4113, %v4133
        %v4140 = vmul.f32 %v4114, %v4133
        %v4141 = vmul.f32 %v4115, %v4133
        %v4142 = vmul.f32 %v4116, %v4133
        %v4143 = vmul.f32 %v4117, %v4133
        %v4144 = vmul.f32 %v4118, %v4133
        %v4145 = vmul.f32 %v4119, %v4133
        %v4146 = vmul.f32 %v4120, %v4133
        %v4147 = vmul.f32 %v4121, %v4133
        %v4148 = vmul.f32 %v4122, %v4133
        %v4149 = vmul.f32 %v4123, %v4133
        %v4150 = vmul.f32 %v4124, %v4133
        %v4151 = vmul.f32 %v4125, %v4133
        %v4152 = vmul.f32 %v4126, %v4133
        %v4153 = vmul.f32 %v4127, %v4133
        %v4154 = vmul.f32 %v4128, %v4133
        %v4155 = vmul.f32 %v4129, %v4133
        %v4156 = vmul.f32 %v4130, %v4133
        %v4157 = vmul.f32 %v4131, %v4133
        %v4158 = vmul.f32 %v4132, %v4133
        %v4159 = vadd.f32 %v4079, %v4134
        %v4160 = vadd.f32 %v4080, %v4135
        %v4161 = vadd.f32 %v4081, %v4136
        %v4162 = vadd.f32 %v4082, %v4137
        %v4163 = vadd.f32 %v4083, %v4138
        %v4164 = vadd.f32 %v4084, %v4139
        %v4165 = vadd.f32 %v4085, %v4140
        %v4166 = vadd.f32 %v4086, %v4141
        %v4167 = vadd.f32 %v4087, %v4142
        %v4168 = vadd.f32 %v4088, %v4143
        %v4169 = vadd.f32 %v4089, %v4144
        %v4170 = vadd.f32 %v4090, %v4145
        %v4171 = vadd.f32 %v4091, %v4146
        %v4172 = vadd.f32 %v4092, %v4147
        %v4173 = vadd.f32 %v4093, %v4148
        %v4174 = vadd.f32 %v4094, %v4149
        %v4175 = vadd.f32 %v4095, %v4150
        %v4176 = vadd.f32 %v4096, %v4151
        %v4177 = vadd.f32 %v4097, %v4152
        %v4178 = vadd.f32 %v4098, %v4153
        %v4179 = vadd.f32 %v4099, %v4154
        %v4180 = vadd.f32 %v4100, %v4155
        %v4181 = vadd.f32 %v4101, %v4156
        %v4182 = vadd.f32 %v4102, %v4157
        %v4183 = vadd.f32 %v4103, %v4158
        %s4184 = sadd.s32 %s4023, 326
        %s4185 = sld [smem:[#allocation12 + %s4184]]
        %s4186 = sadd.s32 2, %s4026
        %s4187 = scalar_lea.vmem [#allocation3], %s4186
        %v4188 = vld [vmem:[%s4187] sm:$0x1]
        %v4189 = vld [vmem:[%s4187 + $0x1] sm:$0x1]
        %v4190 = vld [vmem:[%s4187 + $0x2] sm:$0x1]
        %v4191 = vld [vmem:[%s4187 + $0x3] sm:$0x1]
        %v4192 = vld [vmem:[%s4187 + $0x4] sm:$0x1]
        %v4193 = vld [vmem:[%s4187 + $0x7] sm:$0x1]
        %v4194 = vld [vmem:[%s4187 + $0x8] sm:$0x1]
        %v4195 = vld [vmem:[%s4187 + $0x9] sm:$0x1]
        %v4196 = vld [vmem:[%s4187 + $0xa] sm:$0x1]
        %v4197 = vld [vmem:[%s4187 + $0xb] sm:$0x1]
        %v4198 = vld [vmem:[%s4187 + $0xe] sm:$0x1]
        %v4199 = vld [vmem:[%s4187 + $0xf] sm:$0x1]
        %v4200 = vld [vmem:[%s4187 + $0x10] sm:$0x1]
        %v4201 = vld [vmem:[%s4187 + $0x11] sm:$0x1]
        %v4202 = vld [vmem:[%s4187 + $0x12] sm:$0x1]
        %v4203 = vld [vmem:[%s4187 + $0x15] sm:$0x1]
        %v4204 = vld [vmem:[%s4187 + $0x16] sm:$0x1]
        %v4205 = vld [vmem:[%s4187 + $0x17] sm:$0x1]
        %v4206 = vld [vmem:[%s4187 + $0x18] sm:$0x1]
        %v4207 = vld [vmem:[%s4187 + $0x19] sm:$0x1]
        %v4208 = vld [vmem:[%s4187 + $0x1c] sm:$0x1]
        %v4209 = vld [vmem:[%s4187 + $0x1d] sm:$0x1]
        %v4210 = vld [vmem:[%s4187 + $0x1e] sm:$0x1]
        %v4211 = vld [vmem:[%s4187 + $0x1f] sm:$0x1]
        %v4212 = vld [vmem:[%s4187 + $0x20] sm:$0x1]
        %v4213 = vstv %s4185
        %v4214 = vmul.f32 %v4188, %v4213
        %v4215 = vmul.f32 %v4189, %v4213
        %v4216 = vmul.f32 %v4190, %v4213
        %v4217 = vmul.f32 %v4191, %v4213
        %v4218 = vmul.f32 %v4192, %v4213
        %v4219 = vmul.f32 %v4193, %v4213
        %v4220 = vmul.f32 %v4194, %v4213
        %v4221 = vmul.f32 %v4195, %v4213
        %v4222 = vmul.f32 %v4196, %v4213
        %v4223 = vmul.f32 %v4197, %v4213
        %v4224 = vmul.f32 %v4198, %v4213
        %v4225 = vmul.f32 %v4199, %v4213
        %v4226 = vmul.f32 %v4200, %v4213
        %v4227 = vmul.f32 %v4201, %v4213
        %v4228 = vmul.f32 %v4202, %v4213
        %v4229 = vmul.f32 %v4203, %v4213
        %v4230 = vmul.f32 %v4204, %v4213
        %v4231 = vmul.f32 %v4205, %v4213
        %v4232 = vmul.f32 %v4206, %v4213
        %v4233 = vmul.f32 %v4207, %v4213
        %v4234 = vmul.f32 %v4208, %v4213
        %v4235 = vmul.f32 %v4209, %v4213
        %v4236 = vmul.f32 %v4210, %v4213
        %v4237 = vmul.f32 %v4211, %v4213
        %v4238 = vmul.f32 %v4212, %v4213
        %v4239 = vadd.f32 %v4159, %v4214
        %v4240 = vadd.f32 %v4160, %v4215
        %v4241 = vadd.f32 %v4161, %v4216
        %v4242 = vadd.f32 %v4162, %v4217
        %v4243 = vadd.f32 %v4163, %v4218
        %v4244 = vadd.f32 %v4164, %v4219
        %v4245 = vadd.f32 %v4165, %v4220
        %v4246 = vadd.f32 %v4166, %v4221
        %v4247 = vadd.f32 %v4167, %v4222
        %v4248 = vadd.f32 %v4168, %v4223
        %v4249 = vadd.f32 %v4169, %v4224
        %v4250 = vadd.f32 %v4170, %v4225
        %v4251 = vadd.f32 %v4171, %v4226
        %v4252 = vadd.f32 %v4172, %v4227
        %v4253 = vadd.f32 %v4173, %v4228
        %v4254 = vadd.f32 %v4174, %v4229
        %v4255 = vadd.f32 %v4175, %v4230
        %v4256 = vadd.f32 %v4176, %v4231
        %v4257 = vadd.f32 %v4177, %v4232
        %v4258 = vadd.f32 %v4178, %v4233
        %v4259 = vadd.f32 %v4179, %v4234
        %v4260 = vadd.f32 %v4180, %v4235
        %v4261 = vadd.f32 %v4181, %v4236
        %v4262 = vadd.f32 %v4182, %v4237
        %v4263 = vadd.f32 %v4183, %v4238
        %s4264 = sadd.s32 %s4023, 327
        %s4265 = sld [smem:[#allocation12 + %s4264]]
        %s4266 = sadd.s32 7, %s4026
        %s4267 = scalar_lea.vmem [#allocation3], %s4266
        %v4268 = vld [vmem:[%s4267] sm:$0x1]
        %v4269 = vld [vmem:[%s4267 + $0x1] sm:$0x1]
        %v4270 = vld [vmem:[%s4267 + $0x2] sm:$0x1]
        %v4271 = vld [vmem:[%s4267 + $0x3] sm:$0x1]
        %v4272 = vld [vmem:[%s4267 + $0x4] sm:$0x1]
        %v4273 = vld [vmem:[%s4267 + $0x7] sm:$0x1]
        %v4274 = vld [vmem:[%s4267 + $0x8] sm:$0x1]
        %v4275 = vld [vmem:[%s4267 + $0x9] sm:$0x1]
        %v4276 = vld [vmem:[%s4267 + $0xa] sm:$0x1]
        %v4277 = vld [vmem:[%s4267 + $0xb] sm:$0x1]
        %v4278 = vld [vmem:[%s4267 + $0xe] sm:$0x1]
        %v4279 = vld [vmem:[%s4267 + $0xf] sm:$0x1]
        %v4280 = vld [vmem:[%s4267 + $0x10] sm:$0x1]
        %v4281 = vld [vmem:[%s4267 + $0x11] sm:$0x1]
        %v4282 = vld [vmem:[%s4267 + $0x12] sm:$0x1]
        %v4283 = vld [vmem:[%s4267 + $0x15] sm:$0x1]
        %v4284 = vld [vmem:[%s4267 + $0x16] sm:$0x1]
        %v4285 = vld [vmem:[%s4267 + $0x17] sm:$0x1]
        %v4286 = vld [vmem:[%s4267 + $0x18] sm:$0x1]
        %v4287 = vld [vmem:[%s4267 + $0x19] sm:$0x1]
        %v4288 = vld [vmem:[%s4267 + $0x1c] sm:$0x1]
        %v4289 = vld [vmem:[%s4267 + $0x1d] sm:$0x1]
        %v4290 = vld [vmem:[%s4267 + $0x1e] sm:$0x1]
        %v4291 = vld [vmem:[%s4267 + $0x1f] sm:$0x1]
        %v4292 = vld [vmem:[%s4267 + $0x20] sm:$0x1]
        %v4293 = vstv %s4265
        %v4294 = vmul.f32 %v4268, %v4293
        %v4295 = vmul.f32 %v4269, %v4293
        %v4296 = vmul.f32 %v4270, %v4293
        %v4297 = vmul.f32 %v4271, %v4293
        %v4298 = vmul.f32 %v4272, %v4293
        %v4299 = vmul.f32 %v4273, %v4293
        %v4300 = vmul.f32 %v4274, %v4293
        %v4301 = vmul.f32 %v4275, %v4293
        %v4302 = vmul.f32 %v4276, %v4293
        %v4303 = vmul.f32 %v4277, %v4293
        %v4304 = vmul.f32 %v4278, %v4293
        %v4305 = vmul.f32 %v4279, %v4293
        %v4306 = vmul.f32 %v4280, %v4293
        %v4307 = vmul.f32 %v4281, %v4293
        %v4308 = vmul.f32 %v4282, %v4293
        %v4309 = vmul.f32 %v4283, %v4293
        %v4310 = vmul.f32 %v4284, %v4293
        %v4311 = vmul.f32 %v4285, %v4293
        %v4312 = vmul.f32 %v4286, %v4293
        %v4313 = vmul.f32 %v4287, %v4293
        %v4314 = vmul.f32 %v4288, %v4293
        %v4315 = vmul.f32 %v4289, %v4293
        %v4316 = vmul.f32 %v4290, %v4293
        %v4317 = vmul.f32 %v4291, %v4293
        %v4318 = vmul.f32 %v4292, %v4293
        %v4319 = vadd.f32 %v4239, %v4294
        %v4320 = vadd.f32 %v4240, %v4295
        %v4321 = vadd.f32 %v4241, %v4296
        %v4322 = vadd.f32 %v4242, %v4297
        %v4323 = vadd.f32 %v4243, %v4298
        %v4324 = vadd.f32 %v4244, %v4299
        %v4325 = vadd.f32 %v4245, %v4300
        %v4326 = vadd.f32 %v4246, %v4301
        %v4327 = vadd.f32 %v4247, %v4302
        %v4328 = vadd.f32 %v4248, %v4303
        %v4329 = vadd.f32 %v4249, %v4304
        %v4330 = vadd.f32 %v4250, %v4305
        %v4331 = vadd.f32 %v4251, %v4306
        %v4332 = vadd.f32 %v4252, %v4307
        %v4333 = vadd.f32 %v4253, %v4308
        %v4334 = vadd.f32 %v4254, %v4309
        %v4335 = vadd.f32 %v4255, %v4310
        %v4336 = vadd.f32 %v4256, %v4311
        %v4337 = vadd.f32 %v4257, %v4312
        %v4338 = vadd.f32 %v4258, %v4313
        %v4339 = vadd.f32 %v4259, %v4314
        %v4340 = vadd.f32 %v4260, %v4315
        %v4341 = vadd.f32 %v4261, %v4316
        %v4342 = vadd.f32 %v4262, %v4317
        %v4343 = vadd.f32 %v4263, %v4318
        %s4344 = sadd.s32 %s4023, 328
        %s4345 = sld [smem:[#allocation12 + %s4344]]
        %s4346 = sadd.s32 8, %s4026
        %s4347 = scalar_lea.vmem [#allocation3], %s4346
        %v4348 = vld [vmem:[%s4347] sm:$0x1]
        %v4349 = vld [vmem:[%s4347 + $0x1] sm:$0x1]
        %v4350 = vld [vmem:[%s4347 + $0x2] sm:$0x1]
        %v4351 = vld [vmem:[%s4347 + $0x3] sm:$0x1]
        %v4352 = vld [vmem:[%s4347 + $0x4] sm:$0x1]
        %v4353 = vld [vmem:[%s4347 + $0x7] sm:$0x1]
        %v4354 = vld [vmem:[%s4347 + $0x8] sm:$0x1]
        %v4355 = vld [vmem:[%s4347 + $0x9] sm:$0x1]
        %v4356 = vld [vmem:[%s4347 + $0xa] sm:$0x1]
        %v4357 = vld [vmem:[%s4347 + $0xb] sm:$0x1]
        %v4358 = vld [vmem:[%s4347 + $0xe] sm:$0x1]
        %v4359 = vld [vmem:[%s4347 + $0xf] sm:$0x1]
        %v4360 = vld [vmem:[%s4347 + $0x10] sm:$0x1]
        %v4361 = vld [vmem:[%s4347 + $0x11] sm:$0x1]
        %v4362 = vld [vmem:[%s4347 + $0x12] sm:$0x1]
        %v4363 = vld [vmem:[%s4347 + $0x15] sm:$0x1]
        %v4364 = vld [vmem:[%s4347 + $0x16] sm:$0x1]
        %v4365 = vld [vmem:[%s4347 + $0x17] sm:$0x1]
        %v4366 = vld [vmem:[%s4347 + $0x18] sm:$0x1]
        %v4367 = vld [vmem:[%s4347 + $0x19] sm:$0x1]
        %v4368 = vld [vmem:[%s4347 + $0x1c] sm:$0x1]
        %v4369 = vld [vmem:[%s4347 + $0x1d] sm:$0x1]
        %v4370 = vld [vmem:[%s4347 + $0x1e] sm:$0x1]
        %v4371 = vld [vmem:[%s4347 + $0x1f] sm:$0x1]
        %v4372 = vld [vmem:[%s4347 + $0x20] sm:$0x1]
        %v4373 = vstv %s4345
        %v4374 = vmul.f32 %v4348, %v4373
        %v4375 = vmul.f32 %v4349, %v4373
        %v4376 = vmul.f32 %v4350, %v4373
        %v4377 = vmul.f32 %v4351, %v4373
        %v4378 = vmul.f32 %v4352, %v4373
        %v4379 = vmul.f32 %v4353, %v4373
        %v4380 = vmul.f32 %v4354, %v4373
        %v4381 = vmul.f32 %v4355, %v4373
        %v4382 = vmul.f32 %v4356, %v4373
        %v4383 = vmul.f32 %v4357, %v4373
        %v4384 = vmul.f32 %v4358, %v4373
        %v4385 = vmul.f32 %v4359, %v4373
        %v4386 = vmul.f32 %v4360, %v4373
        %v4387 = vmul.f32 %v4361, %v4373
        %v4388 = vmul.f32 %v4362, %v4373
        %v4389 = vmul.f32 %v4363, %v4373
        %v4390 = vmul.f32 %v4364, %v4373
        %v4391 = vmul.f32 %v4365, %v4373
        %v4392 = vmul.f32 %v4366, %v4373
        %v4393 = vmul.f32 %v4367, %v4373
        %v4394 = vmul.f32 %v4368, %v4373
        %v4395 = vmul.f32 %v4369, %v4373
        %v4396 = vmul.f32 %v4370, %v4373
        %v4397 = vmul.f32 %v4371, %v4373
        %v4398 = vmul.f32 %v4372, %v4373
        %v4399 = vadd.f32 %v4319, %v4374
        %v4400 = vadd.f32 %v4320, %v4375
        %v4401 = vadd.f32 %v4321, %v4376
        %v4402 = vadd.f32 %v4322, %v4377
        %v4403 = vadd.f32 %v4323, %v4378
        %v4404 = vadd.f32 %v4324, %v4379
        %v4405 = vadd.f32 %v4325, %v4380
        %v4406 = vadd.f32 %v4326, %v4381
        %v4407 = vadd.f32 %v4327, %v4382
        %v4408 = vadd.f32 %v4328, %v4383
        %v4409 = vadd.f32 %v4329, %v4384
        %v4410 = vadd.f32 %v4330, %v4385
        %v4411 = vadd.f32 %v4331, %v4386
        %v4412 = vadd.f32 %v4332, %v4387
        %v4413 = vadd.f32 %v4333, %v4388
        %v4414 = vadd.f32 %v4334, %v4389
        %v4415 = vadd.f32 %v4335, %v4390
        %v4416 = vadd.f32 %v4336, %v4391
        %v4417 = vadd.f32 %v4337, %v4392
        %v4418 = vadd.f32 %v4338, %v4393
        %v4419 = vadd.f32 %v4339, %v4394
        %v4420 = vadd.f32 %v4340, %v4395
        %v4421 = vadd.f32 %v4341, %v4396
        %v4422 = vadd.f32 %v4342, %v4397
        %v4423 = vadd.f32 %v4343, %v4398
        %s4424 = sadd.s32 %s4023, 329
        %s4425 = sld [smem:[#allocation12 + %s4424]]
        %s4426 = sadd.s32 9, %s4026
        %s4427 = scalar_lea.vmem [#allocation3], %s4426
        %v4428 = vld [vmem:[%s4427] sm:$0x1]
        %v4429 = vld [vmem:[%s4427 + $0x1] sm:$0x1]
        %v4430 = vld [vmem:[%s4427 + $0x2] sm:$0x1]
        %v4431 = vld [vmem:[%s4427 + $0x3] sm:$0x1]
        %v4432 = vld [vmem:[%s4427 + $0x4] sm:$0x1]
        %v4433 = vld [vmem:[%s4427 + $0x7] sm:$0x1]
        %v4434 = vld [vmem:[%s4427 + $0x8] sm:$0x1]
        %v4435 = vld [vmem:[%s4427 + $0x9] sm:$0x1]
        %v4436 = vld [vmem:[%s4427 + $0xa] sm:$0x1]
        %v4437 = vld [vmem:[%s4427 + $0xb] sm:$0x1]
        %v4438 = vld [vmem:[%s4427 + $0xe] sm:$0x1]
        %v4439 = vld [vmem:[%s4427 + $0xf] sm:$0x1]
        %v4440 = vld [vmem:[%s4427 + $0x10] sm:$0x1]
        %v4441 = vld [vmem:[%s4427 + $0x11] sm:$0x1]
        %v4442 = vld [vmem:[%s4427 + $0x12] sm:$0x1]
        %v4443 = vld [vmem:[%s4427 + $0x15] sm:$0x1]
        %v4444 = vld [vmem:[%s4427 + $0x16] sm:$0x1]
        %v4445 = vld [vmem:[%s4427 + $0x17] sm:$0x1]
        %v4446 = vld [vmem:[%s4427 + $0x18] sm:$0x1]
        %v4447 = vld [vmem:[%s4427 + $0x19] sm:$0x1]
        %v4448 = vld [vmem:[%s4427 + $0x1c] sm:$0x1]
        %v4449 = vld [vmem:[%s4427 + $0x1d] sm:$0x1]
        %v4450 = vld [vmem:[%s4427 + $0x1e] sm:$0x1]
        %v4451 = vld [vmem:[%s4427 + $0x1f] sm:$0x1]
        %v4452 = vld [vmem:[%s4427 + $0x20] sm:$0x1]
        %v4453 = vstv %s4425
        %v4454 = vmul.f32 %v4428, %v4453
        %v4455 = vmul.f32 %v4429, %v4453
        %v4456 = vmul.f32 %v4430, %v4453
        %v4457 = vmul.f32 %v4431, %v4453
        %v4458 = vmul.f32 %v4432, %v4453
        %v4459 = vmul.f32 %v4433, %v4453
        %v4460 = vmul.f32 %v4434, %v4453
        %v4461 = vmul.f32 %v4435, %v4453
        %v4462 = vmul.f32 %v4436, %v4453
        %v4463 = vmul.f32 %v4437, %v4453
        %v4464 = vmul.f32 %v4438, %v4453
        %v4465 = vmul.f32 %v4439, %v4453
        %v4466 = vmul.f32 %v4440, %v4453
        %v4467 = vmul.f32 %v4441, %v4453
        %v4468 = vmul.f32 %v4442, %v4453
        %v4469 = vmul.f32 %v4443, %v4453
        %v4470 = vmul.f32 %v4444, %v4453
        %v4471 = vmul.f32 %v4445, %v4453
        %v4472 = vmul.f32 %v4446, %v4453
        %v4473 = vmul.f32 %v4447, %v4453
        %v4474 = vmul.f32 %v4448, %v4453
        %v4475 = vmul.f32 %v4449, %v4453
        %v4476 = vmul.f32 %v4450, %v4453
        %v4477 = vmul.f32 %v4451, %v4453
        %v4478 = vmul.f32 %v4452, %v4453
        %v4479 = vadd.f32 %v4399, %v4454
        %v4480 = vadd.f32 %v4400, %v4455
        %v4481 = vadd.f32 %v4401, %v4456
        %v4482 = vadd.f32 %v4402, %v4457
        %v4483 = vadd.f32 %v4403, %v4458
        %v4484 = vadd.f32 %v4404, %v4459
        %v4485 = vadd.f32 %v4405, %v4460
        %v4486 = vadd.f32 %v4406, %v4461
        %v4487 = vadd.f32 %v4407, %v4462
        %v4488 = vadd.f32 %v4408, %v4463
        %v4489 = vadd.f32 %v4409, %v4464
        %v4490 = vadd.f32 %v4410, %v4465
        %v4491 = vadd.f32 %v4411, %v4466
        %v4492 = vadd.f32 %v4412, %v4467
        %v4493 = vadd.f32 %v4413, %v4468
        %v4494 = vadd.f32 %v4414, %v4469
        %v4495 = vadd.f32 %v4415, %v4470
        %v4496 = vadd.f32 %v4416, %v4471
        %v4497 = vadd.f32 %v4417, %v4472
        %v4498 = vadd.f32 %v4418, %v4473
        %v4499 = vadd.f32 %v4419, %v4474
        %v4500 = vadd.f32 %v4420, %v4475
        %v4501 = vadd.f32 %v4421, %v4476
        %v4502 = vadd.f32 %v4422, %v4477
        %v4503 = vadd.f32 %v4423, %v4478
        %s4504 = sadd.s32 %s4023, 330
        %s4505 = sld [smem:[#allocation12 + %s4504]]
        %s4506 = sadd.s32 14, %s4026
        %s4507 = scalar_lea.vmem [#allocation3], %s4506
        %v4508 = vld [vmem:[%s4507] sm:$0x1]
        %v4509 = vld [vmem:[%s4507 + $0x1] sm:$0x1]
        %v4510 = vld [vmem:[%s4507 + $0x2] sm:$0x1]
        %v4511 = vld [vmem:[%s4507 + $0x3] sm:$0x1]
        %v4512 = vld [vmem:[%s4507 + $0x4] sm:$0x1]
        %v4513 = vld [vmem:[%s4507 + $0x7] sm:$0x1]
        %v4514 = vld [vmem:[%s4507 + $0x8] sm:$0x1]
        %v4515 = vld [vmem:[%s4507 + $0x9] sm:$0x1]
        %v4516 = vld [vmem:[%s4507 + $0xa] sm:$0x1]
        %v4517 = vld [vmem:[%s4507 + $0xb] sm:$0x1]
        %v4518 = vld [vmem:[%s4507 + $0xe] sm:$0x1]
        %v4519 = vld [vmem:[%s4507 + $0xf] sm:$0x1]
        %v4520 = vld [vmem:[%s4507 + $0x10] sm:$0x1]
        %v4521 = vld [vmem:[%s4507 + $0x11] sm:$0x1]
        %v4522 = vld [vmem:[%s4507 + $0x12] sm:$0x1]
        %v4523 = vld [vmem:[%s4507 + $0x15] sm:$0x1]
        %v4524 = vld [vmem:[%s4507 + $0x16] sm:$0x1]
        %v4525 = vld [vmem:[%s4507 + $0x17] sm:$0x1]
        %v4526 = vld [vmem:[%s4507 + $0x18] sm:$0x1]
        %v4527 = vld [vmem:[%s4507 + $0x19] sm:$0x1]
        %v4528 = vld [vmem:[%s4507 + $0x1c] sm:$0x1]
        %v4529 = vld [vmem:[%s4507 + $0x1d] sm:$0x1]
        %v4530 = vld [vmem:[%s4507 + $0x1e] sm:$0x1]
        %v4531 = vld [vmem:[%s4507 + $0x1f] sm:$0x1]
        %v4532 = vld [vmem:[%s4507 + $0x20] sm:$0x1]
        %v4533 = vstv %s4505
        %v4534 = vmul.f32 %v4508, %v4533
        %v4535 = vmul.f32 %v4509, %v4533
        %v4536 = vmul.f32 %v4510, %v4533
        %v4537 = vmul.f32 %v4511, %v4533
        %v4538 = vmul.f32 %v4512, %v4533
        %v4539 = vmul.f32 %v4513, %v4533
        %v4540 = vmul.f32 %v4514, %v4533
        %v4541 = vmul.f32 %v4515, %v4533
        %v4542 = vmul.f32 %v4516, %v4533
        %v4543 = vmul.f32 %v4517, %v4533
        %v4544 = vmul.f32 %v4518, %v4533
        %v4545 = vmul.f32 %v4519, %v4533
        %v4546 = vmul.f32 %v4520, %v4533
        %v4547 = vmul.f32 %v4521, %v4533
        %v4548 = vmul.f32 %v4522, %v4533
        %v4549 = vmul.f32 %v4523, %v4533
        %v4550 = vmul.f32 %v4524, %v4533
        %v4551 = vmul.f32 %v4525, %v4533
        %v4552 = vmul.f32 %v4526, %v4533
        %v4553 = vmul.f32 %v4527, %v4533
        %v4554 = vmul.f32 %v4528, %v4533
        %v4555 = vmul.f32 %v4529, %v4533
        %v4556 = vmul.f32 %v4530, %v4533
        %v4557 = vmul.f32 %v4531, %v4533
        %v4558 = vmul.f32 %v4532, %v4533
        %v4559 = vadd.f32 %v4479, %v4534
        %v4560 = vadd.f32 %v4480, %v4535
        %v4561 = vadd.f32 %v4481, %v4536
        %v4562 = vadd.f32 %v4482, %v4537
        %v4563 = vadd.f32 %v4483, %v4538
        %v4564 = vadd.f32 %v4484, %v4539
        %v4565 = vadd.f32 %v4485, %v4540
        %v4566 = vadd.f32 %v4486, %v4541
        %v4567 = vadd.f32 %v4487, %v4542
        %v4568 = vadd.f32 %v4488, %v4543
        %v4569 = vadd.f32 %v4489, %v4544
        %v4570 = vadd.f32 %v4490, %v4545
        %v4571 = vadd.f32 %v4491, %v4546
        %v4572 = vadd.f32 %v4492, %v4547
        %v4573 = vadd.f32 %v4493, %v4548
        %v4574 = vadd.f32 %v4494, %v4549
        %v4575 = vadd.f32 %v4495, %v4550
        %v4576 = vadd.f32 %v4496, %v4551
        %v4577 = vadd.f32 %v4497, %v4552
        %v4578 = vadd.f32 %v4498, %v4553
        %v4579 = vadd.f32 %v4499, %v4554
        %v4580 = vadd.f32 %v4500, %v4555
        %v4581 = vadd.f32 %v4501, %v4556
        %v4582 = vadd.f32 %v4502, %v4557
        %v4583 = vadd.f32 %v4503, %v4558
        %s4584 = sadd.s32 %s4023, 331
        %s4585 = sld [smem:[#allocation12 + %s4584]]
        %s4586 = sadd.s32 15, %s4026
        %s4587 = scalar_lea.vmem [#allocation3], %s4586
        %v4588 = vld [vmem:[%s4587] sm:$0x1]
        %v4589 = vld [vmem:[%s4587 + $0x1] sm:$0x1]
        %v4590 = vld [vmem:[%s4587 + $0x2] sm:$0x1]
        %v4591 = vld [vmem:[%s4587 + $0x3] sm:$0x1]
        %v4592 = vld [vmem:[%s4587 + $0x4] sm:$0x1]
        %v4593 = vld [vmem:[%s4587 + $0x7] sm:$0x1]
        %v4594 = vld [vmem:[%s4587 + $0x8] sm:$0x1]
        %v4595 = vld [vmem:[%s4587 + $0x9] sm:$0x1]
        %v4596 = vld [vmem:[%s4587 + $0xa] sm:$0x1]
        %v4597 = vld [vmem:[%s4587 + $0xb] sm:$0x1]
        %v4598 = vld [vmem:[%s4587 + $0xe] sm:$0x1]
        %v4599 = vld [vmem:[%s4587 + $0xf] sm:$0x1]
        %v4600 = vld [vmem:[%s4587 + $0x10] sm:$0x1]
        %v4601 = vld [vmem:[%s4587 + $0x11] sm:$0x1]
        %v4602 = vld [vmem:[%s4587 + $0x12] sm:$0x1]
        %v4603 = vld [vmem:[%s4587 + $0x15] sm:$0x1]
        %v4604 = vld [vmem:[%s4587 + $0x16] sm:$0x1]
        %v4605 = vld [vmem:[%s4587 + $0x17] sm:$0x1]
        %v4606 = vld [vmem:[%s4587 + $0x18] sm:$0x1]
        %v4607 = vld [vmem:[%s4587 + $0x19] sm:$0x1]
        %v4608 = vld [vmem:[%s4587 + $0x1c] sm:$0x1]
        %v4609 = vld [vmem:[%s4587 + $0x1d] sm:$0x1]
        %v4610 = vld [vmem:[%s4587 + $0x1e] sm:$0x1]
        %v4611 = vld [vmem:[%s4587 + $0x1f] sm:$0x1]
        %v4612 = vld [vmem:[%s4587 + $0x20] sm:$0x1]
        %v4613 = vstv %s4585
        %v4614 = vmul.f32 %v4588, %v4613
        %v4615 = vmul.f32 %v4589, %v4613
        %v4616 = vmul.f32 %v4590, %v4613
        %v4617 = vmul.f32 %v4591, %v4613
        %v4618 = vmul.f32 %v4592, %v4613
        %v4619 = vmul.f32 %v4593, %v4613
        %v4620 = vmul.f32 %v4594, %v4613
        %v4621 = vmul.f32 %v4595, %v4613
        %v4622 = vmul.f32 %v4596, %v4613
        %v4623 = vmul.f32 %v4597, %v4613
        %v4624 = vmul.f32 %v4598, %v4613
        %v4625 = vmul.f32 %v4599, %v4613
        %v4626 = vmul.f32 %v4600, %v4613
        %v4627 = vmul.f32 %v4601, %v4613
        %v4628 = vmul.f32 %v4602, %v4613
        %v4629 = vmul.f32 %v4603, %v4613
        %v4630 = vmul.f32 %v4604, %v4613
        %v4631 = vmul.f32 %v4605, %v4613
        %v4632 = vmul.f32 %v4606, %v4613
        %v4633 = vmul.f32 %v4607, %v4613
        %v4634 = vmul.f32 %v4608, %v4613
        %v4635 = vmul.f32 %v4609, %v4613
        %v4636 = vmul.f32 %v4610, %v4613
        %v4637 = vmul.f32 %v4611, %v4613
        %v4638 = vmul.f32 %v4612, %v4613
        %v4639 = vadd.f32 %v4559, %v4614
        %v4640 = vadd.f32 %v4560, %v4615
        %v4641 = vadd.f32 %v4561, %v4616
        %v4642 = vadd.f32 %v4562, %v4617
        %v4643 = vadd.f32 %v4563, %v4618
        %v4644 = vadd.f32 %v4564, %v4619
        %v4645 = vadd.f32 %v4565, %v4620
        %v4646 = vadd.f32 %v4566, %v4621
        %v4647 = vadd.f32 %v4567, %v4622
        %v4648 = vadd.f32 %v4568, %v4623
        %v4649 = vadd.f32 %v4569, %v4624
        %v4650 = vadd.f32 %v4570, %v4625
        %v4651 = vadd.f32 %v4571, %v4626
        %v4652 = vadd.f32 %v4572, %v4627
        %v4653 = vadd.f32 %v4573, %v4628
        %v4654 = vadd.f32 %v4574, %v4629
        %v4655 = vadd.f32 %v4575, %v4630
        %v4656 = vadd.f32 %v4576, %v4631
        %v4657 = vadd.f32 %v4577, %v4632
        %v4658 = vadd.f32 %v4578, %v4633
        %v4659 = vadd.f32 %v4579, %v4634
        %v4660 = vadd.f32 %v4580, %v4635
        %v4661 = vadd.f32 %v4581, %v4636
        %v4662 = vadd.f32 %v4582, %v4637
        %v4663 = vadd.f32 %v4583, %v4638
        %s4664 = sadd.s32 %s4023, 332
        %s4665 = sld [smem:[#allocation12 + %s4664]]
        %s4666 = sadd.s32 16, %s4026
        %s4667 = scalar_lea.vmem [#allocation3], %s4666
        %v4668 = vld [vmem:[%s4667] sm:$0x1]
        %v4669 = vld [vmem:[%s4667 + $0x1] sm:$0x1]
        %v4670 = vld [vmem:[%s4667 + $0x2] sm:$0x1]
        %v4671 = vld [vmem:[%s4667 + $0x3] sm:$0x1]
        %v4672 = vld [vmem:[%s4667 + $0x4] sm:$0x1]
        %v4673 = vld [vmem:[%s4667 + $0x7] sm:$0x1]
        %v4674 = vld [vmem:[%s4667 + $0x8] sm:$0x1]
        %v4675 = vld [vmem:[%s4667 + $0x9] sm:$0x1]
        %v4676 = vld [vmem:[%s4667 + $0xa] sm:$0x1]
        %v4677 = vld [vmem:[%s4667 + $0xb] sm:$0x1]
        %v4678 = vld [vmem:[%s4667 + $0xe] sm:$0x1]
        %v4679 = vld [vmem:[%s4667 + $0xf] sm:$0x1]
        %v4680 = vld [vmem:[%s4667 + $0x10] sm:$0x1]
        %v4681 = vld [vmem:[%s4667 + $0x11] sm:$0x1]
        %v4682 = vld [vmem:[%s4667 + $0x12] sm:$0x1]
        %v4683 = vld [vmem:[%s4667 + $0x15] sm:$0x1]
        %v4684 = vld [vmem:[%s4667 + $0x16] sm:$0x1]
        %v4685 = vld [vmem:[%s4667 + $0x17] sm:$0x1]
        %v4686 = vld [vmem:[%s4667 + $0x18] sm:$0x1]
        %v4687 = vld [vmem:[%s4667 + $0x19] sm:$0x1]
        %v4688 = vld [vmem:[%s4667 + $0x1c] sm:$0x1]
        %v4689 = vld [vmem:[%s4667 + $0x1d] sm:$0x1]
        %v4690 = vld [vmem:[%s4667 + $0x1e] sm:$0x1]
        %v4691 = vld [vmem:[%s4667 + $0x1f] sm:$0x1]
        %v4692 = vld [vmem:[%s4667 + $0x20] sm:$0x1]
        %v4693 = vstv %s4665
        %v4694 = vmul.f32 %v4668, %v4693
        %v4695 = vmul.f32 %v4669, %v4693
        %v4696 = vmul.f32 %v4670, %v4693
        %v4697 = vmul.f32 %v4671, %v4693
        %v4698 = vmul.f32 %v4672, %v4693
        %v4699 = vmul.f32 %v4673, %v4693
        %v4700 = vmul.f32 %v4674, %v4693
        %v4701 = vmul.f32 %v4675, %v4693
        %v4702 = vmul.f32 %v4676, %v4693
        %v4703 = vmul.f32 %v4677, %v4693
        %v4704 = vmul.f32 %v4678, %v4693
        %v4705 = vmul.f32 %v4679, %v4693
        %v4706 = vmul.f32 %v4680, %v4693
        %v4707 = vmul.f32 %v4681, %v4693
        %v4708 = vmul.f32 %v4682, %v4693
        %v4709 = vmul.f32 %v4683, %v4693
        %v4710 = vmul.f32 %v4684, %v4693
        %v4711 = vmul.f32 %v4685, %v4693
        %v4712 = vmul.f32 %v4686, %v4693
        %v4713 = vmul.f32 %v4687, %v4693
        %v4714 = vmul.f32 %v4688, %v4693
        %v4715 = vmul.f32 %v4689, %v4693
        %v4716 = vmul.f32 %v4690, %v4693
        %v4717 = vmul.f32 %v4691, %v4693
        %v4718 = vmul.f32 %v4692, %v4693
        %v4719 = vadd.f32 %v4639, %v4694
        %v4720 = vadd.f32 %v4640, %v4695
        %v4721 = vadd.f32 %v4641, %v4696
        %v4722 = vadd.f32 %v4642, %v4697
        %v4723 = vadd.f32 %v4643, %v4698
        %v4724 = vadd.f32 %v4644, %v4699
        %v4725 = vadd.f32 %v4645, %v4700
        %v4726 = vadd.f32 %v4646, %v4701
        %v4727 = vadd.f32 %v4647, %v4702
        %v4728 = vadd.f32 %v4648, %v4703
        %v4729 = vadd.f32 %v4649, %v4704
        %v4730 = vadd.f32 %v4650, %v4705
        %v4731 = vadd.f32 %v4651, %v4706
        %v4732 = vadd.f32 %v4652, %v4707
        %v4733 = vadd.f32 %v4653, %v4708
        %v4734 = vadd.f32 %v4654, %v4709
        %v4735 = vadd.f32 %v4655, %v4710
        %v4736 = vadd.f32 %v4656, %v4711
        %v4737 = vadd.f32 %v4657, %v4712
        %v4738 = vadd.f32 %v4658, %v4713
        %v4739 = vadd.f32 %v4659, %v4714
        %v4740 = vadd.f32 %v4660, %v4715
        %v4741 = vadd.f32 %v4661, %v4716
        %v4742 = vadd.f32 %v4662, %v4717
        %v4743 = vadd.f32 %v4663, %v4718
      $region58: #{tpu_custom_call.1} parent=50 // loop_footer
        %s3995 = sadd.s32 1, %s3991
      $region59: #{tpu_custom_call.1} parent=50 // loop_footer_branch
        %3990 = sbr.rel target = $region55
      $region60: #{tpu_custom_call.1} parent=50 // loop_exit
        _
      %v4744 = vmax.f32 %v3996, 0.0
      %v4745 = vmax.f32 %v3997, 0.0
      %v4746 = vmax.f32 %v3998, 0.0
      %v4747 = vmax.f32 %v3999, 0.0
      %v4748 = vmax.f32 %v4000, 0.0
      %v4749 = vmax.f32 %v4001, 0.0
      %v4750 = vmax.f32 %v4002, 0.0
      %v4751 = vmax.f32 %v4003, 0.0
      %v4752 = vmax.f32 %v4004, 0.0
      %v4753 = vmax.f32 %v4005, 0.0
      %v4754 = vmax.f32 %v4006, 0.0
      %v4755 = vmax.f32 %v4007, 0.0
      %v4756 = vmax.f32 %v4008, 0.0
      %v4757 = vmax.f32 %v4009, 0.0
      %v4758 = vmax.f32 %v4010, 0.0
      %v4759 = vmax.f32 %v4011, 0.0
      %v4760 = vmax.f32 %v4012, 0.0
      %v4761 = vmax.f32 %v4013, 0.0
      %v4762 = vmax.f32 %v4014, 0.0
      %v4763 = vmax.f32 %v4015, 0.0
      %v4764 = vmax.f32 %v4016, 0.0
      %v4765 = vmax.f32 %v4017, 0.0
      %v4766 = vmax.f32 %v4018, 0.0
      %v4767 = vmax.f32 %v4019, 0.0
      %v4768 = vmax.f32 %v4020, 0.0
      %s4769 = smul.u32 %s3982, 25
      %s4770 = scalar_lea.vmem [#allocation4], %s4769
      %4771 = vst [vmem:[%s4770] sm:$0x1] %v4744
      %4772 = vst [vmem:[%s4770 + $0x1] sm:$0x1] %v4745
      %4773 = vst [vmem:[%s4770 + $0x2] sm:$0x1] %v4746
      %4774 = vst [vmem:[%s4770 + $0x3] sm:$0x1] %v4747
      %4775 = vst [vmem:[%s4770 + $0x4] sm:$0x1] %v4748
      %4776 = vst [vmem:[%s4770 + $0x5] sm:$0x1] %v4749
      %4777 = vst [vmem:[%s4770 + $0x6] sm:$0x1] %v4750
      %4778 = vst [vmem:[%s4770 + $0x7] sm:$0x1] %v4751
      %4779 = vst [vmem:[%s4770 + $0x8] sm:$0x1] %v4752
      %4780 = vst [vmem:[%s4770 + $0x9] sm:$0x1] %v4753
      %4781 = vst [vmem:[%s4770 + $0xa] sm:$0x1] %v4754
      %4782 = vst [vmem:[%s4770 + $0xb] sm:$0x1] %v4755
      %4783 = vst [vmem:[%s4770 + $0xc] sm:$0x1] %v4756
      %4784 = vst [vmem:[%s4770 + $0xd] sm:$0x1] %v4757
      %4785 = vst [vmem:[%s4770 + $0xe] sm:$0x1] %v4758
      %4786 = vst [vmem:[%s4770 + $0xf] sm:$0x1] %v4759
      %4787 = vst [vmem:[%s4770 + $0x10] sm:$0x1] %v4760
      %4788 = vst [vmem:[%s4770 + $0x11] sm:$0x1] %v4761
      %4789 = vst [vmem:[%s4770 + $0x12] sm:$0x1] %v4762
      %4790 = vst [vmem:[%s4770 + $0x13] sm:$0x1] %v4763
      %4791 = vst [vmem:[%s4770 + $0x14] sm:$0x1] %v4764
      %4792 = vst [vmem:[%s4770 + $0x15] sm:$0x1] %v4765
      %4793 = vst [vmem:[%s4770 + $0x16] sm:$0x1] %v4766
      %4794 = vst [vmem:[%s4770 + $0x17] sm:$0x1] %v4767
      %4795 = vst [vmem:[%s4770 + $0x18] sm:$0x1] %v4768
    $region51: #{tpu_custom_call.1} parent=1 // loop_footer
      %s3986 = sadd.s32 1, %s3982
    $region52: #{tpu_custom_call.1} parent=1 // loop_footer_branch
      %3981 = sbr.rel target = $region48
    $region53: #{tpu_custom_call.1} parent=1 // loop_exit
      _
    loop: start=0, step=1, limit=8
    $region61: #{tpu_custom_call.1} parent=1 // loop_pre_header
      _
    $region62: #{tpu_custom_call.1} parent=1 // loop_header
      %s4797 = sphi 0, %s4801
      %p4798 = scmp.ge.s32.totalorder %s4797, 8
    $region63: #{tpu_custom_call.1} parent=1 // loop_header_branch
      %4800 = sbr.rel (%p4798) target = $region67
    $region64: #{tpu_custom_call.1} parent=1 // loop_body
      %s4802 = sadd.s32 %s4797, 28
      %s4803 = sld [smem:[#allocation13 + %s4802]]
      %v4804 = vstv %s4803
      loop: start=0, step=1, limit=16
      $region68: #{tpu_custom_call.1} parent=64 // loop_pre_header
        _
      $region69: #{tpu_custom_call.1} parent=64 // loop_header
        %s4806 = sphi 0, %s4810
        %p4807 = scmp.ge.s32.totalorder %s4806, 16
        %v4811 = vphi %v4804, %v5102
        %v4812 = vphi %v4804, %v5103
        %v4813 = vphi %v4804, %v5104
        %v4814 = vphi %v4804, %v5105
        %v4815 = vphi %v4804, %v5106
        %v4816 = vphi %v4804, %v5107
        %v4817 = vphi %v4804, %v5108
        %v4818 = vphi %v4804, %v5109
        %v4819 = vphi %v4804, %v5110
      $region70: #{tpu_custom_call.1} parent=64 // loop_header_branch
        %4809 = sbr.rel (%p4807) target = $region74
      $region71: #{tpu_custom_call.1} parent=64 // loop_body
        %s4820 = smul.u32 %s4797, 16
        %s4821 = sadd.s32 %s4820, %s4806
        %s4822 = smul.u32 %s4821, 9
        %s4823 = sadd.s32 %s4822, 1476
        %s4824 = sld [smem:[#allocation12 + %s4823]]
        %s4825 = smul.u32 %s4806, 25
        %s4826 = scalar_lea.vmem [#allocation4], %s4825
        %v4827 = vld [vmem:[%s4826] sm:$0x1]
        %v4828 = vld [vmem:[%s4826 + $0x1] sm:$0x1]
        %v4829 = vld [vmem:[%s4826 + $0x2] sm:$0x1]
        %v4830 = vld [vmem:[%s4826 + $0x5] sm:$0x1]
        %v4831 = vld [vmem:[%s4826 + $0x6] sm:$0x1]
        %v4832 = vld [vmem:[%s4826 + $0x7] sm:$0x1]
        %v4833 = vld [vmem:[%s4826 + $0xa] sm:$0x1]
        %v4834 = vld [vmem:[%s4826 + $0xb] sm:$0x1]
        %v4835 = vld [vmem:[%s4826 + $0xc] sm:$0x1]
        %v4836 = vstv %s4824
        %v4837 = vmul.f32 %v4827, %v4836
        %v4838 = vmul.f32 %v4828, %v4836
        %v4839 = vmul.f32 %v4829, %v4836
        %v4840 = vmul.f32 %v4830, %v4836
        %v4841 = vmul.f32 %v4831, %v4836
        %v4842 = vmul.f32 %v4832, %v4836
        %v4843 = vmul.f32 %v4833, %v4836
        %v4844 = vmul.f32 %v4834, %v4836
        %v4845 = vmul.f32 %v4835, %v4836
        %v4846 = vadd.f32 %v4811, %v4837
        %v4847 = vadd.f32 %v4812, %v4838
        %v4848 = vadd.f32 %v4813, %v4839
        %v4849 = vadd.f32 %v4814, %v4840
        %v4850 = vadd.f32 %v4815, %v4841
        %v4851 = vadd.f32 %v4816, %v4842
        %v4852 = vadd.f32 %v4817, %v4843
        %v4853 = vadd.f32 %v4818, %v4844
        %v4854 = vadd.f32 %v4819, %v4845
        %s4855 = sadd.s32 %s4822, 1477
        %s4856 = sld [smem:[#allocation12 + %s4855]]
        %s4857 = sadd.s32 1, %s4825
        %s4858 = scalar_lea.vmem [#allocation4], %s4857
        %v4859 = vld [vmem:[%s4858] sm:$0x1]
        %v4860 = vld [vmem:[%s4858 + $0x1] sm:$0x1]
        %v4861 = vld [vmem:[%s4858 + $0x2] sm:$0x1]
        %v4862 = vld [vmem:[%s4858 + $0x5] sm:$0x1]
        %v4863 = vld [vmem:[%s4858 + $0x6] sm:$0x1]
        %v4864 = vld [vmem:[%s4858 + $0x7] sm:$0x1]
        %v4865 = vld [vmem:[%s4858 + $0xa] sm:$0x1]
        %v4866 = vld [vmem:[%s4858 + $0xb] sm:$0x1]
        %v4867 = vld [vmem:[%s4858 + $0xc] sm:$0x1]
        %v4868 = vstv %s4856
        %v4869 = vmul.f32 %v4859, %v4868
        %v4870 = vmul.f32 %v4860, %v4868
        %v4871 = vmul.f32 %v4861, %v4868
        %v4872 = vmul.f32 %v4862, %v4868
        %v4873 = vmul.f32 %v4863, %v4868
        %v4874 = vmul.f32 %v4864, %v4868
        %v4875 = vmul.f32 %v4865, %v4868
        %v4876 = vmul.f32 %v4866, %v4868
        %v4877 = vmul.f32 %v4867, %v4868
        %v4878 = vadd.f32 %v4846, %v4869
        %v4879 = vadd.f32 %v4847, %v4870
        %v4880 = vadd.f32 %v4848, %v4871
        %v4881 = vadd.f32 %v4849, %v4872
        %v4882 = vadd.f32 %v4850, %v4873
        %v4883 = vadd.f32 %v4851, %v4874
        %v4884 = vadd.f32 %v4852, %v4875
        %v4885 = vadd.f32 %v4853, %v4876
        %v4886 = vadd.f32 %v4854, %v4877
        %s4887 = sadd.s32 %s4822, 1478
        %s4888 = sld [smem:[#allocation12 + %s4887]]
        %s4889 = sadd.s32 2, %s4825
        %s4890 = scalar_lea.vmem [#allocation4], %s4889
        %v4891 = vld [vmem:[%s4890] sm:$0x1]
        %v4892 = vld [vmem:[%s4890 + $0x1] sm:$0x1]
        %v4893 = vld [vmem:[%s4890 + $0x2] sm:$0x1]
        %v4894 = vld [vmem:[%s4890 + $0x5] sm:$0x1]
        %v4895 = vld [vmem:[%s4890 + $0x6] sm:$0x1]
        %v4896 = vld [vmem:[%s4890 + $0x7] sm:$0x1]
        %v4897 = vld [vmem:[%s4890 + $0xa] sm:$0x1]
        %v4898 = vld [vmem:[%s4890 + $0xb] sm:$0x1]
        %v4899 = vld [vmem:[%s4890 + $0xc] sm:$0x1]
        %v4900 = vstv %s4888
        %v4901 = vmul.f32 %v4891, %v4900
        %v4902 = vmul.f32 %v4892, %v4900
        %v4903 = vmul.f32 %v4893, %v4900
        %v4904 = vmul.f32 %v4894, %v4900
        %v4905 = vmul.f32 %v4895, %v4900
        %v4906 = vmul.f32 %v4896, %v4900
        %v4907 = vmul.f32 %v4897, %v4900
        %v4908 = vmul.f32 %v4898, %v4900
        %v4909 = vmul.f32 %v4899, %v4900
        %v4910 = vadd.f32 %v4878, %v4901
        %v4911 = vadd.f32 %v4879, %v4902
        %v4912 = vadd.f32 %v4880, %v4903
        %v4913 = vadd.f32 %v4881, %v4904
        %v4914 = vadd.f32 %v4882, %v4905
        %v4915 = vadd.f32 %v4883, %v4906
        %v4916 = vadd.f32 %v4884, %v4907
        %v4917 = vadd.f32 %v4885, %v4908
        %v4918 = vadd.f32 %v4886, %v4909
        %s4919 = sadd.s32 %s4822, 1479
        %s4920 = sld [smem:[#allocation12 + %s4919]]
        %s4921 = sadd.s32 5, %s4825
        %s4922 = scalar_lea.vmem [#allocation4], %s4921
        %v4923 = vld [vmem:[%s4922] sm:$0x1]
        %v4924 = vld [vmem:[%s4922 + $0x1] sm:$0x1]
        %v4925 = vld [vmem:[%s4922 + $0x2] sm:$0x1]
        %v4926 = vld [vmem:[%s4922 + $0x5] sm:$0x1]
        %v4927 = vld [vmem:[%s4922 + $0x6] sm:$0x1]
        %v4928 = vld [vmem:[%s4922 + $0x7] sm:$0x1]
        %v4929 = vld [vmem:[%s4922 + $0xa] sm:$0x1]
        %v4930 = vld [vmem:[%s4922 + $0xb] sm:$0x1]
        %v4931 = vld [vmem:[%s4922 + $0xc] sm:$0x1]
        %v4932 = vstv %s4920
        %v4933 = vmul.f32 %v4923, %v4932
        %v4934 = vmul.f32 %v4924, %v4932
        %v4935 = vmul.f32 %v4925, %v4932
        %v4936 = vmul.f32 %v4926, %v4932
        %v4937 = vmul.f32 %v4927, %v4932
        %v4938 = vmul.f32 %v4928, %v4932
        %v4939 = vmul.f32 %v4929, %v4932
        %v4940 = vmul.f32 %v4930, %v4932
        %v4941 = vmul.f32 %v4931, %v4932
        %v4942 = vadd.f32 %v4910, %v4933
        %v4943 = vadd.f32 %v4911, %v4934
        %v4944 = vadd.f32 %v4912, %v4935
        %v4945 = vadd.f32 %v4913, %v4936
        %v4946 = vadd.f32 %v4914, %v4937
        %v4947 = vadd.f32 %v4915, %v4938
        %v4948 = vadd.f32 %v4916, %v4939
        %v4949 = vadd.f32 %v4917, %v4940
        %v4950 = vadd.f32 %v4918, %v4941
        %s4951 = sadd.s32 %s4822, 1480
        %s4952 = sld [smem:[#allocation12 + %s4951]]
        %s4953 = sadd.s32 6, %s4825
        %s4954 = scalar_lea.vmem [#allocation4], %s4953
        %v4955 = vld [vmem:[%s4954] sm:$0x1]
        %v4956 = vld [vmem:[%s4954 + $0x1] sm:$0x1]
        %v4957 = vld [vmem:[%s4954 + $0x2] sm:$0x1]
        %v4958 = vld [vmem:[%s4954 + $0x5] sm:$0x1]
        %v4959 = vld [vmem:[%s4954 + $0x6] sm:$0x1]
        %v4960 = vld [vmem:[%s4954 + $0x7] sm:$0x1]
        %v4961 = vld [vmem:[%s4954 + $0xa] sm:$0x1]
        %v4962 = vld [vmem:[%s4954 + $0xb] sm:$0x1]
        %v4963 = vld [vmem:[%s4954 + $0xc] sm:$0x1]
        %v4964 = vstv %s4952
        %v4965 = vmul.f32 %v4955, %v4964
        %v4966 = vmul.f32 %v4956, %v4964
        %v4967 = vmul.f32 %v4957, %v4964
        %v4968 = vmul.f32 %v4958, %v4964
        %v4969 = vmul.f32 %v4959, %v4964
        %v4970 = vmul.f32 %v4960, %v4964
        %v4971 = vmul.f32 %v4961, %v4964
        %v4972 = vmul.f32 %v4962, %v4964
        %v4973 = vmul.f32 %v4963, %v4964
        %v4974 = vadd.f32 %v4942, %v4965
        %v4975 = vadd.f32 %v4943, %v4966
        %v4976 = vadd.f32 %v4944, %v4967
        %v4977 = vadd.f32 %v4945, %v4968
        %v4978 = vadd.f32 %v4946, %v4969
        %v4979 = vadd.f32 %v4947, %v4970
        %v4980 = vadd.f32 %v4948, %v4971
        %v4981 = vadd.f32 %v4949, %v4972
        %v4982 = vadd.f32 %v4950, %v4973
        %s4983 = sadd.s32 %s4822, 1481
        %s4984 = sld [smem:[#allocation12 + %s4983]]
        %s4985 = sadd.s32 7, %s4825
        %s4986 = scalar_lea.vmem [#allocation4], %s4985
        %v4987 = vld [vmem:[%s4986] sm:$0x1]
        %v4988 = vld [vmem:[%s4986 + $0x1] sm:$0x1]
        %v4989 = vld [vmem:[%s4986 + $0x2] sm:$0x1]
        %v4990 = vld [vmem:[%s4986 + $0x5] sm:$0x1]
        %v4991 = vld [vmem:[%s4986 + $0x6] sm:$0x1]
        %v4992 = vld [vmem:[%s4986 + $0x7] sm:$0x1]
        %v4993 = vld [vmem:[%s4986 + $0xa] sm:$0x1]
        %v4994 = vld [vmem:[%s4986 + $0xb] sm:$0x1]
        %v4995 = vld [vmem:[%s4986 + $0xc] sm:$0x1]
        %v4996 = vstv %s4984
        %v4997 = vmul.f32 %v4987, %v4996
        %v4998 = vmul.f32 %v4988, %v4996
        %v4999 = vmul.f32 %v4989, %v4996
        %v5000 = vmul.f32 %v4990, %v4996
        %v5001 = vmul.f32 %v4991, %v4996
        %v5002 = vmul.f32 %v4992, %v4996
        %v5003 = vmul.f32 %v4993, %v4996
        %v5004 = vmul.f32 %v4994, %v4996
        %v5005 = vmul.f32 %v4995, %v4996
        %v5006 = vadd.f32 %v4974, %v4997
        %v5007 = vadd.f32 %v4975, %v4998
        %v5008 = vadd.f32 %v4976, %v4999
        %v5009 = vadd.f32 %v4977, %v5000
        %v5010 = vadd.f32 %v4978, %v5001
        %v5011 = vadd.f32 %v4979, %v5002
        %v5012 = vadd.f32 %v4980, %v5003
        %v5013 = vadd.f32 %v4981, %v5004
        %v5014 = vadd.f32 %v4982, %v5005
        %s5015 = sadd.s32 %s4822, 1482
        %s5016 = sld [smem:[#allocation12 + %s5015]]
        %s5017 = sadd.s32 10, %s4825
        %s5018 = scalar_lea.vmem [#allocation4], %s5017
        %v5019 = vld [vmem:[%s5018] sm:$0x1]
        %v5020 = vld [vmem:[%s5018 + $0x1] sm:$0x1]
        %v5021 = vld [vmem:[%s5018 + $0x2] sm:$0x1]
        %v5022 = vld [vmem:[%s5018 + $0x5] sm:$0x1]
        %v5023 = vld [vmem:[%s5018 + $0x6] sm:$0x1]
        %v5024 = vld [vmem:[%s5018 + $0x7] sm:$0x1]
        %v5025 = vld [vmem:[%s5018 + $0xa] sm:$0x1]
        %v5026 = vld [vmem:[%s5018 + $0xb] sm:$0x1]
        %v5027 = vld [vmem:[%s5018 + $0xc] sm:$0x1]
        %v5028 = vstv %s5016
        %v5029 = vmul.f32 %v5019, %v5028
        %v5030 = vmul.f32 %v5020, %v5028
        %v5031 = vmul.f32 %v5021, %v5028
        %v5032 = vmul.f32 %v5022, %v5028
        %v5033 = vmul.f32 %v5023, %v5028
        %v5034 = vmul.f32 %v5024, %v5028
        %v5035 = vmul.f32 %v5025, %v5028
        %v5036 = vmul.f32 %v5026, %v5028
        %v5037 = vmul.f32 %v5027, %v5028
        %v5038 = vadd.f32 %v5006, %v5029
        %v5039 = vadd.f32 %v5007, %v5030
        %v5040 = vadd.f32 %v5008, %v5031
        %v5041 = vadd.f32 %v5009, %v5032
        %v5042 = vadd.f32 %v5010, %v5033
        %v5043 = vadd.f32 %v5011, %v5034
        %v5044 = vadd.f32 %v5012, %v5035
        %v5045 = vadd.f32 %v5013, %v5036
        %v5046 = vadd.f32 %v5014, %v5037
        %s5047 = sadd.s32 %s4822, 1483
        %s5048 = sld [smem:[#allocation12 + %s5047]]
        %s5049 = sadd.s32 11, %s4825
        %s5050 = scalar_lea.vmem [#allocation4], %s5049
        %v5051 = vld [vmem:[%s5050] sm:$0x1]
        %v5052 = vld [vmem:[%s5050 + $0x1] sm:$0x1]
        %v5053 = vld [vmem:[%s5050 + $0x2] sm:$0x1]
        %v5054 = vld [vmem:[%s5050 + $0x5] sm:$0x1]
        %v5055 = vld [vmem:[%s5050 + $0x6] sm:$0x1]
        %v5056 = vld [vmem:[%s5050 + $0x7] sm:$0x1]
        %v5057 = vld [vmem:[%s5050 + $0xa] sm:$0x1]
        %v5058 = vld [vmem:[%s5050 + $0xb] sm:$0x1]
        %v5059 = vld [vmem:[%s5050 + $0xc] sm:$0x1]
        %v5060 = vstv %s5048
        %v5061 = vmul.f32 %v5051, %v5060
        %v5062 = vmul.f32 %v5052, %v5060
        %v5063 = vmul.f32 %v5053, %v5060
        %v5064 = vmul.f32 %v5054, %v5060
        %v5065 = vmul.f32 %v5055, %v5060
        %v5066 = vmul.f32 %v5056, %v5060
        %v5067 = vmul.f32 %v5057, %v5060
        %v5068 = vmul.f32 %v5058, %v5060
        %v5069 = vmul.f32 %v5059, %v5060
        %v5070 = vadd.f32 %v5038, %v5061
        %v5071 = vadd.f32 %v5039, %v5062
        %v5072 = vadd.f32 %v5040, %v5063
        %v5073 = vadd.f32 %v5041, %v5064
        %v5074 = vadd.f32 %v5042, %v5065
        %v5075 = vadd.f32 %v5043, %v5066
        %v5076 = vadd.f32 %v5044, %v5067
        %v5077 = vadd.f32 %v5045, %v5068
        %v5078 = vadd.f32 %v5046, %v5069
        %s5079 = sadd.s32 %s4822, 1484
        %s5080 = sld [smem:[#allocation12 + %s5079]]
        %s5081 = sadd.s32 12, %s4825
        %s5082 = scalar_lea.vmem [#allocation4], %s5081
        %v5083 = vld [vmem:[%s5082] sm:$0x1]
        %v5084 = vld [vmem:[%s5082 + $0x1] sm:$0x1]
        %v5085 = vld [vmem:[%s5082 + $0x2] sm:$0x1]
        %v5086 = vld [vmem:[%s5082 + $0x5] sm:$0x1]
        %v5087 = vld [vmem:[%s5082 + $0x6] sm:$0x1]
        %v5088 = vld [vmem:[%s5082 + $0x7] sm:$0x1]
        %v5089 = vld [vmem:[%s5082 + $0xa] sm:$0x1]
        %v5090 = vld [vmem:[%s5082 + $0xb] sm:$0x1]
        %v5091 = vld [vmem:[%s5082 + $0xc] sm:$0x1]
        %v5092 = vstv %s5080
        %v5093 = vmul.f32 %v5083, %v5092
        %v5094 = vmul.f32 %v5084, %v5092
        %v5095 = vmul.f32 %v5085, %v5092
        %v5096 = vmul.f32 %v5086, %v5092
        %v5097 = vmul.f32 %v5087, %v5092
        %v5098 = vmul.f32 %v5088, %v5092
        %v5099 = vmul.f32 %v5089, %v5092
        %v5100 = vmul.f32 %v5090, %v5092
        %v5101 = vmul.f32 %v5091, %v5092
        %v5102 = vadd.f32 %v5070, %v5093
        %v5103 = vadd.f32 %v5071, %v5094
        %v5104 = vadd.f32 %v5072, %v5095
        %v5105 = vadd.f32 %v5073, %v5096
        %v5106 = vadd.f32 %v5074, %v5097
        %v5107 = vadd.f32 %v5075, %v5098
        %v5108 = vadd.f32 %v5076, %v5099
        %v5109 = vadd.f32 %v5077, %v5100
        %v5110 = vadd.f32 %v5078, %v5101
      $region72: #{tpu_custom_call.1} parent=64 // loop_footer
        %s4810 = sadd.s32 1, %s4806
      $region73: #{tpu_custom_call.1} parent=64 // loop_footer_branch
        %4805 = sbr.rel target = $region69
      $region74: #{tpu_custom_call.1} parent=64 // loop_exit
        _
      %v5111 = vmax.f32 %v4811, 0.0
      %v5112 = vmax.f32 %v4812, 0.0
      %v5113 = vmax.f32 %v4813, 0.0
      %v5114 = vmax.f32 %v4814, 0.0
      %v5115 = vmax.f32 %v4815, 0.0
      %v5116 = vmax.f32 %v4816, 0.0
      %v5117 = vmax.f32 %v4817, 0.0
      %v5118 = vmax.f32 %v4818, 0.0
      %v5119 = vmax.f32 %v4819, 0.0
      %s5120 = smul.u32 %s4797, 9
      %s5121 = scalar_lea.vmem [#allocation5], %s5120
      %5122 = vst [vmem:[%s5121] sm:$0x1] %v5111
      %5123 = vst [vmem:[%s5121 + $0x1] sm:$0x1] %v5112
      %5124 = vst [vmem:[%s5121 + $0x2] sm:$0x1] %v5113
      %5125 = vst [vmem:[%s5121 + $0x3] sm:$0x1] %v5114
      %5126 = vst [vmem:[%s5121 + $0x4] sm:$0x1] %v5115
      %5127 = vst [vmem:[%s5121 + $0x5] sm:$0x1] %v5116
      %5128 = vst [vmem:[%s5121 + $0x6] sm:$0x1] %v5117
      %5129 = vst [vmem:[%s5121 + $0x7] sm:$0x1] %v5118
      %5130 = vst [vmem:[%s5121 + $0x8] sm:$0x1] %v5119
    $region65: #{tpu_custom_call.1} parent=1 // loop_footer
      %s4801 = sadd.s32 1, %s4797
    $region66: #{tpu_custom_call.1} parent=1 // loop_footer_branch
      %4796 = sbr.rel target = $region62
    $region67: #{tpu_custom_call.1} parent=1 // loop_exit
      _
    loop: start=0, step=1, limit=4
    $region75: #{tpu_custom_call.1} parent=1 // loop_pre_header
      _
    $region76: #{tpu_custom_call.1} parent=1 // loop_header
      %s5132 = sphi 0, %s5136
      %p5133 = scmp.ge.s32.totalorder %s5132, 4
    $region77: #{tpu_custom_call.1} parent=1 // loop_header_branch
      %5135 = sbr.rel (%p5133) target = $region81
    $region78: #{tpu_custom_call.1} parent=1 // loop_body
      %s5137 = sadd.s32 %s5132, 36
      %s5138 = sld [smem:[#allocation13 + %s5137]]
      %v5139 = vstv %s5138
      loop: start=0, step=1, limit=8
      $region82: #{tpu_custom_call.1} parent=78 // loop_pre_header
        _
      $region83: #{tpu_custom_call.1} parent=78 // loop_header
        %s5141 = sphi 0, %s5145
        %p5142 = scmp.ge.s32.totalorder %s5141, 8
        %v5146 = vphi %v5139, %v5221
      $region84: #{tpu_custom_call.1} parent=78 // loop_header_branch
        %5144 = sbr.rel (%p5142) target = $region88
      $region85: #{tpu_custom_call.1} parent=78 // loop_body
        %s5147 = smul.u32 %s5132, 8
        %s5148 = sadd.s32 %s5147, %s5141
        %s5149 = smul.u32 %s5148, 9
        %s5150 = sadd.s32 %s5149, 2628
        %s5151 = sld [smem:[#allocation12 + %s5150]]
        %s5152 = smul.u32 %s5141, 9
        %s5153 = scalar_lea.vmem [#allocation5], %s5152
        %v5154 = vld [vmem:[%s5153] sm:$0x1]
        %v5155 = vstv %s5151
        %v5156 = vmul.f32 %v5154, %v5155
        %v5157 = vadd.f32 %v5146, %v5156
        %s5158 = sadd.s32 %s5149, 2629
        %s5159 = sld [smem:[#allocation12 + %s5158]]
        %s5160 = sadd.s32 1, %s5152
        %s5161 = scalar_lea.vmem [#allocation5], %s5160
        %v5162 = vld [vmem:[%s5161] sm:$0x1]
        %v5163 = vstv %s5159
        %v5164 = vmul.f32 %v5162, %v5163
        %v5165 = vadd.f32 %v5157, %v5164
        %s5166 = sadd.s32 %s5149, 2630
        %s5167 = sld [smem:[#allocation12 + %s5166]]
        %s5168 = sadd.s32 2, %s5152
        %s5169 = scalar_lea.vmem [#allocation5], %s5168
        %v5170 = vld [vmem:[%s5169] sm:$0x1]
        %v5171 = vstv %s5167
        %v5172 = vmul.f32 %v5170, %v5171
        %v5173 = vadd.f32 %v5165, %v5172
        %s5174 = sadd.s32 %s5149, 2631
        %s5175 = sld [smem:[#allocation12 + %s5174]]
        %s5176 = sadd.s32 3, %s5152
        %s5177 = scalar_lea.vmem [#allocation5], %s5176
        %v5178 = vld [vmem:[%s5177] sm:$0x1]
        %v5179 = vstv %s5175
        %v5180 = vmul.f32 %v5178, %v5179
        %v5181 = vadd.f32 %v5173, %v5180
        %s5182 = sadd.s32 %s5149, 2632
        %s5183 = sld [smem:[#allocation12 + %s5182]]
        %s5184 = sadd.s32 4, %s5152
        %s5185 = scalar_lea.vmem [#allocation5], %s5184
        %v5186 = vld [vmem:[%s5185] sm:$0x1]
        %v5187 = vstv %s5183
        %v5188 = vmul.f32 %v5186, %v5187
        %v5189 = vadd.f32 %v5181, %v5188
        %s5190 = sadd.s32 %s5149, 2633
        %s5191 = sld [smem:[#allocation12 + %s5190]]
        %s5192 = sadd.s32 5, %s5152
        %s5193 = scalar_lea.vmem [#allocation5], %s5192
        %v5194 = vld [vmem:[%s5193] sm:$0x1]
        %v5195 = vstv %s5191
        %v5196 = vmul.f32 %v5194, %v5195
        %v5197 = vadd.f32 %v5189, %v5196
        %s5198 = sadd.s32 %s5149, 2634
        %s5199 = sld [smem:[#allocation12 + %s5198]]
        %s5200 = sadd.s32 6, %s5152
        %s5201 = scalar_lea.vmem [#allocation5], %s5200
        %v5202 = vld [vmem:[%s5201] sm:$0x1]
        %v5203 = vstv %s5199
        %v5204 = vmul.f32 %v5202, %v5203
        %v5205 = vadd.f32 %v5197, %v5204
        %s5206 = sadd.s32 %s5149, 2635
        %s5207 = sld [smem:[#allocation12 + %s5206]]
        %s5208 = sadd.s32 7, %s5152
        %s5209 = scalar_lea.vmem [#allocation5], %s5208
        %v5210 = vld [vmem:[%s5209] sm:$0x1]
        %v5211 = vstv %s5207
        %v5212 = vmul.f32 %v5210, %v5211
        %v5213 = vadd.f32 %v5205, %v5212
        %s5214 = sadd.s32 %s5149, 2636
        %s5215 = sld [smem:[#allocation12 + %s5214]]
        %s5216 = sadd.s32 8, %s5152
        %s5217 = scalar_lea.vmem [#allocation5], %s5216
        %v5218 = vld [vmem:[%s5217] sm:$0x1]
        %v5219 = vstv %s5215
        %v5220 = vmul.f32 %v5218, %v5219
        %v5221 = vadd.f32 %v5213, %v5220
      $region86: #{tpu_custom_call.1} parent=78 // loop_footer
        %s5145 = sadd.s32 1, %s5141
      $region87: #{tpu_custom_call.1} parent=78 // loop_footer_branch
        %5140 = sbr.rel target = $region83
      $region88: #{tpu_custom_call.1} parent=78 // loop_exit
        _
      %v5222 = vmax.f32 %v5146, 0.0
      %s5223 = scalar_lea.vmem [#allocation6], %s5132
      %5224 = vst [vmem:[%s5223] sm:$0x1] %v5222
    $region79: #{tpu_custom_call.1} parent=1 // loop_footer
      %s5136 = sadd.s32 1, %s5132
    $region80: #{tpu_custom_call.1} parent=1 // loop_footer_branch
      %5131 = sbr.rel target = $region76
    $region81: #{tpu_custom_call.1} parent=1 // loop_exit
      _
    %s5225 = sld [smem:[#allocation13 + $0x28]]
    %v5226 = vstv %s5225
    %v5227 = vld [vmem:[#allocation6] sm:$0x1]
    %s5228 = sld [smem:[#allocation12 + $0xb64]]
    %v5229 = vstv %s5228
    %v5230 = vmul.f32 %v5227, %v5229
    %v5231 = vadd.f32 %v5226, %v5230
    %s5232 = scalar_lea.vmem [#allocation6], 1
    %v5233 = vld [vmem:[%s5232] sm:$0x1]
    %s5234 = sld [smem:[#allocation12 + $0xb65]]
    %v5235 = vstv %s5234
    %v5236 = vmul.f32 %v5233, %v5235
    %v5237 = vadd.f32 %v5231, %v5236
    %s5238 = scalar_lea.vmem [#allocation6], 2
    %v5239 = vld [vmem:[%s5238] sm:$0x1]
    %s5240 = sld [smem:[#allocation12 + $0xb66]]
    %v5241 = vstv %s5240
    %v5242 = vmul.f32 %v5239, %v5241
    %v5243 = vadd.f32 %v5237, %v5242
    %s5244 = scalar_lea.vmem [#allocation6], 3
    %v5245 = vld [vmem:[%s5244] sm:$0x1]
    %s5246 = sld [smem:[#allocation12 + $0xb67]]
    %v5247 = vstv %s5246
    %v5248 = vmul.f32 %v5245, %v5247
    %v5249 = vadd.f32 %v5243, %v5248
    %v5250 = vxor.u32 %v5249, 2147483648
    %v5251 = vmul.f32 %v5250, 1.442695
    %v5252 = vpow.pop %v5251
    %v5253 = vadd.f32 %v5252, 1.0
    %v5254 = vrcp.pop %v5253
    %v5255 = vmul.f32 1.0, %v5254
    %5256 = vst [vmem:[#allocation14] sm:$0x1] %v5255
    // Predicated region
    $region89: #{tpu_custom_call.1} parent=1 // pred_check
      _
    $region90: #{tpu_custom_call.1} parent=1 // pred_check_branch
      %5258 = sbr.rel (0) target = $region92
    $region91: #{tpu_custom_call.1} parent=1 // pred_region
      %s5260 = ssub.s32 16, 16
      %5261 = vsyncadd [#allocation9], %s5260
      %s5263 = sshll.u32 [#allocation14], 4
      %s5264 = int_to_ptr.vmem [resolvable:$true] %s5263
      %5266 = dma.vmem_to_hbm [thread:$0]  %s5264, 16, %s3, [#allocation9]
    $region92: #{tpu_custom_call.1} parent=1 // pred_fallthru
      _
    // Predicated region
    $region93: #{tpu_custom_call.1} parent=1 // pred_check
      _
    $region94: #{tpu_custom_call.1} parent=1 // pred_check_branch
      %5268 = sbr.rel (0) target = $region96
    $region95: #{tpu_custom_call.1} parent=1 // pred_region
      %5269 = dma.done [#allocation9], 16
    $region96: #{tpu_custom_call.1} parent=1 // pred_fallthru
      _
    %5270 = vsyncpa [#allocation8], 1
    %5271 = vsyncpa [#allocation9], 1
    %5272 = vsyncpa [#allocation10], 1
    %5273 = vsyncpa [#allocation11], 1

</llo_original>
